<compile_context>
chip_gen: v7x
topology: tpu7x:2x2x1
jax: 0.10.0
libtpu: 0.0.40
codegen_flags: <defaults>
</compile_context>

<pallas_src>
import functools

import jax
import jax.numpy as jnp
import numpy as np
from jax.experimental import pallas as pl
from jax.experimental.pallas import tpu as pltpu

EPS = 1e-5  # PyTorch LayerNorm default eps


def _layernorm(x, gamma, beta):
    mu = jnp.mean(x, axis=-1, keepdims=True)
    var = jnp.mean(jnp.square(x - mu), axis=-1, keepdims=True)
    return (x - mu) * jax.lax.rsqrt(var + EPS) * gamma + beta


# ----------------------------------------------------------------------------
# Single fused kernel: embed -> GRU -> loc_delta head
# Row layout for all per-(time, batch) tensors is time-major: row = t * B + b.
# ----------------------------------------------------------------------------
def fused_refinement_kernel(
    # activations
    xy_ref,        # [S*B, 2]  f32   past trajectory, rows (s*B + b)
    so1_ref,       # [H*B, D]  f32   stage-one features, rows (h*B + b)
    ge_ref,        # [H*B, D]  f32   global embed, rows (h*B + b)
    le_ref,        # [B, D]    f32   local embed
    # MLP (2 -> D)
    ew1_ref, eb1_ref, eg1_ref, ebe1_ref,
    # MLP_2 (D -> D)
    ew2_ref, eb2_ref, eg2_ref, ebe2_ref,
    # GRU, per-gate (r, z, n) blocks
    wih_ref,       # [3, D, D] bf16
    bih_ref,       # [3, 1, D] f32
    whh_ref,       # [3, D, D] f32   (recurrent path kept f32)
    bhh_ref,       # [3, 1, D] f32
    # loc_delta head: Linear(4D, D) split into 4 [D, D] row blocks
    hw1_ref,       # [4, D, D] bf16  order: (stage_one, stage_two, global, local)
    hb1_ref, hg1_ref, hbe1_ref,
    hw2_ref,       # [D, D]    bf16
    hb2_ref, hg2_ref, hbe2_ref,
    hw3_ref,       # [D, 2]    f32
    hb3_ref,       # [1, 2]    f32
    # output
    out_ref,       # [H*B, 2]  f32, rows (h*B + b)
    # VMEM scratch
    gi_r_scr, gi_z_scr, gi_n_scr,   # [S*B, D] f32  hoisted input gates
    st2_scr,                        # [S*B, D] f32  GRU hidden states per step
):
    B, D = le_ref.shape
    SB = xy_ref.shape[0]
    HB = so1_ref.shape[0]
    S = SB // B
    H = HB // B
    T = S - H
    bf16 = jnp.bfloat16

    # ---- trajectory embedding: MLP(2->D) as a VPU outer product (K=2), then
    #      MLP_2(D->D) with residual.  Everything stays resident on-chip.
    xy = xy_ref[...]
    w1 = ew1_ref[...]
    h1 = xy[:, 0:1] * w1[0:1, :] + xy[:, 1:2] * w1[1:2, :] + eb1_ref[...]
    h1 = jnp.maximum(_layernorm(h1, eg1_ref[...], ebe1_ref[...]), 0.0)
    h2 = jnp.dot(h1.astype(bf16), ew2_ref[...],
                 preferred_element_type=jnp.float32) + eb2_ref[...]
    emb = jnp.maximum(_layernorm(h2, eg2_ref[...], ebe2_ref[...]), 0.0) + h1
    emb_bf = emb.astype(bf16)

    # ---- GRU input-to-hidden gates hoisted out of the recurrence:
    #      one [S*B, D] matmul per gate instead of S tiny ones.
    gi_r_scr[...] = jnp.dot(emb_bf, wih_ref[0],
                            preferred_element_type=jnp.float32) + bih_ref[0]
    gi_z_scr[...] = jnp.dot(emb_bf, wih_ref[1],
                            preferred_element_type=jnp.float32) + bih_ref[1]
    gi_n_scr[...] = jnp.dot(emb_bf, wih_ref[2],
                            preferred_element_type=jnp.float32) + bih_ref[2]

    # ---- GRU recurrence (PyTorch gate order r, z, n).  Only h @ W_hh is on the
    #      serial chain; hidden state and gate math stay in f32.
    whh_r, whh_z, whh_n = whh_ref[0], whh_ref[1], whh_ref[2]
    bhh_r, bhh_z, bhh_n = bhh_ref[0], bhh_ref[1], bhh_ref[2]

    def gru_step(t, h):
        row = t * B                       # B-row (sublane-aligned) block per step
        gr = gi_r_scr[pl.ds(row, B), :]
        gz = gi_z_scr[pl.ds(row, B), :]
        gn = gi_n_scr[pl.ds(row, B), :]
        hr = jnp.dot(h, whh_r, preferred_element_type=jnp.float32) + bhh_r
        hz = jnp.dot(h, whh_z, preferred_element_type=jnp.float32) + bhh_z
        hn = jnp.dot(h, whh_n, preferred_element_type=jnp.float32) + bhh_n
        r = jax.nn.sigmoid(gr + hr)
        z = jax.nn.sigmoid(gz + hz)
        n = jnp.tanh(gn + r * hn)
        h_new = (1.0 - z) * n + z * h
        st2_scr[pl.ds(row, B), :] = h_new
        return h_new

    _ = jax.lax.fori_loop(0, S, gru_step, jnp.zeros((B, D), jnp.float32),
                          unroll=True)

    # ---- loc_delta head.  Linear(4D, D) evaluated as four [D, D] matmuls on
    #      the un-concatenated inputs (no [*, 4D] tensor is ever built).
    st2 = st2_scr[pl.ds(T * B, H * B), :]             # last H timesteps (static slice)
    pre = (jnp.dot(so1_ref[...].astype(bf16), hw1_ref[0],
                   preferred_element_type=jnp.float32)
           + jnp.dot(st2.astype(bf16), hw1_ref[1],
                     preferred_element_type=jnp.float32)
           + jnp.dot(ge_ref[...].astype(bf16), hw1_ref[2],
                     preferred_element_type=jnp.float32)
           + hb1_ref[...])
    lc = jnp.dot(le_ref[...].astype(bf16), hw1_ref[3],
                 preferred_element_type=jnp.float32)  # [B, D]
    pre = pre + jnp.concatenate([lc] * H, axis=0)     # broadcast local embed over H
    g1 = jnp.maximum(_layernorm(pre, hg1_ref[...], hbe1_ref[...]), 0.0)
    g2 = jnp.dot(g1.astype(bf16), hw2_ref[...],
                 preferred_element_type=jnp.float32) + hb2_ref[...]
    g2 = jnp.maximum(_layernorm(g2, hg2_ref[...], hbe2_ref[...]), 0.0)
    out = jnp.dot(g2, hw3_ref[...],
                  preferred_element_type=jnp.float32) + hb3_ref[...]
    out_ref[...] = out.astype(out_ref.dtype)


# ----------------------------------------------------------------------------
# Wrapper: one pallas_call; only tiny layout reshapes/permutes stay in XLA.
# ----------------------------------------------------------------------------
def trajectory_refinement_forward(kparams, stage_one_out, full_traj,
                                  global_embed, local_embed,
                                  *, future_frame_num, num_modes, hidden_size):
    F, N, S, _ = full_traj.shape
    H, D = future_frame_num, hidden_size
    B = F * N

    # Time-major row order (t*B + b) for the sequence tensors (a few KiB each).
    xy_sm = jnp.transpose(full_traj.reshape(B, S, 2), (1, 0, 2)).reshape(S * B, 2)
    so1_hm = jnp.transpose(stage_one_out, (1, 0, 2)).reshape(H * B, D)
    ge_hm = global_embed.reshape(H * B, D)       # already [H, B, D] -> free
    le = local_embed[0]                          # [B, D]

    args = (xy_sm, so1_hm, ge_hm, le,
            kparams["emb_w1"], kparams["emb_b1"], kparams["emb_g1"], kparams["emb_be1"],
            kparams["emb_w2"], kparams["emb_b2"], kparams["emb_g2"], kparams["emb_be2"],
            kparams["gru_wih"], kparams["gru_bih"],
            kparams["gru_whh"], kparams["gru_bhh"],
            kparams["hd_w1"], kparams["hd_b1"], kparams["hd_g1"], kparams["hd_be1"],
            kparams["hd_w2"], kparams["hd_b2"], kparams["hd_g2"], kparams["hd_be2"],
            kparams["hd_w3"], kparams["hd_b3"])

    def full_spec(a):
        nd = a.ndim
        return pl.BlockSpec(a.shape, lambda i, _nd=nd: (0,) * _nd)

    out = pl.pallas_call(
        fused_refinement_kernel,
        out_shape=jax.ShapeDtypeStruct((H * B, 2), jnp.float32),
        grid=(1,),
        in_specs=[full_spec(a) for a in args],
        out_specs=pl.BlockSpec((H * B, 2), lambda i: (0, 0)),
        scratch_shapes=[pltpu.VMEM((S * B, D), jnp.float32) for _ in range(4)],
        compiler_params=pltpu.CompilerParams(
            dimension_semantics=("arbitrary",),
            vmem_limit_bytes=32 * 1024 * 1024),   # safe on v5e/v6e/v7x
    )(*args)

    # [H*B, 2] (time-major) -> [B, H, 2] -> [F, N, H, 2]
    loc_delta = jnp.transpose(out.reshape(H, B, 2), (1, 0, 2))
    loc_delta = loc_delta.reshape(num_modes, -1, H, 2)
    return loc_delta, None


# ----------------------------------------------------------------------------
# Parameters: PyTorch-style init, plus a kernel-layout preparation step
# (per-gate GRU blocks, split head W1, bf16 MXU operands).  Done ONCE.
# ----------------------------------------------------------------------------
def init_params(key, D):
    def linear(k, fan_in, fan_out):
        k1, k2 = jax.random.split(k)
        bound = 1.0 / np.sqrt(fan_in)
        w = jax.random.uniform(k1, (fan_in, fan_out), jnp.float32, -bound, bound)
        b = jax.random.uniform(k2, (1, fan_out), jnp.float32, -bound, bound)
        return w, b

    ks = jax.random.split(key, 8)
    p = {}
    p["emb_w1"], p["emb_b1"] = linear(ks[0], 2, D)
    p["emb_g1"], p["emb_be1"] = jnp.ones((1, D)), jnp.zeros((1, D))
    p["emb_w2"], p["emb_b2"] = linear(ks[1], D, D)
    p["emb_g2"], p["emb_be2"] = jnp.ones((1, D)), jnp.zeros((1, D))

    # GRU: weights stored transposed, gate order (r|z|n) as in PyTorch
    p["gru_wih"], p["gru_bih"] = linear(ks[2], D, 3 * D)
    p["gru_whh"], p["gru_bhh"] = linear(ks[3], D, 3 * D)

    p["hd_w1"], p["hd_b1"] = linear(ks[4], 4 * D, D)
    p["hd_g1"], p["hd_be1"] = jnp.ones((1, D)), jnp.zeros((1, D))
    p["hd_w2"], p["hd_b2"] = linear(ks[5], D, D)
    p["hd_g2"], p["hd_be2"] = jnp.ones((1, D)), jnp.zeros((1, D))
    p["hd_w3"], p["hd_b3"] = linear(ks[6], D, 2)
    return p


def prepare_kernel_params(p, D):
    """Convert PyTorch-layout params to the kernel layout (done once)."""
    bf16 = jnp.bfloat16

    def split3(w):  # split (r|z|n) gate blocks along the last axis -> [3, ...]
        return jnp.stack([w[:, g * D:(g + 1) * D] for g in range(3)], axis=0)

    kp = dict(p)
    kp["emb_w2"] = p["emb_w2"].astype(bf16)
    kp["gru_wih"] = split3(p["gru_wih"]).astype(bf16)   # [3, D, D] bf16
    kp["gru_whh"] = split3(p["gru_whh"])                # [3, D, D] f32 (recurrent)
    kp["gru_bih"] = split3(p["gru_bih"])                # [3, 1, D]
    kp["gru_bhh"] = split3(p["gru_bhh"])                # [3, 1, D]
    kp["hd_w1"] = jnp.stack(
        [p["hd_w1"][k * D:(k + 1) * D, :] for k in range(4)], axis=0).astype(bf16)
    kp["hd_w2"] = p["hd_w2"].astype(bf16)
    return kp


# ----------------------------------------------------------------------------
# Pure-JAX f32 reference (mirrors the PyTorch forward exactly)
# ----------------------------------------------------------------------------
def reference_forward(p, stage_one_out, full_traj, global_embed, local_embed,
                      *, future_frame_num, num_modes, hidden_size):
    HI = jax.lax.Precision.HIGHEST
    F, N, S, _ = full_traj.shape
    H, D, B = future_frame_num, hidden_size, F * N

    x = full_traj.reshape(-1, 2)
    h1 = jnp.maximum(_layernorm(jnp.dot(x, p["emb_w1"], precision=HI) + p["emb_b1"],
                                p["emb_g1"], p["emb_be1"]), 0.0)
    h2 = jnp.maximum(_layernorm(jnp.dot(h1, p["emb_w2"], precision=HI) + p["emb_b2"],
                                p["emb_g2"], p["emb_be2"]), 0.0) + h1
    emb = h2.reshape(B, S, D)
    x_seq = jnp.transpose(emb, (1, 0, 2))

    def step(h, xt):
        gi = jnp.dot(xt, p["gru_wih"], precision=HI) + p["gru_bih"]
        gh = jnp.dot(h, p["gru_whh"], precision=HI) + p["gru_bhh"]
        r = jax.nn.sigmoid(gi[:, :D] + gh[:, :D])
        z = jax.nn.sigmoid(gi[:, D:2 * D] + gh[:, D:2 * D])
        n = jnp.tanh(gi[:, 2 * D:] + r * gh[:, 2 * D:])
        h_new = (1.0 - z) * n + z * h
        return h_new, h_new

    _, seq = jax.lax.scan(step, jnp.zeros((B, D), jnp.float32), x_seq)
    stage_two = jnp.transpose(seq, (1, 0, 2))
    stage_two_pred = stage_two[:, S - H:, :]
    ge = jnp.transpose(global_embed, (1, 0, 2))
    le = jnp.broadcast_to(local_embed[0][:, None, :], (B, H, D))
    cat = jnp.concatenate([stage_one_out, stage_two_pred, ge, le], axis=-1)
    c = cat.reshape(B * H, 4 * D)
    c = jnp.maximum(_layernorm(jnp.dot(c, p["hd_w1"], precision=HI) + p["hd_b1"],
                               p["hd_g1"], p["hd_be1"]), 0.0)
    c = jnp.maximum(_layernorm(jnp.dot(c, p["hd_w2"], precision=HI) + p["hd_b2"],
                               p["hd_g2"], p["hd_be2"]), 0.0)
    out = jnp.dot(c, p["hd_w3"], precision=HI) + p["hd_b3"]
    return out.reshape(num_modes, -1, H, 2), None


# ----------------------------------------------------------------------------
if __name__ == "__main__":
    # small, self-consistent shapes
    F = 2          # mode_num
    N = 4          # number of agents
    H = 8          # future_frame_num
    T = 8          # past frames
    S = H + T      # sequence length (H+T)
    D = 32         # hidden_size

    key = jax.random.PRNGKey(0)
    kp_, k1, k2, k3, k4 = jax.random.split(key, 5)
    params = init_params(kp_, D)
    kparams = prepare_kernel_params(params, D)

    stage_one_out = jax.random.normal(k1, (F * N, H, D), jnp.float32)
    full_traj = jax.random.normal(k2, (F, N, S, 2), jnp.float32)
    global_embed = jax.random.normal(k3, (H, F * N, D), jnp.float32)
    local_embed = jax.random.normal(k4, (1, F * N, D), jnp.float32)

    fwd = functools.partial(trajectory_refinement_forward,
                            future_frame_num=H, num_modes=F, hidden_size=D)
    loc_delta, pi = jax.jit(fwd)(kparams, stage_one_out, full_traj,
                                 global_embed, local_embed)
    loc_delta = jax.block_until_ready(loc_delta)

    ref, _ = reference_forward(params, stage_one_out, full_traj,
                               global_embed, local_embed,
                               future_frame_num=H, num_modes=F, hidden_size=D)
    assert loc_delta.shape == (F, N, H, 2)
    assert pi is None
    # bf16 MXU operands with f32 accumulation -> slightly looser tolerance
    np.testing.assert_allclose(np.asarray(loc_delta), np.asarray(ref),
                               rtol=2e-2, atol=2e-2)
    print("KERNEL_OK")
</pallas_src>

<mosaic_0001>
module attributes {stable_mosaic.version = 11 : i64} {
  func.func @fused_refinement_kernel(%arg0: i32, %arg1: memref<128x2xf32, #tpu.memory_space<vmem>>, %arg2: memref<64x32xf32, #tpu.memory_space<vmem>>, %arg3: memref<64x32xf32, #tpu.memory_space<vmem>>, %arg4: memref<8x32xf32, #tpu.memory_space<vmem>>, %arg5: memref<2x32xf32, #tpu.memory_space<vmem>>, %arg6: memref<1x32xf32, #tpu.memory_space<vmem>>, %arg7: memref<1x32xf32, #tpu.memory_space<vmem>>, %arg8: memref<1x32xf32, #tpu.memory_space<vmem>>, %arg9: memref<32x32xbf16, #tpu.memory_space<vmem>>, %arg10: memref<1x32xf32, #tpu.memory_space<vmem>>, %arg11: memref<1x32xf32, #tpu.memory_space<vmem>>, %arg12: memref<1x32xf32, #tpu.memory_space<vmem>>, %arg13: memref<3x32x32xbf16, #tpu.memory_space<vmem>>, %arg14: memref<3x1x32xf32, #tpu.memory_space<vmem>>, %arg15: memref<3x32x32xf32, #tpu.memory_space<vmem>>, %arg16: memref<3x1x32xf32, #tpu.memory_space<vmem>>, %arg17: memref<4x32x32xbf16, #tpu.memory_space<vmem>>, %arg18: memref<1x32xf32, #tpu.memory_space<vmem>>, %arg19: memref<1x32xf32, #tpu.memory_space<vmem>>, %arg20: memref<1x32xf32, #tpu.memory_space<vmem>>, %arg21: memref<32x32xbf16, #tpu.memory_space<vmem>>, %arg22: memref<1x32xf32, #tpu.memory_space<vmem>>, %arg23: memref<1x32xf32, #tpu.memory_space<vmem>>, %arg24: memref<1x32xf32, #tpu.memory_space<vmem>>, %arg25: memref<32x2xf32, #tpu.memory_space<vmem>>, %arg26: memref<1x2xf32, #tpu.memory_space<vmem>>, %arg27: memref<64x2xf32, #tpu.memory_space<vmem>>, %arg28: memref<128x32xf32, #tpu.memory_space<vmem>>, %arg29: memref<128x32xf32, #tpu.memory_space<vmem>>, %arg30: memref<128x32xf32, #tpu.memory_space<vmem>>, %arg31: memref<128x32xf32, #tpu.memory_space<vmem>>) attributes {dimension_semantics = [#tpu.dimension_semantics<arbitrary>], iteration_bounds = array<i64: 1>, scalar_prefetch = 0 : i64, scratch_operands = 4 : i64, tpu.core_type = #tpu.core_type<tc>, window_params = [{pipeline_mode = #tpu.pipeline_mode<synchronous>, transform_indices = @transform_0, window_bounds = array<i64: 128, 2>}, {pipeline_mode = #tpu.pipeline_mode<synchronous>, transform_indices = @transform_1, window_bounds = array<i64: 64, 32>}, {pipeline_mode = #tpu.pipeline_mode<synchronous>, transform_indices = @transform_2, window_bounds = array<i64: 64, 32>}, {pipeline_mode = #tpu.pipeline_mode<synchronous>, transform_indices = @transform_3, window_bounds = array<i64: 8, 32>}, {pipeline_mode = #tpu.pipeline_mode<synchronous>, transform_indices = @transform_4, window_bounds = array<i64: 2, 32>}, {pipeline_mode = #tpu.pipeline_mode<synchronous>, transform_indices = @transform_5, window_bounds = array<i64: 1, 32>}, {pipeline_mode = #tpu.pipeline_mode<synchronous>, transform_indices = @transform_6, window_bounds = array<i64: 1, 32>}, {pipeline_mode = #tpu.pipeline_mode<synchronous>, transform_indices = @transform_7, window_bounds = array<i64: 1, 32>}, {pipeline_mode = #tpu.pipeline_mode<synchronous>, transform_indices = @transform_8, window_bounds = array<i64: 32, 32>}, {pipeline_mode = #tpu.pipeline_mode<synchronous>, transform_indices = @transform_9, window_bounds = array<i64: 1, 32>}, {pipeline_mode = #tpu.pipeline_mode<synchronous>, transform_indices = @transform_10, window_bounds = array<i64: 1, 32>}, {pipeline_mode = #tpu.pipeline_mode<synchronous>, transform_indices = @transform_11, window_bounds = array<i64: 1, 32>}, {pipeline_mode = #tpu.pipeline_mode<synchronous>, transform_indices = @transform_12, window_bounds = array<i64: 3, 32, 32>}, {pipeline_mode = #tpu.pipeline_mode<synchronous>, transform_indices = @transform_13, window_bounds = array<i64: 3, 1, 32>}, {pipeline_mode = #tpu.pipeline_mode<synchronous>, transform_indices = @transform_14, window_bounds = array<i64: 3, 32, 32>}, {pipeline_mode = #tpu.pipeline_mode<synchronous>, transform_indices = @transform_15, window_bounds = array<i64: 3, 1, 32>}, {pipeline_mode = #tpu.pipeline_mode<synchronous>, transform_indices = @transform_16, window_bounds = array<i64: 4, 32, 32>}, {pipeline_mode = #tpu.pipeline_mode<synchronous>, transform_indices = @transform_17, window_bounds = array<i64: 1, 32>}, {pipeline_mode = #tpu.pipeline_mode<synchronous>, transform_indices = @transform_18, window_bounds = array<i64: 1, 32>}, {pipeline_mode = #tpu.pipeline_mode<synchronous>, transform_indices = @transform_19, window_bounds = array<i64: 1, 32>}, {pipeline_mode = #tpu.pipeline_mode<synchronous>, transform_indices = @transform_20, window_bounds = array<i64: 32, 32>}, {pipeline_mode = #tpu.pipeline_mode<synchronous>, transform_indices = @transform_21, window_bounds = array<i64: 1, 32>}, {pipeline_mode = #tpu.pipeline_mode<synchronous>, transform_indices = @transform_22, window_bounds = array<i64: 1, 32>}, {pipeline_mode = #tpu.pipeline_mode<synchronous>, transform_indices = @transform_23, window_bounds = array<i64: 1, 32>}, {pipeline_mode = #tpu.pipeline_mode<synchronous>, transform_indices = @transform_24, window_bounds = array<i64: 32, 2>}, {pipeline_mode = #tpu.pipeline_mode<synchronous>, transform_indices = @transform_25, window_bounds = array<i64: 1, 2>}, {pipeline_mode = #tpu.pipeline_mode<synchronous>, transform_indices = @transform_26, window_bounds = array<i64: 64, 2>}]} {
    %c0 = arith.constant 0 : index
    %c0_0 = arith.constant 0 : index
    %0 = vector.load %arg1[%c0, %c0_0] : memref<128x2xf32, #tpu.memory_space<vmem>>, vector<128x2xf32>
    %c0_1 = arith.constant 0 : index
    %c0_2 = arith.constant 0 : index
    %1 = vector.load %arg5[%c0_1, %c0_2] : memref<2x32xf32, #tpu.memory_space<vmem>>, vector<2x32xf32>
    %2 = vector.extract_strided_slice %0 {offsets = [0, 0], sizes = [128, 1], strides = [1, 1]} : vector<128x2xf32> to vector<128x1xf32>
    %3 = vector.extract_strided_slice %1 {offsets = [0, 0], sizes = [1, 32], strides = [1, 1]} : vector<2x32xf32> to vector<1x32xf32>
    %4 = vector.broadcast %2 : vector<128x1xf32> to vector<128x32xf32>
    %5 = vector.broadcast %3 : vector<1x32xf32> to vector<128x32xf32>
    %6 = arith.mulf %4, %5 : vector<128x32xf32>
    %7 = vector.extract_strided_slice %0 {offsets = [0, 1], sizes = [128, 1], strides = [1, 1]} : vector<128x2xf32> to vector<128x1xf32>
    %8 = vector.extract_strided_slice %1 {offsets = [1, 0], sizes = [1, 32], strides = [1, 1]} : vector<2x32xf32> to vector<1x32xf32>
    %9 = vector.broadcast %7 : vector<128x1xf32> to vector<128x32xf32>
    %10 = vector.broadcast %8 : vector<1x32xf32> to vector<128x32xf32>
    %11 = arith.mulf %9, %10 : vector<128x32xf32>
    %12 = arith.addf %6, %11 : vector<128x32xf32>
    %c0_3 = arith.constant 0 : index
    %c0_4 = arith.constant 0 : index
    %13 = vector.load %arg6[%c0_3, %c0_4] : memref<1x32xf32, #tpu.memory_space<vmem>>, vector<1x32xf32>
    %14 = vector.broadcast %13 : vector<1x32xf32> to vector<128x32xf32>
    %15 = arith.addf %12, %14 : vector<128x32xf32>
    %c0_5 = arith.constant 0 : index
    %c0_6 = arith.constant 0 : index
    %16 = vector.load %arg7[%c0_5, %c0_6] : memref<1x32xf32, #tpu.memory_space<vmem>>, vector<1x32xf32>
    %c0_7 = arith.constant 0 : index
    %c0_8 = arith.constant 0 : index
    %17 = vector.load %arg8[%c0_7, %c0_8] : memref<1x32xf32, #tpu.memory_space<vmem>>, vector<1x32xf32>
    %cst = arith.constant dense<0.000000e+00> : vector<128xf32>
    %18 = vector.multi_reduction <add>, %15, %cst [1] : vector<128x32xf32> to vector<128xf32>
    %19 = vector.shape_cast %18 : vector<128xf32> to vector<128x1xf32>
    %cst_9 = arith.constant 3.200000e+01 : f32
    %20 = vector.broadcast %cst_9 : f32 to vector<128x1xf32>
    %21 = arith.divf %19, %20 : vector<128x1xf32>
    %22 = vector.broadcast %21 : vector<128x1xf32> to vector<128x32xf32>
    %23 = arith.subf %15, %22 : vector<128x32xf32>
    %24 = arith.mulf %23, %23 : vector<128x32xf32>
    %cst_10 = arith.constant dense<0.000000e+00> : vector<128xf32>
    %25 = vector.multi_reduction <add>, %24, %cst_10 [1] : vector<128x32xf32> to vector<128xf32>
    %26 = vector.shape_cast %25 : vector<128xf32> to vector<128x1xf32>
    %cst_11 = arith.constant 3.200000e+01 : f32
    %27 = vector.broadcast %cst_11 : f32 to vector<128x1xf32>
    %28 = arith.divf %26, %27 : vector<128x1xf32>
    %29 = vector.broadcast %21 : vector<128x1xf32> to vector<128x32xf32>
    %30 = arith.subf %15, %29 : vector<128x32xf32>
    %cst_12 = arith.constant 9.99999974E-6 : f32
    %31 = vector.broadcast %cst_12 : f32 to vector<128x1xf32>
    %32 = arith.addf %28, %31 : vector<128x1xf32>
    %33 = math.rsqrt %32 : vector<128x1xf32>
    %34 = vector.broadcast %33 : vector<128x1xf32> to vector<128x32xf32>
    %35 = arith.mulf %30, %34 : vector<128x32xf32>
    %36 = vector.broadcast %16 : vector<1x32xf32> to vector<128x32xf32>
    %37 = arith.mulf %35, %36 : vector<128x32xf32>
    %38 = vector.broadcast %17 : vector<1x32xf32> to vector<128x32xf32>
    %39 = arith.addf %37, %38 : vector<128x32xf32>
    %cst_13 = arith.constant 0.000000e+00 : f32
    %40 = vector.broadcast %cst_13 : f32 to vector<128x32xf32>
    %41 = arith.maximumf %39, %40 : vector<128x32xf32>
    %42 = arith.truncf %41 : vector<128x32xf32> to vector<128x32xbf16>
    %c0_14 = arith.constant 0 : index
    %c0_15 = arith.constant 0 : index
    %43 = vector.load %arg9[%c0_14, %c0_15] : memref<32x32xbf16, #tpu.memory_space<vmem>>, vector<32x32xbf16>
    %cst_16 = arith.constant dense<0.000000e+00> : vector<128x32xf32>
    %44 = tpu.matmul %42, %43, %cst_16 {dimension_numbers = #tpu.dot_dimension_numbers<[1], [0], [0], [1], [0, 0, 1, 1], [], []>} : vector<128x32xbf16>, vector<32x32xbf16>, vector<128x32xf32> -> vector<128x32xf32>
    %c0_17 = arith.constant 0 : index
    %c0_18 = arith.constant 0 : index
    %45 = vector.load %arg10[%c0_17, %c0_18] : memref<1x32xf32, #tpu.memory_space<vmem>>, vector<1x32xf32>
    %46 = vector.broadcast %45 : vector<1x32xf32> to vector<128x32xf32>
    %47 = arith.addf %44, %46 : vector<128x32xf32>
    %c0_19 = arith.constant 0 : index
    %c0_20 = arith.constant 0 : index
    %48 = vector.load %arg11[%c0_19, %c0_20] : memref<1x32xf32, #tpu.memory_space<vmem>>, vector<1x32xf32>
    %c0_21 = arith.constant 0 : index
    %c0_22 = arith.constant 0 : index
    %49 = vector.load %arg12[%c0_21, %c0_22] : memref<1x32xf32, #tpu.memory_space<vmem>>, vector<1x32xf32>
    %cst_23 = arith.constant dense<0.000000e+00> : vector<128xf32>
    %50 = vector.multi_reduction <add>, %47, %cst_23 [1] : vector<128x32xf32> to vector<128xf32>
    %51 = vector.shape_cast %50 : vector<128xf32> to vector<128x1xf32>
    %cst_24 = arith.constant 3.200000e+01 : f32
    %52 = vector.broadcast %cst_24 : f32 to vector<128x1xf32>
    %53 = arith.divf %51, %52 : vector<128x1xf32>
    %54 = vector.broadcast %53 : vector<128x1xf32> to vector<128x32xf32>
    %55 = arith.subf %47, %54 : vector<128x32xf32>
    %56 = arith.mulf %55, %55 : vector<128x32xf32>
    %cst_25 = arith.constant dense<0.000000e+00> : vector<128xf32>
    %57 = vector.multi_reduction <add>, %56, %cst_25 [1] : vector<128x32xf32> to vector<128xf32>
    %58 = vector.shape_cast %57 : vector<128xf32> to vector<128x1xf32>
    %cst_26 = arith.constant 3.200000e+01 : f32
    %59 = vector.broadcast %cst_26 : f32 to vector<128x1xf32>
    %60 = arith.divf %58, %59 : vector<128x1xf32>
    %61 = vector.broadcast %53 : vector<128x1xf32> to vector<128x32xf32>
    %62 = arith.subf %47, %61 : vector<128x32xf32>
    %cst_27 = arith.constant 9.99999974E-6 : f32
    %63 = vector.broadcast %cst_27 : f32 to vector<128x1xf32>
    %64 = arith.addf %60, %63 : vector<128x1xf32>
    %65 = math.rsqrt %64 : vector<128x1xf32>
    %66 = vector.broadcast %65 : vector<128x1xf32> to vector<128x32xf32>
    %67 = arith.mulf %62, %66 : vector<128x32xf32>
    %68 = vector.broadcast %48 : vector<1x32xf32> to vector<128x32xf32>
    %69 = arith.mulf %67, %68 : vector<128x32xf32>
    %70 = vector.broadcast %49 : vector<1x32xf32> to vector<128x32xf32>
    %71 = arith.addf %69, %70 : vector<128x32xf32>
    %cst_28 = arith.constant 0.000000e+00 : f32
    %72 = vector.broadcast %cst_28 : f32 to vector<128x32xf32>
    %73 = arith.maximumf %71, %72 : vector<128x32xf32>
    %74 = arith.addf %73, %41 : vector<128x32xf32>
    %75 = arith.truncf %74 : vector<128x32xf32> to vector<128x32xbf16>
    %c0_29 = arith.constant 0 : index
    %c0_30 = arith.constant 0 : index
    %c0_31 = arith.constant 0 : index
    %76 = vector.load %arg13[%c0_29, %c0_30, %c0_31] : memref<3x32x32xbf16, #tpu.memory_space<vmem>>, vector<1x32x32xbf16>
    %77 = vector.shape_cast %76 : vector<1x32x32xbf16> to vector<32x32xbf16>
    %cst_32 = arith.constant dense<0.000000e+00> : vector<128x32xf32>
    %78 = tpu.matmul %75, %77, %cst_32 {dimension_numbers = #tpu.dot_dimension_numbers<[1], [0], [0], [1], [0, 0, 1, 1], [], []>} : vector<128x32xbf16>, vector<32x32xbf16>, vector<128x32xf32> -> vector<128x32xf32>
    %c0_33 = arith.constant 0 : index
    %c0_34 = arith.constant 0 : index
    %c0_35 = arith.constant 0 : index
    %79 = vector.load %arg14[%c0_33, %c0_34, %c0_35] : memref<3x1x32xf32, #tpu.memory_space<vmem>>, vector<1x1x32xf32>
    %80 = vector.shape_cast %79 : vector<1x1x32xf32> to vector<1x32xf32>
    %81 = vector.broadcast %80 : vector<1x32xf32> to vector<128x32xf32>
    %82 = arith.addf %78, %81 : vector<128x32xf32>
    %c0_36 = arith.constant 0 : index
    %c0_37 = arith.constant 0 : index
    %83 = vector.load %arg28[%c0_36, %c0_37] : memref<128x32xf32, #tpu.memory_space<vmem>>, vector<128x32xf32>
    tpu.vector_store %arg28[%c0_36, %c0_37], %82 {strides = array<i32>} : memref<128x32xf32, #tpu.memory_space<vmem>>, vector<128x32xf32>,
    %c1 = arith.constant 1 : index
    %c0_38 = arith.constant 0 : index
    %c0_39 = arith.constant 0 : index
    %84 = vector.load %arg13[%c1, %c0_38, %c0_39] : memref<3x32x32xbf16, #tpu.memory_space<vmem>>, vector<1x32x32xbf16>
    %85 = vector.shape_cast %84 : vector<1x32x32xbf16> to vector<32x32xbf16>
    %cst_40 = arith.constant dense<0.000000e+00> : vector<128x32xf32>
    %86 = tpu.matmul %75, %85, %cst_40 {dimension_numbers = #tpu.dot_dimension_numbers<[1], [0], [0], [1], [0, 0, 1, 1], [], []>} : vector<128x32xbf16>, vector<32x32xbf16>, vector<128x32xf32> -> vector<128x32xf32>
    %c1_41 = arith.constant 1 : index
    %c0_42 = arith.constant 0 : index
    %c0_43 = arith.constant 0 : index
    %87 = vector.load %arg14[%c1_41, %c0_42, %c0_43] : memref<3x1x32xf32, #tpu.memory_space<vmem>>, vector<1x1x32xf32>
    %88 = vector.shape_cast %87 : vector<1x1x32xf32> to vector<1x32xf32>
    %89 = vector.broadcast %88 : vector<1x32xf32> to vector<128x32xf32>
    %90 = arith.addf %86, %89 : vector<128x32xf32>
    %c0_44 = arith.constant 0 : index
    %c0_45 = arith.constant 0 : index
    %91 = vector.load %arg29[%c0_44, %c0_45] : memref<128x32xf32, #tpu.memory_space<vmem>>, vector<128x32xf32>
    tpu.vector_store %arg29[%c0_44, %c0_45], %90 {strides = array<i32>} : memref<128x32xf32, #tpu.memory_space<vmem>>, vector<128x32xf32>,
    %c2 = arith.constant 2 : index
    %c0_46 = arith.constant 0 : index
    %c0_47 = arith.constant 0 : index
    %92 = vector.load %arg13[%c2, %c0_46, %c0_47] : memref<3x32x32xbf16, #tpu.memory_space<vmem>>, vector<1x32x32xbf16>
    %93 = vector.shape_cast %92 : vector<1x32x32xbf16> to vector<32x32xbf16>
    %cst_48 = arith.constant dense<0.000000e+00> : vector<128x32xf32>
    %94 = tpu.matmul %75, %93, %cst_48 {dimension_numbers = #tpu.dot_dimension_numbers<[1], [0], [0], [1], [0, 0, 1, 1], [], []>} : vector<128x32xbf16>, vector<32x32xbf16>, vector<128x32xf32> -> vector<128x32xf32>
    %c2_49 = arith.constant 2 : index
    %c0_50 = arith.constant 0 : index
    %c0_51 = arith.constant 0 : index
    %95 = vector.load %arg14[%c2_49, %c0_50, %c0_51] : memref<3x1x32xf32, #tpu.memory_space<vmem>>, vector<1x1x32xf32>
    %96 = vector.shape_cast %95 : vector<1x1x32xf32> to vector<1x32xf32>
    %97 = vector.broadcast %96 : vector<1x32xf32> to vector<128x32xf32>
    %98 = arith.addf %94, %97 : vector<128x32xf32>
    %c0_52 = arith.constant 0 : index
    %c0_53 = arith.constant 0 : index
    %99 = vector.load %arg30[%c0_52, %c0_53] : memref<128x32xf32, #tpu.memory_space<vmem>>, vector<128x32xf32>
    tpu.vector_store %arg30[%c0_52, %c0_53], %98 {strides = array<i32>} : memref<128x32xf32, #tpu.memory_space<vmem>>, vector<128x32xf32>,
    %c0_54 = arith.constant 0 : index
    %c0_55 = arith.constant 0 : index
    %c0_56 = arith.constant 0 : index
    %100 = vector.load %arg15[%c0_54, %c0_55, %c0_56] : memref<3x32x32xf32, #tpu.memory_space<vmem>>, vector<1x32x32xf32>
    %101 = vector.shape_cast %100 : vector<1x32x32xf32> to vector<32x32xf32>
    %c1_57 = arith.constant 1 : index
    %c0_58 = arith.constant 0 : index
    %c0_59 = arith.constant 0 : index
    %102 = vector.load %arg15[%c1_57, %c0_58, %c0_59] : memref<3x32x32xf32, #tpu.memory_space<vmem>>, vector<1x32x32xf32>
    %103 = vector.shape_cast %102 : vector<1x32x32xf32> to vector<32x32xf32>
    %c2_60 = arith.constant 2 : index
    %c0_61 = arith.constant 0 : index
    %c0_62 = arith.constant 0 : index
    %104 = vector.load %arg15[%c2_60, %c0_61, %c0_62] : memref<3x32x32xf32, #tpu.memory_space<vmem>>, vector<1x32x32xf32>
    %105 = vector.shape_cast %104 : vector<1x32x32xf32> to vector<32x32xf32>
    %c0_63 = arith.constant 0 : index
    %c0_64 = arith.constant 0 : index
    %c0_65 = arith.constant 0 : index
    %106 = vector.load %arg16[%c0_63, %c0_64, %c0_65] : memref<3x1x32xf32, #tpu.memory_space<vmem>>, vector<1x1x32xf32>
    %107 = vector.shape_cast %106 : vector<1x1x32xf32> to vector<1x32xf32>
    %c1_66 = arith.constant 1 : index
    %c0_67 = arith.constant 0 : index
    %c0_68 = arith.constant 0 : index
    %108 = vector.load %arg16[%c1_66, %c0_67, %c0_68] : memref<3x1x32xf32, #tpu.memory_space<vmem>>, vector<1x1x32xf32>
    %109 = vector.shape_cast %108 : vector<1x1x32xf32> to vector<1x32xf32>
    %c2_69 = arith.constant 2 : index
    %c0_70 = arith.constant 0 : index
    %c0_71 = arith.constant 0 : index
    %110 = vector.load %arg16[%c2_69, %c0_70, %c0_71] : memref<3x1x32xf32, #tpu.memory_space<vmem>>, vector<1x1x32xf32>
    %111 = vector.shape_cast %110 : vector<1x1x32xf32> to vector<1x32xf32>
    %cst_72 = arith.constant 0.000000e+00 : f32
    %112 = vector.broadcast %cst_72 : f32 to vector<8x32xf32>
    %c0_i32 = arith.constant 0 : i32
    %c8_i32 = arith.constant 8 : i32
    %113 = arith.muli %c0_i32, %c8_i32 : i32
    %114 = arith.index_cast %113 : i32 to index
    %c0_73 = arith.constant 0 : index
    %115 = vector.load %arg28[%114, %c0_73] : memref<128x32xf32, #tpu.memory_space<vmem>>, vector<8x32xf32>
    %116 = arith.index_cast %113 : i32 to index
    %c0_74 = arith.constant 0 : index
    %117 = vector.load %arg29[%116, %c0_74] : memref<128x32xf32, #tpu.memory_space<vmem>>, vector<8x32xf32>
    %118 = arith.index_cast %113 : i32 to index
    %c0_75 = arith.constant 0 : index
    %119 = vector.load %arg30[%118, %c0_75] : memref<128x32xf32, #tpu.memory_space<vmem>>, vector<8x32xf32>
    %cst_76 = arith.constant dense<0.000000e+00> : vector<8x32xf32>
    %120 = tpu.matmul %112, %101, %cst_76 {dimension_numbers = #tpu.dot_dimension_numbers<[1], [0], [0], [1], [0, 0, 1, 1], [], []>} : vector<8x32xf32>, vector<32x32xf32>, vector<8x32xf32> -> vector<8x32xf32>
    %121 = vector.broadcast %107 : vector<1x32xf32> to vector<8x32xf32>
    %122 = arith.addf %120, %121 : vector<8x32xf32>
    %cst_77 = arith.constant dense<0.000000e+00> : vector<8x32xf32>
    %123 = tpu.matmul %112, %103, %cst_77 {dimension_numbers = #tpu.dot_dimension_numbers<[1], [0], [0], [1], [0, 0, 1, 1], [], []>} : vector<8x32xf32>, vector<32x32xf32>, vector<8x32xf32> -> vector<8x32xf32>
    %124 = vector.broadcast %109 : vector<1x32xf32> to vector<8x32xf32>
    %125 = arith.addf %123, %124 : vector<8x32xf32>
    %cst_78 = arith.constant dense<0.000000e+00> : vector<8x32xf32>
    %126 = tpu.matmul %112, %105, %cst_78 {dimension_numbers = #tpu.dot_dimension_numbers<[1], [0], [0], [1], [0, 0, 1, 1], [], []>} : vector<8x32xf32>, vector<32x32xf32>, vector<8x32xf32> -> vector<8x32xf32>
    %127 = vector.broadcast %111 : vector<1x32xf32> to vector<8x32xf32>
    %128 = arith.addf %126, %127 : vector<8x32xf32>
    %129 = arith.addf %115, %122 : vector<8x32xf32>
    %130 = arith.negf %129 : vector<8x32xf32>
    %131 = math.exp %130 : vector<8x32xf32>
    %cst_79 = arith.constant 1.000000e+00 : f32
    %132 = vector.broadcast %cst_79 : f32 to vector<8x32xf32>
    %133 = arith.addf %132, %131 : vector<8x32xf32>
    %134 = arith.divf %132, %133 : vector<8x32xf32>
    %135 = arith.addf %117, %125 : vector<8x32xf32>
    %136 = arith.negf %135 : vector<8x32xf32>
    %137 = math.exp %136 : vector<8x32xf32>
    %cst_80 = arith.constant 1.000000e+00 : f32
    %138 = vector.broadcast %cst_80 : f32 to vector<8x32xf32>
    %139 = arith.addf %138, %137 : vector<8x32xf32>
    %140 = arith.divf %138, %139 : vector<8x32xf32>
    %141 = arith.mulf %134, %128 : vector<8x32xf32>
    %142 = arith.addf %119, %141 : vector<8x32xf32>
    %143 = math.tanh %142 : vector<8x32xf32>
    %cst_81 = arith.constant 1.000000e+00 : f32
    %144 = vector.broadcast %cst_81 : f32 to vector<8x32xf32>
    %145 = arith.subf %144, %140 : vector<8x32xf32>
    %146 = arith.mulf %145, %143 : vector<8x32xf32>
    %147 = arith.mulf %140, %112 : vector<8x32xf32>
    %148 = arith.addf %146, %147 : vector<8x32xf32>
    %149 = arith.index_cast %113 : i32 to index
    %c0_82 = arith.constant 0 : index
    %150 = vector.load %arg31[%149, %c0_82] : memref<128x32xf32, #tpu.memory_space<vmem>>, vector<8x32xf32>
    tpu.vector_store %arg31[%149, %c0_82], %148 {strides = array<i32>} : memref<128x32xf32, #tpu.memory_space<vmem>>, vector<8x32xf32>,
    %c1_i32 = arith.constant 1 : i32
    %c8_i32_83 = arith.constant 8 : i32
    %151 = arith.muli %c1_i32, %c8_i32_83 : i32
    %152 = arith.index_cast %151 : i32 to index
    %c0_84 = arith.constant 0 : index
    %153 = vector.load %arg28[%152, %c0_84] : memref<128x32xf32, #tpu.memory_space<vmem>>, vector<8x32xf32>
    %154 = arith.index_cast %151 : i32 to index
    %c0_85 = arith.constant 0 : index
    %155 = vector.load %arg29[%154, %c0_85] : memref<128x32xf32, #tpu.memory_space<vmem>>, vector<8x32xf32>
    %156 = arith.index_cast %151 : i32 to index
    %c0_86 = arith.constant 0 : index
    %157 = vector.load %arg30[%156, %c0_86] : memref<128x32xf32, #tpu.memory_space<vmem>>, vector<8x32xf32>
    %cst_87 = arith.constant dense<0.000000e+00> : vector<8x32xf32>
    %158 = tpu.matmul %148, %101, %cst_87 {dimension_numbers = #tpu.dot_dimension_numbers<[1], [0], [0], [1], [0, 0, 1, 1], [], []>} : vector<8x32xf32>, vector<32x32xf32>, vector<8x32xf32> -> vector<8x32xf32>
    %159 = vector.broadcast %107 : vector<1x32xf32> to vector<8x32xf32>
    %160 = arith.addf %158, %159 : vector<8x32xf32>
    %cst_88 = arith.constant dense<0.000000e+00> : vector<8x32xf32>
    %161 = tpu.matmul %148, %103, %cst_88 {dimension_numbers = #tpu.dot_dimension_numbers<[1], [0], [0], [1], [0, 0, 1, 1], [], []>} : vector<8x32xf32>, vector<32x32xf32>, vector<8x32xf32> -> vector<8x32xf32>
    %162 = vector.broadcast %109 : vector<1x32xf32> to vector<8x32xf32>
    %163 = arith.addf %161, %162 : vector<8x32xf32>
    %cst_89 = arith.constant dense<0.000000e+00> : vector<8x32xf32>
    %164 = tpu.matmul %148, %105, %cst_89 {dimension_numbers = #tpu.dot_dimension_numbers<[1], [0], [0], [1], [0, 0, 1, 1], [], []>} : vector<8x32xf32>, vector<32x32xf32>, vector<8x32xf32> -> vector<8x32xf32>
    %165 = vector.broadcast %111 : vector<1x32xf32> to vector<8x32xf32>
    %166 = arith.addf %164, %165 : vector<8x32xf32>
    %167 = arith.addf %153, %160 : vector<8x32xf32>
    %168 = arith.negf %167 : vector<8x32xf32>
    %169 = math.exp %168 : vector<8x32xf32>
    %cst_90 = arith.constant 1.000000e+00 : f32
    %170 = vector.broadcast %cst_90 : f32 to vector<8x32xf32>
    %171 = arith.addf %170, %169 : vector<8x32xf32>
    %172 = arith.divf %170, %171 : vector<8x32xf32>
    %173 = arith.addf %155, %163 : vector<8x32xf32>
    %174 = arith.negf %173 : vector<8x32xf32>
    %175 = math.exp %174 : vector<8x32xf32>
    %cst_91 = arith.constant 1.000000e+00 : f32
    %176 = vector.broadcast %cst_91 : f32 to vector<8x32xf32>
    %177 = arith.addf %176, %175 : vector<8x32xf32>
    %178 = arith.divf %176, %177 : vector<8x32xf32>
    %179 = arith.mulf %172, %166 : vector<8x32xf32>
    %180 = arith.addf %157, %179 : vector<8x32xf32>
    %181 = math.tanh %180 : vector<8x32xf32>
    %cst_92 = arith.constant 1.000000e+00 : f32
    %182 = vector.broadcast %cst_92 : f32 to vector<8x32xf32>
    %183 = arith.subf %182, %178 : vector<8x32xf32>
    %184 = arith.mulf %183, %181 : vector<8x32xf32>
    %185 = arith.mulf %178, %148 : vector<8x32xf32>
    %186 = arith.addf %184, %185 : vector<8x32xf32>
    %187 = arith.index_cast %151 : i32 to index
    %c0_93 = arith.constant 0 : index
    %188 = vector.load %arg31[%187, %c0_93] : memref<128x32xf32, #tpu.memory_space<vmem>>, vector<8x32xf32>
    tpu.vector_store %arg31[%187, %c0_93], %186 {strides = array<i32>} : memref<128x32xf32, #tpu.memory_space<vmem>>, vector<8x32xf32>,
    %c2_i32 = arith.constant 2 : i32
    %c8_i32_94 = arith.constant 8 : i32
    %189 = arith.muli %c2_i32, %c8_i32_94 : i32
    %190 = arith.index_cast %189 : i32 to index
    %c0_95 = arith.constant 0 : index
    %191 = vector.load %arg28[%190, %c0_95] : memref<128x32xf32, #tpu.memory_space<vmem>>, vector<8x32xf32>
    %192 = arith.index_cast %189 : i32 to index
    %c0_96 = arith.constant 0 : index
    %193 = vector.load %arg29[%192, %c0_96] : memref<128x32xf32, #tpu.memory_space<vmem>>, vector<8x32xf32>
    %194 = arith.index_cast %189 : i32 to index
    %c0_97 = arith.constant 0 : index
    %195 = vector.load %arg30[%194, %c0_97] : memref<128x32xf32, #tpu.memory_space<vmem>>, vector<8x32xf32>
    %cst_98 = arith.constant dense<0.000000e+00> : vector<8x32xf32>
    %196 = tpu.matmul %186, %101, %cst_98 {dimension_numbers = #tpu.dot_dimension_numbers<[1], [0], [0], [1], [0, 0, 1, 1], [], []>} : vector<8x32xf32>, vector<32x32xf32>, vector<8x32xf32> -> vector<8x32xf32>
    %197 = vector.broadcast %107 : vector<1x32xf32> to vector<8x32xf32>
    %198 = arith.addf %196, %197 : vector<8x32xf32>
    %cst_99 = arith.constant dense<0.000000e+00> : vector<8x32xf32>
    %199 = tpu.matmul %186, %103, %cst_99 {dimension_numbers = #tpu.dot_dimension_numbers<[1], [0], [0], [1], [0, 0, 1, 1], [], []>} : vector<8x32xf32>, vector<32x32xf32>, vector<8x32xf32> -> vector<8x32xf32>
    %200 = vector.broadcast %109 : vector<1x32xf32> to vector<8x32xf32>
    %201 = arith.addf %199, %200 : vector<8x32xf32>
    %cst_100 = arith.constant dense<0.000000e+00> : vector<8x32xf32>
    %202 = tpu.matmul %186, %105, %cst_100 {dimension_numbers = #tpu.dot_dimension_numbers<[1], [0], [0], [1], [0, 0, 1, 1], [], []>} : vector<8x32xf32>, vector<32x32xf32>, vector<8x32xf32> -> vector<8x32xf32>
    %203 = vector.broadcast %111 : vector<1x32xf32> to vector<8x32xf32>
    %204 = arith.addf %202, %203 : vector<8x32xf32>
    %205 = arith.addf %191, %198 : vector<8x32xf32>
    %206 = arith.negf %205 : vector<8x32xf32>
    %207 = math.exp %206 : vector<8x32xf32>
    %cst_101 = arith.constant 1.000000e+00 : f32
    %208 = vector.broadcast %cst_101 : f32 to vector<8x32xf32>
    %209 = arith.addf %208, %207 : vector<8x32xf32>
    %210 = arith.divf %208, %209 : vector<8x32xf32>
    %211 = arith.addf %193, %201 : vector<8x32xf32>
    %212 = arith.negf %211 : vector<8x32xf32>
    %213 = math.exp %212 : vector<8x32xf32>
    %cst_102 = arith.constant 1.000000e+00 : f32
    %214 = vector.broadcast %cst_102 : f32 to vector<8x32xf32>
    %215 = arith.addf %214, %213 : vector<8x32xf32>
    %216 = arith.divf %214, %215 : vector<8x32xf32>
    %217 = arith.mulf %210, %204 : vector<8x32xf32>
    %218 = arith.addf %195, %217 : vector<8x32xf32>
    %219 = math.tanh %218 : vector<8x32xf32>
    %cst_103 = arith.constant 1.000000e+00 : f32
    %220 = vector.broadcast %cst_103 : f32 to vector<8x32xf32>
    %221 = arith.subf %220, %216 : vector<8x32xf32>
    %222 = arith.mulf %221, %219 : vector<8x32xf32>
    %223 = arith.mulf %216, %186 : vector<8x32xf32>
    %224 = arith.addf %222, %223 : vector<8x32xf32>
    %225 = arith.index_cast %189 : i32 to index
    %c0_104 = arith.constant 0 : index
    %226 = vector.load %arg31[%225, %c0_104] : memref<128x32xf32, #tpu.memory_space<vmem>>, vector<8x32xf32>
    tpu.vector_store %arg31[%225, %c0_104], %224 {strides = array<i32>} : memref<128x32xf32, #tpu.memory_space<vmem>>, vector<8x32xf32>,
    %c3_i32 = arith.constant 3 : i32
    %c8_i32_105 = arith.constant 8 : i32
    %227 = arith.muli %c3_i32, %c8_i32_105 : i32
    %228 = arith.index_cast %227 : i32 to index
    %c0_106 = arith.constant 0 : index
    %229 = vector.load %arg28[%228, %c0_106] : memref<128x32xf32, #tpu.memory_space<vmem>>, vector<8x32xf32>
    %230 = arith.index_cast %227 : i32 to index
    %c0_107 = arith.constant 0 : index
    %231 = vector.load %arg29[%230, %c0_107] : memref<128x32xf32, #tpu.memory_space<vmem>>, vector<8x32xf32>
    %232 = arith.index_cast %227 : i32 to index
    %c0_108 = arith.constant 0 : index
    %233 = vector.load %arg30[%232, %c0_108] : memref<128x32xf32, #tpu.memory_space<vmem>>, vector<8x32xf32>
    %cst_109 = arith.constant dense<0.000000e+00> : vector<8x32xf32>
    %234 = tpu.matmul %224, %101, %cst_109 {dimension_numbers = #tpu.dot_dimension_numbers<[1], [0], [0], [1], [0, 0, 1, 1], [], []>} : vector<8x32xf32>, vector<32x32xf32>, vector<8x32xf32> -> vector<8x32xf32>
    %235 = vector.broadcast %107 : vector<1x32xf32> to vector<8x32xf32>
    %236 = arith.addf %234, %235 : vector<8x32xf32>
    %cst_110 = arith.constant dense<0.000000e+00> : vector<8x32xf32>
    %237 = tpu.matmul %224, %103, %cst_110 {dimension_numbers = #tpu.dot_dimension_numbers<[1], [0], [0], [1], [0, 0, 1, 1], [], []>} : vector<8x32xf32>, vector<32x32xf32>, vector<8x32xf32> -> vector<8x32xf32>
    %238 = vector.broadcast %109 : vector<1x32xf32> to vector<8x32xf32>
    %239 = arith.addf %237, %238 : vector<8x32xf32>
    %cst_111 = arith.constant dense<0.000000e+00> : vector<8x32xf32>
    %240 = tpu.matmul %224, %105, %cst_111 {dimension_numbers = #tpu.dot_dimension_numbers<[1], [0], [0], [1], [0, 0, 1, 1], [], []>} : vector<8x32xf32>, vector<32x32xf32>, vector<8x32xf32> -> vector<8x32xf32>
    %241 = vector.broadcast %111 : vector<1x32xf32> to vector<8x32xf32>
    %242 = arith.addf %240, %241 : vector<8x32xf32>
    %243 = arith.addf %229, %236 : vector<8x32xf32>
    %244 = arith.negf %243 : vector<8x32xf32>
    %245 = math.exp %244 : vector<8x32xf32>
    %cst_112 = arith.constant 1.000000e+00 : f32
    %246 = vector.broadcast %cst_112 : f32 to vector<8x32xf32>
    %247 = arith.addf %246, %245 : vector<8x32xf32>
    %248 = arith.divf %246, %247 : vector<8x32xf32>
    %249 = arith.addf %231, %239 : vector<8x32xf32>
    %250 = arith.negf %249 : vector<8x32xf32>
    %251 = math.exp %250 : vector<8x32xf32>
    %cst_113 = arith.constant 1.000000e+00 : f32
    %252 = vector.broadcast %cst_113 : f32 to vector<8x32xf32>
    %253 = arith.addf %252, %251 : vector<8x32xf32>
    %254 = arith.divf %252, %253 : vector<8x32xf32>
    %255 = arith.mulf %248, %242 : vector<8x32xf32>
    %256 = arith.addf %233, %255 : vector<8x32xf32>
    %257 = math.tanh %256 : vector<8x32xf32>
    %cst_114 = arith.constant 1.000000e+00 : f32
    %258 = vector.broadcast %cst_114 : f32 to vector<8x32xf32>
    %259 = arith.subf %258, %254 : vector<8x32xf32>
    %260 = arith.mulf %259, %257 : vector<8x32xf32>
    %261 = arith.mulf %254, %224 : vector<8x32xf32>
    %262 = arith.addf %260, %261 : vector<8x32xf32>
    %263 = arith.index_cast %227 : i32 to index
    %c0_115 = arith.constant 0 : index
    %264 = vector.load %arg31[%263, %c0_115] : memref<128x32xf32, #tpu.memory_space<vmem>>, vector<8x32xf32>
    tpu.vector_store %arg31[%263, %c0_115], %262 {strides = array<i32>} : memref<128x32xf32, #tpu.memory_space<vmem>>, vector<8x32xf32>,
    %c4_i32 = arith.constant 4 : i32
    %c8_i32_116 = arith.constant 8 : i32
    %265 = arith.muli %c4_i32, %c8_i32_116 : i32
    %266 = arith.index_cast %265 : i32 to index
    %c0_117 = arith.constant 0 : index
    %267 = vector.load %arg28[%266, %c0_117] : memref<128x32xf32, #tpu.memory_space<vmem>>, vector<8x32xf32>
    %268 = arith.index_cast %265 : i32 to index
    %c0_118 = arith.constant 0 : index
    %269 = vector.load %arg29[%268, %c0_118] : memref<128x32xf32, #tpu.memory_space<vmem>>, vector<8x32xf32>
    %270 = arith.index_cast %265 : i32 to index
    %c0_119 = arith.constant 0 : index
    %271 = vector.load %arg30[%270, %c0_119] : memref<128x32xf32, #tpu.memory_space<vmem>>, vector<8x32xf32>
    %cst_120 = arith.constant dense<0.000000e+00> : vector<8x32xf32>
    %272 = tpu.matmul %262, %101, %cst_120 {dimension_numbers = #tpu.dot_dimension_numbers<[1], [0], [0], [1], [0, 0, 1, 1], [], []>} : vector<8x32xf32>, vector<32x32xf32>, vector<8x32xf32> -> vector<8x32xf32>
    %273 = vector.broadcast %107 : vector<1x32xf32> to vector<8x32xf32>
    %274 = arith.addf %272, %273 : vector<8x32xf32>
    %cst_121 = arith.constant dense<0.000000e+00> : vector<8x32xf32>
    %275 = tpu.matmul %262, %103, %cst_121 {dimension_numbers = #tpu.dot_dimension_numbers<[1], [0], [0], [1], [0, 0, 1, 1], [], []>} : vector<8x32xf32>, vector<32x32xf32>, vector<8x32xf32> -> vector<8x32xf32>
    %276 = vector.broadcast %109 : vector<1x32xf32> to vector<8x32xf32>
    %277 = arith.addf %275, %276 : vector<8x32xf32>
    %cst_122 = arith.constant dense<0.000000e+00> : vector<8x32xf32>
    %278 = tpu.matmul %262, %105, %cst_122 {dimension_numbers = #tpu.dot_dimension_numbers<[1], [0], [0], [1], [0, 0, 1, 1], [], []>} : vector<8x32xf32>, vector<32x32xf32>, vector<8x32xf32> -> vector<8x32xf32>
    %279 = vector.broadcast %111 : vector<1x32xf32> to vector<8x32xf32>
    %280 = arith.addf %278, %279 : vector<8x32xf32>
    %281 = arith.addf %267, %274 : vector<8x32xf32>
    %282 = arith.negf %281 : vector<8x32xf32>
    %283 = math.exp %282 : vector<8x32xf32>
    %cst_123 = arith.constant 1.000000e+00 : f32
    %284 = vector.broadcast %cst_123 : f32 to vector<8x32xf32>
    %285 = arith.addf %284, %283 : vector<8x32xf32>
    %286 = arith.divf %284, %285 : vector<8x32xf32>
    %287 = arith.addf %269, %277 : vector<8x32xf32>
    %288 = arith.negf %287 : vector<8x32xf32>
    %289 = math.exp %288 : vector<8x32xf32>
    %cst_124 = arith.constant 1.000000e+00 : f32
    %290 = vector.broadcast %cst_124 : f32 to vector<8x32xf32>
    %291 = arith.addf %290, %289 : vector<8x32xf32>
    %292 = arith.divf %290, %291 : vector<8x32xf32>
    %293 = arith.mulf %286, %280 : vector<8x32xf32>
    %294 = arith.addf %271, %293 : vector<8x32xf32>
    %295 = math.tanh %294 : vector<8x32xf32>
    %cst_125 = arith.constant 1.000000e+00 : f32
    %296 = vector.broadcast %cst_125 : f32 to vector<8x32xf32>
    %297 = arith.subf %296, %292 : vector<8x32xf32>
    %298 = arith.mulf %297, %295 : vector<8x32xf32>
    %299 = arith.mulf %292, %262 : vector<8x32xf32>
    %300 = arith.addf %298, %299 : vector<8x32xf32>
    %301 = arith.index_cast %265 : i32 to index
    %c0_126 = arith.constant 0 : index
    %302 = vector.load %arg31[%301, %c0_126] : memref<128x32xf32, #tpu.memory_space<vmem>>, vector<8x32xf32>
    tpu.vector_store %arg31[%301, %c0_126], %300 {strides = array<i32>} : memref<128x32xf32, #tpu.memory_space<vmem>>, vector<8x32xf32>,
    %c5_i32 = arith.constant 5 : i32
    %c8_i32_127 = arith.constant 8 : i32
    %303 = arith.muli %c5_i32, %c8_i32_127 : i32
    %304 = arith.index_cast %303 : i32 to index
    %c0_128 = arith.constant 0 : index
    %305 = vector.load %arg28[%304, %c0_128] : memref<128x32xf32, #tpu.memory_space<vmem>>, vector<8x32xf32>
    %306 = arith.index_cast %303 : i32 to index
    %c0_129 = arith.constant 0 : index
    %307 = vector.load %arg29[%306, %c0_129] : memref<128x32xf32, #tpu.memory_space<vmem>>, vector<8x32xf32>
    %308 = arith.index_cast %303 : i32 to index
    %c0_130 = arith.constant 0 : index
    %309 = vector.load %arg30[%308, %c0_130] : memref<128x32xf32, #tpu.memory_space<vmem>>, vector<8x32xf32>
    %cst_131 = arith.constant dense<0.000000e+00> : vector<8x32xf32>
    %310 = tpu.matmul %300, %101, %cst_131 {dimension_numbers = #tpu.dot_dimension_numbers<[1], [0], [0], [1], [0, 0, 1, 1], [], []>} : vector<8x32xf32>, vector<32x32xf32>, vector<8x32xf32> -> vector<8x32xf32>
    %311 = vector.broadcast %107 : vector<1x32xf32> to vector<8x32xf32>
    %312 = arith.addf %310, %311 : vector<8x32xf32>
    %cst_132 = arith.constant dense<0.000000e+00> : vector<8x32xf32>
    %313 = tpu.matmul %300, %103, %cst_132 {dimension_numbers = #tpu.dot_dimension_numbers<[1], [0], [0], [1], [0, 0, 1, 1], [], []>} : vector<8x32xf32>, vector<32x32xf32>, vector<8x32xf32> -> vector<8x32xf32>
    %314 = vector.broadcast %109 : vector<1x32xf32> to vector<8x32xf32>
    %315 = arith.addf %313, %314 : vector<8x32xf32>
    %cst_133 = arith.constant dense<0.000000e+00> : vector<8x32xf32>
    %316 = tpu.matmul %300, %105, %cst_133 {dimension_numbers = #tpu.dot_dimension_numbers<[1], [0], [0], [1], [0, 0, 1, 1], [], []>} : vector<8x32xf32>, vector<32x32xf32>, vector<8x32xf32> -> vector<8x32xf32>
    %317 = vector.broadcast %111 : vector<1x32xf32> to vector<8x32xf32>
    %318 = arith.addf %316, %317 : vector<8x32xf32>
    %319 = arith.addf %305, %312 : vector<8x32xf32>
    %320 = arith.negf %319 : vector<8x32xf32>
    %321 = math.exp %320 : vector<8x32xf32>
    %cst_134 = arith.constant 1.000000e+00 : f32
    %322 = vector.broadcast %cst_134 : f32 to vector<8x32xf32>
    %323 = arith.addf %322, %321 : vector<8x32xf32>
    %324 = arith.divf %322, %323 : vector<8x32xf32>
    %325 = arith.addf %307, %315 : vector<8x32xf32>
    %326 = arith.negf %325 : vector<8x32xf32>
    %327 = math.exp %326 : vector<8x32xf32>
    %cst_135 = arith.constant 1.000000e+00 : f32
    %328 = vector.broadcast %cst_135 : f32 to vector<8x32xf32>
    %329 = arith.addf %328, %327 : vector<8x32xf32>
    %330 = arith.divf %328, %329 : vector<8x32xf32>
    %331 = arith.mulf %324, %318 : vector<8x32xf32>
    %332 = arith.addf %309, %331 : vector<8x32xf32>
    %333 = math.tanh %332 : vector<8x32xf32>
    %cst_136 = arith.constant 1.000000e+00 : f32
    %334 = vector.broadcast %cst_136 : f32 to vector<8x32xf32>
    %335 = arith.subf %334, %330 : vector<8x32xf32>
    %336 = arith.mulf %335, %333 : vector<8x32xf32>
    %337 = arith.mulf %330, %300 : vector<8x32xf32>
    %338 = arith.addf %336, %337 : vector<8x32xf32>
    %339 = arith.index_cast %303 : i32 to index
    %c0_137 = arith.constant 0 : index
    %340 = vector.load %arg31[%339, %c0_137] : memref<128x32xf32, #tpu.memory_space<vmem>>, vector<8x32xf32>
    tpu.vector_store %arg31[%339, %c0_137], %338 {strides = array<i32>} : memref<128x32xf32, #tpu.memory_space<vmem>>, vector<8x32xf32>,
    %c6_i32 = arith.constant 6 : i32
    %c8_i32_138 = arith.constant 8 : i32
    %341 = arith.muli %c6_i32, %c8_i32_138 : i32
    %342 = arith.index_cast %341 : i32 to index
    %c0_139 = arith.constant 0 : index
    %343 = vector.load %arg28[%342, %c0_139] : memref<128x32xf32, #tpu.memory_space<vmem>>, vector<8x32xf32>
    %344 = arith.index_cast %341 : i32 to index
    %c0_140 = arith.constant 0 : index
    %345 = vector.load %arg29[%344, %c0_140] : memref<128x32xf32, #tpu.memory_space<vmem>>, vector<8x32xf32>
    %346 = arith.index_cast %341 : i32 to index
    %c0_141 = arith.constant 0 : index
    %347 = vector.load %arg30[%346, %c0_141] : memref<128x32xf32, #tpu.memory_space<vmem>>, vector<8x32xf32>
    %cst_142 = arith.constant dense<0.000000e+00> : vector<8x32xf32>
    %348 = tpu.matmul %338, %101, %cst_142 {dimension_numbers = #tpu.dot_dimension_numbers<[1], [0], [0], [1], [0, 0, 1, 1], [], []>} : vector<8x32xf32>, vector<32x32xf32>, vector<8x32xf32> -> vector<8x32xf32>
    %349 = vector.broadcast %107 : vector<1x32xf32> to vector<8x32xf32>
    %350 = arith.addf %348, %349 : vector<8x32xf32>
    %cst_143 = arith.constant dense<0.000000e+00> : vector<8x32xf32>
    %351 = tpu.matmul %338, %103, %cst_143 {dimension_numbers = #tpu.dot_dimension_numbers<[1], [0], [0], [1], [0, 0, 1, 1], [], []>} : vector<8x32xf32>, vector<32x32xf32>, vector<8x32xf32> -> vector<8x32xf32>
    %352 = vector.broadcast %109 : vector<1x32xf32> to vector<8x32xf32>
    %353 = arith.addf %351, %352 : vector<8x32xf32>
    %cst_144 = arith.constant dense<0.000000e+00> : vector<8x32xf32>
    %354 = tpu.matmul %338, %105, %cst_144 {dimension_numbers = #tpu.dot_dimension_numbers<[1], [0], [0], [1], [0, 0, 1, 1], [], []>} : vector<8x32xf32>, vector<32x32xf32>, vector<8x32xf32> -> vector<8x32xf32>
    %355 = vector.broadcast %111 : vector<1x32xf32> to vector<8x32xf32>
    %356 = arith.addf %354, %355 : vector<8x32xf32>
    %357 = arith.addf %343, %350 : vector<8x32xf32>
    %358 = arith.negf %357 : vector<8x32xf32>
    %359 = math.exp %358 : vector<8x32xf32>
    %cst_145 = arith.constant 1.000000e+00 : f32
    %360 = vector.broadcast %cst_145 : f32 to vector<8x32xf32>
    %361 = arith.addf %360, %359 : vector<8x32xf32>
    %362 = arith.divf %360, %361 : vector<8x32xf32>
    %363 = arith.addf %345, %353 : vector<8x32xf32>
    %364 = arith.negf %363 : vector<8x32xf32>
    %365 = math.exp %364 : vector<8x32xf32>
    %cst_146 = arith.constant 1.000000e+00 : f32
    %366 = vector.broadcast %cst_146 : f32 to vector<8x32xf32>
    %367 = arith.addf %366, %365 : vector<8x32xf32>
    %368 = arith.divf %366, %367 : vector<8x32xf32>
    %369 = arith.mulf %362, %356 : vector<8x32xf32>
    %370 = arith.addf %347, %369 : vector<8x32xf32>
    %371 = math.tanh %370 : vector<8x32xf32>
    %cst_147 = arith.constant 1.000000e+00 : f32
    %372 = vector.broadcast %cst_147 : f32 to vector<8x32xf32>
    %373 = arith.subf %372, %368 : vector<8x32xf32>
    %374 = arith.mulf %373, %371 : vector<8x32xf32>
    %375 = arith.mulf %368, %338 : vector<8x32xf32>
    %376 = arith.addf %374, %375 : vector<8x32xf32>
    %377 = arith.index_cast %341 : i32 to index
    %c0_148 = arith.constant 0 : index
    %378 = vector.load %arg31[%377, %c0_148] : memref<128x32xf32, #tpu.memory_space<vmem>>, vector<8x32xf32>
    tpu.vector_store %arg31[%377, %c0_148], %376 {strides = array<i32>} : memref<128x32xf32, #tpu.memory_space<vmem>>, vector<8x32xf32>,
    %c7_i32 = arith.constant 7 : i32
    %c8_i32_149 = arith.constant 8 : i32
    %379 = arith.muli %c7_i32, %c8_i32_149 : i32
    %380 = arith.index_cast %379 : i32 to index
    %c0_150 = arith.constant 0 : index
    %381 = vector.load %arg28[%380, %c0_150] : memref<128x32xf32, #tpu.memory_space<vmem>>, vector<8x32xf32>
    %382 = arith.index_cast %379 : i32 to index
    %c0_151 = arith.constant 0 : index
    %383 = vector.load %arg29[%382, %c0_151] : memref<128x32xf32, #tpu.memory_space<vmem>>, vector<8x32xf32>
    %384 = arith.index_cast %379 : i32 to index
    %c0_152 = arith.constant 0 : index
    %385 = vector.load %arg30[%384, %c0_152] : memref<128x32xf32, #tpu.memory_space<vmem>>, vector<8x32xf32>
    %cst_153 = arith.constant dense<0.000000e+00> : vector<8x32xf32>
    %386 = tpu.matmul %376, %101, %cst_153 {dimension_numbers = #tpu.dot_dimension_numbers<[1], [0], [0], [1], [0, 0, 1, 1], [], []>} : vector<8x32xf32>, vector<32x32xf32>, vector<8x32xf32> -> vector<8x32xf32>
    %387 = vector.broadcast %107 : vector<1x32xf32> to vector<8x32xf32>
    %388 = arith.addf %386, %387 : vector<8x32xf32>
    %cst_154 = arith.constant dense<0.000000e+00> : vector<8x32xf32>
    %389 = tpu.matmul %376, %103, %cst_154 {dimension_numbers = #tpu.dot_dimension_numbers<[1], [0], [0], [1], [0, 0, 1, 1], [], []>} : vector<8x32xf32>, vector<32x32xf32>, vector<8x32xf32> -> vector<8x32xf32>
    %390 = vector.broadcast %109 : vector<1x32xf32> to vector<8x32xf32>
    %391 = arith.addf %389, %390 : vector<8x32xf32>
    %cst_155 = arith.constant dense<0.000000e+00> : vector<8x32xf32>
    %392 = tpu.matmul %376, %105, %cst_155 {dimension_numbers = #tpu.dot_dimension_numbers<[1], [0], [0], [1], [0, 0, 1, 1], [], []>} : vector<8x32xf32>, vector<32x32xf32>, vector<8x32xf32> -> vector<8x32xf32>
    %393 = vector.broadcast %111 : vector<1x32xf32> to vector<8x32xf32>
    %394 = arith.addf %392, %393 : vector<8x32xf32>
    %395 = arith.addf %381, %388 : vector<8x32xf32>
    %396 = arith.negf %395 : vector<8x32xf32>
    %397 = math.exp %396 : vector<8x32xf32>
    %cst_156 = arith.constant 1.000000e+00 : f32
    %398 = vector.broadcast %cst_156 : f32 to vector<8x32xf32>
    %399 = arith.addf %398, %397 : vector<8x32xf32>
    %400 = arith.divf %398, %399 : vector<8x32xf32>
    %401 = arith.addf %383, %391 : vector<8x32xf32>
    %402 = arith.negf %401 : vector<8x32xf32>
    %403 = math.exp %402 : vector<8x32xf32>
    %cst_157 = arith.constant 1.000000e+00 : f32
    %404 = vector.broadcast %cst_157 : f32 to vector<8x32xf32>
    %405 = arith.addf %404, %403 : vector<8x32xf32>
    %406 = arith.divf %404, %405 : vector<8x32xf32>
    %407 = arith.mulf %400, %394 : vector<8x32xf32>
    %408 = arith.addf %385, %407 : vector<8x32xf32>
    %409 = math.tanh %408 : vector<8x32xf32>
    %cst_158 = arith.constant 1.000000e+00 : f32
    %410 = vector.broadcast %cst_158 : f32 to vector<8x32xf32>
    %411 = arith.subf %410, %406 : vector<8x32xf32>
    %412 = arith.mulf %411, %409 : vector<8x32xf32>
    %413 = arith.mulf %406, %376 : vector<8x32xf32>
    %414 = arith.addf %412, %413 : vector<8x32xf32>
    %415 = arith.index_cast %379 : i32 to index
    %c0_159 = arith.constant 0 : index
    %416 = vector.load %arg31[%415, %c0_159] : memref<128x32xf32, #tpu.memory_space<vmem>>, vector<8x32xf32>
    tpu.vector_store %arg31[%415, %c0_159], %414 {strides = array<i32>} : memref<128x32xf32, #tpu.memory_space<vmem>>, vector<8x32xf32>,
    %c8_i32_160 = arith.constant 8 : i32
    %c8_i32_161 = arith.constant 8 : i32
    %417 = arith.muli %c8_i32_160, %c8_i32_161 : i32
    %418 = arith.index_cast %417 : i32 to index
    %c0_162 = arith.constant 0 : index
    %419 = vector.load %arg28[%418, %c0_162] : memref<128x32xf32, #tpu.memory_space<vmem>>, vector<8x32xf32>
    %420 = arith.index_cast %417 : i32 to index
    %c0_163 = arith.constant 0 : index
    %421 = vector.load %arg29[%420, %c0_163] : memref<128x32xf32, #tpu.memory_space<vmem>>, vector<8x32xf32>
    %422 = arith.index_cast %417 : i32 to index
    %c0_164 = arith.constant 0 : index
    %423 = vector.load %arg30[%422, %c0_164] : memref<128x32xf32, #tpu.memory_space<vmem>>, vector<8x32xf32>
    %cst_165 = arith.constant dense<0.000000e+00> : vector<8x32xf32>
    %424 = tpu.matmul %414, %101, %cst_165 {dimension_numbers = #tpu.dot_dimension_numbers<[1], [0], [0], [1], [0, 0, 1, 1], [], []>} : vector<8x32xf32>, vector<32x32xf32>, vector<8x32xf32> -> vector<8x32xf32>
    %425 = vector.broadcast %107 : vector<1x32xf32> to vector<8x32xf32>
    %426 = arith.addf %424, %425 : vector<8x32xf32>
    %cst_166 = arith.constant dense<0.000000e+00> : vector<8x32xf32>
    %427 = tpu.matmul %414, %103, %cst_166 {dimension_numbers = #tpu.dot_dimension_numbers<[1], [0], [0], [1], [0, 0, 1, 1], [], []>} : vector<8x32xf32>, vector<32x32xf32>, vector<8x32xf32> -> vector<8x32xf32>
    %428 = vector.broadcast %109 : vector<1x32xf32> to vector<8x32xf32>
    %429 = arith.addf %427, %428 : vector<8x32xf32>
    %cst_167 = arith.constant dense<0.000000e+00> : vector<8x32xf32>
    %430 = tpu.matmul %414, %105, %cst_167 {dimension_numbers = #tpu.dot_dimension_numbers<[1], [0], [0], [1], [0, 0, 1, 1], [], []>} : vector<8x32xf32>, vector<32x32xf32>, vector<8x32xf32> -> vector<8x32xf32>
    %431 = vector.broadcast %111 : vector<1x32xf32> to vector<8x32xf32>
    %432 = arith.addf %430, %431 : vector<8x32xf32>
    %433 = arith.addf %419, %426 : vector<8x32xf32>
    %434 = arith.negf %433 : vector<8x32xf32>
    %435 = math.exp %434 : vector<8x32xf32>
    %cst_168 = arith.constant 1.000000e+00 : f32
    %436 = vector.broadcast %cst_168 : f32 to vector<8x32xf32>
    %437 = arith.addf %436, %435 : vector<8x32xf32>
    %438 = arith.divf %436, %437 : vector<8x32xf32>
    %439 = arith.addf %421, %429 : vector<8x32xf32>
    %440 = arith.negf %439 : vector<8x32xf32>
    %441 = math.exp %440 : vector<8x32xf32>
    %cst_169 = arith.constant 1.000000e+00 : f32
    %442 = vector.broadcast %cst_169 : f32 to vector<8x32xf32>
    %443 = arith.addf %442, %441 : vector<8x32xf32>
    %444 = arith.divf %442, %443 : vector<8x32xf32>
    %445 = arith.mulf %438, %432 : vector<8x32xf32>
    %446 = arith.addf %423, %445 : vector<8x32xf32>
    %447 = math.tanh %446 : vector<8x32xf32>
    %cst_170 = arith.constant 1.000000e+00 : f32
    %448 = vector.broadcast %cst_170 : f32 to vector<8x32xf32>
    %449 = arith.subf %448, %444 : vector<8x32xf32>
    %450 = arith.mulf %449, %447 : vector<8x32xf32>
    %451 = arith.mulf %444, %414 : vector<8x32xf32>
    %452 = arith.addf %450, %451 : vector<8x32xf32>
    %453 = arith.index_cast %417 : i32 to index
    %c0_171 = arith.constant 0 : index
    %454 = vector.load %arg31[%453, %c0_171] : memref<128x32xf32, #tpu.memory_space<vmem>>, vector<8x32xf32>
    tpu.vector_store %arg31[%453, %c0_171], %452 {strides = array<i32>} : memref<128x32xf32, #tpu.memory_space<vmem>>, vector<8x32xf32>,
    %c9_i32 = arith.constant 9 : i32
    %c8_i32_172 = arith.constant 8 : i32
    %455 = arith.muli %c9_i32, %c8_i32_172 : i32
    %456 = arith.index_cast %455 : i32 to index
    %c0_173 = arith.constant 0 : index
    %457 = vector.load %arg28[%456, %c0_173] : memref<128x32xf32, #tpu.memory_space<vmem>>, vector<8x32xf32>
    %458 = arith.index_cast %455 : i32 to index
    %c0_174 = arith.constant 0 : index
    %459 = vector.load %arg29[%458, %c0_174] : memref<128x32xf32, #tpu.memory_space<vmem>>, vector<8x32xf32>
    %460 = arith.index_cast %455 : i32 to index
    %c0_175 = arith.constant 0 : index
    %461 = vector.load %arg30[%460, %c0_175] : memref<128x32xf32, #tpu.memory_space<vmem>>, vector<8x32xf32>
    %cst_176 = arith.constant dense<0.000000e+00> : vector<8x32xf32>
    %462 = tpu.matmul %452, %101, %cst_176 {dimension_numbers = #tpu.dot_dimension_numbers<[1], [0], [0], [1], [0, 0, 1, 1], [], []>} : vector<8x32xf32>, vector<32x32xf32>, vector<8x32xf32> -> vector<8x32xf32>
    %463 = vector.broadcast %107 : vector<1x32xf32> to vector<8x32xf32>
    %464 = arith.addf %462, %463 : vector<8x32xf32>
    %cst_177 = arith.constant dense<0.000000e+00> : vector<8x32xf32>
    %465 = tpu.matmul %452, %103, %cst_177 {dimension_numbers = #tpu.dot_dimension_numbers<[1], [0], [0], [1], [0, 0, 1, 1], [], []>} : vector<8x32xf32>, vector<32x32xf32>, vector<8x32xf32> -> vector<8x32xf32>
    %466 = vector.broadcast %109 : vector<1x32xf32> to vector<8x32xf32>
    %467 = arith.addf %465, %466 : vector<8x32xf32>
    %cst_178 = arith.constant dense<0.000000e+00> : vector<8x32xf32>
    %468 = tpu.matmul %452, %105, %cst_178 {dimension_numbers = #tpu.dot_dimension_numbers<[1], [0], [0], [1], [0, 0, 1, 1], [], []>} : vector<8x32xf32>, vector<32x32xf32>, vector<8x32xf32> -> vector<8x32xf32>
    %469 = vector.broadcast %111 : vector<1x32xf32> to vector<8x32xf32>
    %470 = arith.addf %468, %469 : vector<8x32xf32>
    %471 = arith.addf %457, %464 : vector<8x32xf32>
    %472 = arith.negf %471 : vector<8x32xf32>
    %473 = math.exp %472 : vector<8x32xf32>
    %cst_179 = arith.constant 1.000000e+00 : f32
    %474 = vector.broadcast %cst_179 : f32 to vector<8x32xf32>
    %475 = arith.addf %474, %473 : vector<8x32xf32>
    %476 = arith.divf %474, %475 : vector<8x32xf32>
    %477 = arith.addf %459, %467 : vector<8x32xf32>
    %478 = arith.negf %477 : vector<8x32xf32>
    %479 = math.exp %478 : vector<8x32xf32>
    %cst_180 = arith.constant 1.000000e+00 : f32
    %480 = vector.broadcast %cst_180 : f32 to vector<8x32xf32>
    %481 = arith.addf %480, %479 : vector<8x32xf32>
    %482 = arith.divf %480, %481 : vector<8x32xf32>
    %483 = arith.mulf %476, %470 : vector<8x32xf32>
    %484 = arith.addf %461, %483 : vector<8x32xf32>
    %485 = math.tanh %484 : vector<8x32xf32>
    %cst_181 = arith.constant 1.000000e+00 : f32
    %486 = vector.broadcast %cst_181 : f32 to vector<8x32xf32>
    %487 = arith.subf %486, %482 : vector<8x32xf32>
    %488 = arith.mulf %487, %485 : vector<8x32xf32>
    %489 = arith.mulf %482, %452 : vector<8x32xf32>
    %490 = arith.addf %488, %489 : vector<8x32xf32>
    %491 = arith.index_cast %455 : i32 to index
    %c0_182 = arith.constant 0 : index
    %492 = vector.load %arg31[%491, %c0_182] : memref<128x32xf32, #tpu.memory_space<vmem>>, vector<8x32xf32>
    tpu.vector_store %arg31[%491, %c0_182], %490 {strides = array<i32>} : memref<128x32xf32, #tpu.memory_space<vmem>>, vector<8x32xf32>,
    %c10_i32 = arith.constant 10 : i32
    %c8_i32_183 = arith.constant 8 : i32
    %493 = arith.muli %c10_i32, %c8_i32_183 : i32
    %494 = arith.index_cast %493 : i32 to index
    %c0_184 = arith.constant 0 : index
    %495 = vector.load %arg28[%494, %c0_184] : memref<128x32xf32, #tpu.memory_space<vmem>>, vector<8x32xf32>
    %496 = arith.index_cast %493 : i32 to index
    %c0_185 = arith.constant 0 : index
    %497 = vector.load %arg29[%496, %c0_185] : memref<128x32xf32, #tpu.memory_space<vmem>>, vector<8x32xf32>
    %498 = arith.index_cast %493 : i32 to index
    %c0_186 = arith.constant 0 : index
    %499 = vector.load %arg30[%498, %c0_186] : memref<128x32xf32, #tpu.memory_space<vmem>>, vector<8x32xf32>
    %cst_187 = arith.constant dense<0.000000e+00> : vector<8x32xf32>
    %500 = tpu.matmul %490, %101, %cst_187 {dimension_numbers = #tpu.dot_dimension_numbers<[1], [0], [0], [1], [0, 0, 1, 1], [], []>} : vector<8x32xf32>, vector<32x32xf32>, vector<8x32xf32> -> vector<8x32xf32>
    %501 = vector.broadcast %107 : vector<1x32xf32> to vector<8x32xf32>
    %502 = arith.addf %500, %501 : vector<8x32xf32>
    %cst_188 = arith.constant dense<0.000000e+00> : vector<8x32xf32>
    %503 = tpu.matmul %490, %103, %cst_188 {dimension_numbers = #tpu.dot_dimension_numbers<[1], [0], [0], [1], [0, 0, 1, 1], [], []>} : vector<8x32xf32>, vector<32x32xf32>, vector<8x32xf32> -> vector<8x32xf32>
    %504 = vector.broadcast %109 : vector<1x32xf32> to vector<8x32xf32>
    %505 = arith.addf %503, %504 : vector<8x32xf32>
    %cst_189 = arith.constant dense<0.000000e+00> : vector<8x32xf32>
    %506 = tpu.matmul %490, %105, %cst_189 {dimension_numbers = #tpu.dot_dimension_numbers<[1], [0], [0], [1], [0, 0, 1, 1], [], []>} : vector<8x32xf32>, vector<32x32xf32>, vector<8x32xf32> -> vector<8x32xf32>
    %507 = vector.broadcast %111 : vector<1x32xf32> to vector<8x32xf32>
    %508 = arith.addf %506, %507 : vector<8x32xf32>
    %509 = arith.addf %495, %502 : vector<8x32xf32>
    %510 = arith.negf %509 : vector<8x32xf32>
    %511 = math.exp %510 : vector<8x32xf32>
    %cst_190 = arith.constant 1.000000e+00 : f32
    %512 = vector.broadcast %cst_190 : f32 to vector<8x32xf32>
    %513 = arith.addf %512, %511 : vector<8x32xf32>
    %514 = arith.divf %512, %513 : vector<8x32xf32>
    %515 = arith.addf %497, %505 : vector<8x32xf32>
    %516 = arith.negf %515 : vector<8x32xf32>
    %517 = math.exp %516 : vector<8x32xf32>
    %cst_191 = arith.constant 1.000000e+00 : f32
    %518 = vector.broadcast %cst_191 : f32 to vector<8x32xf32>
    %519 = arith.addf %518, %517 : vector<8x32xf32>
    %520 = arith.divf %518, %519 : vector<8x32xf32>
    %521 = arith.mulf %514, %508 : vector<8x32xf32>
    %522 = arith.addf %499, %521 : vector<8x32xf32>
    %523 = math.tanh %522 : vector<8x32xf32>
    %cst_192 = arith.constant 1.000000e+00 : f32
    %524 = vector.broadcast %cst_192 : f32 to vector<8x32xf32>
    %525 = arith.subf %524, %520 : vector<8x32xf32>
    %526 = arith.mulf %525, %523 : vector<8x32xf32>
    %527 = arith.mulf %520, %490 : vector<8x32xf32>
    %528 = arith.addf %526, %527 : vector<8x32xf32>
    %529 = arith.index_cast %493 : i32 to index
    %c0_193 = arith.constant 0 : index
    %530 = vector.load %arg31[%529, %c0_193] : memref<128x32xf32, #tpu.memory_space<vmem>>, vector<8x32xf32>
    tpu.vector_store %arg31[%529, %c0_193], %528 {strides = array<i32>} : memref<128x32xf32, #tpu.memory_space<vmem>>, vector<8x32xf32>,
    %c11_i32 = arith.constant 11 : i32
    %c8_i32_194 = arith.constant 8 : i32
    %531 = arith.muli %c11_i32, %c8_i32_194 : i32
    %532 = arith.index_cast %531 : i32 to index
    %c0_195 = arith.constant 0 : index
    %533 = vector.load %arg28[%532, %c0_195] : memref<128x32xf32, #tpu.memory_space<vmem>>, vector<8x32xf32>
    %534 = arith.index_cast %531 : i32 to index
    %c0_196 = arith.constant 0 : index
    %535 = vector.load %arg29[%534, %c0_196] : memref<128x32xf32, #tpu.memory_space<vmem>>, vector<8x32xf32>
    %536 = arith.index_cast %531 : i32 to index
    %c0_197 = arith.constant 0 : index
    %537 = vector.load %arg30[%536, %c0_197] : memref<128x32xf32, #tpu.memory_space<vmem>>, vector<8x32xf32>
    %cst_198 = arith.constant dense<0.000000e+00> : vector<8x32xf32>
    %538 = tpu.matmul %528, %101, %cst_198 {dimension_numbers = #tpu.dot_dimension_numbers<[1], [0], [0], [1], [0, 0, 1, 1], [], []>} : vector<8x32xf32>, vector<32x32xf32>, vector<8x32xf32> -> vector<8x32xf32>
    %539 = vector.broadcast %107 : vector<1x32xf32> to vector<8x32xf32>
    %540 = arith.addf %538, %539 : vector<8x32xf32>
    %cst_199 = arith.constant dense<0.000000e+00> : vector<8x32xf32>
    %541 = tpu.matmul %528, %103, %cst_199 {dimension_numbers = #tpu.dot_dimension_numbers<[1], [0], [0], [1], [0, 0, 1, 1], [], []>} : vector<8x32xf32>, vector<32x32xf32>, vector<8x32xf32> -> vector<8x32xf32>
    %542 = vector.broadcast %109 : vector<1x32xf32> to vector<8x32xf32>
    %543 = arith.addf %541, %542 : vector<8x32xf32>
    %cst_200 = arith.constant dense<0.000000e+00> : vector<8x32xf32>
    %544 = tpu.matmul %528, %105, %cst_200 {dimension_numbers = #tpu.dot_dimension_numbers<[1], [0], [0], [1], [0, 0, 1, 1], [], []>} : vector<8x32xf32>, vector<32x32xf32>, vector<8x32xf32> -> vector<8x32xf32>
    %545 = vector.broadcast %111 : vector<1x32xf32> to vector<8x32xf32>
    %546 = arith.addf %544, %545 : vector<8x32xf32>
    %547 = arith.addf %533, %540 : vector<8x32xf32>
    %548 = arith.negf %547 : vector<8x32xf32>
    %549 = math.exp %548 : vector<8x32xf32>
    %cst_201 = arith.constant 1.000000e+00 : f32
    %550 = vector.broadcast %cst_201 : f32 to vector<8x32xf32>
    %551 = arith.addf %550, %549 : vector<8x32xf32>
    %552 = arith.divf %550, %551 : vector<8x32xf32>
    %553 = arith.addf %535, %543 : vector<8x32xf32>
    %554 = arith.negf %553 : vector<8x32xf32>
    %555 = math.exp %554 : vector<8x32xf32>
    %cst_202 = arith.constant 1.000000e+00 : f32
    %556 = vector.broadcast %cst_202 : f32 to vector<8x32xf32>
    %557 = arith.addf %556, %555 : vector<8x32xf32>
    %558 = arith.divf %556, %557 : vector<8x32xf32>
    %559 = arith.mulf %552, %546 : vector<8x32xf32>
    %560 = arith.addf %537, %559 : vector<8x32xf32>
    %561 = math.tanh %560 : vector<8x32xf32>
    %cst_203 = arith.constant 1.000000e+00 : f32
    %562 = vector.broadcast %cst_203 : f32 to vector<8x32xf32>
    %563 = arith.subf %562, %558 : vector<8x32xf32>
    %564 = arith.mulf %563, %561 : vector<8x32xf32>
    %565 = arith.mulf %558, %528 : vector<8x32xf32>
    %566 = arith.addf %564, %565 : vector<8x32xf32>
    %567 = arith.index_cast %531 : i32 to index
    %c0_204 = arith.constant 0 : index
    %568 = vector.load %arg31[%567, %c0_204] : memref<128x32xf32, #tpu.memory_space<vmem>>, vector<8x32xf32>
    tpu.vector_store %arg31[%567, %c0_204], %566 {strides = array<i32>} : memref<128x32xf32, #tpu.memory_space<vmem>>, vector<8x32xf32>,
    %c12_i32 = arith.constant 12 : i32
    %c8_i32_205 = arith.constant 8 : i32
    %569 = arith.muli %c12_i32, %c8_i32_205 : i32
    %570 = arith.index_cast %569 : i32 to index
    %c0_206 = arith.constant 0 : index
    %571 = vector.load %arg28[%570, %c0_206] : memref<128x32xf32, #tpu.memory_space<vmem>>, vector<8x32xf32>
    %572 = arith.index_cast %569 : i32 to index
    %c0_207 = arith.constant 0 : index
    %573 = vector.load %arg29[%572, %c0_207] : memref<128x32xf32, #tpu.memory_space<vmem>>, vector<8x32xf32>
    %574 = arith.index_cast %569 : i32 to index
    %c0_208 = arith.constant 0 : index
    %575 = vector.load %arg30[%574, %c0_208] : memref<128x32xf32, #tpu.memory_space<vmem>>, vector<8x32xf32>
    %cst_209 = arith.constant dense<0.000000e+00> : vector<8x32xf32>
    %576 = tpu.matmul %566, %101, %cst_209 {dimension_numbers = #tpu.dot_dimension_numbers<[1], [0], [0], [1], [0, 0, 1, 1], [], []>} : vector<8x32xf32>, vector<32x32xf32>, vector<8x32xf32> -> vector<8x32xf32>
    %577 = vector.broadcast %107 : vector<1x32xf32> to vector<8x32xf32>
    %578 = arith.addf %576, %577 : vector<8x32xf32>
    %cst_210 = arith.constant dense<0.000000e+00> : vector<8x32xf32>
    %579 = tpu.matmul %566, %103, %cst_210 {dimension_numbers = #tpu.dot_dimension_numbers<[1], [0], [0], [1], [0, 0, 1, 1], [], []>} : vector<8x32xf32>, vector<32x32xf32>, vector<8x32xf32> -> vector<8x32xf32>
    %580 = vector.broadcast %109 : vector<1x32xf32> to vector<8x32xf32>
    %581 = arith.addf %579, %580 : vector<8x32xf32>
    %cst_211 = arith.constant dense<0.000000e+00> : vector<8x32xf32>
    %582 = tpu.matmul %566, %105, %cst_211 {dimension_numbers = #tpu.dot_dimension_numbers<[1], [0], [0], [1], [0, 0, 1, 1], [], []>} : vector<8x32xf32>, vector<32x32xf32>, vector<8x32xf32> -> vector<8x32xf32>
    %583 = vector.broadcast %111 : vector<1x32xf32> to vector<8x32xf32>
    %584 = arith.addf %582, %583 : vector<8x32xf32>
    %585 = arith.addf %571, %578 : vector<8x32xf32>
    %586 = arith.negf %585 : vector<8x32xf32>
    %587 = math.exp %586 : vector<8x32xf32>
    %cst_212 = arith.constant 1.000000e+00 : f32
    %588 = vector.broadcast %cst_212 : f32 to vector<8x32xf32>
    %589 = arith.addf %588, %587 : vector<8x32xf32>
    %590 = arith.divf %588, %589 : vector<8x32xf32>
    %591 = arith.addf %573, %581 : vector<8x32xf32>
    %592 = arith.negf %591 : vector<8x32xf32>
    %593 = math.exp %592 : vector<8x32xf32>
    %cst_213 = arith.constant 1.000000e+00 : f32
    %594 = vector.broadcast %cst_213 : f32 to vector<8x32xf32>
    %595 = arith.addf %594, %593 : vector<8x32xf32>
    %596 = arith.divf %594, %595 : vector<8x32xf32>
    %597 = arith.mulf %590, %584 : vector<8x32xf32>
    %598 = arith.addf %575, %597 : vector<8x32xf32>
    %599 = math.tanh %598 : vector<8x32xf32>
    %cst_214 = arith.constant 1.000000e+00 : f32
    %600 = vector.broadcast %cst_214 : f32 to vector<8x32xf32>
    %601 = arith.subf %600, %596 : vector<8x32xf32>
    %602 = arith.mulf %601, %599 : vector<8x32xf32>
    %603 = arith.mulf %596, %566 : vector<8x32xf32>
    %604 = arith.addf %602, %603 : vector<8x32xf32>
    %605 = arith.index_cast %569 : i32 to index
    %c0_215 = arith.constant 0 : index
    %606 = vector.load %arg31[%605, %c0_215] : memref<128x32xf32, #tpu.memory_space<vmem>>, vector<8x32xf32>
    tpu.vector_store %arg31[%605, %c0_215], %604 {strides = array<i32>} : memref<128x32xf32, #tpu.memory_space<vmem>>, vector<8x32xf32>,
    %c13_i32 = arith.constant 13 : i32
    %c8_i32_216 = arith.constant 8 : i32
    %607 = arith.muli %c13_i32, %c8_i32_216 : i32
    %608 = arith.index_cast %607 : i32 to index
    %c0_217 = arith.constant 0 : index
    %609 = vector.load %arg28[%608, %c0_217] : memref<128x32xf32, #tpu.memory_space<vmem>>, vector<8x32xf32>
    %610 = arith.index_cast %607 : i32 to index
    %c0_218 = arith.constant 0 : index
    %611 = vector.load %arg29[%610, %c0_218] : memref<128x32xf32, #tpu.memory_space<vmem>>, vector<8x32xf32>
    %612 = arith.index_cast %607 : i32 to index
    %c0_219 = arith.constant 0 : index
    %613 = vector.load %arg30[%612, %c0_219] : memref<128x32xf32, #tpu.memory_space<vmem>>, vector<8x32xf32>
    %cst_220 = arith.constant dense<0.000000e+00> : vector<8x32xf32>
    %614 = tpu.matmul %604, %101, %cst_220 {dimension_numbers = #tpu.dot_dimension_numbers<[1], [0], [0], [1], [0, 0, 1, 1], [], []>} : vector<8x32xf32>, vector<32x32xf32>, vector<8x32xf32> -> vector<8x32xf32>
    %615 = vector.broadcast %107 : vector<1x32xf32> to vector<8x32xf32>
    %616 = arith.addf %614, %615 : vector<8x32xf32>
    %cst_221 = arith.constant dense<0.000000e+00> : vector<8x32xf32>
    %617 = tpu.matmul %604, %103, %cst_221 {dimension_numbers = #tpu.dot_dimension_numbers<[1], [0], [0], [1], [0, 0, 1, 1], [], []>} : vector<8x32xf32>, vector<32x32xf32>, vector<8x32xf32> -> vector<8x32xf32>
    %618 = vector.broadcast %109 : vector<1x32xf32> to vector<8x32xf32>
    %619 = arith.addf %617, %618 : vector<8x32xf32>
    %cst_222 = arith.constant dense<0.000000e+00> : vector<8x32xf32>
    %620 = tpu.matmul %604, %105, %cst_222 {dimension_numbers = #tpu.dot_dimension_numbers<[1], [0], [0], [1], [0, 0, 1, 1], [], []>} : vector<8x32xf32>, vector<32x32xf32>, vector<8x32xf32> -> vector<8x32xf32>
    %621 = vector.broadcast %111 : vector<1x32xf32> to vector<8x32xf32>
    %622 = arith.addf %620, %621 : vector<8x32xf32>
    %623 = arith.addf %609, %616 : vector<8x32xf32>
    %624 = arith.negf %623 : vector<8x32xf32>
    %625 = math.exp %624 : vector<8x32xf32>
    %cst_223 = arith.constant 1.000000e+00 : f32
    %626 = vector.broadcast %cst_223 : f32 to vector<8x32xf32>
    %627 = arith.addf %626, %625 : vector<8x32xf32>
    %628 = arith.divf %626, %627 : vector<8x32xf32>
    %629 = arith.addf %611, %619 : vector<8x32xf32>
    %630 = arith.negf %629 : vector<8x32xf32>
    %631 = math.exp %630 : vector<8x32xf32>
    %cst_224 = arith.constant 1.000000e+00 : f32
    %632 = vector.broadcast %cst_224 : f32 to vector<8x32xf32>
    %633 = arith.addf %632, %631 : vector<8x32xf32>
    %634 = arith.divf %632, %633 : vector<8x32xf32>
    %635 = arith.mulf %628, %622 : vector<8x32xf32>
    %636 = arith.addf %613, %635 : vector<8x32xf32>
    %637 = math.tanh %636 : vector<8x32xf32>
    %cst_225 = arith.constant 1.000000e+00 : f32
    %638 = vector.broadcast %cst_225 : f32 to vector<8x32xf32>
    %639 = arith.subf %638, %634 : vector<8x32xf32>
    %640 = arith.mulf %639, %637 : vector<8x32xf32>
    %641 = arith.mulf %634, %604 : vector<8x32xf32>
    %642 = arith.addf %640, %641 : vector<8x32xf32>
    %643 = arith.index_cast %607 : i32 to index
    %c0_226 = arith.constant 0 : index
    %644 = vector.load %arg31[%643, %c0_226] : memref<128x32xf32, #tpu.memory_space<vmem>>, vector<8x32xf32>
    tpu.vector_store %arg31[%643, %c0_226], %642 {strides = array<i32>} : memref<128x32xf32, #tpu.memory_space<vmem>>, vector<8x32xf32>,
    %c14_i32 = arith.constant 14 : i32
    %c8_i32_227 = arith.constant 8 : i32
    %645 = arith.muli %c14_i32, %c8_i32_227 : i32
    %646 = arith.index_cast %645 : i32 to index
    %c0_228 = arith.constant 0 : index
    %647 = vector.load %arg28[%646, %c0_228] : memref<128x32xf32, #tpu.memory_space<vmem>>, vector<8x32xf32>
    %648 = arith.index_cast %645 : i32 to index
    %c0_229 = arith.constant 0 : index
    %649 = vector.load %arg29[%648, %c0_229] : memref<128x32xf32, #tpu.memory_space<vmem>>, vector<8x32xf32>
    %650 = arith.index_cast %645 : i32 to index
    %c0_230 = arith.constant 0 : index
    %651 = vector.load %arg30[%650, %c0_230] : memref<128x32xf32, #tpu.memory_space<vmem>>, vector<8x32xf32>
    %cst_231 = arith.constant dense<0.000000e+00> : vector<8x32xf32>
    %652 = tpu.matmul %642, %101, %cst_231 {dimension_numbers = #tpu.dot_dimension_numbers<[1], [0], [0], [1], [0, 0, 1, 1], [], []>} : vector<8x32xf32>, vector<32x32xf32>, vector<8x32xf32> -> vector<8x32xf32>
    %653 = vector.broadcast %107 : vector<1x32xf32> to vector<8x32xf32>
    %654 = arith.addf %652, %653 : vector<8x32xf32>
    %cst_232 = arith.constant dense<0.000000e+00> : vector<8x32xf32>
    %655 = tpu.matmul %642, %103, %cst_232 {dimension_numbers = #tpu.dot_dimension_numbers<[1], [0], [0], [1], [0, 0, 1, 1], [], []>} : vector<8x32xf32>, vector<32x32xf32>, vector<8x32xf32> -> vector<8x32xf32>
    %656 = vector.broadcast %109 : vector<1x32xf32> to vector<8x32xf32>
    %657 = arith.addf %655, %656 : vector<8x32xf32>
    %cst_233 = arith.constant dense<0.000000e+00> : vector<8x32xf32>
    %658 = tpu.matmul %642, %105, %cst_233 {dimension_numbers = #tpu.dot_dimension_numbers<[1], [0], [0], [1], [0, 0, 1, 1], [], []>} : vector<8x32xf32>, vector<32x32xf32>, vector<8x32xf32> -> vector<8x32xf32>
    %659 = vector.broadcast %111 : vector<1x32xf32> to vector<8x32xf32>
    %660 = arith.addf %658, %659 : vector<8x32xf32>
    %661 = arith.addf %647, %654 : vector<8x32xf32>
    %662 = arith.negf %661 : vector<8x32xf32>
    %663 = math.exp %662 : vector<8x32xf32>
    %cst_234 = arith.constant 1.000000e+00 : f32
    %664 = vector.broadcast %cst_234 : f32 to vector<8x32xf32>
    %665 = arith.addf %664, %663 : vector<8x32xf32>
    %666 = arith.divf %664, %665 : vector<8x32xf32>
    %667 = arith.addf %649, %657 : vector<8x32xf32>
    %668 = arith.negf %667 : vector<8x32xf32>
    %669 = math.exp %668 : vector<8x32xf32>
    %cst_235 = arith.constant 1.000000e+00 : f32
    %670 = vector.broadcast %cst_235 : f32 to vector<8x32xf32>
    %671 = arith.addf %670, %669 : vector<8x32xf32>
    %672 = arith.divf %670, %671 : vector<8x32xf32>
    %673 = arith.mulf %666, %660 : vector<8x32xf32>
    %674 = arith.addf %651, %673 : vector<8x32xf32>
    %675 = math.tanh %674 : vector<8x32xf32>
    %cst_236 = arith.constant 1.000000e+00 : f32
    %676 = vector.broadcast %cst_236 : f32 to vector<8x32xf32>
    %677 = arith.subf %676, %672 : vector<8x32xf32>
    %678 = arith.mulf %677, %675 : vector<8x32xf32>
    %679 = arith.mulf %672, %642 : vector<8x32xf32>
    %680 = arith.addf %678, %679 : vector<8x32xf32>
    %681 = arith.index_cast %645 : i32 to index
    %c0_237 = arith.constant 0 : index
    %682 = vector.load %arg31[%681, %c0_237] : memref<128x32xf32, #tpu.memory_space<vmem>>, vector<8x32xf32>
    tpu.vector_store %arg31[%681, %c0_237], %680 {strides = array<i32>} : memref<128x32xf32, #tpu.memory_space<vmem>>, vector<8x32xf32>,
    %c15_i32 = arith.constant 15 : i32
    %c8_i32_238 = arith.constant 8 : i32
    %683 = arith.muli %c15_i32, %c8_i32_238 : i32
    %684 = arith.index_cast %683 : i32 to index
    %c0_239 = arith.constant 0 : index
    %685 = vector.load %arg28[%684, %c0_239] : memref<128x32xf32, #tpu.memory_space<vmem>>, vector<8x32xf32>
    %686 = arith.index_cast %683 : i32 to index
    %c0_240 = arith.constant 0 : index
    %687 = vector.load %arg29[%686, %c0_240] : memref<128x32xf32, #tpu.memory_space<vmem>>, vector<8x32xf32>
    %688 = arith.index_cast %683 : i32 to index
    %c0_241 = arith.constant 0 : index
    %689 = vector.load %arg30[%688, %c0_241] : memref<128x32xf32, #tpu.memory_space<vmem>>, vector<8x32xf32>
    %cst_242 = arith.constant dense<0.000000e+00> : vector<8x32xf32>
    %690 = tpu.matmul %680, %101, %cst_242 {dimension_numbers = #tpu.dot_dimension_numbers<[1], [0], [0], [1], [0, 0, 1, 1], [], []>} : vector<8x32xf32>, vector<32x32xf32>, vector<8x32xf32> -> vector<8x32xf32>
    %691 = vector.broadcast %107 : vector<1x32xf32> to vector<8x32xf32>
    %692 = arith.addf %690, %691 : vector<8x32xf32>
    %cst_243 = arith.constant dense<0.000000e+00> : vector<8x32xf32>
    %693 = tpu.matmul %680, %103, %cst_243 {dimension_numbers = #tpu.dot_dimension_numbers<[1], [0], [0], [1], [0, 0, 1, 1], [], []>} : vector<8x32xf32>, vector<32x32xf32>, vector<8x32xf32> -> vector<8x32xf32>
    %694 = vector.broadcast %109 : vector<1x32xf32> to vector<8x32xf32>
    %695 = arith.addf %693, %694 : vector<8x32xf32>
    %cst_244 = arith.constant dense<0.000000e+00> : vector<8x32xf32>
    %696 = tpu.matmul %680, %105, %cst_244 {dimension_numbers = #tpu.dot_dimension_numbers<[1], [0], [0], [1], [0, 0, 1, 1], [], []>} : vector<8x32xf32>, vector<32x32xf32>, vector<8x32xf32> -> vector<8x32xf32>
    %697 = vector.broadcast %111 : vector<1x32xf32> to vector<8x32xf32>
    %698 = arith.addf %696, %697 : vector<8x32xf32>
    %699 = arith.addf %685, %692 : vector<8x32xf32>
    %700 = arith.negf %699 : vector<8x32xf32>
    %701 = math.exp %700 : vector<8x32xf32>
    %cst_245 = arith.constant 1.000000e+00 : f32
    %702 = vector.broadcast %cst_245 : f32 to vector<8x32xf32>
    %703 = arith.addf %702, %701 : vector<8x32xf32>
    %704 = arith.divf %702, %703 : vector<8x32xf32>
    %705 = arith.addf %687, %695 : vector<8x32xf32>
    %706 = arith.negf %705 : vector<8x32xf32>
    %707 = math.exp %706 : vector<8x32xf32>
    %cst_246 = arith.constant 1.000000e+00 : f32
    %708 = vector.broadcast %cst_246 : f32 to vector<8x32xf32>
    %709 = arith.addf %708, %707 : vector<8x32xf32>
    %710 = arith.divf %708, %709 : vector<8x32xf32>
    %711 = arith.mulf %704, %698 : vector<8x32xf32>
    %712 = arith.addf %689, %711 : vector<8x32xf32>
    %713 = math.tanh %712 : vector<8x32xf32>
    %cst_247 = arith.constant 1.000000e+00 : f32
    %714 = vector.broadcast %cst_247 : f32 to vector<8x32xf32>
    %715 = arith.subf %714, %710 : vector<8x32xf32>
    %716 = arith.mulf %715, %713 : vector<8x32xf32>
    %717 = arith.mulf %710, %680 : vector<8x32xf32>
    %718 = arith.addf %716, %717 : vector<8x32xf32>
    %719 = arith.index_cast %683 : i32 to index
    %c0_248 = arith.constant 0 : index
    %720 = vector.load %arg31[%719, %c0_248] : memref<128x32xf32, #tpu.memory_space<vmem>>, vector<8x32xf32>
    tpu.vector_store %arg31[%719, %c0_248], %718 {strides = array<i32>} : memref<128x32xf32, #tpu.memory_space<vmem>>, vector<8x32xf32>,
    %c16_i32 = arith.constant 16 : i32
    %c64 = arith.constant 64 : index
    %c0_249 = arith.constant 0 : index
    %721 = vector.load %arg31[%c64, %c0_249] : memref<128x32xf32, #tpu.memory_space<vmem>>, vector<64x32xf32>
    %c0_250 = arith.constant 0 : index
    %c0_251 = arith.constant 0 : index
    %722 = vector.load %arg2[%c0_250, %c0_251] : memref<64x32xf32, #tpu.memory_space<vmem>>, vector<64x32xf32>
    %723 = arith.truncf %722 : vector<64x32xf32> to vector<64x32xbf16>
    %c0_252 = arith.constant 0 : index
    %c0_253 = arith.constant 0 : index
    %c0_254 = arith.constant 0 : index
    %724 = vector.load %arg17[%c0_252, %c0_253, %c0_254] : memref<4x32x32xbf16, #tpu.memory_space<vmem>>, vector<1x32x32xbf16>
    %725 = vector.shape_cast %724 : vector<1x32x32xbf16> to vector<32x32xbf16>
    %cst_255 = arith.constant dense<0.000000e+00> : vector<64x32xf32>
    %726 = tpu.matmul %723, %725, %cst_255 {dimension_numbers = #tpu.dot_dimension_numbers<[1], [0], [0], [1], [0, 0, 1, 1], [], []>} : vector<64x32xbf16>, vector<32x32xbf16>, vector<64x32xf32> -> vector<64x32xf32>
    %727 = arith.truncf %721 : vector<64x32xf32> to vector<64x32xbf16>
    %c1_256 = arith.constant 1 : index
    %c0_257 = arith.constant 0 : index
    %c0_258 = arith.constant 0 : index
    %728 = vector.load %arg17[%c1_256, %c0_257, %c0_258] : memref<4x32x32xbf16, #tpu.memory_space<vmem>>, vector<1x32x32xbf16>
    %729 = vector.shape_cast %728 : vector<1x32x32xbf16> to vector<32x32xbf16>
    %cst_259 = arith.constant dense<0.000000e+00> : vector<64x32xf32>
    %730 = tpu.matmul %727, %729, %cst_259 {dimension_numbers = #tpu.dot_dimension_numbers<[1], [0], [0], [1], [0, 0, 1, 1], [], []>} : vector<64x32xbf16>, vector<32x32xbf16>, vector<64x32xf32> -> vector<64x32xf32>
    %731 = arith.addf %726, %730 : vector<64x32xf32>
    %c0_260 = arith.constant 0 : index
    %c0_261 = arith.constant 0 : index
    %732 = vector.load %arg3[%c0_260, %c0_261] : memref<64x32xf32, #tpu.memory_space<vmem>>, vector<64x32xf32>
    %733 = arith.truncf %732 : vector<64x32xf32> to vector<64x32xbf16>
    %c2_262 = arith.constant 2 : index
    %c0_263 = arith.constant 0 : index
    %c0_264 = arith.constant 0 : index
    %734 = vector.load %arg17[%c2_262, %c0_263, %c0_264] : memref<4x32x32xbf16, #tpu.memory_space<vmem>>, vector<1x32x32xbf16>
    %735 = vector.shape_cast %734 : vector<1x32x32xbf16> to vector<32x32xbf16>
    %cst_265 = arith.constant dense<0.000000e+00> : vector<64x32xf32>
    %736 = tpu.matmul %733, %735, %cst_265 {dimension_numbers = #tpu.dot_dimension_numbers<[1], [0], [0], [1], [0, 0, 1, 1], [], []>} : vector<64x32xbf16>, vector<32x32xbf16>, vector<64x32xf32> -> vector<64x32xf32>
    %737 = arith.addf %731, %736 : vector<64x32xf32>
    %c0_266 = arith.constant 0 : index
    %c0_267 = arith.constant 0 : index
    %738 = vector.load %arg18[%c0_266, %c0_267] : memref<1x32xf32, #tpu.memory_space<vmem>>, vector<1x32xf32>
    %739 = vector.broadcast %738 : vector<1x32xf32> to vector<64x32xf32>
    %740 = arith.addf %737, %739 : vector<64x32xf32>
    %c0_268 = arith.constant 0 : index
    %c0_269 = arith.constant 0 : index
    %741 = vector.load %arg4[%c0_268, %c0_269] : memref<8x32xf32, #tpu.memory_space<vmem>>, vector<8x32xf32>
    %742 = arith.truncf %741 : vector<8x32xf32> to vector<8x32xbf16>
    %c3 = arith.constant 3 : index
    %c0_270 = arith.constant 0 : index
    %c0_271 = arith.constant 0 : index
    %743 = vector.load %arg17[%c3, %c0_270, %c0_271] : memref<4x32x32xbf16, #tpu.memory_space<vmem>>, vector<1x32x32xbf16>
    %744 = vector.shape_cast %743 : vector<1x32x32xbf16> to vector<32x32xbf16>
    %cst_272 = arith.constant dense<0.000000e+00> : vector<8x32xf32>
    %745 = tpu.matmul %742, %744, %cst_272 {dimension_numbers = #tpu.dot_dimension_numbers<[1], [0], [0], [1], [0, 0, 1, 1], [], []>} : vector<8x32xbf16>, vector<32x32xbf16>, vector<8x32xf32> -> vector<8x32xf32>
    %746 = tpu.concatenate %745, %745, %745, %745, %745, %745, %745, %745 in 0 : vector<8x32xf32>, vector<8x32xf32>, vector<8x32xf32>, vector<8x32xf32>, vector<8x32xf32>, vector<8x32xf32>, vector<8x32xf32>, vector<8x32xf32> -> vector<64x32xf32>
    %747 = arith.addf %740, %746 : vector<64x32xf32>
    %c0_273 = arith.constant 0 : index
    %c0_274 = arith.constant 0 : index
    %748 = vector.load %arg19[%c0_273, %c0_274] : memref<1x32xf32, #tpu.memory_space<vmem>>, vector<1x32xf32>
    %c0_275 = arith.constant 0 : index
    %c0_276 = arith.constant 0 : index
    %749 = vector.load %arg20[%c0_275, %c0_276] : memref<1x32xf32, #tpu.memory_space<vmem>>, vector<1x32xf32>
    %cst_277 = arith.constant dense<0.000000e+00> : vector<64xf32>
    %750 = vector.multi_reduction <add>, %747, %cst_277 [1] : vector<64x32xf32> to vector<64xf32>
    %751 = vector.shape_cast %750 : vector<64xf32> to vector<64x1xf32>
    %cst_278 = arith.constant 3.200000e+01 : f32
    %752 = vector.broadcast %cst_278 : f32 to vector<64x1xf32>
    %753 = arith.divf %751, %752 : vector<64x1xf32>
    %754 = vector.broadcast %753 : vector<64x1xf32> to vector<64x32xf32>
    %755 = arith.subf %747, %754 : vector<64x32xf32>
    %756 = arith.mulf %755, %755 : vector<64x32xf32>
    %cst_279 = arith.constant dense<0.000000e+00> : vector<64xf32>
    %757 = vector.multi_reduction <add>, %756, %cst_279 [1] : vector<64x32xf32> to vector<64xf32>
    %758 = vector.shape_cast %757 : vector<64xf32> to vector<64x1xf32>
    %cst_280 = arith.constant 3.200000e+01 : f32
    %759 = vector.broadcast %cst_280 : f32 to vector<64x1xf32>
    %760 = arith.divf %758, %759 : vector<64x1xf32>
    %761 = vector.broadcast %753 : vector<64x1xf32> to vector<64x32xf32>
    %762 = arith.subf %747, %761 : vector<64x32xf32>
    %cst_281 = arith.constant 9.99999974E-6 : f32
    %763 = vector.broadcast %cst_281 : f32 to vector<64x1xf32>
    %764 = arith.addf %760, %763 : vector<64x1xf32>
    %765 = math.rsqrt %764 : vector<64x1xf32>
    %766 = vector.broadcast %765 : vector<64x1xf32> to vector<64x32xf32>
    %767 = arith.mulf %762, %766 : vector<64x32xf32>
    %768 = vector.broadcast %748 : vector<1x32xf32> to vector<64x32xf32>
    %769 = arith.mulf %767, %768 : vector<64x32xf32>
    %770 = vector.broadcast %749 : vector<1x32xf32> to vector<64x32xf32>
    %771 = arith.addf %769, %770 : vector<64x32xf32>
    %cst_282 = arith.constant 0.000000e+00 : f32
    %772 = vector.broadcast %cst_282 : f32 to vector<64x32xf32>
    %773 = arith.maximumf %771, %772 : vector<64x32xf32>
    %774 = arith.truncf %773 : vector<64x32xf32> to vector<64x32xbf16>
    %c0_283 = arith.constant 0 : index
    %c0_284 = arith.constant 0 : index
    %775 = vector.load %arg21[%c0_283, %c0_284] : memref<32x32xbf16, #tpu.memory_space<vmem>>, vector<32x32xbf16>
    %cst_285 = arith.constant dense<0.000000e+00> : vector<64x32xf32>
    %776 = tpu.matmul %774, %775, %cst_285 {dimension_numbers = #tpu.dot_dimension_numbers<[1], [0], [0], [1], [0, 0, 1, 1], [], []>} : vector<64x32xbf16>, vector<32x32xbf16>, vector<64x32xf32> -> vector<64x32xf32>
    %c0_286 = arith.constant 0 : index
    %c0_287 = arith.constant 0 : index
    %777 = vector.load %arg22[%c0_286, %c0_287] : memref<1x32xf32, #tpu.memory_space<vmem>>, vector<1x32xf32>
    %778 = vector.broadcast %777 : vector<1x32xf32> to vector<64x32xf32>
    %779 = arith.addf %776, %778 : vector<64x32xf32>
    %c0_288 = arith.constant 0 : index
    %c0_289 = arith.constant 0 : index
    %780 = vector.load %arg23[%c0_288, %c0_289] : memref<1x32xf32, #tpu.memory_space<vmem>>, vector<1x32xf32>
    %c0_290 = arith.constant 0 : index
    %c0_291 = arith.constant 0 : index
    %781 = vector.load %arg24[%c0_290, %c0_291] : memref<1x32xf32, #tpu.memory_space<vmem>>, vector<1x32xf32>
    %cst_292 = arith.constant dense<0.000000e+00> : vector<64xf32>
    %782 = vector.multi_reduction <add>, %779, %cst_292 [1] : vector<64x32xf32> to vector<64xf32>
    %783 = vector.shape_cast %782 : vector<64xf32> to vector<64x1xf32>
    %cst_293 = arith.constant 3.200000e+01 : f32
    %784 = vector.broadcast %cst_293 : f32 to vector<64x1xf32>
    %785 = arith.divf %783, %784 : vector<64x1xf32>
    %786 = vector.broadcast %785 : vector<64x1xf32> to vector<64x32xf32>
    %787 = arith.subf %779, %786 : vector<64x32xf32>
    %788 = arith.mulf %787, %787 : vector<64x32xf32>
    %cst_294 = arith.constant dense<0.000000e+00> : vector<64xf32>
    %789 = vector.multi_reduction <add>, %788, %cst_294 [1] : vector<64x32xf32> to vector<64xf32>
    %790 = vector.shape_cast %789 : vector<64xf32> to vector<64x1xf32>
    %cst_295 = arith.constant 3.200000e+01 : f32
    %791 = vector.broadcast %cst_295 : f32 to vector<64x1xf32>
    %792 = arith.divf %790, %791 : vector<64x1xf32>
    %793 = vector.broadcast %785 : vector<64x1xf32> to vector<64x32xf32>
    %794 = arith.subf %779, %793 : vector<64x32xf32>
    %cst_296 = arith.constant 9.99999974E-6 : f32
    %795 = vector.broadcast %cst_296 : f32 to vector<64x1xf32>
    %796 = arith.addf %792, %795 : vector<64x1xf32>
    %797 = math.rsqrt %796 : vector<64x1xf32>
    %798 = vector.broadcast %797 : vector<64x1xf32> to vector<64x32xf32>
    %799 = arith.mulf %794, %798 : vector<64x32xf32>
    %800 = vector.broadcast %780 : vector<1x32xf32> to vector<64x32xf32>
    %801 = arith.mulf %799, %800 : vector<64x32xf32>
    %802 = vector.broadcast %781 : vector<1x32xf32> to vector<64x32xf32>
    %803 = arith.addf %801, %802 : vector<64x32xf32>
    %cst_297 = arith.constant 0.000000e+00 : f32
    %804 = vector.broadcast %cst_297 : f32 to vector<64x32xf32>
    %805 = arith.maximumf %803, %804 : vector<64x32xf32>
    %c0_298 = arith.constant 0 : index
    %c0_299 = arith.constant 0 : index
    %806 = vector.load %arg25[%c0_298, %c0_299] : memref<32x2xf32, #tpu.memory_space<vmem>>, vector<32x2xf32>
    %cst_300 = arith.constant dense<0.000000e+00> : vector<64x2xf32>
    %807 = tpu.matmul %805, %806, %cst_300 {dimension_numbers = #tpu.dot_dimension_numbers<[1], [0], [0], [1], [0, 0, 1, 1], [], []>} : vector<64x32xf32>, vector<32x2xf32>, vector<64x2xf32> -> vector<64x2xf32>
    %c0_301 = arith.constant 0 : index
    %c0_302 = arith.constant 0 : index
    %808 = vector.load %arg26[%c0_301, %c0_302] : memref<1x2xf32, #tpu.memory_space<vmem>>, vector<1x2xf32>
    %809 = vector.broadcast %808 : vector<1x2xf32> to vector<64x2xf32>
    %810 = arith.addf %807, %809 : vector<64x2xf32>
    %c0_303 = arith.constant 0 : index
    %c0_304 = arith.constant 0 : index
    %811 = vector.load %arg27[%c0_303, %c0_304] : memref<64x2xf32, #tpu.memory_space<vmem>>, vector<64x2xf32>
    tpu.vector_store %arg27[%c0_303, %c0_304], %810 {strides = array<i32>} : memref<64x2xf32, #tpu.memory_space<vmem>>, vector<64x2xf32>,
    return
  }
  func.func @transform_0(%arg0: i32) -> (i32, i32) {
    %c0_i32 = arith.constant 0 : i32
    %c0_i32_0 = arith.constant 0 : i32
    %c0_i32_1 = arith.constant 0 : i32
    return %c0_i32, %c0_i32_0 : i32, i32
  }
  func.func @transform_1(%arg0: i32) -> (i32, i32) {
    %c0_i32 = arith.constant 0 : i32
    %c0_i32_0 = arith.constant 0 : i32
    %c0_i32_1 = arith.constant 0 : i32
    return %c0_i32, %c0_i32_0 : i32, i32
  }
  func.func @transform_2(%arg0: i32) -> (i32, i32) {
    %c0_i32 = arith.constant 0 : i32
    %c0_i32_0 = arith.constant 0 : i32
    %c0_i32_1 = arith.constant 0 : i32
    return %c0_i32, %c0_i32_0 : i32, i32
  }
  func.func @transform_3(%arg0: i32) -> (i32, i32) {
    %c0_i32 = arith.constant 0 : i32
    %c0_i32_0 = arith.constant 0 : i32
    %c0_i32_1 = arith.constant 0 : i32
    return %c0_i32, %c0_i32_0 : i32, i32
  }
  func.func @transform_4(%arg0: i32) -> (i32, i32) {
    %c0_i32 = arith.constant 0 : i32
    %c0_i32_0 = arith.constant 0 : i32
    %c0_i32_1 = arith.constant 0 : i32
    return %c0_i32, %c0_i32_0 : i32, i32
  }
  func.func @transform_5(%arg0: i32) -> (i32, i32) {
    %c0_i32 = arith.constant 0 : i32
    %c0_i32_0 = arith.constant 0 : i32
    %c0_i32_1 = arith.constant 0 : i32
    return %c0_i32, %c0_i32_0 : i32, i32
  }
  func.func @transform_6(%arg0: i32) -> (i32, i32) {
    %c0_i32 = arith.constant 0 : i32
    %c0_i32_0 = arith.constant 0 : i32
    %c0_i32_1 = arith.constant 0 : i32
    return %c0_i32, %c0_i32_0 : i32, i32
  }
  func.func @transform_7(%arg0: i32) -> (i32, i32) {
    %c0_i32 = arith.constant 0 : i32
    %c0_i32_0 = arith.constant 0 : i32
    %c0_i32_1 = arith.constant 0 : i32
    return %c0_i32, %c0_i32_0 : i32, i32
  }
  func.func @transform_8(%arg0: i32) -> (i32, i32) {
    %c0_i32 = arith.constant 0 : i32
    %c0_i32_0 = arith.constant 0 : i32
    %c0_i32_1 = arith.constant 0 : i32
    return %c0_i32, %c0_i32_0 : i32, i32
  }
  func.func @transform_9(%arg0: i32) -> (i32, i32) {
    %c0_i32 = arith.constant 0 : i32
    %c0_i32_0 = arith.constant 0 : i32
    %c0_i32_1 = arith.constant 0 : i32
    return %c0_i32, %c0_i32_0 : i32, i32
  }
  func.func @transform_10(%arg0: i32) -> (i32, i32) {
    %c0_i32 = arith.constant 0 : i32
    %c0_i32_0 = arith.constant 0 : i32
    %c0_i32_1 = arith.constant 0 : i32
    return %c0_i32, %c0_i32_0 : i32, i32
  }
  func.func @transform_11(%arg0: i32) -> (i32, i32) {
    %c0_i32 = arith.constant 0 : i32
    %c0_i32_0 = arith.constant 0 : i32
    %c0_i32_1 = arith.constant 0 : i32
    return %c0_i32, %c0_i32_0 : i32, i32
  }
  func.func @transform_12(%arg0: i32) -> (i32, i32, i32) {
    %c0_i32 = arith.constant 0 : i32
    %c0_i32_0 = arith.constant 0 : i32
    %c0_i32_1 = arith.constant 0 : i32
    %c0_i32_2 = arith.constant 0 : i32
    return %c0_i32, %c0_i32_0, %c0_i32_1 : i32, i32, i32
  }
  func.func @transform_13(%arg0: i32) -> (i32, i32, i32) {
    %c0_i32 = arith.constant 0 : i32
    %c0_i32_0 = arith.constant 0 : i32
    %c0_i32_1 = arith.constant 0 : i32
    %c0_i32_2 = arith.constant 0 : i32
    return %c0_i32, %c0_i32_0, %c0_i32_1 : i32, i32, i32
  }
  func.func @transform_14(%arg0: i32) -> (i32, i32, i32) {
    %c0_i32 = arith.constant 0 : i32
    %c0_i32_0 = arith.constant 0 : i32
    %c0_i32_1 = arith.constant 0 : i32
    %c0_i32_2 = arith.constant 0 : i32
    return %c0_i32, %c0_i32_0, %c0_i32_1 : i32, i32, i32
  }
  func.func @transform_15(%arg0: i32) -> (i32, i32, i32) {
    %c0_i32 = arith.constant 0 : i32
    %c0_i32_0 = arith.constant 0 : i32
    %c0_i32_1 = arith.constant 0 : i32
    %c0_i32_2 = arith.constant 0 : i32
    return %c0_i32, %c0_i32_0, %c0_i32_1 : i32, i32, i32
  }
  func.func @transform_16(%arg0: i32) -> (i32, i32, i32) {
    %c0_i32 = arith.constant 0 : i32
    %c0_i32_0 = arith.constant 0 : i32
    %c0_i32_1 = arith.constant 0 : i32
    %c0_i32_2 = arith.constant 0 : i32
    return %c0_i32, %c0_i32_0, %c0_i32_1 : i32, i32, i32
  }
  func.func @transform_17(%arg0: i32) -> (i32, i32) {
    %c0_i32 = arith.constant 0 : i32
    %c0_i32_0 = arith.constant 0 : i32
    %c0_i32_1 = arith.constant 0 : i32
    return %c0_i32, %c0_i32_0 : i32, i32
  }
  func.func @transform_18(%arg0: i32) -> (i32, i32) {
    %c0_i32 = arith.constant 0 : i32
    %c0_i32_0 = arith.constant 0 : i32
    %c0_i32_1 = arith.constant 0 : i32
    return %c0_i32, %c0_i32_0 : i32, i32
  }
  func.func @transform_19(%arg0: i32) -> (i32, i32) {
    %c0_i32 = arith.constant 0 : i32
    %c0_i32_0 = arith.constant 0 : i32
    %c0_i32_1 = arith.constant 0 : i32
    return %c0_i32, %c0_i32_0 : i32, i32
  }
  func.func @transform_20(%arg0: i32) -> (i32, i32) {
    %c0_i32 = arith.constant 0 : i32
    %c0_i32_0 = arith.constant 0 : i32
    %c0_i32_1 = arith.constant 0 : i32
    return %c0_i32, %c0_i32_0 : i32, i32
  }
  func.func @transform_21(%arg0: i32) -> (i32, i32) {
    %c0_i32 = arith.constant 0 : i32
    %c0_i32_0 = arith.constant 0 : i32
    %c0_i32_1 = arith.constant 0 : i32
    return %c0_i32, %c0_i32_0 : i32, i32
  }
  func.func @transform_22(%arg0: i32) -> (i32, i32) {
    %c0_i32 = arith.constant 0 : i32
    %c0_i32_0 = arith.constant 0 : i32
    %c0_i32_1 = arith.constant 0 : i32
    return %c0_i32, %c0_i32_0 : i32, i32
  }
  func.func @transform_23(%arg0: i32) -> (i32, i32) {
    %c0_i32 = arith.constant 0 : i32
    %c0_i32_0 = arith.constant 0 : i32
    %c0_i32_1 = arith.constant 0 : i32
    return %c0_i32, %c0_i32_0 : i32, i32
  }
  func.func @transform_24(%arg0: i32) -> (i32, i32) {
    %c0_i32 = arith.constant 0 : i32
    %c0_i32_0 = arith.constant 0 : i32
    %c0_i32_1 = arith.constant 0 : i32
    return %c0_i32, %c0_i32_0 : i32, i32
  }
  func.func @transform_25(%arg0: i32) -> (i32, i32) {
    %c0_i32 = arith.constant 0 : i32
    %c0_i32_0 = arith.constant 0 : i32
    %c0_i32_1 = arith.constant 0 : i32
    return %c0_i32, %c0_i32_0 : i32, i32
  }
  func.func @transform_26(%arg0: i32) -> (i32, i32) {
    %c0_i32 = arith.constant 0 : i32
    %c0_i32_0 = arith.constant 0 : i32
    %c0_i32_1 = arith.constant 0 : i32
    return %c0_i32, %c0_i32_0 : i32, i32
  }
}

</mosaic_0001>

<llo_original>
// kernel: trajectory_refinement_forward.1
$region0: #{trajectory_refinement_forward.1}
  #allocation0 [shape = 'u32[]', space=smem, size = 0x4, offset = 0x4, fixed_abs, tag = 'smem constant byte address 0x4 - core index']
  #allocation1 [shape = 'u32[144,128]{1,0:T(1,128)}', space=vmem, size = 0x12000, scoped, tag = 'internal scratch']
  #allocation2 [shape = 'f32[128,32]{1,0:T(8,128)}', space=vmem, size = 0x10000, scoped, tag = 'scratch operand']
  #allocation3 [shape = 'f32[128,32]{1,0:T(8,128)}', space=vmem, size = 0x10000, scoped, tag = 'scratch operand']
  #allocation4 [shape = 'f32[128,32]{1,0:T(8,128)}', space=vmem, size = 0x10000, scoped, tag = 'scratch operand']
  #allocation5 [shape = 'f32[128,32]{1,0:T(8,128)}', space=vmem, size = 0x10000, scoped, tag = 'scratch operand']
  %s0 = inlined_call_operand.vmem [shape: f32[128,2], index: 0, kind: input, shape index: {}]
  %s1 = inlined_call_operand.vmem [shape: f32[64,32], index: 1, kind: input, shape index: {}]
  %s2 = inlined_call_operand.vmem [shape: f32[64,32], index: 2, kind: input, shape index: {}]
  %s3 = inlined_call_operand.vmem [shape: f32[8,32], index: 3, kind: input, shape index: {}]
  %s4 = inlined_call_operand.vmem [shape: f32[2,32], index: 4, kind: input, shape index: {}]
  %s5 = inlined_call_operand.hbm [shape: f32[1,32], index: 5, kind: input, shape index: {}]
  %s6 = inlined_call_operand.vmem [shape: f32[1,32], index: 6, kind: input, shape index: {}]
  %s7 = inlined_call_operand.hbm [shape: f32[1,32], index: 7, kind: input, shape index: {}]
  %s8 = inlined_call_operand.vmem [shape: bf16[32,32], index: 8, kind: input, shape index: {}]
  %s9 = inlined_call_operand.hbm [shape: f32[1,32], index: 9, kind: input, shape index: {}]
  %s10 = inlined_call_operand.vmem [shape: f32[1,32], index: 10, kind: input, shape index: {}]
  %s11 = inlined_call_operand.hbm [shape: f32[1,32], index: 11, kind: input, shape index: {}]
  %s12 = inlined_call_operand.vmem [shape: bf16[3,32,32], index: 12, kind: input, shape index: {}]
  %s13 = inlined_call_operand.vmem [shape: f32[3,1,32], index: 13, kind: input, shape index: {}]
  %s14 = inlined_call_operand.vmem [shape: f32[3,32,32], index: 14, kind: input, shape index: {}]
  %s15 = inlined_call_operand.vmem [shape: f32[3,1,32], index: 15, kind: input, shape index: {}]
  %s16 = inlined_call_operand.vmem [shape: bf16[4,32,32], index: 16, kind: input, shape index: {}]
  %s17 = inlined_call_operand.hbm [shape: f32[1,32], index: 17, kind: input, shape index: {}]
  %s18 = inlined_call_operand.hbm [shape: f32[1,32], index: 18, kind: input, shape index: {}]
  %s19 = inlined_call_operand.hbm [shape: f32[1,32], index: 19, kind: input, shape index: {}]
  %s20 = inlined_call_operand.vmem [shape: bf16[32,32], index: 20, kind: input, shape index: {}]
  %s21 = inlined_call_operand.hbm [shape: f32[1,32], index: 21, kind: input, shape index: {}]
  %s22 = inlined_call_operand.hbm [shape: f32[1,32], index: 22, kind: input, shape index: {}]
  %s23 = inlined_call_operand.hbm [shape: f32[1,32], index: 23, kind: input, shape index: {}]
  %s24 = inlined_call_operand.vmem [shape: f32[32,2], index: 24, kind: input, shape index: {}]
  %s25 = inlined_call_operand.hbm [shape: f32[1,2], index: 25, kind: input, shape index: {}]
  %s26 = inlined_call_operand.vmem [shape: f32[64,2], index: 26, kind: output, shape index: {}]
  %s27 = sld [smem:[#allocation0]]
  $region158: #{trajectory_refinement_forward.1} parent=0
    _
  %s29 = ssub.s32 1, %s27
  %s30 = scalar_select 0, %s29, %s27
  $region1: #{trajectory_refinement_forward.1} parent=0
    #allocation6 [shape = 'u8[512]{0}', space=vmem, size = 0x400, scoped, tag = 'input window, operand 5, single buffered']
    #allocation7 [shape = 's32[1]{0}', space=sflag, size = 0x4, scoped, tag = 'scoped memory for trajectory_refinement_forward.1']
    #allocation8 [shape = 'u8[512]{0}', space=vmem, size = 0x400, scoped, tag = 'input window, operand 7, single buffered']
    #allocation9 [shape = 's32[1]{0}', space=sflag, size = 0x4, scoped, tag = 'scoped memory for trajectory_refinement_forward.1']
    #allocation10 [shape = 'u8[512]{0}', space=vmem, size = 0x400, scoped, tag = 'input window, operand 9, single buffered']
    #allocation11 [shape = 'u8[512]{0}', space=vmem, size = 0x400, scoped, tag = 'input window, operand 11, single buffered']
    #allocation12 [shape = 's32[1]{0}', space=sflag, size = 0x4, scoped, tag = 'scoped memory for trajectory_refinement_forward.1']
    #allocation13 [shape = 'u8[512]{0}', space=vmem, size = 0x400, scoped, tag = 'input window, operand 17, single buffered']
    #allocation14 [shape = 'u8[512]{0}', space=vmem, size = 0x400, scoped, tag = 'input window, operand 18, single buffered']
    #allocation15 [shape = 's32[1]{0}', space=sflag, size = 0x4, scoped, tag = 'scoped memory for trajectory_refinement_forward.1']
    #allocation16 [shape = 'u8[512]{0}', space=vmem, size = 0x400, scoped, tag = 'input window, operand 19, single buffered']
    #allocation17 [shape = 'u8[512]{0}', space=vmem, size = 0x400, scoped, tag = 'input window, operand 21, single buffered']
    #allocation18 [shape = 's32[1]{0}', space=sflag, size = 0x4, scoped, tag = 'scoped memory for trajectory_refinement_forward.1']
    #allocation19 [shape = 'u8[512]{0}', space=vmem, size = 0x400, scoped, tag = 'input window, operand 22, single buffered']
    #allocation20 [shape = 'u8[512]{0}', space=vmem, size = 0x400, scoped, tag = 'input window, operand 23, single buffered']
    #allocation21 [shape = 's32[1]{0}', space=sflag, size = 0x4, scoped, tag = 'scoped memory for trajectory_refinement_forward.1']
    #allocation22 [shape = 'u8[512]{0}', space=vmem, size = 0x400, scoped, tag = 'input window, operand 25, single buffered']
    %31 = vsyncpa [#allocation7], 0
    %32 = vsyncpa [#allocation9], 0
    %33 = vsyncpa [#allocation12], 0
    %34 = vsyncpa [#allocation15], 0
    %35 = vsyncpa [#allocation18], 0
    %36 = vsyncpa [#allocation21], 0
    // Predicated region
    $region2: #{trajectory_refinement_forward.1} parent=1 // pred_check
      _
    $region3: #{trajectory_refinement_forward.1} parent=1 // pred_check_branch
      %38 = sbr.rel (0) target = $region5
    $region4: #{trajectory_refinement_forward.1} parent=1 // pred_region
      _
    $region5: #{trajectory_refinement_forward.1} parent=1 // pred_fallthru
      _
    // Predicated region
    $region6: #{trajectory_refinement_forward.1} parent=1 // pred_check
      _
    $region7: #{trajectory_refinement_forward.1} parent=1 // pred_check_branch
      %40 = sbr.rel (0) target = $region9
    $region8: #{trajectory_refinement_forward.1} parent=1 // pred_region
      _
    $region9: #{trajectory_refinement_forward.1} parent=1 // pred_fallthru
      _
    // Predicated region
    $region10: #{trajectory_refinement_forward.1} parent=1 // pred_check
      _
    $region11: #{trajectory_refinement_forward.1} parent=1 // pred_check_branch
      %42 = sbr.rel (0) target = $region13
    $region12: #{trajectory_refinement_forward.1} parent=1 // pred_region
      _
    $region13: #{trajectory_refinement_forward.1} parent=1 // pred_fallthru
      _
    // Predicated region
    $region14: #{trajectory_refinement_forward.1} parent=1 // pred_check
      _
    $region15: #{trajectory_refinement_forward.1} parent=1 // pred_check_branch
      %44 = sbr.rel (0) target = $region17
    $region16: #{trajectory_refinement_forward.1} parent=1 // pred_region
      _
    $region17: #{trajectory_refinement_forward.1} parent=1 // pred_fallthru
      _
    // Predicated region
    $region18: #{trajectory_refinement_forward.1} parent=1 // pred_check
      _
    $region19: #{trajectory_refinement_forward.1} parent=1 // pred_check_branch
      %46 = sbr.rel (0) target = $region21
    $region20: #{trajectory_refinement_forward.1} parent=1 // pred_region
      _
    $region21: #{trajectory_refinement_forward.1} parent=1 // pred_fallthru
      _
    // Predicated region
    $region22: #{trajectory_refinement_forward.1} parent=1 // pred_check
      _
    $region23: #{trajectory_refinement_forward.1} parent=1 // pred_check_branch
      %48 = sbr.rel (0) target = $region25
    $region24: #{trajectory_refinement_forward.1} parent=1 // pred_region
      %s50 = ssub.s32 16, 16
      %51 = vsyncadd [#allocation7], %s50
      %s53 = sshll.u32 [#allocation6], 4
      %s54 = int_to_ptr.vmem [resolvable:$true] %s53
      %56 = dma.hbm_to_vmem [thread:$0]  %s5, 16, %s54, [#allocation7]
    $region25: #{trajectory_refinement_forward.1} parent=1 // pred_fallthru
      _
    // Predicated region
    $region26: #{trajectory_refinement_forward.1} parent=1 // pred_check
      _
    $region27: #{trajectory_refinement_forward.1} parent=1 // pred_check_branch
      %58 = sbr.rel (0) target = $region29
    $region28: #{trajectory_refinement_forward.1} parent=1 // pred_region
      _
    $region29: #{trajectory_refinement_forward.1} parent=1 // pred_fallthru
      _
    // Predicated region
    $region30: #{trajectory_refinement_forward.1} parent=1 // pred_check
      _
    $region31: #{trajectory_refinement_forward.1} parent=1 // pred_check_branch
      %60 = sbr.rel (0) target = $region33
    $region32: #{trajectory_refinement_forward.1} parent=1 // pred_region
      %s62 = ssub.s32 16, 16
      %63 = vsyncadd [#allocation9], %s62
      %s65 = sshll.u32 [#allocation8], 4
      %s66 = int_to_ptr.vmem [resolvable:$true] %s65
      %68 = dma.hbm_to_vmem [thread:$0]  %s7, 16, %s66, [#allocation9]
    $region33: #{trajectory_refinement_forward.1} parent=1 // pred_fallthru
      _
    // Predicated region
    $region34: #{trajectory_refinement_forward.1} parent=1 // pred_check
      _
    $region35: #{trajectory_refinement_forward.1} parent=1 // pred_check_branch
      %70 = sbr.rel (0) target = $region37
    $region36: #{trajectory_refinement_forward.1} parent=1 // pred_region
      _
    $region37: #{trajectory_refinement_forward.1} parent=1 // pred_fallthru
      _
    // Predicated region
    $region38: #{trajectory_refinement_forward.1} parent=1 // pred_check
      _
    $region39: #{trajectory_refinement_forward.1} parent=1 // pred_check_branch
      %72 = sbr.rel (0) target = $region41
    $region40: #{trajectory_refinement_forward.1} parent=1 // pred_region
      %s74 = ssub.s32 16, 16
      %75 = vsyncadd [#allocation9], %s74
      %s77 = sshll.u32 [#allocation10], 4
      %s78 = int_to_ptr.vmem [resolvable:$true] %s77
      %80 = dma.hbm_to_vmem [thread:$0]  %s9, 16, %s78, [#allocation9]
    $region41: #{trajectory_refinement_forward.1} parent=1 // pred_fallthru
      _
    // Predicated region
    $region42: #{trajectory_refinement_forward.1} parent=1 // pred_check
      _
    $region43: #{trajectory_refinement_forward.1} parent=1 // pred_check_branch
      %82 = sbr.rel (0) target = $region45
    $region44: #{trajectory_refinement_forward.1} parent=1 // pred_region
      _
    $region45: #{trajectory_refinement_forward.1} parent=1 // pred_fallthru
      _
    // Predicated region
    $region46: #{trajectory_refinement_forward.1} parent=1 // pred_check
      _
    $region47: #{trajectory_refinement_forward.1} parent=1 // pred_check_branch
      %84 = sbr.rel (0) target = $region49
    $region48: #{trajectory_refinement_forward.1} parent=1 // pred_region
      %s86 = ssub.s32 16, 16
      %87 = vsyncadd [#allocation12], %s86
      %s89 = sshll.u32 [#allocation11], 4
      %s90 = int_to_ptr.vmem [resolvable:$true] %s89
      %92 = dma.hbm_to_vmem [thread:$0]  %s11, 16, %s90, [#allocation12]
    $region49: #{trajectory_refinement_forward.1} parent=1 // pred_fallthru
      _
    // Predicated region
    $region50: #{trajectory_refinement_forward.1} parent=1 // pred_check
      _
    $region51: #{trajectory_refinement_forward.1} parent=1 // pred_check_branch
      %94 = sbr.rel (0) target = $region53
    $region52: #{trajectory_refinement_forward.1} parent=1 // pred_region
      _
    $region53: #{trajectory_refinement_forward.1} parent=1 // pred_fallthru
      _
    // Predicated region
    $region54: #{trajectory_refinement_forward.1} parent=1 // pred_check
      _
    $region55: #{trajectory_refinement_forward.1} parent=1 // pred_check_branch
      %96 = sbr.rel (0) target = $region57
    $region56: #{trajectory_refinement_forward.1} parent=1 // pred_region
      _
    $region57: #{trajectory_refinement_forward.1} parent=1 // pred_fallthru
      _
    // Predicated region
    $region58: #{trajectory_refinement_forward.1} parent=1 // pred_check
      _
    $region59: #{trajectory_refinement_forward.1} parent=1 // pred_check_branch
      %98 = sbr.rel (0) target = $region61
    $region60: #{trajectory_refinement_forward.1} parent=1 // pred_region
      _
    $region61: #{trajectory_refinement_forward.1} parent=1 // pred_fallthru
      _
    // Predicated region
    $region62: #{trajectory_refinement_forward.1} parent=1 // pred_check
      _
    $region63: #{trajectory_refinement_forward.1} parent=1 // pred_check_branch
      %100 = sbr.rel (0) target = $region65
    $region64: #{trajectory_refinement_forward.1} parent=1 // pred_region
      _
    $region65: #{trajectory_refinement_forward.1} parent=1 // pred_fallthru
      _
    // Predicated region
    $region66: #{trajectory_refinement_forward.1} parent=1 // pred_check
      _
    $region67: #{trajectory_refinement_forward.1} parent=1 // pred_check_branch
      %102 = sbr.rel (0) target = $region69
    $region68: #{trajectory_refinement_forward.1} parent=1 // pred_region
      _
    $region69: #{trajectory_refinement_forward.1} parent=1 // pred_fallthru
      _
    // Predicated region
    $region70: #{trajectory_refinement_forward.1} parent=1 // pred_check
      _
    $region71: #{trajectory_refinement_forward.1} parent=1 // pred_check_branch
      %104 = sbr.rel (0) target = $region73
    $region72: #{trajectory_refinement_forward.1} parent=1 // pred_region
      %s106 = ssub.s32 16, 16
      %107 = vsyncadd [#allocation12], %s106
      %s109 = sshll.u32 [#allocation13], 4
      %s110 = int_to_ptr.vmem [resolvable:$true] %s109
      %112 = dma.hbm_to_vmem [thread:$0]  %s17, 16, %s110, [#allocation12]
    $region73: #{trajectory_refinement_forward.1} parent=1 // pred_fallthru
      _
    // Predicated region
    $region74: #{trajectory_refinement_forward.1} parent=1 // pred_check
      _
    $region75: #{trajectory_refinement_forward.1} parent=1 // pred_check_branch
      %114 = sbr.rel (0) target = $region77
    $region76: #{trajectory_refinement_forward.1} parent=1 // pred_region
      %s116 = ssub.s32 16, 16
      %117 = vsyncadd [#allocation15], %s116
      %s119 = sshll.u32 [#allocation14], 4
      %s120 = int_to_ptr.vmem [resolvable:$true] %s119
      %122 = dma.hbm_to_vmem [thread:$0]  %s18, 16, %s120, [#allocation15]
    $region77: #{trajectory_refinement_forward.1} parent=1 // pred_fallthru
      _
    // Predicated region
    $region78: #{trajectory_refinement_forward.1} parent=1 // pred_check
      _
    $region79: #{trajectory_refinement_forward.1} parent=1 // pred_check_branch
      %124 = sbr.rel (0) target = $region81
    $region80: #{trajectory_refinement_forward.1} parent=1 // pred_region
      %s126 = ssub.s32 16, 16
      %127 = vsyncadd [#allocation15], %s126
      %s129 = sshll.u32 [#allocation16], 4
      %s130 = int_to_ptr.vmem [resolvable:$true] %s129
      %132 = dma.hbm_to_vmem [thread:$0]  %s19, 16, %s130, [#allocation15]
    $region81: #{trajectory_refinement_forward.1} parent=1 // pred_fallthru
      _
    // Predicated region
    $region82: #{trajectory_refinement_forward.1} parent=1 // pred_check
      _
    $region83: #{trajectory_refinement_forward.1} parent=1 // pred_check_branch
      %134 = sbr.rel (0) target = $region85
    $region84: #{trajectory_refinement_forward.1} parent=1 // pred_region
      _
    $region85: #{trajectory_refinement_forward.1} parent=1 // pred_fallthru
      _
    // Predicated region
    $region86: #{trajectory_refinement_forward.1} parent=1 // pred_check
      _
    $region87: #{trajectory_refinement_forward.1} parent=1 // pred_check_branch
      %136 = sbr.rel (0) target = $region89
    $region88: #{trajectory_refinement_forward.1} parent=1 // pred_region
      %s138 = ssub.s32 16, 16
      %139 = vsyncadd [#allocation18], %s138
      %s141 = sshll.u32 [#allocation17], 4
      %s142 = int_to_ptr.vmem [resolvable:$true] %s141
      %144 = dma.hbm_to_vmem [thread:$0]  %s21, 16, %s142, [#allocation18]
    $region89: #{trajectory_refinement_forward.1} parent=1 // pred_fallthru
      _
    // Predicated region
    $region90: #{trajectory_refinement_forward.1} parent=1 // pred_check
      _
    $region91: #{trajectory_refinement_forward.1} parent=1 // pred_check_branch
      %146 = sbr.rel (0) target = $region93
    $region92: #{trajectory_refinement_forward.1} parent=1 // pred_region
      %s148 = ssub.s32 16, 16
      %149 = vsyncadd [#allocation18], %s148
      %s151 = sshll.u32 [#allocation19], 4
      %s152 = int_to_ptr.vmem [resolvable:$true] %s151
      %154 = dma.hbm_to_vmem [thread:$0]  %s22, 16, %s152, [#allocation18]
    $region93: #{trajectory_refinement_forward.1} parent=1 // pred_fallthru
      _
    // Predicated region
    $region94: #{trajectory_refinement_forward.1} parent=1 // pred_check
      _
    $region95: #{trajectory_refinement_forward.1} parent=1 // pred_check_branch
      %156 = sbr.rel (0) target = $region97
    $region96: #{trajectory_refinement_forward.1} parent=1 // pred_region
      %s158 = ssub.s32 16, 16
      %159 = vsyncadd [#allocation21], %s158
      %s161 = sshll.u32 [#allocation20], 4
      %s162 = int_to_ptr.vmem [resolvable:$true] %s161
      %164 = dma.hbm_to_vmem [thread:$0]  %s23, 16, %s162, [#allocation21]
    $region97: #{trajectory_refinement_forward.1} parent=1 // pred_fallthru
      _
    // Predicated region
    $region98: #{trajectory_refinement_forward.1} parent=1 // pred_check
      _
    $region99: #{trajectory_refinement_forward.1} parent=1 // pred_check_branch
      %166 = sbr.rel (0) target = $region101
    $region100: #{trajectory_refinement_forward.1} parent=1 // pred_region
      _
    $region101: #{trajectory_refinement_forward.1} parent=1 // pred_fallthru
      _
    // Predicated region
    $region102: #{trajectory_refinement_forward.1} parent=1 // pred_check
      _
    $region103: #{trajectory_refinement_forward.1} parent=1 // pred_check_branch
      %168 = sbr.rel (0) target = $region105
    $region104: #{trajectory_refinement_forward.1} parent=1 // pred_region
      %s170 = ssub.s32 16, 16
      %171 = vsyncadd [#allocation21], %s170
      %s173 = sshll.u32 [#allocation22], 4
      %s174 = int_to_ptr.vmem [resolvable:$true] %s173
      %176 = dma.hbm_to_vmem [thread:$0]  %s25, 16, %s174, [#allocation21]
    $region105: #{trajectory_refinement_forward.1} parent=1 // pred_fallthru
      _
    // Predicated region
    $region106: #{trajectory_refinement_forward.1} parent=1 // pred_check
      _
    $region107: #{trajectory_refinement_forward.1} parent=1 // pred_check_branch
      %178 = sbr.rel (0) target = $region109
    $region108: #{trajectory_refinement_forward.1} parent=1 // pred_region
      %179 = dma.done [#allocation7], 16
    $region109: #{trajectory_refinement_forward.1} parent=1 // pred_fallthru
      _
    // Predicated region
    $region110: #{trajectory_refinement_forward.1} parent=1 // pred_check
      _
    $region111: #{trajectory_refinement_forward.1} parent=1 // pred_check_branch
      %181 = sbr.rel (0) target = $region113
    $region112: #{trajectory_refinement_forward.1} parent=1 // pred_region
      %182 = dma.done [#allocation9], 16
    $region113: #{trajectory_refinement_forward.1} parent=1 // pred_fallthru
      _
    // Predicated region
    $region114: #{trajectory_refinement_forward.1} parent=1 // pred_check
      _
    $region115: #{trajectory_refinement_forward.1} parent=1 // pred_check_branch
      %184 = sbr.rel (0) target = $region117
    $region116: #{trajectory_refinement_forward.1} parent=1 // pred_region
      %185 = dma.done [#allocation9], 16
    $region117: #{trajectory_refinement_forward.1} parent=1 // pred_fallthru
      _
    // Predicated region
    $region118: #{trajectory_refinement_forward.1} parent=1 // pred_check
      _
    $region119: #{trajectory_refinement_forward.1} parent=1 // pred_check_branch
      %187 = sbr.rel (0) target = $region121
    $region120: #{trajectory_refinement_forward.1} parent=1 // pred_region
      %188 = dma.done [#allocation12], 16
    $region121: #{trajectory_refinement_forward.1} parent=1 // pred_fallthru
      _
    // Predicated region
    $region122: #{trajectory_refinement_forward.1} parent=1 // pred_check
      _
    $region123: #{trajectory_refinement_forward.1} parent=1 // pred_check_branch
      %190 = sbr.rel (0) target = $region125
    $region124: #{trajectory_refinement_forward.1} parent=1 // pred_region
      %191 = dma.done [#allocation12], 16
    $region125: #{trajectory_refinement_forward.1} parent=1 // pred_fallthru
      _
    // Predicated region
    $region126: #{trajectory_refinement_forward.1} parent=1 // pred_check
      _
    $region127: #{trajectory_refinement_forward.1} parent=1 // pred_check_branch
      %193 = sbr.rel (0) target = $region129
    $region128: #{trajectory_refinement_forward.1} parent=1 // pred_region
      %194 = dma.done [#allocation15], 16
    $region129: #{trajectory_refinement_forward.1} parent=1 // pred_fallthru
      _
    // Predicated region
    $region130: #{trajectory_refinement_forward.1} parent=1 // pred_check
      _
    $region131: #{trajectory_refinement_forward.1} parent=1 // pred_check_branch
      %196 = sbr.rel (0) target = $region133
    $region132: #{trajectory_refinement_forward.1} parent=1 // pred_region
      %197 = dma.done [#allocation15], 16
    $region133: #{trajectory_refinement_forward.1} parent=1 // pred_fallthru
      _
    // Predicated region
    $region134: #{trajectory_refinement_forward.1} parent=1 // pred_check
      _
    $region135: #{trajectory_refinement_forward.1} parent=1 // pred_check_branch
      %199 = sbr.rel (0) target = $region137
    $region136: #{trajectory_refinement_forward.1} parent=1 // pred_region
      %200 = dma.done [#allocation18], 16
    $region137: #{trajectory_refinement_forward.1} parent=1 // pred_fallthru
      _
    // Predicated region
    $region138: #{trajectory_refinement_forward.1} parent=1 // pred_check
      _
    $region139: #{trajectory_refinement_forward.1} parent=1 // pred_check_branch
      %202 = sbr.rel (0) target = $region141
    $region140: #{trajectory_refinement_forward.1} parent=1 // pred_region
      %203 = dma.done [#allocation18], 16
    $region141: #{trajectory_refinement_forward.1} parent=1 // pred_fallthru
      _
    // Predicated region
    $region142: #{trajectory_refinement_forward.1} parent=1 // pred_check
      _
    $region143: #{trajectory_refinement_forward.1} parent=1 // pred_check_branch
      %205 = sbr.rel (0) target = $region145
    $region144: #{trajectory_refinement_forward.1} parent=1 // pred_region
      %206 = dma.done [#allocation21], 16
    $region145: #{trajectory_refinement_forward.1} parent=1 // pred_fallthru
      _
    // Predicated region
    $region146: #{trajectory_refinement_forward.1} parent=1 // pred_check
      _
    $region147: #{trajectory_refinement_forward.1} parent=1 // pred_check_branch
      %208 = sbr.rel (0) target = $region149
    $region148: #{trajectory_refinement_forward.1} parent=1 // pred_region
      %209 = dma.done [#allocation21], 16
    $region149: #{trajectory_refinement_forward.1} parent=1 // pred_fallthru
      _
    %v211 = vld [vmem:[%s0] sm:$0xff]
    %v212 = vld [vmem:[%s0 + $0x8] sm:$0xff]
    %v213 = vld [vmem:[%s0 + $0x10] sm:$0xff]
    %v214 = vld [vmem:[%s0 + $0x18] sm:$0xff]
    %v215 = vld [vmem:[%s0 + $0x20] sm:$0xff]
    %v216 = vld [vmem:[%s0 + $0x28] sm:$0xff]
    %v217 = vld [vmem:[%s0 + $0x30] sm:$0xff]
    %v218 = vld [vmem:[%s0 + $0x38] sm:$0xff]
    %v219 = vld [vmem:[%s0 + $0x40] sm:$0xff]
    %v220 = vld [vmem:[%s0 + $0x48] sm:$0xff]
    %v221 = vld [vmem:[%s0 + $0x50] sm:$0xff]
    %v222 = vld [vmem:[%s0 + $0x58] sm:$0xff]
    %v223 = vld [vmem:[%s0 + $0x60] sm:$0xff]
    %v224 = vld [vmem:[%s0 + $0x68] sm:$0xff]
    %v225 = vld [vmem:[%s0 + $0x70] sm:$0xff]
    %v226 = vld [vmem:[%s0 + $0x78] sm:$0xff]
    %v227 = vld [vmem:[%s4] sm:$0x3]
    %229 = vset.pattern.permute.xlu0 0
    %230 = vperm.xlu0 %229, %v211
    %v231 = vpop.permute.xlu0 %230
    %234 = vset.pattern.permute.xlu0 0
    %235 = vperm.xlu0 %234, %v212
    %v236 = vpop.permute.xlu0 %235
    %239 = vset.pattern.permute.xlu0 0
    %240 = vperm.xlu0 %239, %v213
    %v241 = vpop.permute.xlu0 %240
    %244 = vset.pattern.permute.xlu0 0
    %245 = vperm.xlu0 %244, %v214
    %v246 = vpop.permute.xlu0 %245
    %249 = vset.pattern.permute.xlu0 0
    %250 = vperm.xlu0 %249, %v215
    %v251 = vpop.permute.xlu0 %250
    %254 = vset.pattern.permute.xlu0 0
    %255 = vperm.xlu0 %254, %v216
    %v256 = vpop.permute.xlu0 %255
    %259 = vset.pattern.permute.xlu0 0
    %260 = vperm.xlu0 %259, %v217
    %v261 = vpop.permute.xlu0 %260
    %264 = vset.pattern.permute.xlu0 0
    %265 = vperm.xlu0 %264, %v218
    %v266 = vpop.permute.xlu0 %265
    %269 = vset.pattern.permute.xlu0 0
    %270 = vperm.xlu0 %269, %v219
    %v271 = vpop.permute.xlu0 %270
    %274 = vset.pattern.permute.xlu0 0
    %275 = vperm.xlu0 %274, %v220
    %v276 = vpop.permute.xlu0 %275
    %279 = vset.pattern.permute.xlu0 0
    %280 = vperm.xlu0 %279, %v221
    %v281 = vpop.permute.xlu0 %280
    %284 = vset.pattern.permute.xlu0 0
    %285 = vperm.xlu0 %284, %v222
    %v286 = vpop.permute.xlu0 %285
    %289 = vset.pattern.permute.xlu0 0
    %290 = vperm.xlu0 %289, %v223
    %v291 = vpop.permute.xlu0 %290
    %294 = vset.pattern.permute.xlu0 0
    %295 = vperm.xlu0 %294, %v224
    %v296 = vpop.permute.xlu0 %295
    %299 = vset.pattern.permute.xlu0 0
    %300 = vperm.xlu0 %299, %v225
    %v301 = vpop.permute.xlu0 %300
    %304 = vset.pattern.permute.xlu0 0
    %305 = vperm.xlu0 %304, %v226
    %v306 = vpop.permute.xlu0 %305
    %v308 = vlaneseq
    %v309 = vshrl.u32 %v308, 7
    %v310 = vsub.s32 0, %v309
    %v311 = vrot.slane %v227, %v310
    %v312 = vmul.f32 %v231, %v311
    %v313 = vmul.f32 %v236, %v311
    %v314 = vmul.f32 %v241, %v311
    %v315 = vmul.f32 %v246, %v311
    %v316 = vmul.f32 %v251, %v311
    %v317 = vmul.f32 %v256, %v311
    %v318 = vmul.f32 %v261, %v311
    %v319 = vmul.f32 %v266, %v311
    %v320 = vmul.f32 %v271, %v311
    %v321 = vmul.f32 %v276, %v311
    %v322 = vmul.f32 %v281, %v311
    %v323 = vmul.f32 %v286, %v311
    %v324 = vmul.f32 %v291, %v311
    %v325 = vmul.f32 %v296, %v311
    %v326 = vmul.f32 %v301, %v311
    %v327 = vmul.f32 %v306, %v311
    %328 = vset.pattern.permute.xlu0 1
    %329 = vperm.xlu0 %328, %v211
    %v330 = vpop.permute.xlu0 %329
    %332 = vset.pattern.permute.xlu0 1
    %333 = vperm.xlu0 %332, %v212
    %v334 = vpop.permute.xlu0 %333
    %336 = vset.pattern.permute.xlu0 1
    %337 = vperm.xlu0 %336, %v213
    %v338 = vpop.permute.xlu0 %337
    %340 = vset.pattern.permute.xlu0 1
    %341 = vperm.xlu0 %340, %v214
    %v342 = vpop.permute.xlu0 %341
    %344 = vset.pattern.permute.xlu0 1
    %345 = vperm.xlu0 %344, %v215
    %v346 = vpop.permute.xlu0 %345
    %348 = vset.pattern.permute.xlu0 1
    %349 = vperm.xlu0 %348, %v216
    %v350 = vpop.permute.xlu0 %349
    %352 = vset.pattern.permute.xlu0 1
    %353 = vperm.xlu0 %352, %v217
    %v354 = vpop.permute.xlu0 %353
    %356 = vset.pattern.permute.xlu0 1
    %357 = vperm.xlu0 %356, %v218
    %v358 = vpop.permute.xlu0 %357
    %360 = vset.pattern.permute.xlu0 1
    %361 = vperm.xlu0 %360, %v219
    %v362 = vpop.permute.xlu0 %361
    %364 = vset.pattern.permute.xlu0 1
    %365 = vperm.xlu0 %364, %v220
    %v366 = vpop.permute.xlu0 %365
    %368 = vset.pattern.permute.xlu0 1
    %369 = vperm.xlu0 %368, %v221
    %v370 = vpop.permute.xlu0 %369
    %372 = vset.pattern.permute.xlu0 1
    %373 = vperm.xlu0 %372, %v222
    %v374 = vpop.permute.xlu0 %373
    %376 = vset.pattern.permute.xlu0 1
    %377 = vperm.xlu0 %376, %v223
    %v378 = vpop.permute.xlu0 %377
    %380 = vset.pattern.permute.xlu0 1
    %381 = vperm.xlu0 %380, %v224
    %v382 = vpop.permute.xlu0 %381
    %384 = vset.pattern.permute.xlu0 1
    %385 = vperm.xlu0 %384, %v225
    %v386 = vpop.permute.xlu0 %385
    %388 = vset.pattern.permute.xlu0 1
    %389 = vperm.xlu0 %388, %v226
    %v390 = vpop.permute.xlu0 %389
    %v392 = vlaneseq
    %v393 = vshrl.u32 %v392, 7
    %v394 = vsub.s32 1, %v393
    %v395 = vrot.slane %v227, %v394
    %v396 = vmul.f32 %v330, %v395
    %v397 = vmul.f32 %v334, %v395
    %v398 = vmul.f32 %v338, %v395
    %v399 = vmul.f32 %v342, %v395
    %v400 = vmul.f32 %v346, %v395
    %v401 = vmul.f32 %v350, %v395
    %v402 = vmul.f32 %v354, %v395
    %v403 = vmul.f32 %v358, %v395
    %v404 = vmul.f32 %v362, %v395
    %v405 = vmul.f32 %v366, %v395
    %v406 = vmul.f32 %v370, %v395
    %v407 = vmul.f32 %v374, %v395
    %v408 = vmul.f32 %v378, %v395
    %v409 = vmul.f32 %v382, %v395
    %v410 = vmul.f32 %v386, %v395
    %v411 = vmul.f32 %v390, %v395
    %v412 = vadd.f32 %v312, %v396
    %v413 = vadd.f32 %v313, %v397
    %v414 = vadd.f32 %v314, %v398
    %v415 = vadd.f32 %v315, %v399
    %v416 = vadd.f32 %v316, %v400
    %v417 = vadd.f32 %v317, %v401
    %v418 = vadd.f32 %v318, %v402
    %v419 = vadd.f32 %v319, %v403
    %v420 = vadd.f32 %v320, %v404
    %v421 = vadd.f32 %v321, %v405
    %v422 = vadd.f32 %v322, %v406
    %v423 = vadd.f32 %v323, %v407
    %v424 = vadd.f32 %v324, %v408
    %v425 = vadd.f32 %v325, %v409
    %v426 = vadd.f32 %v326, %v410
    %v427 = vadd.f32 %v327, %v411
    %v428 = vld [vmem:[#allocation6] sm:$0x1]
    %v430 = vlaneseq
    %v431 = vshrl.u32 %v430, 7
    %v432 = vsub.s32 0, %v431
    %v433 = vrot.slane %v428, %v432
    %v435 = vadd.f32 %v412, %v433
    %v436 = vadd.f32 %v413, %v433
    %v437 = vadd.f32 %v414, %v433
    %v438 = vadd.f32 %v415, %v433
    %v439 = vadd.f32 %v416, %v433
    %v440 = vadd.f32 %v417, %v433
    %v441 = vadd.f32 %v418, %v433
    %v442 = vadd.f32 %v419, %v433
    %v443 = vadd.f32 %v420, %v433
    %v444 = vadd.f32 %v421, %v433
    %v445 = vadd.f32 %v422, %v433
    %v446 = vadd.f32 %v423, %v433
    %v447 = vadd.f32 %v424, %v433
    %v448 = vadd.f32 %v425, %v433
    %v449 = vadd.f32 %v426, %v433
    %v450 = vadd.f32 %v427, %v433
    %v451 = vld [vmem:[%s6] sm:$0x1]
    %v452 = vld [vmem:[#allocation8] sm:$0x1]
    %vm453 = vcmask 261120
    %v454 = vsel %vm453, %v435, 0.0
    %455 = vadd.xlane.f32.xlu0 %v454
    %v456 = vpop.xlane.xlu0 %455
    %v457 = vsel %vm453, %v436, 0.0
    %458 = vadd.xlane.f32.xlu0 %v457
    %v459 = vpop.xlane.xlu0 %458
    %v460 = vsel %vm453, %v437, 0.0
    %461 = vadd.xlane.f32.xlu0 %v460
    %v462 = vpop.xlane.xlu0 %461
    %v463 = vsel %vm453, %v438, 0.0
    %464 = vadd.xlane.f32.xlu0 %v463
    %v465 = vpop.xlane.xlu0 %464
    %v466 = vsel %vm453, %v439, 0.0
    %467 = vadd.xlane.f32.xlu0 %v466
    %v468 = vpop.xlane.xlu0 %467
    %v469 = vsel %vm453, %v440, 0.0
    %470 = vadd.xlane.f32.xlu0 %v469
    %v471 = vpop.xlane.xlu0 %470
    %v472 = vsel %vm453, %v441, 0.0
    %473 = vadd.xlane.f32.xlu0 %v472
    %v474 = vpop.xlane.xlu0 %473
    %v475 = vsel %vm453, %v442, 0.0
    %476 = vadd.xlane.f32.xlu0 %v475
    %v477 = vpop.xlane.xlu0 %476
    %v478 = vsel %vm453, %v443, 0.0
    %479 = vadd.xlane.f32.xlu0 %v478
    %v480 = vpop.xlane.xlu0 %479
    %v481 = vsel %vm453, %v444, 0.0
    %482 = vadd.xlane.f32.xlu0 %v481
    %v483 = vpop.xlane.xlu0 %482
    %v484 = vsel %vm453, %v445, 0.0
    %485 = vadd.xlane.f32.xlu0 %v484
    %v486 = vpop.xlane.xlu0 %485
    %v487 = vsel %vm453, %v446, 0.0
    %488 = vadd.xlane.f32.xlu0 %v487
    %v489 = vpop.xlane.xlu0 %488
    %v490 = vsel %vm453, %v447, 0.0
    %491 = vadd.xlane.f32.xlu0 %v490
    %v492 = vpop.xlane.xlu0 %491
    %v493 = vsel %vm453, %v448, 0.0
    %494 = vadd.xlane.f32.xlu0 %v493
    %v495 = vpop.xlane.xlu0 %494
    %v496 = vsel %vm453, %v449, 0.0
    %497 = vadd.xlane.f32.xlu0 %v496
    %v498 = vpop.xlane.xlu0 %497
    %v499 = vsel %vm453, %v450, 0.0
    %500 = vadd.xlane.f32.xlu0 %v499
    %v501 = vpop.xlane.xlu0 %500
    %v502 = vrcp.pop 32.0
    %v503 = vmul.f32 %v456, %v502
    %v504 = vmul.f32 %v459, %v502
    %v505 = vmul.f32 %v462, %v502
    %v506 = vmul.f32 %v465, %v502
    %v507 = vmul.f32 %v468, %v502
    %v508 = vmul.f32 %v471, %v502
    %v509 = vmul.f32 %v474, %v502
    %v510 = vmul.f32 %v477, %v502
    %v511 = vmul.f32 %v480, %v502
    %v512 = vmul.f32 %v483, %v502
    %v513 = vmul.f32 %v486, %v502
    %v514 = vmul.f32 %v489, %v502
    %v515 = vmul.f32 %v492, %v502
    %v516 = vmul.f32 %v495, %v502
    %v517 = vmul.f32 %v498, %v502
    %v518 = vmul.f32 %v501, %v502
    %v519 = vsub.f32 %v435, %v503
    %v520 = vsub.f32 %v436, %v504
    %v521 = vsub.f32 %v437, %v505
    %v522 = vsub.f32 %v438, %v506
    %v523 = vsub.f32 %v439, %v507
    %v524 = vsub.f32 %v440, %v508
    %v525 = vsub.f32 %v441, %v509
    %v526 = vsub.f32 %v442, %v510
    %v527 = vsub.f32 %v443, %v511
    %v528 = vsub.f32 %v444, %v512
    %v529 = vsub.f32 %v445, %v513
    %v530 = vsub.f32 %v446, %v514
    %v531 = vsub.f32 %v447, %v515
    %v532 = vsub.f32 %v448, %v516
    %v533 = vsub.f32 %v449, %v517
    %v534 = vsub.f32 %v450, %v518
    %v535 = vmul.f32 %v519, %v519
    %v536 = vmul.f32 %v520, %v520
    %v537 = vmul.f32 %v521, %v521
    %v538 = vmul.f32 %v522, %v522
    %v539 = vmul.f32 %v523, %v523
    %v540 = vmul.f32 %v524, %v524
    %v541 = vmul.f32 %v525, %v525
    %v542 = vmul.f32 %v526, %v526
    %v543 = vmul.f32 %v527, %v527
    %v544 = vmul.f32 %v528, %v528
    %v545 = vmul.f32 %v529, %v529
    %v546 = vmul.f32 %v530, %v530
    %v547 = vmul.f32 %v531, %v531
    %v548 = vmul.f32 %v532, %v532
    %v549 = vmul.f32 %v533, %v533
    %v550 = vmul.f32 %v534, %v534
    %v551 = vsel %vm453, %v535, 0.0
    %552 = vadd.xlane.f32.xlu0 %v551
    %v553 = vpop.xlane.xlu0 %552
    %v554 = vsel %vm453, %v536, 0.0
    %555 = vadd.xlane.f32.xlu0 %v554
    %v556 = vpop.xlane.xlu0 %555
    %v557 = vsel %vm453, %v537, 0.0
    %558 = vadd.xlane.f32.xlu0 %v557
    %v559 = vpop.xlane.xlu0 %558
    %v560 = vsel %vm453, %v538, 0.0
    %561 = vadd.xlane.f32.xlu0 %v560
    %v562 = vpop.xlane.xlu0 %561
    %v563 = vsel %vm453, %v539, 0.0
    %564 = vadd.xlane.f32.xlu0 %v563
    %v565 = vpop.xlane.xlu0 %564
    %v566 = vsel %vm453, %v540, 0.0
    %567 = vadd.xlane.f32.xlu0 %v566
    %v568 = vpop.xlane.xlu0 %567
    %v569 = vsel %vm453, %v541, 0.0
    %570 = vadd.xlane.f32.xlu0 %v569
    %v571 = vpop.xlane.xlu0 %570
    %v572 = vsel %vm453, %v542, 0.0
    %573 = vadd.xlane.f32.xlu0 %v572
    %v574 = vpop.xlane.xlu0 %573
    %v575 = vsel %vm453, %v543, 0.0
    %576 = vadd.xlane.f32.xlu0 %v575
    %v577 = vpop.xlane.xlu0 %576
    %v578 = vsel %vm453, %v544, 0.0
    %579 = vadd.xlane.f32.xlu0 %v578
    %v580 = vpop.xlane.xlu0 %579
    %v581 = vsel %vm453, %v545, 0.0
    %582 = vadd.xlane.f32.xlu0 %v581
    %v583 = vpop.xlane.xlu0 %582
    %v584 = vsel %vm453, %v546, 0.0
    %585 = vadd.xlane.f32.xlu0 %v584
    %v586 = vpop.xlane.xlu0 %585
    %v587 = vsel %vm453, %v547, 0.0
    %588 = vadd.xlane.f32.xlu0 %v587
    %v589 = vpop.xlane.xlu0 %588
    %v590 = vsel %vm453, %v548, 0.0
    %591 = vadd.xlane.f32.xlu0 %v590
    %v592 = vpop.xlane.xlu0 %591
    %v593 = vsel %vm453, %v549, 0.0
    %594 = vadd.xlane.f32.xlu0 %v593
    %v595 = vpop.xlane.xlu0 %594
    %v596 = vsel %vm453, %v550, 0.0
    %597 = vadd.xlane.f32.xlu0 %v596
    %v598 = vpop.xlane.xlu0 %597
    %v599 = vmul.f32 %v553, %v502
    %v600 = vmul.f32 %v556, %v502
    %v601 = vmul.f32 %v559, %v502
    %v602 = vmul.f32 %v562, %v502
    %v603 = vmul.f32 %v565, %v502
    %v604 = vmul.f32 %v568, %v502
    %v605 = vmul.f32 %v571, %v502
    %v606 = vmul.f32 %v574, %v502
    %v607 = vmul.f32 %v577, %v502
    %v608 = vmul.f32 %v580, %v502
    %v609 = vmul.f32 %v583, %v502
    %v610 = vmul.f32 %v586, %v502
    %v611 = vmul.f32 %v589, %v502
    %v612 = vmul.f32 %v592, %v502
    %v613 = vmul.f32 %v595, %v502
    %v614 = vmul.f32 %v598, %v502
    %v615 = vadd.f32 %v599, 1e-05
    %v616 = vadd.f32 %v600, 1e-05
    %v617 = vadd.f32 %v601, 1e-05
    %v618 = vadd.f32 %v602, 1e-05
    %v619 = vadd.f32 %v603, 1e-05
    %v620 = vadd.f32 %v604, 1e-05
    %v621 = vadd.f32 %v605, 1e-05
    %v622 = vadd.f32 %v606, 1e-05
    %v623 = vadd.f32 %v607, 1e-05
    %v624 = vadd.f32 %v608, 1e-05
    %v625 = vadd.f32 %v609, 1e-05
    %v626 = vadd.f32 %v610, 1e-05
    %v627 = vadd.f32 %v611, 1e-05
    %v628 = vadd.f32 %v612, 1e-05
    %v629 = vadd.f32 %v613, 1e-05
    %v630 = vadd.f32 %v614, 1e-05
    %v631 = vrsqrt.pop %v615
    %v632 = vrsqrt.pop %v616
    %v633 = vrsqrt.pop %v617
    %v634 = vrsqrt.pop %v618
    %v635 = vrsqrt.pop %v619
    %v636 = vrsqrt.pop %v620
    %v637 = vrsqrt.pop %v621
    %v638 = vrsqrt.pop %v622
    %v639 = vrsqrt.pop %v623
    %v640 = vrsqrt.pop %v624
    %v641 = vrsqrt.pop %v625
    %v642 = vrsqrt.pop %v626
    %v643 = vrsqrt.pop %v627
    %v644 = vrsqrt.pop %v628
    %v645 = vrsqrt.pop %v629
    %v646 = vrsqrt.pop %v630
    %v647 = vmul.f32 %v519, %v631
    %v648 = vmul.f32 %v520, %v632
    %v649 = vmul.f32 %v521, %v633
    %v650 = vmul.f32 %v522, %v634
    %v651 = vmul.f32 %v523, %v635
    %v652 = vmul.f32 %v524, %v636
    %v653 = vmul.f32 %v525, %v637
    %v654 = vmul.f32 %v526, %v638
    %v655 = vmul.f32 %v527, %v639
    %v656 = vmul.f32 %v528, %v640
    %v657 = vmul.f32 %v529, %v641
    %v658 = vmul.f32 %v530, %v642
    %v659 = vmul.f32 %v531, %v643
    %v660 = vmul.f32 %v532, %v644
    %v661 = vmul.f32 %v533, %v645
    %v662 = vmul.f32 %v534, %v646
    %v664 = vlaneseq
    %v665 = vshrl.u32 %v664, 7
    %v666 = vsub.s32 0, %v665
    %v667 = vrot.slane %v451, %v666
    %v669 = vmul.f32 %v647, %v667
    %v670 = vmul.f32 %v648, %v667
    %v671 = vmul.f32 %v649, %v667
    %v672 = vmul.f32 %v650, %v667
    %v673 = vmul.f32 %v651, %v667
    %v674 = vmul.f32 %v652, %v667
    %v675 = vmul.f32 %v653, %v667
    %v676 = vmul.f32 %v654, %v667
    %v677 = vmul.f32 %v655, %v667
    %v678 = vmul.f32 %v656, %v667
    %v679 = vmul.f32 %v657, %v667
    %v680 = vmul.f32 %v658, %v667
    %v681 = vmul.f32 %v659, %v667
    %v682 = vmul.f32 %v660, %v667
    %v683 = vmul.f32 %v661, %v667
    %v684 = vmul.f32 %v662, %v667
    %v686 = vlaneseq
    %v687 = vshrl.u32 %v686, 7
    %v688 = vsub.s32 0, %v687
    %v689 = vrot.slane %v452, %v688
    %v691 = vadd.f32 %v669, %v689
    %v692 = vadd.f32 %v670, %v689
    %v693 = vadd.f32 %v671, %v689
    %v694 = vadd.f32 %v672, %v689
    %v695 = vadd.f32 %v673, %v689
    %v696 = vadd.f32 %v674, %v689
    %v697 = vadd.f32 %v675, %v689
    %v698 = vadd.f32 %v676, %v689
    %v699 = vadd.f32 %v677, %v689
    %v700 = vadd.f32 %v678, %v689
    %v701 = vadd.f32 %v679, %v689
    %v702 = vadd.f32 %v680, %v689
    %v703 = vadd.f32 %v681, %v689
    %v704 = vadd.f32 %v682, %v689
    %v705 = vadd.f32 %v683, %v689
    %v706 = vadd.f32 %v684, %v689
    %v707 = vmax.f32 %v691, 0.0
    %v708 = vmax.f32 %v692, 0.0
    %v709 = vmax.f32 %v693, 0.0
    %v710 = vmax.f32 %v694, 0.0
    %v711 = vmax.f32 %v695, 0.0
    %v712 = vmax.f32 %v696, 0.0
    %v713 = vmax.f32 %v697, 0.0
    %v714 = vmax.f32 %v698, 0.0
    %v715 = vmax.f32 %v699, 0.0
    %v716 = vmax.f32 %v700, 0.0
    %v717 = vmax.f32 %v701, 0.0
    %v718 = vmax.f32 %v702, 0.0
    %v719 = vmax.f32 %v703, 0.0
    %v720 = vmax.f32 %v704, 0.0
    %v721 = vmax.f32 %v705, 0.0
    %v722 = vmax.f32 %v706, 0.0
    %v723 = vpack.c.bf16 %v708, %v707
    %v724 = vpack.c.bf16 %v710, %v709
    %v725 = vpack.c.bf16 %v712, %v711
    %v726 = vpack.c.bf16 %v714, %v713
    %v727 = vpack.c.bf16 %v716, %v715
    %v728 = vpack.c.bf16 %v718, %v717
    %v729 = vpack.c.bf16 %v720, %v719
    %v730 = vpack.c.bf16 %v722, %v721
    %v731 = vld [vmem:[%s8] sm:$0xf]
    %v732 = vld [vmem:[%s8 + $0x4] sm:$0xf]
    %v733 = vld [vmem:[%s8 + $0x8] sm:$0xf]
    %v734 = vld [vmem:[%s8 + $0xc] sm:$0xf]
    %v735 = vld [vmem:[#allocation10] sm:$0x1]
    %v737 = vlaneseq
    %v738 = vshrl.u32 %v737, 7
    %v739 = vsub.s32 0, %v738
    %v740 = vrot.slane %v735, %v739
    %v746 = vunpack.c.l.b16 %v731
    %v747 = vunpack.c.l.b16 %v732
    %v748 = vunpack.c.l.b16 %v733
    %v749 = vunpack.c.l.b16 %v734
    %v750 = vpack.c.b16 %v747, %v746
    %v751 = vpack.c.b16 %v749, %v748
    %v755 = vsel %vm453, %v723, 0
    %v758 = vsel %vm453, %v724, 0
    %v761 = vsel %vm453, %v725, 0
    %v764 = vsel %vm453, %v726, 0
    %v767 = vsel %vm453, %v727, 0
    %v770 = vsel %vm453, %v728, 0
    %v773 = vsel %vm453, %v729, 0
    %v776 = vsel %vm453, %v730, 0
    %778 = vmatprep.subr.bf16.mxu0 0
    %779 = vmatpush1.bf16.msra.mxu0 %v750
    %780 = vmatprep.subr.bf16.mxu0 0
    %781 = vmatpush1.bf16.msra.mxu0 %v751
    %782 = vmatprep.subr.bf16.mxu0 0
    %783 = vmatpush1.bf16.msra.mxu0 0
    %784 = vmatprep.subr.bf16.mxu0 0
    %785 = vmatpush1.bf16.msra.mxu0 0
    %786 = vmatprep.subr.bf16.mxu0 0
    %787 = vmatpush1.bf16.msra.mxu0 0
    %788 = vmatprep.subr.bf16.mxu0 0
    %789 = vmatpush1.bf16.msra.mxu0 0
    %790 = vmatprep.subr.bf16.mxu0 0
    %791 = vmatpush1.bf16.msra.mxu0 0
    %792 = vmatprep.subr.bf16.mxu0 0
    %793 = vmatpush1.bf16.msra.mxu0 0
    %794 = vmatprep.subr.bf16.mxu0 0
    %795 = vmatpush1.bf16.msra.mxu0 0
    %796 = vmatprep.subr.bf16.mxu0 0
    %797 = vmatpush1.bf16.msra.mxu0 0
    %798 = vmatprep.subr.bf16.mxu0 0
    %799 = vmatpush1.bf16.msra.mxu0 0
    %800 = vmatprep.subr.bf16.mxu0 0
    %801 = vmatpush1.bf16.msra.mxu0 0
    %802 = vmatprep.subr.bf16.mxu0 0
    %803 = vmatpush1.bf16.msra.mxu0 0
    %804 = vmatprep.subr.bf16.mxu0 0
    %805 = vmatpush1.bf16.msra.mxu0 0
    %806 = vmatprep.subr.bf16.mxu0 0
    %807 = vmatpush1.bf16.msra.mxu0 0
    %808 = vmatprep.subr.bf16.mxu0 0
    %809 = vmatpush1.bf16.msra.mxu0 0
    %810 = vmatprep.mubr.bf16.mxu0 0
    %811 = vmatmul.mubr.bf16.gmra.mrb[0].mxu0 %v755
    %v812 = vpop.f32.mrb[0].mxu0
    %v813 = vadd.f32 %v740, %v812
    %v814 = vpop.f32.mrb[0].mxu0
    %v815 = vpop.f32.mrb[0].mxu0
    %v816 = vadd.f32 %v740, %v815
    %v817 = vpop.f32.mrb[0].mxu0
    %818 = vmatprep.mubr.bf16.mxu0 0
    %819 = vmatmul.mubr.bf16.gmra.mrb[0].mxu0 %v758
    %v820 = vpop.f32.mrb[0].mxu0
    %v821 = vadd.f32 %v740, %v820
    %v822 = vpop.f32.mrb[0].mxu0
    %v823 = vpop.f32.mrb[0].mxu0
    %v824 = vadd.f32 %v740, %v823
    %v825 = vpop.f32.mrb[0].mxu0
    %826 = vmatprep.mubr.bf16.mxu0 0
    %827 = vmatmul.mubr.bf16.gmra.mrb[0].mxu0 %v761
    %v828 = vpop.f32.mrb[0].mxu0
    %v829 = vadd.f32 %v740, %v828
    %v830 = vpop.f32.mrb[0].mxu0
    %v831 = vpop.f32.mrb[0].mxu0
    %v832 = vadd.f32 %v740, %v831
    %v833 = vpop.f32.mrb[0].mxu0
    %834 = vmatprep.mubr.bf16.mxu0 0
    %835 = vmatmul.mubr.bf16.gmra.mrb[0].mxu0 %v764
    %v836 = vpop.f32.mrb[0].mxu0
    %v837 = vadd.f32 %v740, %v836
    %v838 = vpop.f32.mrb[0].mxu0
    %v839 = vpop.f32.mrb[0].mxu0
    %v840 = vadd.f32 %v740, %v839
    %v841 = vpop.f32.mrb[0].mxu0
    %842 = vmatprep.mubr.bf16.mxu0 0
    %843 = vmatmul.mubr.bf16.gmra.mrb[0].mxu0 %v767
    %v844 = vpop.f32.mrb[0].mxu0
    %v845 = vadd.f32 %v740, %v844
    %v846 = vpop.f32.mrb[0].mxu0
    %v847 = vpop.f32.mrb[0].mxu0
    %v848 = vadd.f32 %v740, %v847
    %v849 = vpop.f32.mrb[0].mxu0
    %850 = vmatprep.mubr.bf16.mxu0 0
    %851 = vmatmul.mubr.bf16.gmra.mrb[0].mxu0 %v770
    %v852 = vpop.f32.mrb[0].mxu0
    %v853 = vadd.f32 %v740, %v852
    %v854 = vpop.f32.mrb[0].mxu0
    %v855 = vpop.f32.mrb[0].mxu0
    %v856 = vadd.f32 %v740, %v855
    %v857 = vpop.f32.mrb[0].mxu0
    %858 = vmatprep.mubr.bf16.mxu0 0
    %859 = vmatmul.mubr.bf16.gmra.mrb[0].mxu0 %v773
    %v860 = vpop.f32.mrb[0].mxu0
    %v861 = vadd.f32 %v740, %v860
    %v862 = vpop.f32.mrb[0].mxu0
    %v863 = vpop.f32.mrb[0].mxu0
    %v864 = vadd.f32 %v740, %v863
    %v865 = vpop.f32.mrb[0].mxu0
    %866 = vmatprep.mubr.bf16.mxu0 0
    %867 = vmatmul.mubr.bf16.gmra.mrb[0].mxu0 %v776
    %v868 = vpop.f32.mrb[0].mxu0
    %v869 = vadd.f32 %v740, %v868
    %v870 = vpop.f32.mrb[0].mxu0
    %v871 = vpop.f32.mrb[0].mxu0
    %v872 = vadd.f32 %v740, %v871
    %v873 = vpop.f32.mrb[0].mxu0
    %874 = vdwg.mxu0
    %v875 = vld [vmem:[%s10] sm:$0x1]
    %v876 = vld [vmem:[#allocation11] sm:$0x1]
    %v877 = vsel %vm453, %v813, 0.0
    %878 = vadd.xlane.f32.xlu0 %v877
    %v879 = vpop.xlane.xlu0 %878
    %v880 = vsel %vm453, %v816, 0.0
    %881 = vadd.xlane.f32.xlu0 %v880
    %v882 = vpop.xlane.xlu0 %881
    %v883 = vsel %vm453, %v821, 0.0
    %884 = vadd.xlane.f32.xlu0 %v883
    %v885 = vpop.xlane.xlu0 %884
    %v886 = vsel %vm453, %v824, 0.0
    %887 = vadd.xlane.f32.xlu0 %v886
    %v888 = vpop.xlane.xlu0 %887
    %v889 = vsel %vm453, %v829, 0.0
    %890 = vadd.xlane.f32.xlu0 %v889
    %v891 = vpop.xlane.xlu0 %890
    %v892 = vsel %vm453, %v832, 0.0
    %893 = vadd.xlane.f32.xlu0 %v892
    %v894 = vpop.xlane.xlu0 %893
    %v895 = vsel %vm453, %v837, 0.0
    %896 = vadd.xlane.f32.xlu0 %v895
    %v897 = vpop.xlane.xlu0 %896
    %v898 = vsel %vm453, %v840, 0.0
    %899 = vadd.xlane.f32.xlu0 %v898
    %v900 = vpop.xlane.xlu0 %899
    %v901 = vsel %vm453, %v845, 0.0
    %902 = vadd.xlane.f32.xlu0 %v901
    %v903 = vpop.xlane.xlu0 %902
    %v904 = vsel %vm453, %v848, 0.0
    %905 = vadd.xlane.f32.xlu0 %v904
    %v906 = vpop.xlane.xlu0 %905
    %v907 = vsel %vm453, %v853, 0.0
    %908 = vadd.xlane.f32.xlu0 %v907
    %v909 = vpop.xlane.xlu0 %908
    %v910 = vsel %vm453, %v856, 0.0
    %911 = vadd.xlane.f32.xlu0 %v910
    %v912 = vpop.xlane.xlu0 %911
    %v913 = vsel %vm453, %v861, 0.0
    %914 = vadd.xlane.f32.xlu0 %v913
    %v915 = vpop.xlane.xlu0 %914
    %v916 = vsel %vm453, %v864, 0.0
    %917 = vadd.xlane.f32.xlu0 %v916
    %v918 = vpop.xlane.xlu0 %917
    %v919 = vsel %vm453, %v869, 0.0
    %920 = vadd.xlane.f32.xlu0 %v919
    %v921 = vpop.xlane.xlu0 %920
    %v922 = vsel %vm453, %v872, 0.0
    %923 = vadd.xlane.f32.xlu0 %v922
    %v924 = vpop.xlane.xlu0 %923
    %v925 = vmul.f32 %v879, %v502
    %v926 = vmul.f32 %v882, %v502
    %v927 = vmul.f32 %v885, %v502
    %v928 = vmul.f32 %v888, %v502
    %v929 = vmul.f32 %v891, %v502
    %v930 = vmul.f32 %v894, %v502
    %v931 = vmul.f32 %v897, %v502
    %v932 = vmul.f32 %v900, %v502
    %v933 = vmul.f32 %v903, %v502
    %v934 = vmul.f32 %v906, %v502
    %v935 = vmul.f32 %v909, %v502
    %v936 = vmul.f32 %v912, %v502
    %v937 = vmul.f32 %v915, %v502
    %v938 = vmul.f32 %v918, %v502
    %v939 = vmul.f32 %v921, %v502
    %v940 = vmul.f32 %v924, %v502
    %v941 = vsub.f32 %v813, %v925
    %v942 = vsub.f32 %v816, %v926
    %v943 = vsub.f32 %v821, %v927
    %v944 = vsub.f32 %v824, %v928
    %v945 = vsub.f32 %v829, %v929
    %v946 = vsub.f32 %v832, %v930
    %v947 = vsub.f32 %v837, %v931
    %v948 = vsub.f32 %v840, %v932
    %v949 = vsub.f32 %v845, %v933
    %v950 = vsub.f32 %v848, %v934
    %v951 = vsub.f32 %v853, %v935
    %v952 = vsub.f32 %v856, %v936
    %v953 = vsub.f32 %v861, %v937
    %v954 = vsub.f32 %v864, %v938
    %v955 = vsub.f32 %v869, %v939
    %v956 = vsub.f32 %v872, %v940
    %v957 = vmul.f32 %v941, %v941
    %v958 = vmul.f32 %v942, %v942
    %v959 = vmul.f32 %v943, %v943
    %v960 = vmul.f32 %v944, %v944
    %v961 = vmul.f32 %v945, %v945
    %v962 = vmul.f32 %v946, %v946
    %v963 = vmul.f32 %v947, %v947
    %v964 = vmul.f32 %v948, %v948
    %v965 = vmul.f32 %v949, %v949
    %v966 = vmul.f32 %v950, %v950
    %v967 = vmul.f32 %v951, %v951
    %v968 = vmul.f32 %v952, %v952
    %v969 = vmul.f32 %v953, %v953
    %v970 = vmul.f32 %v954, %v954
    %v971 = vmul.f32 %v955, %v955
    %v972 = vmul.f32 %v956, %v956
    %v973 = vsel %vm453, %v957, 0.0
    %974 = vadd.xlane.f32.xlu0 %v973
    %v975 = vpop.xlane.xlu0 %974
    %v976 = vsel %vm453, %v958, 0.0
    %977 = vadd.xlane.f32.xlu0 %v976
    %v978 = vpop.xlane.xlu0 %977
    %v979 = vsel %vm453, %v959, 0.0
    %980 = vadd.xlane.f32.xlu0 %v979
    %v981 = vpop.xlane.xlu0 %980
    %v982 = vsel %vm453, %v960, 0.0
    %983 = vadd.xlane.f32.xlu0 %v982
    %v984 = vpop.xlane.xlu0 %983
    %v985 = vsel %vm453, %v961, 0.0
    %986 = vadd.xlane.f32.xlu0 %v985
    %v987 = vpop.xlane.xlu0 %986
    %v988 = vsel %vm453, %v962, 0.0
    %989 = vadd.xlane.f32.xlu0 %v988
    %v990 = vpop.xlane.xlu0 %989
    %v991 = vsel %vm453, %v963, 0.0
    %992 = vadd.xlane.f32.xlu0 %v991
    %v993 = vpop.xlane.xlu0 %992
    %v994 = vsel %vm453, %v964, 0.0
    %995 = vadd.xlane.f32.xlu0 %v994
    %v996 = vpop.xlane.xlu0 %995
    %v997 = vsel %vm453, %v965, 0.0
    %998 = vadd.xlane.f32.xlu0 %v997
    %v999 = vpop.xlane.xlu0 %998
    %v1000 = vsel %vm453, %v966, 0.0
    %1001 = vadd.xlane.f32.xlu0 %v1000
    %v1002 = vpop.xlane.xlu0 %1001
    %v1003 = vsel %vm453, %v967, 0.0
    %1004 = vadd.xlane.f32.xlu0 %v1003
    %v1005 = vpop.xlane.xlu0 %1004
    %v1006 = vsel %vm453, %v968, 0.0
    %1007 = vadd.xlane.f32.xlu0 %v1006
    %v1008 = vpop.xlane.xlu0 %1007
    %v1009 = vsel %vm453, %v969, 0.0
    %1010 = vadd.xlane.f32.xlu0 %v1009
    %v1011 = vpop.xlane.xlu0 %1010
    %v1012 = vsel %vm453, %v970, 0.0
    %1013 = vadd.xlane.f32.xlu0 %v1012
    %v1014 = vpop.xlane.xlu0 %1013
    %v1015 = vsel %vm453, %v971, 0.0
    %1016 = vadd.xlane.f32.xlu0 %v1015
    %v1017 = vpop.xlane.xlu0 %1016
    %v1018 = vsel %vm453, %v972, 0.0
    %1019 = vadd.xlane.f32.xlu0 %v1018
    %v1020 = vpop.xlane.xlu0 %1019
    %v1021 = vmul.f32 %v975, %v502
    %v1022 = vmul.f32 %v978, %v502
    %v1023 = vmul.f32 %v981, %v502
    %v1024 = vmul.f32 %v984, %v502
    %v1025 = vmul.f32 %v987, %v502
    %v1026 = vmul.f32 %v990, %v502
    %v1027 = vmul.f32 %v993, %v502
    %v1028 = vmul.f32 %v996, %v502
    %v1029 = vmul.f32 %v999, %v502
    %v1030 = vmul.f32 %v1002, %v502
    %v1031 = vmul.f32 %v1005, %v502
    %v1032 = vmul.f32 %v1008, %v502
    %v1033 = vmul.f32 %v1011, %v502
    %v1034 = vmul.f32 %v1014, %v502
    %v1035 = vmul.f32 %v1017, %v502
    %v1036 = vmul.f32 %v1020, %v502
    %v1037 = vadd.f32 %v1021, 1e-05
    %v1038 = vadd.f32 %v1022, 1e-05
    %v1039 = vadd.f32 %v1023, 1e-05
    %v1040 = vadd.f32 %v1024, 1e-05
    %v1041 = vadd.f32 %v1025, 1e-05
    %v1042 = vadd.f32 %v1026, 1e-05
    %v1043 = vadd.f32 %v1027, 1e-05
    %v1044 = vadd.f32 %v1028, 1e-05
    %v1045 = vadd.f32 %v1029, 1e-05
    %v1046 = vadd.f32 %v1030, 1e-05
    %v1047 = vadd.f32 %v1031, 1e-05
    %v1048 = vadd.f32 %v1032, 1e-05
    %v1049 = vadd.f32 %v1033, 1e-05
    %v1050 = vadd.f32 %v1034, 1e-05
    %v1051 = vadd.f32 %v1035, 1e-05
    %v1052 = vadd.f32 %v1036, 1e-05
    %v1053 = vrsqrt.pop %v1037
    %v1054 = vrsqrt.pop %v1038
    %v1055 = vrsqrt.pop %v1039
    %v1056 = vrsqrt.pop %v1040
    %v1057 = vrsqrt.pop %v1041
    %v1058 = vrsqrt.pop %v1042
    %v1059 = vrsqrt.pop %v1043
    %v1060 = vrsqrt.pop %v1044
    %v1061 = vrsqrt.pop %v1045
    %v1062 = vrsqrt.pop %v1046
    %v1063 = vrsqrt.pop %v1047
    %v1064 = vrsqrt.pop %v1048
    %v1065 = vrsqrt.pop %v1049
    %v1066 = vrsqrt.pop %v1050
    %v1067 = vrsqrt.pop %v1051
    %v1068 = vrsqrt.pop %v1052
    %v1069 = vmul.f32 %v941, %v1053
    %v1070 = vmul.f32 %v942, %v1054
    %v1071 = vmul.f32 %v943, %v1055
    %v1072 = vmul.f32 %v944, %v1056
    %v1073 = vmul.f32 %v945, %v1057
    %v1074 = vmul.f32 %v946, %v1058
    %v1075 = vmul.f32 %v947, %v1059
    %v1076 = vmul.f32 %v948, %v1060
    %v1077 = vmul.f32 %v949, %v1061
    %v1078 = vmul.f32 %v950, %v1062
    %v1079 = vmul.f32 %v951, %v1063
    %v1080 = vmul.f32 %v952, %v1064
    %v1081 = vmul.f32 %v953, %v1065
    %v1082 = vmul.f32 %v954, %v1066
    %v1083 = vmul.f32 %v955, %v1067
    %v1084 = vmul.f32 %v956, %v1068
    %v1086 = vlaneseq
    %v1087 = vshrl.u32 %v1086, 7
    %v1088 = vsub.s32 0, %v1087
    %v1089 = vrot.slane %v875, %v1088
    %v1091 = vmul.f32 %v1069, %v1089
    %v1092 = vmul.f32 %v1070, %v1089
    %v1093 = vmul.f32 %v1071, %v1089
    %v1094 = vmul.f32 %v1072, %v1089
    %v1095 = vmul.f32 %v1073, %v1089
    %v1096 = vmul.f32 %v1074, %v1089
    %v1097 = vmul.f32 %v1075, %v1089
    %v1098 = vmul.f32 %v1076, %v1089
    %v1099 = vmul.f32 %v1077, %v1089
    %v1100 = vmul.f32 %v1078, %v1089
    %v1101 = vmul.f32 %v1079, %v1089
    %v1102 = vmul.f32 %v1080, %v1089
    %v1103 = vmul.f32 %v1081, %v1089
    %v1104 = vmul.f32 %v1082, %v1089
    %v1105 = vmul.f32 %v1083, %v1089
    %v1106 = vmul.f32 %v1084, %v1089
    %v1108 = vlaneseq
    %v1109 = vshrl.u32 %v1108, 7
    %v1110 = vsub.s32 0, %v1109
    %v1111 = vrot.slane %v876, %v1110
    %v1113 = vadd.f32 %v1091, %v1111
    %v1114 = vadd.f32 %v1092, %v1111
    %v1115 = vadd.f32 %v1093, %v1111
    %v1116 = vadd.f32 %v1094, %v1111
    %v1117 = vadd.f32 %v1095, %v1111
    %v1118 = vadd.f32 %v1096, %v1111
    %v1119 = vadd.f32 %v1097, %v1111
    %v1120 = vadd.f32 %v1098, %v1111
    %v1121 = vadd.f32 %v1099, %v1111
    %v1122 = vadd.f32 %v1100, %v1111
    %v1123 = vadd.f32 %v1101, %v1111
    %v1124 = vadd.f32 %v1102, %v1111
    %v1125 = vadd.f32 %v1103, %v1111
    %v1126 = vadd.f32 %v1104, %v1111
    %v1127 = vadd.f32 %v1105, %v1111
    %v1128 = vadd.f32 %v1106, %v1111
    %v1129 = vmax.f32 %v1113, 0.0
    %v1130 = vmax.f32 %v1114, 0.0
    %v1131 = vmax.f32 %v1115, 0.0
    %v1132 = vmax.f32 %v1116, 0.0
    %v1133 = vmax.f32 %v1117, 0.0
    %v1134 = vmax.f32 %v1118, 0.0
    %v1135 = vmax.f32 %v1119, 0.0
    %v1136 = vmax.f32 %v1120, 0.0
    %v1137 = vmax.f32 %v1121, 0.0
    %v1138 = vmax.f32 %v1122, 0.0
    %v1139 = vmax.f32 %v1123, 0.0
    %v1140 = vmax.f32 %v1124, 0.0
    %v1141 = vmax.f32 %v1125, 0.0
    %v1142 = vmax.f32 %v1126, 0.0
    %v1143 = vmax.f32 %v1127, 0.0
    %v1144 = vmax.f32 %v1128, 0.0
    %v1145 = vadd.f32 %v1129, %v707
    %v1146 = vadd.f32 %v1130, %v708
    %v1147 = vadd.f32 %v1131, %v709
    %v1148 = vadd.f32 %v1132, %v710
    %v1149 = vadd.f32 %v1133, %v711
    %v1150 = vadd.f32 %v1134, %v712
    %v1151 = vadd.f32 %v1135, %v713
    %v1152 = vadd.f32 %v1136, %v714
    %v1153 = vadd.f32 %v1137, %v715
    %v1154 = vadd.f32 %v1138, %v716
    %v1155 = vadd.f32 %v1139, %v717
    %v1156 = vadd.f32 %v1140, %v718
    %v1157 = vadd.f32 %v1141, %v719
    %v1158 = vadd.f32 %v1142, %v720
    %v1159 = vadd.f32 %v1143, %v721
    %v1160 = vadd.f32 %v1144, %v722
    %v1161 = vpack.c.bf16 %v1146, %v1145
    %v1162 = vpack.c.bf16 %v1148, %v1147
    %v1163 = vpack.c.bf16 %v1150, %v1149
    %v1164 = vpack.c.bf16 %v1152, %v1151
    %v1165 = vpack.c.bf16 %v1154, %v1153
    %v1166 = vpack.c.bf16 %v1156, %v1155
    %v1167 = vpack.c.bf16 %v1158, %v1157
    %v1168 = vpack.c.bf16 %v1160, %v1159
    %v1169 = vld [vmem:[%s12] sm:$0xf]
    %v1170 = vld [vmem:[%s12 + $0x4] sm:$0xf]
    %v1171 = vld [vmem:[%s12 + $0x8] sm:$0xf]
    %v1172 = vld [vmem:[%s12 + $0xc] sm:$0xf]
    %v1173 = vld [vmem:[%s13] sm:$0x1]
    %v1175 = vlaneseq
    %v1176 = vshrl.u32 %v1175, 7
    %v1177 = vsub.s32 0, %v1176
    %v1178 = vrot.slane %v1173, %v1177
    %v1184 = vunpack.c.l.b16 %v1169
    %v1185 = vunpack.c.l.b16 %v1170
    %v1186 = vunpack.c.l.b16 %v1171
    %v1187 = vunpack.c.l.b16 %v1172
    %v1188 = vpack.c.b16 %v1185, %v1184
    %v1189 = vpack.c.b16 %v1187, %v1186
    %v1193 = vsel %vm453, %v1161, 0
    %v1196 = vsel %vm453, %v1162, 0
    %v1199 = vsel %vm453, %v1163, 0
    %v1202 = vsel %vm453, %v1164, 0
    %v1205 = vsel %vm453, %v1165, 0
    %v1208 = vsel %vm453, %v1166, 0
    %v1211 = vsel %vm453, %v1167, 0
    %v1214 = vsel %vm453, %v1168, 0
    %1216 = vmatprep.subr.bf16.mxu0 0
    %1217 = vmatpush1.bf16.msra.mxu0 %v1188
    %1218 = vmatprep.subr.bf16.mxu0 0
    %1219 = vmatpush1.bf16.msra.mxu0 %v1189
    %1220 = vmatprep.subr.bf16.mxu0 0
    %1221 = vmatpush1.bf16.msra.mxu0 0
    %1222 = vmatprep.subr.bf16.mxu0 0
    %1223 = vmatpush1.bf16.msra.mxu0 0
    %1224 = vmatprep.subr.bf16.mxu0 0
    %1225 = vmatpush1.bf16.msra.mxu0 0
    %1226 = vmatprep.subr.bf16.mxu0 0
    %1227 = vmatpush1.bf16.msra.mxu0 0
    %1228 = vmatprep.subr.bf16.mxu0 0
    %1229 = vmatpush1.bf16.msra.mxu0 0
    %1230 = vmatprep.subr.bf16.mxu0 0
    %1231 = vmatpush1.bf16.msra.mxu0 0
    %1232 = vmatprep.subr.bf16.mxu0 0
    %1233 = vmatpush1.bf16.msra.mxu0 0
    %1234 = vmatprep.subr.bf16.mxu0 0
    %1235 = vmatpush1.bf16.msra.mxu0 0
    %1236 = vmatprep.subr.bf16.mxu0 0
    %1237 = vmatpush1.bf16.msra.mxu0 0
    %1238 = vmatprep.subr.bf16.mxu0 0
    %1239 = vmatpush1.bf16.msra.mxu0 0
    %1240 = vmatprep.subr.bf16.mxu0 0
    %1241 = vmatpush1.bf16.msra.mxu0 0
    %1242 = vmatprep.subr.bf16.mxu0 0
    %1243 = vmatpush1.bf16.msra.mxu0 0
    %1244 = vmatprep.subr.bf16.mxu0 0
    %1245 = vmatpush1.bf16.msra.mxu0 0
    %1246 = vmatprep.subr.bf16.mxu0 0
    %1247 = vmatpush1.bf16.msra.mxu0 0
    %1248 = vmatprep.mubr.bf16.mxu0 0
    %1249 = vmatmul.mubr.bf16.gmra.mrb[0].mxu0 %v1193
    %v1250 = vpop.f32.mrb[0].mxu0
    %v1251 = vadd.f32 %v1178, %v1250
    %v1252 = vpop.f32.mrb[0].mxu0
    %v1253 = vpop.f32.mrb[0].mxu0
    %v1254 = vadd.f32 %v1178, %v1253
    %v1255 = vpop.f32.mrb[0].mxu0
    %1256 = vmatprep.mubr.bf16.mxu0 0
    %1257 = vmatmul.mubr.bf16.gmra.mrb[0].mxu0 %v1196
    %v1258 = vpop.f32.mrb[0].mxu0
    %v1259 = vadd.f32 %v1178, %v1258
    %v1260 = vpop.f32.mrb[0].mxu0
    %v1261 = vpop.f32.mrb[0].mxu0
    %v1262 = vadd.f32 %v1178, %v1261
    %v1263 = vpop.f32.mrb[0].mxu0
    %1264 = vmatprep.mubr.bf16.mxu0 0
    %1265 = vmatmul.mubr.bf16.gmra.mrb[0].mxu0 %v1199
    %v1266 = vpop.f32.mrb[0].mxu0
    %v1267 = vadd.f32 %v1178, %v1266
    %v1268 = vpop.f32.mrb[0].mxu0
    %v1269 = vpop.f32.mrb[0].mxu0
    %v1270 = vadd.f32 %v1178, %v1269
    %v1271 = vpop.f32.mrb[0].mxu0
    %1272 = vmatprep.mubr.bf16.mxu0 0
    %1273 = vmatmul.mubr.bf16.gmra.mrb[0].mxu0 %v1202
    %v1274 = vpop.f32.mrb[0].mxu0
    %v1275 = vadd.f32 %v1178, %v1274
    %v1276 = vpop.f32.mrb[0].mxu0
    %v1277 = vpop.f32.mrb[0].mxu0
    %v1278 = vadd.f32 %v1178, %v1277
    %v1279 = vpop.f32.mrb[0].mxu0
    %1280 = vmatprep.mubr.bf16.mxu0 0
    %1281 = vmatmul.mubr.bf16.gmra.mrb[0].mxu0 %v1205
    %v1282 = vpop.f32.mrb[0].mxu0
    %v1283 = vadd.f32 %v1178, %v1282
    %v1284 = vpop.f32.mrb[0].mxu0
    %v1285 = vpop.f32.mrb[0].mxu0
    %v1286 = vadd.f32 %v1178, %v1285
    %v1287 = vpop.f32.mrb[0].mxu0
    %1288 = vmatprep.mubr.bf16.mxu0 0
    %1289 = vmatmul.mubr.bf16.gmra.mrb[0].mxu0 %v1208
    %v1290 = vpop.f32.mrb[0].mxu0
    %v1291 = vadd.f32 %v1178, %v1290
    %v1292 = vpop.f32.mrb[0].mxu0
    %v1293 = vpop.f32.mrb[0].mxu0
    %v1294 = vadd.f32 %v1178, %v1293
    %v1295 = vpop.f32.mrb[0].mxu0
    %1296 = vmatprep.mubr.bf16.mxu0 0
    %1297 = vmatmul.mubr.bf16.gmra.mrb[0].mxu0 %v1211
    %v1298 = vpop.f32.mrb[0].mxu0
    %v1299 = vadd.f32 %v1178, %v1298
    %v1300 = vpop.f32.mrb[0].mxu0
    %v1301 = vpop.f32.mrb[0].mxu0
    %v1302 = vadd.f32 %v1178, %v1301
    %v1303 = vpop.f32.mrb[0].mxu0
    %1304 = vmatprep.mubr.bf16.mxu0 0
    %1305 = vmatmul.mubr.bf16.gmra.mrb[0].mxu0 %v1214
    %v1306 = vpop.f32.mrb[0].mxu0
    %v1307 = vadd.f32 %v1178, %v1306
    %v1308 = vpop.f32.mrb[0].mxu0
    %v1309 = vpop.f32.mrb[0].mxu0
    %v1310 = vadd.f32 %v1178, %v1309
    %v1311 = vpop.f32.mrb[0].mxu0
    %1312 = vdwg.mxu0
    %1313 = vst.msk [vmem:[#allocation2] sm:$0xff] %vm453, %v1251
    %1314 = vst.msk [vmem:[#allocation2 + $0x8] sm:$0xff] %vm453, %v1254
    %1315 = vst.msk [vmem:[#allocation2 + $0x10] sm:$0xff] %vm453, %v1259
    %1316 = vst.msk [vmem:[#allocation2 + $0x18] sm:$0xff] %vm453, %v1262
    %1317 = vst.msk [vmem:[#allocation2 + $0x20] sm:$0xff] %vm453, %v1267
    %1318 = vst.msk [vmem:[#allocation2 + $0x28] sm:$0xff] %vm453, %v1270
    %1319 = vst.msk [vmem:[#allocation2 + $0x30] sm:$0xff] %vm453, %v1275
    %1320 = vst.msk [vmem:[#allocation2 + $0x38] sm:$0xff] %vm453, %v1278
    %1321 = vst.msk [vmem:[#allocation2 + $0x40] sm:$0xff] %vm453, %v1283
    %1322 = vst.msk [vmem:[#allocation2 + $0x48] sm:$0xff] %vm453, %v1286
    %1323 = vst.msk [vmem:[#allocation2 + $0x50] sm:$0xff] %vm453, %v1291
    %1324 = vst.msk [vmem:[#allocation2 + $0x58] sm:$0xff] %vm453, %v1294
    %1325 = vst.msk [vmem:[#allocation2 + $0x60] sm:$0xff] %vm453, %v1299
    %1326 = vst.msk [vmem:[#allocation2 + $0x68] sm:$0xff] %vm453, %v1302
    %1327 = vst.msk [vmem:[#allocation2 + $0x70] sm:$0xff] %vm453, %v1307
    %1328 = vst.msk [vmem:[#allocation2 + $0x78] sm:$0xff] %vm453, %v1310
    %s1329 = scalar_lea.vmem %s12, 16
    %v1330 = vld [vmem:[%s1329] sm:$0xf]
    %v1331 = vld [vmem:[%s1329 + $0x4] sm:$0xf]
    %v1332 = vld [vmem:[%s1329 + $0x8] sm:$0xf]
    %v1333 = vld [vmem:[%s1329 + $0xc] sm:$0xf]
    %s1334 = scalar_lea.vmem %s13, 1
    %v1335 = vld [vmem:[%s1334] sm:$0x1]
    %v1337 = vlaneseq
    %v1338 = vshrl.u32 %v1337, 7
    %v1339 = vsub.s32 0, %v1338
    %v1340 = vrot.slane %v1335, %v1339
    %v1346 = vunpack.c.l.b16 %v1330
    %v1347 = vunpack.c.l.b16 %v1331
    %v1348 = vunpack.c.l.b16 %v1332
    %v1349 = vunpack.c.l.b16 %v1333
    %v1350 = vpack.c.b16 %v1347, %v1346
    %v1351 = vpack.c.b16 %v1349, %v1348
    %1354 = vmatprep.subr.bf16.mxu0 0
    %1355 = vmatpush1.bf16.msra.mxu0 %v1350
    %1356 = vmatprep.subr.bf16.mxu0 0
    %1357 = vmatpush1.bf16.msra.mxu0 %v1351
    %1358 = vmatprep.subr.bf16.mxu0 0
    %1359 = vmatpush1.bf16.msra.mxu0 0
    %1360 = vmatprep.subr.bf16.mxu0 0
    %1361 = vmatpush1.bf16.msra.mxu0 0
    %1362 = vmatprep.subr.bf16.mxu0 0
    %1363 = vmatpush1.bf16.msra.mxu0 0
    %1364 = vmatprep.subr.bf16.mxu0 0
    %1365 = vmatpush1.bf16.msra.mxu0 0
    %1366 = vmatprep.subr.bf16.mxu0 0
    %1367 = vmatpush1.bf16.msra.mxu0 0
    %1368 = vmatprep.subr.bf16.mxu0 0
    %1369 = vmatpush1.bf16.msra.mxu0 0
    %1370 = vmatprep.subr.bf16.mxu0 0
    %1371 = vmatpush1.bf16.msra.mxu0 0
    %1372 = vmatprep.subr.bf16.mxu0 0
    %1373 = vmatpush1.bf16.msra.mxu0 0
    %1374 = vmatprep.subr.bf16.mxu0 0
    %1375 = vmatpush1.bf16.msra.mxu0 0
    %1376 = vmatprep.subr.bf16.mxu0 0
    %1377 = vmatpush1.bf16.msra.mxu0 0
    %1378 = vmatprep.subr.bf16.mxu0 0
    %1379 = vmatpush1.bf16.msra.mxu0 0
    %1380 = vmatprep.subr.bf16.mxu0 0
    %1381 = vmatpush1.bf16.msra.mxu0 0
    %1382 = vmatprep.subr.bf16.mxu0 0
    %1383 = vmatpush1.bf16.msra.mxu0 0
    %1384 = vmatprep.subr.bf16.mxu0 0
    %1385 = vmatpush1.bf16.msra.mxu0 0
    %1386 = vmatprep.mubr.bf16.mxu0 0
    %1387 = vmatmul.mubr.bf16.gmra.mrb[0].mxu0 %v1193
    %v1388 = vpop.f32.mrb[0].mxu0
    %v1389 = vadd.f32 %v1340, %v1388
    %v1390 = vpop.f32.mrb[0].mxu0
    %v1391 = vpop.f32.mrb[0].mxu0
    %v1392 = vadd.f32 %v1340, %v1391
    %v1393 = vpop.f32.mrb[0].mxu0
    %1394 = vmatprep.mubr.bf16.mxu0 0
    %1395 = vmatmul.mubr.bf16.gmra.mrb[0].mxu0 %v1196
    %v1396 = vpop.f32.mrb[0].mxu0
    %v1397 = vadd.f32 %v1340, %v1396
    %v1398 = vpop.f32.mrb[0].mxu0
    %v1399 = vpop.f32.mrb[0].mxu0
    %v1400 = vadd.f32 %v1340, %v1399
    %v1401 = vpop.f32.mrb[0].mxu0
    %1402 = vmatprep.mubr.bf16.mxu0 0
    %1403 = vmatmul.mubr.bf16.gmra.mrb[0].mxu0 %v1199
    %v1404 = vpop.f32.mrb[0].mxu0
    %v1405 = vadd.f32 %v1340, %v1404
    %v1406 = vpop.f32.mrb[0].mxu0
    %v1407 = vpop.f32.mrb[0].mxu0
    %v1408 = vadd.f32 %v1340, %v1407
    %v1409 = vpop.f32.mrb[0].mxu0
    %1410 = vmatprep.mubr.bf16.mxu0 0
    %1411 = vmatmul.mubr.bf16.gmra.mrb[0].mxu0 %v1202
    %v1412 = vpop.f32.mrb[0].mxu0
    %v1413 = vadd.f32 %v1340, %v1412
    %v1414 = vpop.f32.mrb[0].mxu0
    %v1415 = vpop.f32.mrb[0].mxu0
    %v1416 = vadd.f32 %v1340, %v1415
    %v1417 = vpop.f32.mrb[0].mxu0
    %1418 = vmatprep.mubr.bf16.mxu0 0
    %1419 = vmatmul.mubr.bf16.gmra.mrb[0].mxu0 %v1205
    %v1420 = vpop.f32.mrb[0].mxu0
    %v1421 = vadd.f32 %v1340, %v1420
    %v1422 = vpop.f32.mrb[0].mxu0
    %v1423 = vpop.f32.mrb[0].mxu0
    %v1424 = vadd.f32 %v1340, %v1423
    %v1425 = vpop.f32.mrb[0].mxu0
    %1426 = vmatprep.mubr.bf16.mxu0 0
    %1427 = vmatmul.mubr.bf16.gmra.mrb[0].mxu0 %v1208
    %v1428 = vpop.f32.mrb[0].mxu0
    %v1429 = vadd.f32 %v1340, %v1428
    %v1430 = vpop.f32.mrb[0].mxu0
    %v1431 = vpop.f32.mrb[0].mxu0
    %v1432 = vadd.f32 %v1340, %v1431
    %v1433 = vpop.f32.mrb[0].mxu0
    %1434 = vmatprep.mubr.bf16.mxu0 0
    %1435 = vmatmul.mubr.bf16.gmra.mrb[0].mxu0 %v1211
    %v1436 = vpop.f32.mrb[0].mxu0
    %v1437 = vadd.f32 %v1340, %v1436
    %v1438 = vpop.f32.mrb[0].mxu0
    %v1439 = vpop.f32.mrb[0].mxu0
    %v1440 = vadd.f32 %v1340, %v1439
    %v1441 = vpop.f32.mrb[0].mxu0
    %1442 = vmatprep.mubr.bf16.mxu0 0
    %1443 = vmatmul.mubr.bf16.gmra.mrb[0].mxu0 %v1214
    %v1444 = vpop.f32.mrb[0].mxu0
    %v1445 = vadd.f32 %v1340, %v1444
    %v1446 = vpop.f32.mrb[0].mxu0
    %v1447 = vpop.f32.mrb[0].mxu0
    %v1448 = vadd.f32 %v1340, %v1447
    %v1449 = vpop.f32.mrb[0].mxu0
    %1450 = vdwg.mxu0
    %1451 = vst.msk [vmem:[#allocation3] sm:$0xff] %vm453, %v1389
    %1452 = vst.msk [vmem:[#allocation3 + $0x8] sm:$0xff] %vm453, %v1392
    %1453 = vst.msk [vmem:[#allocation3 + $0x10] sm:$0xff] %vm453, %v1397
    %1454 = vst.msk [vmem:[#allocation3 + $0x18] sm:$0xff] %vm453, %v1400
    %1455 = vst.msk [vmem:[#allocation3 + $0x20] sm:$0xff] %vm453, %v1405
    %1456 = vst.msk [vmem:[#allocation3 + $0x28] sm:$0xff] %vm453, %v1408
    %1457 = vst.msk [vmem:[#allocation3 + $0x30] sm:$0xff] %vm453, %v1413
    %1458 = vst.msk [vmem:[#allocation3 + $0x38] sm:$0xff] %vm453, %v1416
    %1459 = vst.msk [vmem:[#allocation3 + $0x40] sm:$0xff] %vm453, %v1421
    %1460 = vst.msk [vmem:[#allocation3 + $0x48] sm:$0xff] %vm453, %v1424
    %1461 = vst.msk [vmem:[#allocation3 + $0x50] sm:$0xff] %vm453, %v1429
    %1462 = vst.msk [vmem:[#allocation3 + $0x58] sm:$0xff] %vm453, %v1432
    %1463 = vst.msk [vmem:[#allocation3 + $0x60] sm:$0xff] %vm453, %v1437
    %1464 = vst.msk [vmem:[#allocation3 + $0x68] sm:$0xff] %vm453, %v1440
    %1465 = vst.msk [vmem:[#allocation3 + $0x70] sm:$0xff] %vm453, %v1445
    %1466 = vst.msk [vmem:[#allocation3 + $0x78] sm:$0xff] %vm453, %v1448
    %s1467 = scalar_lea.vmem %s12, 32
    %v1468 = vld [vmem:[%s1467] sm:$0xf]
    %v1469 = vld [vmem:[%s1467 + $0x4] sm:$0xf]
    %v1470 = vld [vmem:[%s1467 + $0x8] sm:$0xf]
    %v1471 = vld [vmem:[%s1467 + $0xc] sm:$0xf]
    %s1472 = scalar_lea.vmem %s13, 2
    %v1473 = vld [vmem:[%s1472] sm:$0x1]
    %v1475 = vlaneseq
    %v1476 = vshrl.u32 %v1475, 7
    %v1477 = vsub.s32 0, %v1476
    %v1478 = vrot.slane %v1473, %v1477
    %v1484 = vunpack.c.l.b16 %v1468
    %v1485 = vunpack.c.l.b16 %v1469
    %v1486 = vunpack.c.l.b16 %v1470
    %v1487 = vunpack.c.l.b16 %v1471
    %v1488 = vpack.c.b16 %v1485, %v1484
    %v1489 = vpack.c.b16 %v1487, %v1486
    %1492 = vmatprep.subr.bf16.mxu0 0
    %1493 = vmatpush1.bf16.msra.mxu0 %v1488
    %1494 = vmatprep.subr.bf16.mxu0 0
    %1495 = vmatpush1.bf16.msra.mxu0 %v1489
    %1496 = vmatprep.subr.bf16.mxu0 0
    %1497 = vmatpush1.bf16.msra.mxu0 0
    %1498 = vmatprep.subr.bf16.mxu0 0
    %1499 = vmatpush1.bf16.msra.mxu0 0
    %1500 = vmatprep.subr.bf16.mxu0 0
    %1501 = vmatpush1.bf16.msra.mxu0 0
    %1502 = vmatprep.subr.bf16.mxu0 0
    %1503 = vmatpush1.bf16.msra.mxu0 0
    %1504 = vmatprep.subr.bf16.mxu0 0
    %1505 = vmatpush1.bf16.msra.mxu0 0
    %1506 = vmatprep.subr.bf16.mxu0 0
    %1507 = vmatpush1.bf16.msra.mxu0 0
    %1508 = vmatprep.subr.bf16.mxu0 0
    %1509 = vmatpush1.bf16.msra.mxu0 0
    %1510 = vmatprep.subr.bf16.mxu0 0
    %1511 = vmatpush1.bf16.msra.mxu0 0
    %1512 = vmatprep.subr.bf16.mxu0 0
    %1513 = vmatpush1.bf16.msra.mxu0 0
    %1514 = vmatprep.subr.bf16.mxu0 0
    %1515 = vmatpush1.bf16.msra.mxu0 0
    %1516 = vmatprep.subr.bf16.mxu0 0
    %1517 = vmatpush1.bf16.msra.mxu0 0
    %1518 = vmatprep.subr.bf16.mxu0 0
    %1519 = vmatpush1.bf16.msra.mxu0 0
    %1520 = vmatprep.subr.bf16.mxu0 0
    %1521 = vmatpush1.bf16.msra.mxu0 0
    %1522 = vmatprep.subr.bf16.mxu0 0
    %1523 = vmatpush1.bf16.msra.mxu0 0
    %1524 = vmatprep.mubr.bf16.mxu0 0
    %1525 = vmatmul.mubr.bf16.gmra.mrb[0].mxu0 %v1193
    %v1526 = vpop.f32.mrb[0].mxu0
    %v1527 = vadd.f32 %v1478, %v1526
    %v1528 = vpop.f32.mrb[0].mxu0
    %v1529 = vpop.f32.mrb[0].mxu0
    %v1530 = vadd.f32 %v1478, %v1529
    %v1531 = vpop.f32.mrb[0].mxu0
    %1532 = vmatprep.mubr.bf16.mxu0 0
    %1533 = vmatmul.mubr.bf16.gmra.mrb[0].mxu0 %v1196
    %v1534 = vpop.f32.mrb[0].mxu0
    %v1535 = vadd.f32 %v1478, %v1534
    %v1536 = vpop.f32.mrb[0].mxu0
    %v1537 = vpop.f32.mrb[0].mxu0
    %v1538 = vadd.f32 %v1478, %v1537
    %v1539 = vpop.f32.mrb[0].mxu0
    %1540 = vmatprep.mubr.bf16.mxu0 0
    %1541 = vmatmul.mubr.bf16.gmra.mrb[0].mxu0 %v1199
    %v1542 = vpop.f32.mrb[0].mxu0
    %v1543 = vadd.f32 %v1478, %v1542
    %v1544 = vpop.f32.mrb[0].mxu0
    %v1545 = vpop.f32.mrb[0].mxu0
    %v1546 = vadd.f32 %v1478, %v1545
    %v1547 = vpop.f32.mrb[0].mxu0
    %1548 = vmatprep.mubr.bf16.mxu0 0
    %1549 = vmatmul.mubr.bf16.gmra.mrb[0].mxu0 %v1202
    %v1550 = vpop.f32.mrb[0].mxu0
    %v1551 = vadd.f32 %v1478, %v1550
    %v1552 = vpop.f32.mrb[0].mxu0
    %v1553 = vpop.f32.mrb[0].mxu0
    %v1554 = vadd.f32 %v1478, %v1553
    %v1555 = vpop.f32.mrb[0].mxu0
    %1556 = vmatprep.mubr.bf16.mxu0 0
    %1557 = vmatmul.mubr.bf16.gmra.mrb[0].mxu0 %v1205
    %v1558 = vpop.f32.mrb[0].mxu0
    %v1559 = vadd.f32 %v1478, %v1558
    %v1560 = vpop.f32.mrb[0].mxu0
    %v1561 = vpop.f32.mrb[0].mxu0
    %v1562 = vadd.f32 %v1478, %v1561
    %v1563 = vpop.f32.mrb[0].mxu0
    %1564 = vmatprep.mubr.bf16.mxu0 0
    %1565 = vmatmul.mubr.bf16.gmra.mrb[0].mxu0 %v1208
    %v1566 = vpop.f32.mrb[0].mxu0
    %v1567 = vadd.f32 %v1478, %v1566
    %v1568 = vpop.f32.mrb[0].mxu0
    %v1569 = vpop.f32.mrb[0].mxu0
    %v1570 = vadd.f32 %v1478, %v1569
    %v1571 = vpop.f32.mrb[0].mxu0
    %1572 = vmatprep.mubr.bf16.mxu0 0
    %1573 = vmatmul.mubr.bf16.gmra.mrb[0].mxu0 %v1211
    %v1574 = vpop.f32.mrb[0].mxu0
    %v1575 = vadd.f32 %v1478, %v1574
    %v1576 = vpop.f32.mrb[0].mxu0
    %v1577 = vpop.f32.mrb[0].mxu0
    %v1578 = vadd.f32 %v1478, %v1577
    %v1579 = vpop.f32.mrb[0].mxu0
    %1580 = vmatprep.mubr.bf16.mxu0 0
    %1581 = vmatmul.mubr.bf16.gmra.mrb[0].mxu0 %v1214
    %v1582 = vpop.f32.mrb[0].mxu0
    %v1583 = vadd.f32 %v1478, %v1582
    %v1584 = vpop.f32.mrb[0].mxu0
    %v1585 = vpop.f32.mrb[0].mxu0
    %v1586 = vadd.f32 %v1478, %v1585
    %v1587 = vpop.f32.mrb[0].mxu0
    %1588 = vdwg.mxu0
    %1589 = vst.msk [vmem:[#allocation4] sm:$0xff] %vm453, %v1527
    %1590 = vst.msk [vmem:[#allocation4 + $0x8] sm:$0xff] %vm453, %v1530
    %1591 = vst.msk [vmem:[#allocation4 + $0x10] sm:$0xff] %vm453, %v1535
    %1592 = vst.msk [vmem:[#allocation4 + $0x18] sm:$0xff] %vm453, %v1538
    %1593 = vst.msk [vmem:[#allocation4 + $0x20] sm:$0xff] %vm453, %v1543
    %1594 = vst.msk [vmem:[#allocation4 + $0x28] sm:$0xff] %vm453, %v1546
    %1595 = vst.msk [vmem:[#allocation4 + $0x30] sm:$0xff] %vm453, %v1551
    %1596 = vst.msk [vmem:[#allocation4 + $0x38] sm:$0xff] %vm453, %v1554
    %1597 = vst.msk [vmem:[#allocation4 + $0x40] sm:$0xff] %vm453, %v1559
    %1598 = vst.msk [vmem:[#allocation4 + $0x48] sm:$0xff] %vm453, %v1562
    %1599 = vst.msk [vmem:[#allocation4 + $0x50] sm:$0xff] %vm453, %v1567
    %1600 = vst.msk [vmem:[#allocation4 + $0x58] sm:$0xff] %vm453, %v1570
    %1601 = vst.msk [vmem:[#allocation4 + $0x60] sm:$0xff] %vm453, %v1575
    %1602 = vst.msk [vmem:[#allocation4 + $0x68] sm:$0xff] %vm453, %v1578
    %1603 = vst.msk [vmem:[#allocation4 + $0x70] sm:$0xff] %vm453, %v1583
    %1604 = vst.msk [vmem:[#allocation4 + $0x78] sm:$0xff] %vm453, %v1586
    %v1605 = vld [vmem:[%s14] sm:$0xff]
    %v1606 = vld [vmem:[%s14 + $0x8] sm:$0xff]
    %v1607 = vld [vmem:[%s14 + $0x10] sm:$0xff]
    %v1608 = vld [vmem:[%s14 + $0x18] sm:$0xff]
    %s1609 = scalar_lea.vmem %s14, 32
    %v1610 = vld [vmem:[%s1609] sm:$0xff]
    %v1611 = vld [vmem:[%s1609 + $0x8] sm:$0xff]
    %v1612 = vld [vmem:[%s1609 + $0x10] sm:$0xff]
    %v1613 = vld [vmem:[%s1609 + $0x18] sm:$0xff]
    %s1614 = scalar_lea.vmem %s14, 64
    %v1615 = vld [vmem:[%s1614] sm:$0xff]
    %v1616 = vld [vmem:[%s1614 + $0x8] sm:$0xff]
    %v1617 = vld [vmem:[%s1614 + $0x10] sm:$0xff]
    %v1618 = vld [vmem:[%s1614 + $0x18] sm:$0xff]
    %v1619 = vld [vmem:[%s15] sm:$0x1]
    %s1620 = scalar_lea.vmem %s15, 1
    %v1621 = vld [vmem:[%s1620] sm:$0x1]
    %s1622 = scalar_lea.vmem %s15, 2
    %v1623 = vld [vmem:[%s1622] sm:$0x1]
    %v1624 = vld [vmem:[#allocation2] sm:$0xff]
    %v1625 = vld [vmem:[#allocation3] sm:$0xff]
    %v1626 = vld [vmem:[#allocation4] sm:$0xff]
    %v1628 = vlaneseq
    %v1629 = vshrl.u32 %v1628, 7
    %v1630 = vsub.s32 0, %v1629
    %v1631 = vrot.slane %v1619, %v1630
    %v1634 = vsel %vm453, 0.0, 0
    %1636 = vmatprep.subr.mxu0 0.0
    %1637 = vmatpush1.msra.mxu0 %v1605
    %1638 = vmatprep.subr.mxu0 0.0
    %1639 = vmatpush1.msra.mxu0 %v1606
    %1640 = vmatprep.subr.mxu0 0.0
    %1641 = vmatpush1.msra.mxu0 %v1607
    %1642 = vmatprep.subr.mxu0 0.0
    %1643 = vmatpush1.msra.mxu0 %v1608
    %1644 = vmatprep.subr.mxu0 0.0
    %1645 = vmatpush1.msra.mxu0 0.0
    %1646 = vmatprep.subr.mxu0 0.0
    %1647 = vmatpush1.msra.mxu0 0.0
    %1648 = vmatprep.subr.mxu0 0.0
    %1649 = vmatpush1.msra.mxu0 0.0
    %1650 = vmatprep.subr.mxu0 0.0
    %1651 = vmatpush1.msra.mxu0 0.0
    %1652 = vmatprep.subr.mxu0 0.0
    %1653 = vmatpush1.msra.mxu0 0.0
    %1654 = vmatprep.subr.mxu0 0.0
    %1655 = vmatpush1.msra.mxu0 0.0
    %1656 = vmatprep.subr.mxu0 0.0
    %1657 = vmatpush1.msra.mxu0 0.0
    %1658 = vmatprep.subr.mxu0 0.0
    %1659 = vmatpush1.msra.mxu0 0.0
    %1660 = vmatprep.subr.mxu0 0.0
    %1661 = vmatpush1.msra.mxu0 0.0
    %1662 = vmatprep.subr.mxu0 0.0
    %1663 = vmatpush1.msra.mxu0 0.0
    %1664 = vmatprep.subr.mxu0 0.0
    %1665 = vmatpush1.msra.mxu0 0.0
    %1666 = vmatprep.subr.mxu0 0.0
    %1667 = vmatpush1.msra.mxu0 0.0
    %1668 = vmatprep.subr.mxu0 0.0
    %1669 = vmatpush1.msra.mxu0 0.0
    %1670 = vmatprep.subr.mxu0 0.0
    %1671 = vmatpush1.msra.mxu0 0.0
    %1672 = vmatprep.subr.mxu0 0.0
    %1673 = vmatpush1.msra.mxu0 0.0
    %1674 = vmatprep.subr.mxu0 0.0
    %1675 = vmatpush1.msra.mxu0 0.0
    %1676 = vmatprep.subr.mxu0 0.0
    %1677 = vmatpush1.msra.mxu0 0.0
    %1678 = vmatprep.subr.mxu0 0.0
    %1679 = vmatpush1.msra.mxu0 0.0
    %1680 = vmatprep.subr.mxu0 0.0
    %1681 = vmatpush1.msra.mxu0 0.0
    %1682 = vmatprep.subr.mxu0 0.0
    %1683 = vmatpush1.msra.mxu0 0.0
    %1684 = vmatprep.subr.mxu0 0.0
    %1685 = vmatpush1.msra.mxu0 0.0
    %1686 = vmatprep.subr.mxu0 0.0
    %1687 = vmatpush1.msra.mxu0 0.0
    %1688 = vmatprep.subr.mxu0 0.0
    %1689 = vmatpush1.msra.mxu0 0.0
    %1690 = vmatprep.subr.mxu0 0.0
    %1691 = vmatpush1.msra.mxu0 0.0
    %1692 = vmatprep.subr.mxu0 0.0
    %1693 = vmatpush1.msra.mxu0 0.0
    %1694 = vmatprep.subr.mxu0 0.0
    %1695 = vmatpush1.msra.mxu0 0.0
    %1696 = vmatprep.subr.mxu0 0.0
    %1697 = vmatpush1.msra.mxu0 0.0
    %1698 = vmatprep.subr.mxu0 0.0
    %1699 = vmatpush1.msra.mxu0 0.0
    %1700 = vmatprep.mubr.f32.mxu0 0.0
    %1701 = vmatmul.mubr.f32.gmra.mrb[0].mxu0 %v1634
    %v1702 = vpop.f32.mrb[0].mxu0
    %v1703 = vadd.f32 %v1631, %v1702
    %v1704 = vpop.f32.mrb[0].mxu0
    %1705 = vdwg.mxu0
    %v1707 = vlaneseq
    %v1708 = vshrl.u32 %v1707, 7
    %v1709 = vsub.s32 0, %v1708
    %v1710 = vrot.slane %v1621, %v1709
    %1712 = vmatprep.subr.mxu0 0.0
    %1713 = vmatpush1.msra.mxu0 %v1610
    %1714 = vmatprep.subr.mxu0 0.0
    %1715 = vmatpush1.msra.mxu0 %v1611
    %1716 = vmatprep.subr.mxu0 0.0
    %1717 = vmatpush1.msra.mxu0 %v1612
    %1718 = vmatprep.subr.mxu0 0.0
    %1719 = vmatpush1.msra.mxu0 %v1613
    %1720 = vmatprep.subr.mxu0 0.0
    %1721 = vmatpush1.msra.mxu0 0.0
    %1722 = vmatprep.subr.mxu0 0.0
    %1723 = vmatpush1.msra.mxu0 0.0
    %1724 = vmatprep.subr.mxu0 0.0
    %1725 = vmatpush1.msra.mxu0 0.0
    %1726 = vmatprep.subr.mxu0 0.0
    %1727 = vmatpush1.msra.mxu0 0.0
    %1728 = vmatprep.subr.mxu0 0.0
    %1729 = vmatpush1.msra.mxu0 0.0
    %1730 = vmatprep.subr.mxu0 0.0
    %1731 = vmatpush1.msra.mxu0 0.0
    %1732 = vmatprep.subr.mxu0 0.0
    %1733 = vmatpush1.msra.mxu0 0.0
    %1734 = vmatprep.subr.mxu0 0.0
    %1735 = vmatpush1.msra.mxu0 0.0
    %1736 = vmatprep.subr.mxu0 0.0
    %1737 = vmatpush1.msra.mxu0 0.0
    %1738 = vmatprep.subr.mxu0 0.0
    %1739 = vmatpush1.msra.mxu0 0.0
    %1740 = vmatprep.subr.mxu0 0.0
    %1741 = vmatpush1.msra.mxu0 0.0
    %1742 = vmatprep.subr.mxu0 0.0
    %1743 = vmatpush1.msra.mxu0 0.0
    %1744 = vmatprep.subr.mxu0 0.0
    %1745 = vmatpush1.msra.mxu0 0.0
    %1746 = vmatprep.subr.mxu0 0.0
    %1747 = vmatpush1.msra.mxu0 0.0
    %1748 = vmatprep.subr.mxu0 0.0
    %1749 = vmatpush1.msra.mxu0 0.0
    %1750 = vmatprep.subr.mxu0 0.0
    %1751 = vmatpush1.msra.mxu0 0.0
    %1752 = vmatprep.subr.mxu0 0.0
    %1753 = vmatpush1.msra.mxu0 0.0
    %1754 = vmatprep.subr.mxu0 0.0
    %1755 = vmatpush1.msra.mxu0 0.0
    %1756 = vmatprep.subr.mxu0 0.0
    %1757 = vmatpush1.msra.mxu0 0.0
    %1758 = vmatprep.subr.mxu0 0.0
    %1759 = vmatpush1.msra.mxu0 0.0
    %1760 = vmatprep.subr.mxu0 0.0
    %1761 = vmatpush1.msra.mxu0 0.0
    %1762 = vmatprep.subr.mxu0 0.0
    %1763 = vmatpush1.msra.mxu0 0.0
    %1764 = vmatprep.subr.mxu0 0.0
    %1765 = vmatpush1.msra.mxu0 0.0
    %1766 = vmatprep.subr.mxu0 0.0
    %1767 = vmatpush1.msra.mxu0 0.0
    %1768 = vmatprep.subr.mxu0 0.0
    %1769 = vmatpush1.msra.mxu0 0.0
    %1770 = vmatprep.subr.mxu0 0.0
    %1771 = vmatpush1.msra.mxu0 0.0
    %1772 = vmatprep.subr.mxu0 0.0
    %1773 = vmatpush1.msra.mxu0 0.0
    %1774 = vmatprep.subr.mxu0 0.0
    %1775 = vmatpush1.msra.mxu0 0.0
    %1776 = vmatprep.mubr.f32.mxu0 0.0
    %1777 = vmatmul.mubr.f32.gmra.mrb[0].mxu0 %v1634
    %v1778 = vpop.f32.mrb[0].mxu0
    %v1779 = vadd.f32 %v1710, %v1778
    %v1780 = vpop.f32.mrb[0].mxu0
    %1781 = vdwg.mxu0
    %v1783 = vlaneseq
    %v1784 = vshrl.u32 %v1783, 7
    %v1785 = vsub.s32 0, %v1784
    %v1786 = vrot.slane %v1623, %v1785
    %1788 = vmatprep.subr.mxu0 0.0
    %1789 = vmatpush1.msra.mxu0 %v1615
    %1790 = vmatprep.subr.mxu0 0.0
    %1791 = vmatpush1.msra.mxu0 %v1616
    %1792 = vmatprep.subr.mxu0 0.0
    %1793 = vmatpush1.msra.mxu0 %v1617
    %1794 = vmatprep.subr.mxu0 0.0
    %1795 = vmatpush1.msra.mxu0 %v1618
    %1796 = vmatprep.subr.mxu0 0.0
    %1797 = vmatpush1.msra.mxu0 0.0
    %1798 = vmatprep.subr.mxu0 0.0
    %1799 = vmatpush1.msra.mxu0 0.0
    %1800 = vmatprep.subr.mxu0 0.0
    %1801 = vmatpush1.msra.mxu0 0.0
    %1802 = vmatprep.subr.mxu0 0.0
    %1803 = vmatpush1.msra.mxu0 0.0
    %1804 = vmatprep.subr.mxu0 0.0
    %1805 = vmatpush1.msra.mxu0 0.0
    %1806 = vmatprep.subr.mxu0 0.0
    %1807 = vmatpush1.msra.mxu0 0.0
    %1808 = vmatprep.subr.mxu0 0.0
    %1809 = vmatpush1.msra.mxu0 0.0
    %1810 = vmatprep.subr.mxu0 0.0
    %1811 = vmatpush1.msra.mxu0 0.0
    %1812 = vmatprep.subr.mxu0 0.0
    %1813 = vmatpush1.msra.mxu0 0.0
    %1814 = vmatprep.subr.mxu0 0.0
    %1815 = vmatpush1.msra.mxu0 0.0
    %1816 = vmatprep.subr.mxu0 0.0
    %1817 = vmatpush1.msra.mxu0 0.0
    %1818 = vmatprep.subr.mxu0 0.0
    %1819 = vmatpush1.msra.mxu0 0.0
    %1820 = vmatprep.subr.mxu0 0.0
    %1821 = vmatpush1.msra.mxu0 0.0
    %1822 = vmatprep.subr.mxu0 0.0
    %1823 = vmatpush1.msra.mxu0 0.0
    %1824 = vmatprep.subr.mxu0 0.0
    %1825 = vmatpush1.msra.mxu0 0.0
    %1826 = vmatprep.subr.mxu0 0.0
    %1827 = vmatpush1.msra.mxu0 0.0
    %1828 = vmatprep.subr.mxu0 0.0
    %1829 = vmatpush1.msra.mxu0 0.0
    %1830 = vmatprep.subr.mxu0 0.0
    %1831 = vmatpush1.msra.mxu0 0.0
    %1832 = vmatprep.subr.mxu0 0.0
    %1833 = vmatpush1.msra.mxu0 0.0
    %1834 = vmatprep.subr.mxu0 0.0
    %1835 = vmatpush1.msra.mxu0 0.0
    %1836 = vmatprep.subr.mxu0 0.0
    %1837 = vmatpush1.msra.mxu0 0.0
    %1838 = vmatprep.subr.mxu0 0.0
    %1839 = vmatpush1.msra.mxu0 0.0
    %1840 = vmatprep.subr.mxu0 0.0
    %1841 = vmatpush1.msra.mxu0 0.0
    %1842 = vmatprep.subr.mxu0 0.0
    %1843 = vmatpush1.msra.mxu0 0.0
    %1844 = vmatprep.subr.mxu0 0.0
    %1845 = vmatpush1.msra.mxu0 0.0
    %1846 = vmatprep.subr.mxu0 0.0
    %1847 = vmatpush1.msra.mxu0 0.0
    %1848 = vmatprep.subr.mxu0 0.0
    %1849 = vmatpush1.msra.mxu0 0.0
    %1850 = vmatprep.subr.mxu0 0.0
    %1851 = vmatpush1.msra.mxu0 0.0
    %1852 = vmatprep.mubr.f32.mxu0 0.0
    %1853 = vmatmul.mubr.f32.gmra.mrb[0].mxu0 %v1634
    %v1854 = vpop.f32.mrb[0].mxu0
    %v1855 = vadd.f32 %v1786, %v1854
    %v1856 = vpop.f32.mrb[0].mxu0
    %1857 = vdwg.mxu0
    %v1858 = vadd.f32 %v1624, %v1703
    %v1859 = vxor.u32 %v1858, 2147483648
    %v1860 = vmul.f32 %v1859, 1.442695
    %v1861 = vpow.pop %v1860
    %v1862 = vadd.f32 %v1861, 1.0
    %v1863 = vrcp.pop %v1862
    %v1864 = vmul.f32 1.0, %v1863
    %v1865 = vadd.f32 %v1625, %v1779
    %v1866 = vxor.u32 %v1865, 2147483648
    %v1867 = vmul.f32 %v1866, 1.442695
    %v1868 = vpow.pop %v1867
    %v1869 = vadd.f32 %v1868, 1.0
    %v1870 = vrcp.pop %v1869
    %v1871 = vmul.f32 1.0, %v1870
    %v1872 = vmul.f32 %v1864, %v1855
    %v1873 = vadd.f32 %v1626, %v1872
    %v1874 = vtanh.pop %v1873
    %v1875 = vsub.f32 1.0, %v1871
    %v1876 = vmul.f32 %v1875, %v1874
    %v1877 = vmul.f32 %v1871, 0.0
    %v1878 = vadd.f32 %v1876, %v1877
    %1879 = vst.msk [vmem:[#allocation5] sm:$0xff] %vm453, %v1878
    %v1880 = vld [vmem:[#allocation2 + $0x8] sm:$0xff]
    %v1881 = vld [vmem:[#allocation3 + $0x8] sm:$0xff]
    %v1882 = vld [vmem:[#allocation4 + $0x8] sm:$0xff]
    %v1884 = vsel %vm453, %v1878, 0
    %1886 = vmatprep.subr.mxu0 0.0
    %1887 = vmatpush1.msra.mxu0 %v1605
    %1888 = vmatprep.subr.mxu0 0.0
    %1889 = vmatpush1.msra.mxu0 %v1606
    %1890 = vmatprep.subr.mxu0 0.0
    %1891 = vmatpush1.msra.mxu0 %v1607
    %1892 = vmatprep.subr.mxu0 0.0
    %1893 = vmatpush1.msra.mxu0 %v1608
    %1894 = vmatprep.subr.mxu0 0.0
    %1895 = vmatpush1.msra.mxu0 0.0
    %1896 = vmatprep.subr.mxu0 0.0
    %1897 = vmatpush1.msra.mxu0 0.0
    %1898 = vmatprep.subr.mxu0 0.0
    %1899 = vmatpush1.msra.mxu0 0.0
    %1900 = vmatprep.subr.mxu0 0.0
    %1901 = vmatpush1.msra.mxu0 0.0
    %1902 = vmatprep.subr.mxu0 0.0
    %1903 = vmatpush1.msra.mxu0 0.0
    %1904 = vmatprep.subr.mxu0 0.0
    %1905 = vmatpush1.msra.mxu0 0.0
    %1906 = vmatprep.subr.mxu0 0.0
    %1907 = vmatpush1.msra.mxu0 0.0
    %1908 = vmatprep.subr.mxu0 0.0
    %1909 = vmatpush1.msra.mxu0 0.0
    %1910 = vmatprep.subr.mxu0 0.0
    %1911 = vmatpush1.msra.mxu0 0.0
    %1912 = vmatprep.subr.mxu0 0.0
    %1913 = vmatpush1.msra.mxu0 0.0
    %1914 = vmatprep.subr.mxu0 0.0
    %1915 = vmatpush1.msra.mxu0 0.0
    %1916 = vmatprep.subr.mxu0 0.0
    %1917 = vmatpush1.msra.mxu0 0.0
    %1918 = vmatprep.subr.mxu0 0.0
    %1919 = vmatpush1.msra.mxu0 0.0
    %1920 = vmatprep.subr.mxu0 0.0
    %1921 = vmatpush1.msra.mxu0 0.0
    %1922 = vmatprep.subr.mxu0 0.0
    %1923 = vmatpush1.msra.mxu0 0.0
    %1924 = vmatprep.subr.mxu0 0.0
    %1925 = vmatpush1.msra.mxu0 0.0
    %1926 = vmatprep.subr.mxu0 0.0
    %1927 = vmatpush1.msra.mxu0 0.0
    %1928 = vmatprep.subr.mxu0 0.0
    %1929 = vmatpush1.msra.mxu0 0.0
    %1930 = vmatprep.subr.mxu0 0.0
    %1931 = vmatpush1.msra.mxu0 0.0
    %1932 = vmatprep.subr.mxu0 0.0
    %1933 = vmatpush1.msra.mxu0 0.0
    %1934 = vmatprep.subr.mxu0 0.0
    %1935 = vmatpush1.msra.mxu0 0.0
    %1936 = vmatprep.subr.mxu0 0.0
    %1937 = vmatpush1.msra.mxu0 0.0
    %1938 = vmatprep.subr.mxu0 0.0
    %1939 = vmatpush1.msra.mxu0 0.0
    %1940 = vmatprep.subr.mxu0 0.0
    %1941 = vmatpush1.msra.mxu0 0.0
    %1942 = vmatprep.subr.mxu0 0.0
    %1943 = vmatpush1.msra.mxu0 0.0
    %1944 = vmatprep.subr.mxu0 0.0
    %1945 = vmatpush1.msra.mxu0 0.0
    %1946 = vmatprep.subr.mxu0 0.0
    %1947 = vmatpush1.msra.mxu0 0.0
    %1948 = vmatprep.subr.mxu0 0.0
    %1949 = vmatpush1.msra.mxu0 0.0
    %1950 = vmatprep.mubr.f32.mxu0 0.0
    %1951 = vmatmul.mubr.f32.gmra.mrb[0].mxu0 %v1884
    %v1952 = vpop.f32.mrb[0].mxu0
    %v1953 = vadd.f32 %v1631, %v1952
    %v1954 = vpop.f32.mrb[0].mxu0
    %1955 = vdwg.mxu0
    %1956 = vmatprep.subr.mxu0 0.0
    %1957 = vmatpush1.msra.mxu0 %v1610
    %1958 = vmatprep.subr.mxu0 0.0
    %1959 = vmatpush1.msra.mxu0 %v1611
    %1960 = vmatprep.subr.mxu0 0.0
    %1961 = vmatpush1.msra.mxu0 %v1612
    %1962 = vmatprep.subr.mxu0 0.0
    %1963 = vmatpush1.msra.mxu0 %v1613
    %1964 = vmatprep.subr.mxu0 0.0
    %1965 = vmatpush1.msra.mxu0 0.0
    %1966 = vmatprep.subr.mxu0 0.0
    %1967 = vmatpush1.msra.mxu0 0.0
    %1968 = vmatprep.subr.mxu0 0.0
    %1969 = vmatpush1.msra.mxu0 0.0
    %1970 = vmatprep.subr.mxu0 0.0
    %1971 = vmatpush1.msra.mxu0 0.0
    %1972 = vmatprep.subr.mxu0 0.0
    %1973 = vmatpush1.msra.mxu0 0.0
    %1974 = vmatprep.subr.mxu0 0.0
    %1975 = vmatpush1.msra.mxu0 0.0
    %1976 = vmatprep.subr.mxu0 0.0
    %1977 = vmatpush1.msra.mxu0 0.0
    %1978 = vmatprep.subr.mxu0 0.0
    %1979 = vmatpush1.msra.mxu0 0.0
    %1980 = vmatprep.subr.mxu0 0.0
    %1981 = vmatpush1.msra.mxu0 0.0
    %1982 = vmatprep.subr.mxu0 0.0
    %1983 = vmatpush1.msra.mxu0 0.0
    %1984 = vmatprep.subr.mxu0 0.0
    %1985 = vmatpush1.msra.mxu0 0.0
    %1986 = vmatprep.subr.mxu0 0.0
    %1987 = vmatpush1.msra.mxu0 0.0
    %1988 = vmatprep.subr.mxu0 0.0
    %1989 = vmatpush1.msra.mxu0 0.0
    %1990 = vmatprep.subr.mxu0 0.0
    %1991 = vmatpush1.msra.mxu0 0.0
    %1992 = vmatprep.subr.mxu0 0.0
    %1993 = vmatpush1.msra.mxu0 0.0
    %1994 = vmatprep.subr.mxu0 0.0
    %1995 = vmatpush1.msra.mxu0 0.0
    %1996 = vmatprep.subr.mxu0 0.0
    %1997 = vmatpush1.msra.mxu0 0.0
    %1998 = vmatprep.subr.mxu0 0.0
    %1999 = vmatpush1.msra.mxu0 0.0
    %2000 = vmatprep.subr.mxu0 0.0
    %2001 = vmatpush1.msra.mxu0 0.0
    %2002 = vmatprep.subr.mxu0 0.0
    %2003 = vmatpush1.msra.mxu0 0.0
    %2004 = vmatprep.subr.mxu0 0.0
    %2005 = vmatpush1.msra.mxu0 0.0
    %2006 = vmatprep.subr.mxu0 0.0
    %2007 = vmatpush1.msra.mxu0 0.0
    %2008 = vmatprep.subr.mxu0 0.0
    %2009 = vmatpush1.msra.mxu0 0.0
    %2010 = vmatprep.subr.mxu0 0.0
    %2011 = vmatpush1.msra.mxu0 0.0
    %2012 = vmatprep.subr.mxu0 0.0
    %2013 = vmatpush1.msra.mxu0 0.0
    %2014 = vmatprep.subr.mxu0 0.0
    %2015 = vmatpush1.msra.mxu0 0.0
    %2016 = vmatprep.subr.mxu0 0.0
    %2017 = vmatpush1.msra.mxu0 0.0
    %2018 = vmatprep.subr.mxu0 0.0
    %2019 = vmatpush1.msra.mxu0 0.0
    %2020 = vmatprep.mubr.f32.mxu0 0.0
    %2021 = vmatmul.mubr.f32.gmra.mrb[0].mxu0 %v1884
    %v2022 = vpop.f32.mrb[0].mxu0
    %v2023 = vadd.f32 %v1710, %v2022
    %v2024 = vpop.f32.mrb[0].mxu0
    %2025 = vdwg.mxu0
    %2026 = vmatprep.subr.mxu0 0.0
    %2027 = vmatpush1.msra.mxu0 %v1615
    %2028 = vmatprep.subr.mxu0 0.0
    %2029 = vmatpush1.msra.mxu0 %v1616
    %2030 = vmatprep.subr.mxu0 0.0
    %2031 = vmatpush1.msra.mxu0 %v1617
    %2032 = vmatprep.subr.mxu0 0.0
    %2033 = vmatpush1.msra.mxu0 %v1618
    %2034 = vmatprep.subr.mxu0 0.0
    %2035 = vmatpush1.msra.mxu0 0.0
    %2036 = vmatprep.subr.mxu0 0.0
    %2037 = vmatpush1.msra.mxu0 0.0
    %2038 = vmatprep.subr.mxu0 0.0
    %2039 = vmatpush1.msra.mxu0 0.0
    %2040 = vmatprep.subr.mxu0 0.0
    %2041 = vmatpush1.msra.mxu0 0.0
    %2042 = vmatprep.subr.mxu0 0.0
    %2043 = vmatpush1.msra.mxu0 0.0
    %2044 = vmatprep.subr.mxu0 0.0
    %2045 = vmatpush1.msra.mxu0 0.0
    %2046 = vmatprep.subr.mxu0 0.0
    %2047 = vmatpush1.msra.mxu0 0.0
    %2048 = vmatprep.subr.mxu0 0.0
    %2049 = vmatpush1.msra.mxu0 0.0
    %2050 = vmatprep.subr.mxu0 0.0
    %2051 = vmatpush1.msra.mxu0 0.0
    %2052 = vmatprep.subr.mxu0 0.0
    %2053 = vmatpush1.msra.mxu0 0.0
    %2054 = vmatprep.subr.mxu0 0.0
    %2055 = vmatpush1.msra.mxu0 0.0
    %2056 = vmatprep.subr.mxu0 0.0
    %2057 = vmatpush1.msra.mxu0 0.0
    %2058 = vmatprep.subr.mxu0 0.0
    %2059 = vmatpush1.msra.mxu0 0.0
    %2060 = vmatprep.subr.mxu0 0.0
    %2061 = vmatpush1.msra.mxu0 0.0
    %2062 = vmatprep.subr.mxu0 0.0
    %2063 = vmatpush1.msra.mxu0 0.0
    %2064 = vmatprep.subr.mxu0 0.0
    %2065 = vmatpush1.msra.mxu0 0.0
    %2066 = vmatprep.subr.mxu0 0.0
    %2067 = vmatpush1.msra.mxu0 0.0
    %2068 = vmatprep.subr.mxu0 0.0
    %2069 = vmatpush1.msra.mxu0 0.0
    %2070 = vmatprep.subr.mxu0 0.0
    %2071 = vmatpush1.msra.mxu0 0.0
    %2072 = vmatprep.subr.mxu0 0.0
    %2073 = vmatpush1.msra.mxu0 0.0
    %2074 = vmatprep.subr.mxu0 0.0
    %2075 = vmatpush1.msra.mxu0 0.0
    %2076 = vmatprep.subr.mxu0 0.0
    %2077 = vmatpush1.msra.mxu0 0.0
    %2078 = vmatprep.subr.mxu0 0.0
    %2079 = vmatpush1.msra.mxu0 0.0
    %2080 = vmatprep.subr.mxu0 0.0
    %2081 = vmatpush1.msra.mxu0 0.0
    %2082 = vmatprep.subr.mxu0 0.0
    %2083 = vmatpush1.msra.mxu0 0.0
    %2084 = vmatprep.subr.mxu0 0.0
    %2085 = vmatpush1.msra.mxu0 0.0
    %2086 = vmatprep.subr.mxu0 0.0
    %2087 = vmatpush1.msra.mxu0 0.0
    %2088 = vmatprep.subr.mxu0 0.0
    %2089 = vmatpush1.msra.mxu0 0.0
    %2090 = vmatprep.mubr.f32.mxu0 0.0
    %2091 = vmatmul.mubr.f32.gmra.mrb[0].mxu0 %v1884
    %v2092 = vpop.f32.mrb[0].mxu0
    %v2093 = vadd.f32 %v1786, %v2092
    %v2094 = vpop.f32.mrb[0].mxu0
    %2095 = vdwg.mxu0
    %v2096 = vadd.f32 %v1880, %v1953
    %v2097 = vxor.u32 %v2096, 2147483648
    %v2098 = vmul.f32 %v2097, 1.442695
    %v2099 = vpow.pop %v2098
    %v2100 = vadd.f32 %v2099, 1.0
    %v2101 = vrcp.pop %v2100
    %v2102 = vmul.f32 1.0, %v2101
    %v2103 = vadd.f32 %v1881, %v2023
    %v2104 = vxor.u32 %v2103, 2147483648
    %v2105 = vmul.f32 %v2104, 1.442695
    %v2106 = vpow.pop %v2105
    %v2107 = vadd.f32 %v2106, 1.0
    %v2108 = vrcp.pop %v2107
    %v2109 = vmul.f32 1.0, %v2108
    %v2110 = vmul.f32 %v2102, %v2093
    %v2111 = vadd.f32 %v1882, %v2110
    %v2112 = vtanh.pop %v2111
    %v2113 = vsub.f32 1.0, %v2109
    %v2114 = vmul.f32 %v2113, %v2112
    %v2115 = vmul.f32 %v2109, %v1878
    %v2116 = vadd.f32 %v2114, %v2115
    %2117 = vst.msk [vmem:[#allocation5 + $0x8] sm:$0xff] %vm453, %v2116
    %v2118 = vld [vmem:[#allocation2 + $0x10] sm:$0xff]
    %v2119 = vld [vmem:[#allocation3 + $0x10] sm:$0xff]
    %v2120 = vld [vmem:[#allocation4 + $0x10] sm:$0xff]
    %v2122 = vsel %vm453, %v2116, 0
    %2124 = vmatprep.subr.mxu0 0.0
    %2125 = vmatpush1.msra.mxu0 %v1605
    %2126 = vmatprep.subr.mxu0 0.0
    %2127 = vmatpush1.msra.mxu0 %v1606
    %2128 = vmatprep.subr.mxu0 0.0
    %2129 = vmatpush1.msra.mxu0 %v1607
    %2130 = vmatprep.subr.mxu0 0.0
    %2131 = vmatpush1.msra.mxu0 %v1608
    %2132 = vmatprep.subr.mxu0 0.0
    %2133 = vmatpush1.msra.mxu0 0.0
    %2134 = vmatprep.subr.mxu0 0.0
    %2135 = vmatpush1.msra.mxu0 0.0
    %2136 = vmatprep.subr.mxu0 0.0
    %2137 = vmatpush1.msra.mxu0 0.0
    %2138 = vmatprep.subr.mxu0 0.0
    %2139 = vmatpush1.msra.mxu0 0.0
    %2140 = vmatprep.subr.mxu0 0.0
    %2141 = vmatpush1.msra.mxu0 0.0
    %2142 = vmatprep.subr.mxu0 0.0
    %2143 = vmatpush1.msra.mxu0 0.0
    %2144 = vmatprep.subr.mxu0 0.0
    %2145 = vmatpush1.msra.mxu0 0.0
    %2146 = vmatprep.subr.mxu0 0.0
    %2147 = vmatpush1.msra.mxu0 0.0
    %2148 = vmatprep.subr.mxu0 0.0
    %2149 = vmatpush1.msra.mxu0 0.0
    %2150 = vmatprep.subr.mxu0 0.0
    %2151 = vmatpush1.msra.mxu0 0.0
    %2152 = vmatprep.subr.mxu0 0.0
    %2153 = vmatpush1.msra.mxu0 0.0
    %2154 = vmatprep.subr.mxu0 0.0
    %2155 = vmatpush1.msra.mxu0 0.0
    %2156 = vmatprep.subr.mxu0 0.0
    %2157 = vmatpush1.msra.mxu0 0.0
    %2158 = vmatprep.subr.mxu0 0.0
    %2159 = vmatpush1.msra.mxu0 0.0
    %2160 = vmatprep.subr.mxu0 0.0
    %2161 = vmatpush1.msra.mxu0 0.0
    %2162 = vmatprep.subr.mxu0 0.0
    %2163 = vmatpush1.msra.mxu0 0.0
    %2164 = vmatprep.subr.mxu0 0.0
    %2165 = vmatpush1.msra.mxu0 0.0
    %2166 = vmatprep.subr.mxu0 0.0
    %2167 = vmatpush1.msra.mxu0 0.0
    %2168 = vmatprep.subr.mxu0 0.0
    %2169 = vmatpush1.msra.mxu0 0.0
    %2170 = vmatprep.subr.mxu0 0.0
    %2171 = vmatpush1.msra.mxu0 0.0
    %2172 = vmatprep.subr.mxu0 0.0
    %2173 = vmatpush1.msra.mxu0 0.0
    %2174 = vmatprep.subr.mxu0 0.0
    %2175 = vmatpush1.msra.mxu0 0.0
    %2176 = vmatprep.subr.mxu0 0.0
    %2177 = vmatpush1.msra.mxu0 0.0
    %2178 = vmatprep.subr.mxu0 0.0
    %2179 = vmatpush1.msra.mxu0 0.0
    %2180 = vmatprep.subr.mxu0 0.0
    %2181 = vmatpush1.msra.mxu0 0.0
    %2182 = vmatprep.subr.mxu0 0.0
    %2183 = vmatpush1.msra.mxu0 0.0
    %2184 = vmatprep.subr.mxu0 0.0
    %2185 = vmatpush1.msra.mxu0 0.0
    %2186 = vmatprep.subr.mxu0 0.0
    %2187 = vmatpush1.msra.mxu0 0.0
    %2188 = vmatprep.mubr.f32.mxu0 0.0
    %2189 = vmatmul.mubr.f32.gmra.mrb[0].mxu0 %v2122
    %v2190 = vpop.f32.mrb[0].mxu0
    %v2191 = vadd.f32 %v1631, %v2190
    %v2192 = vpop.f32.mrb[0].mxu0
    %2193 = vdwg.mxu0
    %2194 = vmatprep.subr.mxu0 0.0
    %2195 = vmatpush1.msra.mxu0 %v1610
    %2196 = vmatprep.subr.mxu0 0.0
    %2197 = vmatpush1.msra.mxu0 %v1611
    %2198 = vmatprep.subr.mxu0 0.0
    %2199 = vmatpush1.msra.mxu0 %v1612
    %2200 = vmatprep.subr.mxu0 0.0
    %2201 = vmatpush1.msra.mxu0 %v1613
    %2202 = vmatprep.subr.mxu0 0.0
    %2203 = vmatpush1.msra.mxu0 0.0
    %2204 = vmatprep.subr.mxu0 0.0
    %2205 = vmatpush1.msra.mxu0 0.0
    %2206 = vmatprep.subr.mxu0 0.0
    %2207 = vmatpush1.msra.mxu0 0.0
    %2208 = vmatprep.subr.mxu0 0.0
    %2209 = vmatpush1.msra.mxu0 0.0
    %2210 = vmatprep.subr.mxu0 0.0
    %2211 = vmatpush1.msra.mxu0 0.0
    %2212 = vmatprep.subr.mxu0 0.0
    %2213 = vmatpush1.msra.mxu0 0.0
    %2214 = vmatprep.subr.mxu0 0.0
    %2215 = vmatpush1.msra.mxu0 0.0
    %2216 = vmatprep.subr.mxu0 0.0
    %2217 = vmatpush1.msra.mxu0 0.0
    %2218 = vmatprep.subr.mxu0 0.0
    %2219 = vmatpush1.msra.mxu0 0.0
    %2220 = vmatprep.subr.mxu0 0.0
    %2221 = vmatpush1.msra.mxu0 0.0
    %2222 = vmatprep.subr.mxu0 0.0
    %2223 = vmatpush1.msra.mxu0 0.0
    %2224 = vmatprep.subr.mxu0 0.0
    %2225 = vmatpush1.msra.mxu0 0.0
    %2226 = vmatprep.subr.mxu0 0.0
    %2227 = vmatpush1.msra.mxu0 0.0
    %2228 = vmatprep.subr.mxu0 0.0
    %2229 = vmatpush1.msra.mxu0 0.0
    %2230 = vmatprep.subr.mxu0 0.0
    %2231 = vmatpush1.msra.mxu0 0.0
    %2232 = vmatprep.subr.mxu0 0.0
    %2233 = vmatpush1.msra.mxu0 0.0
    %2234 = vmatprep.subr.mxu0 0.0
    %2235 = vmatpush1.msra.mxu0 0.0
    %2236 = vmatprep.subr.mxu0 0.0
    %2237 = vmatpush1.msra.mxu0 0.0
    %2238 = vmatprep.subr.mxu0 0.0
    %2239 = vmatpush1.msra.mxu0 0.0
    %2240 = vmatprep.subr.mxu0 0.0
    %2241 = vmatpush1.msra.mxu0 0.0
    %2242 = vmatprep.subr.mxu0 0.0
    %2243 = vmatpush1.msra.mxu0 0.0
    %2244 = vmatprep.subr.mxu0 0.0
    %2245 = vmatpush1.msra.mxu0 0.0
    %2246 = vmatprep.subr.mxu0 0.0
    %2247 = vmatpush1.msra.mxu0 0.0
    %2248 = vmatprep.subr.mxu0 0.0
    %2249 = vmatpush1.msra.mxu0 0.0
    %2250 = vmatprep.subr.mxu0 0.0
    %2251 = vmatpush1.msra.mxu0 0.0
    %2252 = vmatprep.subr.mxu0 0.0
    %2253 = vmatpush1.msra.mxu0 0.0
    %2254 = vmatprep.subr.mxu0 0.0
    %2255 = vmatpush1.msra.mxu0 0.0
    %2256 = vmatprep.subr.mxu0 0.0
    %2257 = vmatpush1.msra.mxu0 0.0
    %2258 = vmatprep.mubr.f32.mxu0 0.0
    %2259 = vmatmul.mubr.f32.gmra.mrb[0].mxu0 %v2122
    %v2260 = vpop.f32.mrb[0].mxu0
    %v2261 = vadd.f32 %v1710, %v2260
    %v2262 = vpop.f32.mrb[0].mxu0
    %2263 = vdwg.mxu0
    %2264 = vmatprep.subr.mxu0 0.0
    %2265 = vmatpush1.msra.mxu0 %v1615
    %2266 = vmatprep.subr.mxu0 0.0
    %2267 = vmatpush1.msra.mxu0 %v1616
    %2268 = vmatprep.subr.mxu0 0.0
    %2269 = vmatpush1.msra.mxu0 %v1617
    %2270 = vmatprep.subr.mxu0 0.0
    %2271 = vmatpush1.msra.mxu0 %v1618
    %2272 = vmatprep.subr.mxu0 0.0
    %2273 = vmatpush1.msra.mxu0 0.0
    %2274 = vmatprep.subr.mxu0 0.0
    %2275 = vmatpush1.msra.mxu0 0.0
    %2276 = vmatprep.subr.mxu0 0.0
    %2277 = vmatpush1.msra.mxu0 0.0
    %2278 = vmatprep.subr.mxu0 0.0
    %2279 = vmatpush1.msra.mxu0 0.0
    %2280 = vmatprep.subr.mxu0 0.0
    %2281 = vmatpush1.msra.mxu0 0.0
    %2282 = vmatprep.subr.mxu0 0.0
    %2283 = vmatpush1.msra.mxu0 0.0
    %2284 = vmatprep.subr.mxu0 0.0
    %2285 = vmatpush1.msra.mxu0 0.0
    %2286 = vmatprep.subr.mxu0 0.0
    %2287 = vmatpush1.msra.mxu0 0.0
    %2288 = vmatprep.subr.mxu0 0.0
    %2289 = vmatpush1.msra.mxu0 0.0
    %2290 = vmatprep.subr.mxu0 0.0
    %2291 = vmatpush1.msra.mxu0 0.0
    %2292 = vmatprep.subr.mxu0 0.0
    %2293 = vmatpush1.msra.mxu0 0.0
    %2294 = vmatprep.subr.mxu0 0.0
    %2295 = vmatpush1.msra.mxu0 0.0
    %2296 = vmatprep.subr.mxu0 0.0
    %2297 = vmatpush1.msra.mxu0 0.0
    %2298 = vmatprep.subr.mxu0 0.0
    %2299 = vmatpush1.msra.mxu0 0.0
    %2300 = vmatprep.subr.mxu0 0.0
    %2301 = vmatpush1.msra.mxu0 0.0
    %2302 = vmatprep.subr.mxu0 0.0
    %2303 = vmatpush1.msra.mxu0 0.0
    %2304 = vmatprep.subr.mxu0 0.0
    %2305 = vmatpush1.msra.mxu0 0.0
    %2306 = vmatprep.subr.mxu0 0.0
    %2307 = vmatpush1.msra.mxu0 0.0
    %2308 = vmatprep.subr.mxu0 0.0
    %2309 = vmatpush1.msra.mxu0 0.0
    %2310 = vmatprep.subr.mxu0 0.0
    %2311 = vmatpush1.msra.mxu0 0.0
    %2312 = vmatprep.subr.mxu0 0.0
    %2313 = vmatpush1.msra.mxu0 0.0
    %2314 = vmatprep.subr.mxu0 0.0
    %2315 = vmatpush1.msra.mxu0 0.0
    %2316 = vmatprep.subr.mxu0 0.0
    %2317 = vmatpush1.msra.mxu0 0.0
    %2318 = vmatprep.subr.mxu0 0.0
    %2319 = vmatpush1.msra.mxu0 0.0
    %2320 = vmatprep.subr.mxu0 0.0
    %2321 = vmatpush1.msra.mxu0 0.0
    %2322 = vmatprep.subr.mxu0 0.0
    %2323 = vmatpush1.msra.mxu0 0.0
    %2324 = vmatprep.subr.mxu0 0.0
    %2325 = vmatpush1.msra.mxu0 0.0
    %2326 = vmatprep.subr.mxu0 0.0
    %2327 = vmatpush1.msra.mxu0 0.0
    %2328 = vmatprep.mubr.f32.mxu0 0.0
    %2329 = vmatmul.mubr.f32.gmra.mrb[0].mxu0 %v2122
    %v2330 = vpop.f32.mrb[0].mxu0
    %v2331 = vadd.f32 %v1786, %v2330
    %v2332 = vpop.f32.mrb[0].mxu0
    %2333 = vdwg.mxu0
    %v2334 = vadd.f32 %v2118, %v2191
    %v2335 = vxor.u32 %v2334, 2147483648
    %v2336 = vmul.f32 %v2335, 1.442695
    %v2337 = vpow.pop %v2336
    %v2338 = vadd.f32 %v2337, 1.0
    %v2339 = vrcp.pop %v2338
    %v2340 = vmul.f32 1.0, %v2339
    %v2341 = vadd.f32 %v2119, %v2261
    %v2342 = vxor.u32 %v2341, 2147483648
    %v2343 = vmul.f32 %v2342, 1.442695
    %v2344 = vpow.pop %v2343
    %v2345 = vadd.f32 %v2344, 1.0
    %v2346 = vrcp.pop %v2345
    %v2347 = vmul.f32 1.0, %v2346
    %v2348 = vmul.f32 %v2340, %v2331
    %v2349 = vadd.f32 %v2120, %v2348
    %v2350 = vtanh.pop %v2349
    %v2351 = vsub.f32 1.0, %v2347
    %v2352 = vmul.f32 %v2351, %v2350
    %v2353 = vmul.f32 %v2347, %v2116
    %v2354 = vadd.f32 %v2352, %v2353
    %2355 = vst.msk [vmem:[#allocation5 + $0x10] sm:$0xff] %vm453, %v2354
    %v2356 = vld [vmem:[#allocation2 + $0x18] sm:$0xff]
    %v2357 = vld [vmem:[#allocation3 + $0x18] sm:$0xff]
    %v2358 = vld [vmem:[#allocation4 + $0x18] sm:$0xff]
    %v2360 = vsel %vm453, %v2354, 0
    %2362 = vmatprep.subr.mxu0 0.0
    %2363 = vmatpush1.msra.mxu0 %v1605
    %2364 = vmatprep.subr.mxu0 0.0
    %2365 = vmatpush1.msra.mxu0 %v1606
    %2366 = vmatprep.subr.mxu0 0.0
    %2367 = vmatpush1.msra.mxu0 %v1607
    %2368 = vmatprep.subr.mxu0 0.0
    %2369 = vmatpush1.msra.mxu0 %v1608
    %2370 = vmatprep.subr.mxu0 0.0
    %2371 = vmatpush1.msra.mxu0 0.0
    %2372 = vmatprep.subr.mxu0 0.0
    %2373 = vmatpush1.msra.mxu0 0.0
    %2374 = vmatprep.subr.mxu0 0.0
    %2375 = vmatpush1.msra.mxu0 0.0
    %2376 = vmatprep.subr.mxu0 0.0
    %2377 = vmatpush1.msra.mxu0 0.0
    %2378 = vmatprep.subr.mxu0 0.0
    %2379 = vmatpush1.msra.mxu0 0.0
    %2380 = vmatprep.subr.mxu0 0.0
    %2381 = vmatpush1.msra.mxu0 0.0
    %2382 = vmatprep.subr.mxu0 0.0
    %2383 = vmatpush1.msra.mxu0 0.0
    %2384 = vmatprep.subr.mxu0 0.0
    %2385 = vmatpush1.msra.mxu0 0.0
    %2386 = vmatprep.subr.mxu0 0.0
    %2387 = vmatpush1.msra.mxu0 0.0
    %2388 = vmatprep.subr.mxu0 0.0
    %2389 = vmatpush1.msra.mxu0 0.0
    %2390 = vmatprep.subr.mxu0 0.0
    %2391 = vmatpush1.msra.mxu0 0.0
    %2392 = vmatprep.subr.mxu0 0.0
    %2393 = vmatpush1.msra.mxu0 0.0
    %2394 = vmatprep.subr.mxu0 0.0
    %2395 = vmatpush1.msra.mxu0 0.0
    %2396 = vmatprep.subr.mxu0 0.0
    %2397 = vmatpush1.msra.mxu0 0.0
    %2398 = vmatprep.subr.mxu0 0.0
    %2399 = vmatpush1.msra.mxu0 0.0
    %2400 = vmatprep.subr.mxu0 0.0
    %2401 = vmatpush1.msra.mxu0 0.0
    %2402 = vmatprep.subr.mxu0 0.0
    %2403 = vmatpush1.msra.mxu0 0.0
    %2404 = vmatprep.subr.mxu0 0.0
    %2405 = vmatpush1.msra.mxu0 0.0
    %2406 = vmatprep.subr.mxu0 0.0
    %2407 = vmatpush1.msra.mxu0 0.0
    %2408 = vmatprep.subr.mxu0 0.0
    %2409 = vmatpush1.msra.mxu0 0.0
    %2410 = vmatprep.subr.mxu0 0.0
    %2411 = vmatpush1.msra.mxu0 0.0
    %2412 = vmatprep.subr.mxu0 0.0
    %2413 = vmatpush1.msra.mxu0 0.0
    %2414 = vmatprep.subr.mxu0 0.0
    %2415 = vmatpush1.msra.mxu0 0.0
    %2416 = vmatprep.subr.mxu0 0.0
    %2417 = vmatpush1.msra.mxu0 0.0
    %2418 = vmatprep.subr.mxu0 0.0
    %2419 = vmatpush1.msra.mxu0 0.0
    %2420 = vmatprep.subr.mxu0 0.0
    %2421 = vmatpush1.msra.mxu0 0.0
    %2422 = vmatprep.subr.mxu0 0.0
    %2423 = vmatpush1.msra.mxu0 0.0
    %2424 = vmatprep.subr.mxu0 0.0
    %2425 = vmatpush1.msra.mxu0 0.0
    %2426 = vmatprep.mubr.f32.mxu0 0.0
    %2427 = vmatmul.mubr.f32.gmra.mrb[0].mxu0 %v2360
    %v2428 = vpop.f32.mrb[0].mxu0
    %v2429 = vadd.f32 %v1631, %v2428
    %v2430 = vpop.f32.mrb[0].mxu0
    %2431 = vdwg.mxu0
    %2432 = vmatprep.subr.mxu0 0.0
    %2433 = vmatpush1.msra.mxu0 %v1610
    %2434 = vmatprep.subr.mxu0 0.0
    %2435 = vmatpush1.msra.mxu0 %v1611
    %2436 = vmatprep.subr.mxu0 0.0
    %2437 = vmatpush1.msra.mxu0 %v1612
    %2438 = vmatprep.subr.mxu0 0.0
    %2439 = vmatpush1.msra.mxu0 %v1613
    %2440 = vmatprep.subr.mxu0 0.0
    %2441 = vmatpush1.msra.mxu0 0.0
    %2442 = vmatprep.subr.mxu0 0.0
    %2443 = vmatpush1.msra.mxu0 0.0
    %2444 = vmatprep.subr.mxu0 0.0
    %2445 = vmatpush1.msra.mxu0 0.0
    %2446 = vmatprep.subr.mxu0 0.0
    %2447 = vmatpush1.msra.mxu0 0.0
    %2448 = vmatprep.subr.mxu0 0.0
    %2449 = vmatpush1.msra.mxu0 0.0
    %2450 = vmatprep.subr.mxu0 0.0
    %2451 = vmatpush1.msra.mxu0 0.0
    %2452 = vmatprep.subr.mxu0 0.0
    %2453 = vmatpush1.msra.mxu0 0.0
    %2454 = vmatprep.subr.mxu0 0.0
    %2455 = vmatpush1.msra.mxu0 0.0
    %2456 = vmatprep.subr.mxu0 0.0
    %2457 = vmatpush1.msra.mxu0 0.0
    %2458 = vmatprep.subr.mxu0 0.0
    %2459 = vmatpush1.msra.mxu0 0.0
    %2460 = vmatprep.subr.mxu0 0.0
    %2461 = vmatpush1.msra.mxu0 0.0
    %2462 = vmatprep.subr.mxu0 0.0
    %2463 = vmatpush1.msra.mxu0 0.0
    %2464 = vmatprep.subr.mxu0 0.0
    %2465 = vmatpush1.msra.mxu0 0.0
    %2466 = vmatprep.subr.mxu0 0.0
    %2467 = vmatpush1.msra.mxu0 0.0
    %2468 = vmatprep.subr.mxu0 0.0
    %2469 = vmatpush1.msra.mxu0 0.0
    %2470 = vmatprep.subr.mxu0 0.0
    %2471 = vmatpush1.msra.mxu0 0.0
    %2472 = vmatprep.subr.mxu0 0.0
    %2473 = vmatpush1.msra.mxu0 0.0
    %2474 = vmatprep.subr.mxu0 0.0
    %2475 = vmatpush1.msra.mxu0 0.0
    %2476 = vmatprep.subr.mxu0 0.0
    %2477 = vmatpush1.msra.mxu0 0.0
    %2478 = vmatprep.subr.mxu0 0.0
    %2479 = vmatpush1.msra.mxu0 0.0
    %2480 = vmatprep.subr.mxu0 0.0
    %2481 = vmatpush1.msra.mxu0 0.0
    %2482 = vmatprep.subr.mxu0 0.0
    %2483 = vmatpush1.msra.mxu0 0.0
    %2484 = vmatprep.subr.mxu0 0.0
    %2485 = vmatpush1.msra.mxu0 0.0
    %2486 = vmatprep.subr.mxu0 0.0
    %2487 = vmatpush1.msra.mxu0 0.0
    %2488 = vmatprep.subr.mxu0 0.0
    %2489 = vmatpush1.msra.mxu0 0.0
    %2490 = vmatprep.subr.mxu0 0.0
    %2491 = vmatpush1.msra.mxu0 0.0
    %2492 = vmatprep.subr.mxu0 0.0
    %2493 = vmatpush1.msra.mxu0 0.0
    %2494 = vmatprep.subr.mxu0 0.0
    %2495 = vmatpush1.msra.mxu0 0.0
    %2496 = vmatprep.mubr.f32.mxu0 0.0
    %2497 = vmatmul.mubr.f32.gmra.mrb[0].mxu0 %v2360
    %v2498 = vpop.f32.mrb[0].mxu0
    %v2499 = vadd.f32 %v1710, %v2498
    %v2500 = vpop.f32.mrb[0].mxu0
    %2501 = vdwg.mxu0
    %2502 = vmatprep.subr.mxu0 0.0
    %2503 = vmatpush1.msra.mxu0 %v1615
    %2504 = vmatprep.subr.mxu0 0.0
    %2505 = vmatpush1.msra.mxu0 %v1616
    %2506 = vmatprep.subr.mxu0 0.0
    %2507 = vmatpush1.msra.mxu0 %v1617
    %2508 = vmatprep.subr.mxu0 0.0
    %2509 = vmatpush1.msra.mxu0 %v1618
    %2510 = vmatprep.subr.mxu0 0.0
    %2511 = vmatpush1.msra.mxu0 0.0
    %2512 = vmatprep.subr.mxu0 0.0
    %2513 = vmatpush1.msra.mxu0 0.0
    %2514 = vmatprep.subr.mxu0 0.0
    %2515 = vmatpush1.msra.mxu0 0.0
    %2516 = vmatprep.subr.mxu0 0.0
    %2517 = vmatpush1.msra.mxu0 0.0
    %2518 = vmatprep.subr.mxu0 0.0
    %2519 = vmatpush1.msra.mxu0 0.0
    %2520 = vmatprep.subr.mxu0 0.0
    %2521 = vmatpush1.msra.mxu0 0.0
    %2522 = vmatprep.subr.mxu0 0.0
    %2523 = vmatpush1.msra.mxu0 0.0
    %2524 = vmatprep.subr.mxu0 0.0
    %2525 = vmatpush1.msra.mxu0 0.0
    %2526 = vmatprep.subr.mxu0 0.0
    %2527 = vmatpush1.msra.mxu0 0.0
    %2528 = vmatprep.subr.mxu0 0.0
    %2529 = vmatpush1.msra.mxu0 0.0
    %2530 = vmatprep.subr.mxu0 0.0
    %2531 = vmatpush1.msra.mxu0 0.0
    %2532 = vmatprep.subr.mxu0 0.0
    %2533 = vmatpush1.msra.mxu0 0.0
    %2534 = vmatprep.subr.mxu0 0.0
    %2535 = vmatpush1.msra.mxu0 0.0
    %2536 = vmatprep.subr.mxu0 0.0
    %2537 = vmatpush1.msra.mxu0 0.0
    %2538 = vmatprep.subr.mxu0 0.0
    %2539 = vmatpush1.msra.mxu0 0.0
    %2540 = vmatprep.subr.mxu0 0.0
    %2541 = vmatpush1.msra.mxu0 0.0
    %2542 = vmatprep.subr.mxu0 0.0
    %2543 = vmatpush1.msra.mxu0 0.0
    %2544 = vmatprep.subr.mxu0 0.0
    %2545 = vmatpush1.msra.mxu0 0.0
    %2546 = vmatprep.subr.mxu0 0.0
    %2547 = vmatpush1.msra.mxu0 0.0
    %2548 = vmatprep.subr.mxu0 0.0
    %2549 = vmatpush1.msra.mxu0 0.0
    %2550 = vmatprep.subr.mxu0 0.0
    %2551 = vmatpush1.msra.mxu0 0.0
    %2552 = vmatprep.subr.mxu0 0.0
    %2553 = vmatpush1.msra.mxu0 0.0
    %2554 = vmatprep.subr.mxu0 0.0
    %2555 = vmatpush1.msra.mxu0 0.0
    %2556 = vmatprep.subr.mxu0 0.0
    %2557 = vmatpush1.msra.mxu0 0.0
    %2558 = vmatprep.subr.mxu0 0.0
    %2559 = vmatpush1.msra.mxu0 0.0
    %2560 = vmatprep.subr.mxu0 0.0
    %2561 = vmatpush1.msra.mxu0 0.0
    %2562 = vmatprep.subr.mxu0 0.0
    %2563 = vmatpush1.msra.mxu0 0.0
    %2564 = vmatprep.subr.mxu0 0.0
    %2565 = vmatpush1.msra.mxu0 0.0
    %2566 = vmatprep.mubr.f32.mxu0 0.0
    %2567 = vmatmul.mubr.f32.gmra.mrb[0].mxu0 %v2360
    %v2568 = vpop.f32.mrb[0].mxu0
    %v2569 = vadd.f32 %v1786, %v2568
    %v2570 = vpop.f32.mrb[0].mxu0
    %2571 = vdwg.mxu0
    %v2572 = vadd.f32 %v2356, %v2429
    %v2573 = vxor.u32 %v2572, 2147483648
    %v2574 = vmul.f32 %v2573, 1.442695
    %v2575 = vpow.pop %v2574
    %v2576 = vadd.f32 %v2575, 1.0
    %v2577 = vrcp.pop %v2576
    %v2578 = vmul.f32 1.0, %v2577
    %v2579 = vadd.f32 %v2357, %v2499
    %v2580 = vxor.u32 %v2579, 2147483648
    %v2581 = vmul.f32 %v2580, 1.442695
    %v2582 = vpow.pop %v2581
    %v2583 = vadd.f32 %v2582, 1.0
    %v2584 = vrcp.pop %v2583
    %v2585 = vmul.f32 1.0, %v2584
    %v2586 = vmul.f32 %v2578, %v2569
    %v2587 = vadd.f32 %v2358, %v2586
    %v2588 = vtanh.pop %v2587
    %v2589 = vsub.f32 1.0, %v2585
    %v2590 = vmul.f32 %v2589, %v2588
    %v2591 = vmul.f32 %v2585, %v2354
    %v2592 = vadd.f32 %v2590, %v2591
    %2593 = vst.msk [vmem:[#allocation5 + $0x18] sm:$0xff] %vm453, %v2592
    %v2594 = vld [vmem:[#allocation2 + $0x20] sm:$0xff]
    %v2595 = vld [vmem:[#allocation3 + $0x20] sm:$0xff]
    %v2596 = vld [vmem:[#allocation4 + $0x20] sm:$0xff]
    %v2598 = vsel %vm453, %v2592, 0
    %2600 = vmatprep.subr.mxu0 0.0
    %2601 = vmatpush1.msra.mxu0 %v1605
    %2602 = vmatprep.subr.mxu0 0.0
    %2603 = vmatpush1.msra.mxu0 %v1606
    %2604 = vmatprep.subr.mxu0 0.0
    %2605 = vmatpush1.msra.mxu0 %v1607
    %2606 = vmatprep.subr.mxu0 0.0
    %2607 = vmatpush1.msra.mxu0 %v1608
    %2608 = vmatprep.subr.mxu0 0.0
    %2609 = vmatpush1.msra.mxu0 0.0
    %2610 = vmatprep.subr.mxu0 0.0
    %2611 = vmatpush1.msra.mxu0 0.0
    %2612 = vmatprep.subr.mxu0 0.0
    %2613 = vmatpush1.msra.mxu0 0.0
    %2614 = vmatprep.subr.mxu0 0.0
    %2615 = vmatpush1.msra.mxu0 0.0
    %2616 = vmatprep.subr.mxu0 0.0
    %2617 = vmatpush1.msra.mxu0 0.0
    %2618 = vmatprep.subr.mxu0 0.0
    %2619 = vmatpush1.msra.mxu0 0.0
    %2620 = vmatprep.subr.mxu0 0.0
    %2621 = vmatpush1.msra.mxu0 0.0
    %2622 = vmatprep.subr.mxu0 0.0
    %2623 = vmatpush1.msra.mxu0 0.0
    %2624 = vmatprep.subr.mxu0 0.0
    %2625 = vmatpush1.msra.mxu0 0.0
    %2626 = vmatprep.subr.mxu0 0.0
    %2627 = vmatpush1.msra.mxu0 0.0
    %2628 = vmatprep.subr.mxu0 0.0
    %2629 = vmatpush1.msra.mxu0 0.0
    %2630 = vmatprep.subr.mxu0 0.0
    %2631 = vmatpush1.msra.mxu0 0.0
    %2632 = vmatprep.subr.mxu0 0.0
    %2633 = vmatpush1.msra.mxu0 0.0
    %2634 = vmatprep.subr.mxu0 0.0
    %2635 = vmatpush1.msra.mxu0 0.0
    %2636 = vmatprep.subr.mxu0 0.0
    %2637 = vmatpush1.msra.mxu0 0.0
    %2638 = vmatprep.subr.mxu0 0.0
    %2639 = vmatpush1.msra.mxu0 0.0
    %2640 = vmatprep.subr.mxu0 0.0
    %2641 = vmatpush1.msra.mxu0 0.0
    %2642 = vmatprep.subr.mxu0 0.0
    %2643 = vmatpush1.msra.mxu0 0.0
    %2644 = vmatprep.subr.mxu0 0.0
    %2645 = vmatpush1.msra.mxu0 0.0
    %2646 = vmatprep.subr.mxu0 0.0
    %2647 = vmatpush1.msra.mxu0 0.0
    %2648 = vmatprep.subr.mxu0 0.0
    %2649 = vmatpush1.msra.mxu0 0.0
    %2650 = vmatprep.subr.mxu0 0.0
    %2651 = vmatpush1.msra.mxu0 0.0
    %2652 = vmatprep.subr.mxu0 0.0
    %2653 = vmatpush1.msra.mxu0 0.0
    %2654 = vmatprep.subr.mxu0 0.0
    %2655 = vmatpush1.msra.mxu0 0.0
    %2656 = vmatprep.subr.mxu0 0.0
    %2657 = vmatpush1.msra.mxu0 0.0
    %2658 = vmatprep.subr.mxu0 0.0
    %2659 = vmatpush1.msra.mxu0 0.0
    %2660 = vmatprep.subr.mxu0 0.0
    %2661 = vmatpush1.msra.mxu0 0.0
    %2662 = vmatprep.subr.mxu0 0.0
    %2663 = vmatpush1.msra.mxu0 0.0
    %2664 = vmatprep.mubr.f32.mxu0 0.0
    %2665 = vmatmul.mubr.f32.gmra.mrb[0].mxu0 %v2598
    %v2666 = vpop.f32.mrb[0].mxu0
    %v2667 = vadd.f32 %v1631, %v2666
    %v2668 = vpop.f32.mrb[0].mxu0
    %2669 = vdwg.mxu0
    %2670 = vmatprep.subr.mxu0 0.0
    %2671 = vmatpush1.msra.mxu0 %v1610
    %2672 = vmatprep.subr.mxu0 0.0
    %2673 = vmatpush1.msra.mxu0 %v1611
    %2674 = vmatprep.subr.mxu0 0.0
    %2675 = vmatpush1.msra.mxu0 %v1612
    %2676 = vmatprep.subr.mxu0 0.0
    %2677 = vmatpush1.msra.mxu0 %v1613
    %2678 = vmatprep.subr.mxu0 0.0
    %2679 = vmatpush1.msra.mxu0 0.0
    %2680 = vmatprep.subr.mxu0 0.0
    %2681 = vmatpush1.msra.mxu0 0.0
    %2682 = vmatprep.subr.mxu0 0.0
    %2683 = vmatpush1.msra.mxu0 0.0
    %2684 = vmatprep.subr.mxu0 0.0
    %2685 = vmatpush1.msra.mxu0 0.0
    %2686 = vmatprep.subr.mxu0 0.0
    %2687 = vmatpush1.msra.mxu0 0.0
    %2688 = vmatprep.subr.mxu0 0.0
    %2689 = vmatpush1.msra.mxu0 0.0
    %2690 = vmatprep.subr.mxu0 0.0
    %2691 = vmatpush1.msra.mxu0 0.0
    %2692 = vmatprep.subr.mxu0 0.0
    %2693 = vmatpush1.msra.mxu0 0.0
    %2694 = vmatprep.subr.mxu0 0.0
    %2695 = vmatpush1.msra.mxu0 0.0
    %2696 = vmatprep.subr.mxu0 0.0
    %2697 = vmatpush1.msra.mxu0 0.0
    %2698 = vmatprep.subr.mxu0 0.0
    %2699 = vmatpush1.msra.mxu0 0.0
    %2700 = vmatprep.subr.mxu0 0.0
    %2701 = vmatpush1.msra.mxu0 0.0
    %2702 = vmatprep.subr.mxu0 0.0
    %2703 = vmatpush1.msra.mxu0 0.0
    %2704 = vmatprep.subr.mxu0 0.0
    %2705 = vmatpush1.msra.mxu0 0.0
    %2706 = vmatprep.subr.mxu0 0.0
    %2707 = vmatpush1.msra.mxu0 0.0
    %2708 = vmatprep.subr.mxu0 0.0
    %2709 = vmatpush1.msra.mxu0 0.0
    %2710 = vmatprep.subr.mxu0 0.0
    %2711 = vmatpush1.msra.mxu0 0.0
    %2712 = vmatprep.subr.mxu0 0.0
    %2713 = vmatpush1.msra.mxu0 0.0
    %2714 = vmatprep.subr.mxu0 0.0
    %2715 = vmatpush1.msra.mxu0 0.0
    %2716 = vmatprep.subr.mxu0 0.0
    %2717 = vmatpush1.msra.mxu0 0.0
    %2718 = vmatprep.subr.mxu0 0.0
    %2719 = vmatpush1.msra.mxu0 0.0
    %2720 = vmatprep.subr.mxu0 0.0
    %2721 = vmatpush1.msra.mxu0 0.0
    %2722 = vmatprep.subr.mxu0 0.0
    %2723 = vmatpush1.msra.mxu0 0.0
    %2724 = vmatprep.subr.mxu0 0.0
    %2725 = vmatpush1.msra.mxu0 0.0
    %2726 = vmatprep.subr.mxu0 0.0
    %2727 = vmatpush1.msra.mxu0 0.0
    %2728 = vmatprep.subr.mxu0 0.0
    %2729 = vmatpush1.msra.mxu0 0.0
    %2730 = vmatprep.subr.mxu0 0.0
    %2731 = vmatpush1.msra.mxu0 0.0
    %2732 = vmatprep.subr.mxu0 0.0
    %2733 = vmatpush1.msra.mxu0 0.0
    %2734 = vmatprep.mubr.f32.mxu0 0.0
    %2735 = vmatmul.mubr.f32.gmra.mrb[0].mxu0 %v2598
    %v2736 = vpop.f32.mrb[0].mxu0
    %v2737 = vadd.f32 %v1710, %v2736
    %v2738 = vpop.f32.mrb[0].mxu0
    %2739 = vdwg.mxu0
    %2740 = vmatprep.subr.mxu0 0.0
    %2741 = vmatpush1.msra.mxu0 %v1615
    %2742 = vmatprep.subr.mxu0 0.0
    %2743 = vmatpush1.msra.mxu0 %v1616
    %2744 = vmatprep.subr.mxu0 0.0
    %2745 = vmatpush1.msra.mxu0 %v1617
    %2746 = vmatprep.subr.mxu0 0.0
    %2747 = vmatpush1.msra.mxu0 %v1618
    %2748 = vmatprep.subr.mxu0 0.0
    %2749 = vmatpush1.msra.mxu0 0.0
    %2750 = vmatprep.subr.mxu0 0.0
    %2751 = vmatpush1.msra.mxu0 0.0
    %2752 = vmatprep.subr.mxu0 0.0
    %2753 = vmatpush1.msra.mxu0 0.0
    %2754 = vmatprep.subr.mxu0 0.0
    %2755 = vmatpush1.msra.mxu0 0.0
    %2756 = vmatprep.subr.mxu0 0.0
    %2757 = vmatpush1.msra.mxu0 0.0
    %2758 = vmatprep.subr.mxu0 0.0
    %2759 = vmatpush1.msra.mxu0 0.0
    %2760 = vmatprep.subr.mxu0 0.0
    %2761 = vmatpush1.msra.mxu0 0.0
    %2762 = vmatprep.subr.mxu0 0.0
    %2763 = vmatpush1.msra.mxu0 0.0
    %2764 = vmatprep.subr.mxu0 0.0
    %2765 = vmatpush1.msra.mxu0 0.0
    %2766 = vmatprep.subr.mxu0 0.0
    %2767 = vmatpush1.msra.mxu0 0.0
    %2768 = vmatprep.subr.mxu0 0.0
    %2769 = vmatpush1.msra.mxu0 0.0
    %2770 = vmatprep.subr.mxu0 0.0
    %2771 = vmatpush1.msra.mxu0 0.0
    %2772 = vmatprep.subr.mxu0 0.0
    %2773 = vmatpush1.msra.mxu0 0.0
    %2774 = vmatprep.subr.mxu0 0.0
    %2775 = vmatpush1.msra.mxu0 0.0
    %2776 = vmatprep.subr.mxu0 0.0
    %2777 = vmatpush1.msra.mxu0 0.0
    %2778 = vmatprep.subr.mxu0 0.0
    %2779 = vmatpush1.msra.mxu0 0.0
    %2780 = vmatprep.subr.mxu0 0.0
    %2781 = vmatpush1.msra.mxu0 0.0
    %2782 = vmatprep.subr.mxu0 0.0
    %2783 = vmatpush1.msra.mxu0 0.0
    %2784 = vmatprep.subr.mxu0 0.0
    %2785 = vmatpush1.msra.mxu0 0.0
    %2786 = vmatprep.subr.mxu0 0.0
    %2787 = vmatpush1.msra.mxu0 0.0
    %2788 = vmatprep.subr.mxu0 0.0
    %2789 = vmatpush1.msra.mxu0 0.0
    %2790 = vmatprep.subr.mxu0 0.0
    %2791 = vmatpush1.msra.mxu0 0.0
    %2792 = vmatprep.subr.mxu0 0.0
    %2793 = vmatpush1.msra.mxu0 0.0
    %2794 = vmatprep.subr.mxu0 0.0
    %2795 = vmatpush1.msra.mxu0 0.0
    %2796 = vmatprep.subr.mxu0 0.0
    %2797 = vmatpush1.msra.mxu0 0.0
    %2798 = vmatprep.subr.mxu0 0.0
    %2799 = vmatpush1.msra.mxu0 0.0
    %2800 = vmatprep.subr.mxu0 0.0
    %2801 = vmatpush1.msra.mxu0 0.0
    %2802 = vmatprep.subr.mxu0 0.0
    %2803 = vmatpush1.msra.mxu0 0.0
    %2804 = vmatprep.mubr.f32.mxu0 0.0
    %2805 = vmatmul.mubr.f32.gmra.mrb[0].mxu0 %v2598
    %v2806 = vpop.f32.mrb[0].mxu0
    %v2807 = vadd.f32 %v1786, %v2806
    %v2808 = vpop.f32.mrb[0].mxu0
    %2809 = vdwg.mxu0
    %v2810 = vadd.f32 %v2594, %v2667
    %v2811 = vxor.u32 %v2810, 2147483648
    %v2812 = vmul.f32 %v2811, 1.442695
    %v2813 = vpow.pop %v2812
    %v2814 = vadd.f32 %v2813, 1.0
    %v2815 = vrcp.pop %v2814
    %v2816 = vmul.f32 1.0, %v2815
    %v2817 = vadd.f32 %v2595, %v2737
    %v2818 = vxor.u32 %v2817, 2147483648
    %v2819 = vmul.f32 %v2818, 1.442695
    %v2820 = vpow.pop %v2819
    %v2821 = vadd.f32 %v2820, 1.0
    %v2822 = vrcp.pop %v2821
    %v2823 = vmul.f32 1.0, %v2822
    %v2824 = vmul.f32 %v2816, %v2807
    %v2825 = vadd.f32 %v2596, %v2824
    %v2826 = vtanh.pop %v2825
    %v2827 = vsub.f32 1.0, %v2823
    %v2828 = vmul.f32 %v2827, %v2826
    %v2829 = vmul.f32 %v2823, %v2592
    %v2830 = vadd.f32 %v2828, %v2829
    %2831 = vst.msk [vmem:[#allocation5 + $0x20] sm:$0xff] %vm453, %v2830
    %v2832 = vld [vmem:[#allocation2 + $0x28] sm:$0xff]
    %v2833 = vld [vmem:[#allocation3 + $0x28] sm:$0xff]
    %v2834 = vld [vmem:[#allocation4 + $0x28] sm:$0xff]
    %v2836 = vsel %vm453, %v2830, 0
    %2838 = vmatprep.subr.mxu0 0.0
    %2839 = vmatpush1.msra.mxu0 %v1605
    %2840 = vmatprep.subr.mxu0 0.0
    %2841 = vmatpush1.msra.mxu0 %v1606
    %2842 = vmatprep.subr.mxu0 0.0
    %2843 = vmatpush1.msra.mxu0 %v1607
    %2844 = vmatprep.subr.mxu0 0.0
    %2845 = vmatpush1.msra.mxu0 %v1608
    %2846 = vmatprep.subr.mxu0 0.0
    %2847 = vmatpush1.msra.mxu0 0.0
    %2848 = vmatprep.subr.mxu0 0.0
    %2849 = vmatpush1.msra.mxu0 0.0
    %2850 = vmatprep.subr.mxu0 0.0
    %2851 = vmatpush1.msra.mxu0 0.0
    %2852 = vmatprep.subr.mxu0 0.0
    %2853 = vmatpush1.msra.mxu0 0.0
    %2854 = vmatprep.subr.mxu0 0.0
    %2855 = vmatpush1.msra.mxu0 0.0
    %2856 = vmatprep.subr.mxu0 0.0
    %2857 = vmatpush1.msra.mxu0 0.0
    %2858 = vmatprep.subr.mxu0 0.0
    %2859 = vmatpush1.msra.mxu0 0.0
    %2860 = vmatprep.subr.mxu0 0.0
    %2861 = vmatpush1.msra.mxu0 0.0
    %2862 = vmatprep.subr.mxu0 0.0
    %2863 = vmatpush1.msra.mxu0 0.0
    %2864 = vmatprep.subr.mxu0 0.0
    %2865 = vmatpush1.msra.mxu0 0.0
    %2866 = vmatprep.subr.mxu0 0.0
    %2867 = vmatpush1.msra.mxu0 0.0
    %2868 = vmatprep.subr.mxu0 0.0
    %2869 = vmatpush1.msra.mxu0 0.0
    %2870 = vmatprep.subr.mxu0 0.0
    %2871 = vmatpush1.msra.mxu0 0.0
    %2872 = vmatprep.subr.mxu0 0.0
    %2873 = vmatpush1.msra.mxu0 0.0
    %2874 = vmatprep.subr.mxu0 0.0
    %2875 = vmatpush1.msra.mxu0 0.0
    %2876 = vmatprep.subr.mxu0 0.0
    %2877 = vmatpush1.msra.mxu0 0.0
    %2878 = vmatprep.subr.mxu0 0.0
    %2879 = vmatpush1.msra.mxu0 0.0
    %2880 = vmatprep.subr.mxu0 0.0
    %2881 = vmatpush1.msra.mxu0 0.0
    %2882 = vmatprep.subr.mxu0 0.0
    %2883 = vmatpush1.msra.mxu0 0.0
    %2884 = vmatprep.subr.mxu0 0.0
    %2885 = vmatpush1.msra.mxu0 0.0
    %2886 = vmatprep.subr.mxu0 0.0
    %2887 = vmatpush1.msra.mxu0 0.0
    %2888 = vmatprep.subr.mxu0 0.0
    %2889 = vmatpush1.msra.mxu0 0.0
    %2890 = vmatprep.subr.mxu0 0.0
    %2891 = vmatpush1.msra.mxu0 0.0
    %2892 = vmatprep.subr.mxu0 0.0
    %2893 = vmatpush1.msra.mxu0 0.0
    %2894 = vmatprep.subr.mxu0 0.0
    %2895 = vmatpush1.msra.mxu0 0.0
    %2896 = vmatprep.subr.mxu0 0.0
    %2897 = vmatpush1.msra.mxu0 0.0
    %2898 = vmatprep.subr.mxu0 0.0
    %2899 = vmatpush1.msra.mxu0 0.0
    %2900 = vmatprep.subr.mxu0 0.0
    %2901 = vmatpush1.msra.mxu0 0.0
    %2902 = vmatprep.mubr.f32.mxu0 0.0
    %2903 = vmatmul.mubr.f32.gmra.mrb[0].mxu0 %v2836
    %v2904 = vpop.f32.mrb[0].mxu0
    %v2905 = vadd.f32 %v1631, %v2904
    %v2906 = vpop.f32.mrb[0].mxu0
    %2907 = vdwg.mxu0
    %2908 = vmatprep.subr.mxu0 0.0
    %2909 = vmatpush1.msra.mxu0 %v1610
    %2910 = vmatprep.subr.mxu0 0.0
    %2911 = vmatpush1.msra.mxu0 %v1611
    %2912 = vmatprep.subr.mxu0 0.0
    %2913 = vmatpush1.msra.mxu0 %v1612
    %2914 = vmatprep.subr.mxu0 0.0
    %2915 = vmatpush1.msra.mxu0 %v1613
    %2916 = vmatprep.subr.mxu0 0.0
    %2917 = vmatpush1.msra.mxu0 0.0
    %2918 = vmatprep.subr.mxu0 0.0
    %2919 = vmatpush1.msra.mxu0 0.0
    %2920 = vmatprep.subr.mxu0 0.0
    %2921 = vmatpush1.msra.mxu0 0.0
    %2922 = vmatprep.subr.mxu0 0.0
    %2923 = vmatpush1.msra.mxu0 0.0
    %2924 = vmatprep.subr.mxu0 0.0
    %2925 = vmatpush1.msra.mxu0 0.0
    %2926 = vmatprep.subr.mxu0 0.0
    %2927 = vmatpush1.msra.mxu0 0.0
    %2928 = vmatprep.subr.mxu0 0.0
    %2929 = vmatpush1.msra.mxu0 0.0
    %2930 = vmatprep.subr.mxu0 0.0
    %2931 = vmatpush1.msra.mxu0 0.0
    %2932 = vmatprep.subr.mxu0 0.0
    %2933 = vmatpush1.msra.mxu0 0.0
    %2934 = vmatprep.subr.mxu0 0.0
    %2935 = vmatpush1.msra.mxu0 0.0
    %2936 = vmatprep.subr.mxu0 0.0
    %2937 = vmatpush1.msra.mxu0 0.0
    %2938 = vmatprep.subr.mxu0 0.0
    %2939 = vmatpush1.msra.mxu0 0.0
    %2940 = vmatprep.subr.mxu0 0.0
    %2941 = vmatpush1.msra.mxu0 0.0
    %2942 = vmatprep.subr.mxu0 0.0
    %2943 = vmatpush1.msra.mxu0 0.0
    %2944 = vmatprep.subr.mxu0 0.0
    %2945 = vmatpush1.msra.mxu0 0.0
    %2946 = vmatprep.subr.mxu0 0.0
    %2947 = vmatpush1.msra.mxu0 0.0
    %2948 = vmatprep.subr.mxu0 0.0
    %2949 = vmatpush1.msra.mxu0 0.0
    %2950 = vmatprep.subr.mxu0 0.0
    %2951 = vmatpush1.msra.mxu0 0.0
    %2952 = vmatprep.subr.mxu0 0.0
    %2953 = vmatpush1.msra.mxu0 0.0
    %2954 = vmatprep.subr.mxu0 0.0
    %2955 = vmatpush1.msra.mxu0 0.0
    %2956 = vmatprep.subr.mxu0 0.0
    %2957 = vmatpush1.msra.mxu0 0.0
    %2958 = vmatprep.subr.mxu0 0.0
    %2959 = vmatpush1.msra.mxu0 0.0
    %2960 = vmatprep.subr.mxu0 0.0
    %2961 = vmatpush1.msra.mxu0 0.0
    %2962 = vmatprep.subr.mxu0 0.0
    %2963 = vmatpush1.msra.mxu0 0.0
    %2964 = vmatprep.subr.mxu0 0.0
    %2965 = vmatpush1.msra.mxu0 0.0
    %2966 = vmatprep.subr.mxu0 0.0
    %2967 = vmatpush1.msra.mxu0 0.0
    %2968 = vmatprep.subr.mxu0 0.0
    %2969 = vmatpush1.msra.mxu0 0.0
    %2970 = vmatprep.subr.mxu0 0.0
    %2971 = vmatpush1.msra.mxu0 0.0
    %2972 = vmatprep.mubr.f32.mxu0 0.0
    %2973 = vmatmul.mubr.f32.gmra.mrb[0].mxu0 %v2836
    %v2974 = vpop.f32.mrb[0].mxu0
    %v2975 = vadd.f32 %v1710, %v2974
    %v2976 = vpop.f32.mrb[0].mxu0
    %2977 = vdwg.mxu0
    %2978 = vmatprep.subr.mxu0 0.0
    %2979 = vmatpush1.msra.mxu0 %v1615
    %2980 = vmatprep.subr.mxu0 0.0
    %2981 = vmatpush1.msra.mxu0 %v1616
    %2982 = vmatprep.subr.mxu0 0.0
    %2983 = vmatpush1.msra.mxu0 %v1617
    %2984 = vmatprep.subr.mxu0 0.0
    %2985 = vmatpush1.msra.mxu0 %v1618
    %2986 = vmatprep.subr.mxu0 0.0
    %2987 = vmatpush1.msra.mxu0 0.0
    %2988 = vmatprep.subr.mxu0 0.0
    %2989 = vmatpush1.msra.mxu0 0.0
    %2990 = vmatprep.subr.mxu0 0.0
    %2991 = vmatpush1.msra.mxu0 0.0
    %2992 = vmatprep.subr.mxu0 0.0
    %2993 = vmatpush1.msra.mxu0 0.0
    %2994 = vmatprep.subr.mxu0 0.0
    %2995 = vmatpush1.msra.mxu0 0.0
    %2996 = vmatprep.subr.mxu0 0.0
    %2997 = vmatpush1.msra.mxu0 0.0
    %2998 = vmatprep.subr.mxu0 0.0
    %2999 = vmatpush1.msra.mxu0 0.0
    %3000 = vmatprep.subr.mxu0 0.0
    %3001 = vmatpush1.msra.mxu0 0.0
    %3002 = vmatprep.subr.mxu0 0.0
    %3003 = vmatpush1.msra.mxu0 0.0
    %3004 = vmatprep.subr.mxu0 0.0
    %3005 = vmatpush1.msra.mxu0 0.0
    %3006 = vmatprep.subr.mxu0 0.0
    %3007 = vmatpush1.msra.mxu0 0.0
    %3008 = vmatprep.subr.mxu0 0.0
    %3009 = vmatpush1.msra.mxu0 0.0
    %3010 = vmatprep.subr.mxu0 0.0
    %3011 = vmatpush1.msra.mxu0 0.0
    %3012 = vmatprep.subr.mxu0 0.0
    %3013 = vmatpush1.msra.mxu0 0.0
    %3014 = vmatprep.subr.mxu0 0.0
    %3015 = vmatpush1.msra.mxu0 0.0
    %3016 = vmatprep.subr.mxu0 0.0
    %3017 = vmatpush1.msra.mxu0 0.0
    %3018 = vmatprep.subr.mxu0 0.0
    %3019 = vmatpush1.msra.mxu0 0.0
    %3020 = vmatprep.subr.mxu0 0.0
    %3021 = vmatpush1.msra.mxu0 0.0
    %3022 = vmatprep.subr.mxu0 0.0
    %3023 = vmatpush1.msra.mxu0 0.0
    %3024 = vmatprep.subr.mxu0 0.0
    %3025 = vmatpush1.msra.mxu0 0.0
    %3026 = vmatprep.subr.mxu0 0.0
    %3027 = vmatpush1.msra.mxu0 0.0
    %3028 = vmatprep.subr.mxu0 0.0
    %3029 = vmatpush1.msra.mxu0 0.0
    %3030 = vmatprep.subr.mxu0 0.0
    %3031 = vmatpush1.msra.mxu0 0.0
    %3032 = vmatprep.subr.mxu0 0.0
    %3033 = vmatpush1.msra.mxu0 0.0
    %3034 = vmatprep.subr.mxu0 0.0
    %3035 = vmatpush1.msra.mxu0 0.0
    %3036 = vmatprep.subr.mxu0 0.0
    %3037 = vmatpush1.msra.mxu0 0.0
    %3038 = vmatprep.subr.mxu0 0.0
    %3039 = vmatpush1.msra.mxu0 0.0
    %3040 = vmatprep.subr.mxu0 0.0
    %3041 = vmatpush1.msra.mxu0 0.0
    %3042 = vmatprep.mubr.f32.mxu0 0.0
    %3043 = vmatmul.mubr.f32.gmra.mrb[0].mxu0 %v2836
    %v3044 = vpop.f32.mrb[0].mxu0
    %v3045 = vadd.f32 %v1786, %v3044
    %v3046 = vpop.f32.mrb[0].mxu0
    %3047 = vdwg.mxu0
    %v3048 = vadd.f32 %v2832, %v2905
    %v3049 = vxor.u32 %v3048, 2147483648
    %v3050 = vmul.f32 %v3049, 1.442695
    %v3051 = vpow.pop %v3050
    %v3052 = vadd.f32 %v3051, 1.0
    %v3053 = vrcp.pop %v3052
    %v3054 = vmul.f32 1.0, %v3053
    %v3055 = vadd.f32 %v2833, %v2975
    %v3056 = vxor.u32 %v3055, 2147483648
    %v3057 = vmul.f32 %v3056, 1.442695
    %v3058 = vpow.pop %v3057
    %v3059 = vadd.f32 %v3058, 1.0
    %v3060 = vrcp.pop %v3059
    %v3061 = vmul.f32 1.0, %v3060
    %v3062 = vmul.f32 %v3054, %v3045
    %v3063 = vadd.f32 %v2834, %v3062
    %v3064 = vtanh.pop %v3063
    %v3065 = vsub.f32 1.0, %v3061
    %v3066 = vmul.f32 %v3065, %v3064
    %v3067 = vmul.f32 %v3061, %v2830
    %v3068 = vadd.f32 %v3066, %v3067
    %3069 = vst.msk [vmem:[#allocation5 + $0x28] sm:$0xff] %vm453, %v3068
    %v3070 = vld [vmem:[#allocation2 + $0x30] sm:$0xff]
    %v3071 = vld [vmem:[#allocation3 + $0x30] sm:$0xff]
    %v3072 = vld [vmem:[#allocation4 + $0x30] sm:$0xff]
    %v3074 = vsel %vm453, %v3068, 0
    %3076 = vmatprep.subr.mxu0 0.0
    %3077 = vmatpush1.msra.mxu0 %v1605
    %3078 = vmatprep.subr.mxu0 0.0
    %3079 = vmatpush1.msra.mxu0 %v1606
    %3080 = vmatprep.subr.mxu0 0.0
    %3081 = vmatpush1.msra.mxu0 %v1607
    %3082 = vmatprep.subr.mxu0 0.0
    %3083 = vmatpush1.msra.mxu0 %v1608
    %3084 = vmatprep.subr.mxu0 0.0
    %3085 = vmatpush1.msra.mxu0 0.0
    %3086 = vmatprep.subr.mxu0 0.0
    %3087 = vmatpush1.msra.mxu0 0.0
    %3088 = vmatprep.subr.mxu0 0.0
    %3089 = vmatpush1.msra.mxu0 0.0
    %3090 = vmatprep.subr.mxu0 0.0
    %3091 = vmatpush1.msra.mxu0 0.0
    %3092 = vmatprep.subr.mxu0 0.0
    %3093 = vmatpush1.msra.mxu0 0.0
    %3094 = vmatprep.subr.mxu0 0.0
    %3095 = vmatpush1.msra.mxu0 0.0
    %3096 = vmatprep.subr.mxu0 0.0
    %3097 = vmatpush1.msra.mxu0 0.0
    %3098 = vmatprep.subr.mxu0 0.0
    %3099 = vmatpush1.msra.mxu0 0.0
    %3100 = vmatprep.subr.mxu0 0.0
    %3101 = vmatpush1.msra.mxu0 0.0
    %3102 = vmatprep.subr.mxu0 0.0
    %3103 = vmatpush1.msra.mxu0 0.0
    %3104 = vmatprep.subr.mxu0 0.0
    %3105 = vmatpush1.msra.mxu0 0.0
    %3106 = vmatprep.subr.mxu0 0.0
    %3107 = vmatpush1.msra.mxu0 0.0
    %3108 = vmatprep.subr.mxu0 0.0
    %3109 = vmatpush1.msra.mxu0 0.0
    %3110 = vmatprep.subr.mxu0 0.0
    %3111 = vmatpush1.msra.mxu0 0.0
    %3112 = vmatprep.subr.mxu0 0.0
    %3113 = vmatpush1.msra.mxu0 0.0
    %3114 = vmatprep.subr.mxu0 0.0
    %3115 = vmatpush1.msra.mxu0 0.0
    %3116 = vmatprep.subr.mxu0 0.0
    %3117 = vmatpush1.msra.mxu0 0.0
    %3118 = vmatprep.subr.mxu0 0.0
    %3119 = vmatpush1.msra.mxu0 0.0
    %3120 = vmatprep.subr.mxu0 0.0
    %3121 = vmatpush1.msra.mxu0 0.0
    %3122 = vmatprep.subr.mxu0 0.0
    %3123 = vmatpush1.msra.mxu0 0.0
    %3124 = vmatprep.subr.mxu0 0.0
    %3125 = vmatpush1.msra.mxu0 0.0
    %3126 = vmatprep.subr.mxu0 0.0
    %3127 = vmatpush1.msra.mxu0 0.0
    %3128 = vmatprep.subr.mxu0 0.0
    %3129 = vmatpush1.msra.mxu0 0.0
    %3130 = vmatprep.subr.mxu0 0.0
    %3131 = vmatpush1.msra.mxu0 0.0
    %3132 = vmatprep.subr.mxu0 0.0
    %3133 = vmatpush1.msra.mxu0 0.0
    %3134 = vmatprep.subr.mxu0 0.0
    %3135 = vmatpush1.msra.mxu0 0.0
    %3136 = vmatprep.subr.mxu0 0.0
    %3137 = vmatpush1.msra.mxu0 0.0
    %3138 = vmatprep.subr.mxu0 0.0
    %3139 = vmatpush1.msra.mxu0 0.0
    %3140 = vmatprep.mubr.f32.mxu0 0.0
    %3141 = vmatmul.mubr.f32.gmra.mrb[0].mxu0 %v3074
    %v3142 = vpop.f32.mrb[0].mxu0
    %v3143 = vadd.f32 %v1631, %v3142
    %v3144 = vpop.f32.mrb[0].mxu0
    %3145 = vdwg.mxu0
    %3146 = vmatprep.subr.mxu0 0.0
    %3147 = vmatpush1.msra.mxu0 %v1610
    %3148 = vmatprep.subr.mxu0 0.0
    %3149 = vmatpush1.msra.mxu0 %v1611
    %3150 = vmatprep.subr.mxu0 0.0
    %3151 = vmatpush1.msra.mxu0 %v1612
    %3152 = vmatprep.subr.mxu0 0.0
    %3153 = vmatpush1.msra.mxu0 %v1613
    %3154 = vmatprep.subr.mxu0 0.0
    %3155 = vmatpush1.msra.mxu0 0.0
    %3156 = vmatprep.subr.mxu0 0.0
    %3157 = vmatpush1.msra.mxu0 0.0
    %3158 = vmatprep.subr.mxu0 0.0
    %3159 = vmatpush1.msra.mxu0 0.0
    %3160 = vmatprep.subr.mxu0 0.0
    %3161 = vmatpush1.msra.mxu0 0.0
    %3162 = vmatprep.subr.mxu0 0.0
    %3163 = vmatpush1.msra.mxu0 0.0
    %3164 = vmatprep.subr.mxu0 0.0
    %3165 = vmatpush1.msra.mxu0 0.0
    %3166 = vmatprep.subr.mxu0 0.0
    %3167 = vmatpush1.msra.mxu0 0.0
    %3168 = vmatprep.subr.mxu0 0.0
    %3169 = vmatpush1.msra.mxu0 0.0
    %3170 = vmatprep.subr.mxu0 0.0
    %3171 = vmatpush1.msra.mxu0 0.0
    %3172 = vmatprep.subr.mxu0 0.0
    %3173 = vmatpush1.msra.mxu0 0.0
    %3174 = vmatprep.subr.mxu0 0.0
    %3175 = vmatpush1.msra.mxu0 0.0
    %3176 = vmatprep.subr.mxu0 0.0
    %3177 = vmatpush1.msra.mxu0 0.0
    %3178 = vmatprep.subr.mxu0 0.0
    %3179 = vmatpush1.msra.mxu0 0.0
    %3180 = vmatprep.subr.mxu0 0.0
    %3181 = vmatpush1.msra.mxu0 0.0
    %3182 = vmatprep.subr.mxu0 0.0
    %3183 = vmatpush1.msra.mxu0 0.0
    %3184 = vmatprep.subr.mxu0 0.0
    %3185 = vmatpush1.msra.mxu0 0.0
    %3186 = vmatprep.subr.mxu0 0.0
    %3187 = vmatpush1.msra.mxu0 0.0
    %3188 = vmatprep.subr.mxu0 0.0
    %3189 = vmatpush1.msra.mxu0 0.0
    %3190 = vmatprep.subr.mxu0 0.0
    %3191 = vmatpush1.msra.mxu0 0.0
    %3192 = vmatprep.subr.mxu0 0.0
    %3193 = vmatpush1.msra.mxu0 0.0
    %3194 = vmatprep.subr.mxu0 0.0
    %3195 = vmatpush1.msra.mxu0 0.0
    %3196 = vmatprep.subr.mxu0 0.0
    %3197 = vmatpush1.msra.mxu0 0.0
    %3198 = vmatprep.subr.mxu0 0.0
    %3199 = vmatpush1.msra.mxu0 0.0
    %3200 = vmatprep.subr.mxu0 0.0
    %3201 = vmatpush1.msra.mxu0 0.0
    %3202 = vmatprep.subr.mxu0 0.0
    %3203 = vmatpush1.msra.mxu0 0.0
    %3204 = vmatprep.subr.mxu0 0.0
    %3205 = vmatpush1.msra.mxu0 0.0
    %3206 = vmatprep.subr.mxu0 0.0
    %3207 = vmatpush1.msra.mxu0 0.0
    %3208 = vmatprep.subr.mxu0 0.0
    %3209 = vmatpush1.msra.mxu0 0.0
    %3210 = vmatprep.mubr.f32.mxu0 0.0
    %3211 = vmatmul.mubr.f32.gmra.mrb[0].mxu0 %v3074
    %v3212 = vpop.f32.mrb[0].mxu0
    %v3213 = vadd.f32 %v1710, %v3212
    %v3214 = vpop.f32.mrb[0].mxu0
    %3215 = vdwg.mxu0
    %3216 = vmatprep.subr.mxu0 0.0
    %3217 = vmatpush1.msra.mxu0 %v1615
    %3218 = vmatprep.subr.mxu0 0.0
    %3219 = vmatpush1.msra.mxu0 %v1616
    %3220 = vmatprep.subr.mxu0 0.0
    %3221 = vmatpush1.msra.mxu0 %v1617
    %3222 = vmatprep.subr.mxu0 0.0
    %3223 = vmatpush1.msra.mxu0 %v1618
    %3224 = vmatprep.subr.mxu0 0.0
    %3225 = vmatpush1.msra.mxu0 0.0
    %3226 = vmatprep.subr.mxu0 0.0
    %3227 = vmatpush1.msra.mxu0 0.0
    %3228 = vmatprep.subr.mxu0 0.0
    %3229 = vmatpush1.msra.mxu0 0.0
    %3230 = vmatprep.subr.mxu0 0.0
    %3231 = vmatpush1.msra.mxu0 0.0
    %3232 = vmatprep.subr.mxu0 0.0
    %3233 = vmatpush1.msra.mxu0 0.0
    %3234 = vmatprep.subr.mxu0 0.0
    %3235 = vmatpush1.msra.mxu0 0.0
    %3236 = vmatprep.subr.mxu0 0.0
    %3237 = vmatpush1.msra.mxu0 0.0
    %3238 = vmatprep.subr.mxu0 0.0
    %3239 = vmatpush1.msra.mxu0 0.0
    %3240 = vmatprep.subr.mxu0 0.0
    %3241 = vmatpush1.msra.mxu0 0.0
    %3242 = vmatprep.subr.mxu0 0.0
    %3243 = vmatpush1.msra.mxu0 0.0
    %3244 = vmatprep.subr.mxu0 0.0
    %3245 = vmatpush1.msra.mxu0 0.0
    %3246 = vmatprep.subr.mxu0 0.0
    %3247 = vmatpush1.msra.mxu0 0.0
    %3248 = vmatprep.subr.mxu0 0.0
    %3249 = vmatpush1.msra.mxu0 0.0
    %3250 = vmatprep.subr.mxu0 0.0
    %3251 = vmatpush1.msra.mxu0 0.0
    %3252 = vmatprep.subr.mxu0 0.0
    %3253 = vmatpush1.msra.mxu0 0.0
    %3254 = vmatprep.subr.mxu0 0.0
    %3255 = vmatpush1.msra.mxu0 0.0
    %3256 = vmatprep.subr.mxu0 0.0
    %3257 = vmatpush1.msra.mxu0 0.0
    %3258 = vmatprep.subr.mxu0 0.0
    %3259 = vmatpush1.msra.mxu0 0.0
    %3260 = vmatprep.subr.mxu0 0.0
    %3261 = vmatpush1.msra.mxu0 0.0
    %3262 = vmatprep.subr.mxu0 0.0
    %3263 = vmatpush1.msra.mxu0 0.0
    %3264 = vmatprep.subr.mxu0 0.0
    %3265 = vmatpush1.msra.mxu0 0.0
    %3266 = vmatprep.subr.mxu0 0.0
    %3267 = vmatpush1.msra.mxu0 0.0
    %3268 = vmatprep.subr.mxu0 0.0
    %3269 = vmatpush1.msra.mxu0 0.0
    %3270 = vmatprep.subr.mxu0 0.0
    %3271 = vmatpush1.msra.mxu0 0.0
    %3272 = vmatprep.subr.mxu0 0.0
    %3273 = vmatpush1.msra.mxu0 0.0
    %3274 = vmatprep.subr.mxu0 0.0
    %3275 = vmatpush1.msra.mxu0 0.0
    %3276 = vmatprep.subr.mxu0 0.0
    %3277 = vmatpush1.msra.mxu0 0.0
    %3278 = vmatprep.subr.mxu0 0.0
    %3279 = vmatpush1.msra.mxu0 0.0
    %3280 = vmatprep.mubr.f32.mxu0 0.0
    %3281 = vmatmul.mubr.f32.gmra.mrb[0].mxu0 %v3074
    %v3282 = vpop.f32.mrb[0].mxu0
    %v3283 = vadd.f32 %v1786, %v3282
    %v3284 = vpop.f32.mrb[0].mxu0
    %3285 = vdwg.mxu0
    %v3286 = vadd.f32 %v3070, %v3143
    %v3287 = vxor.u32 %v3286, 2147483648
    %v3288 = vmul.f32 %v3287, 1.442695
    %v3289 = vpow.pop %v3288
    %v3290 = vadd.f32 %v3289, 1.0
    %v3291 = vrcp.pop %v3290
    %v3292 = vmul.f32 1.0, %v3291
    %v3293 = vadd.f32 %v3071, %v3213
    %v3294 = vxor.u32 %v3293, 2147483648
    %v3295 = vmul.f32 %v3294, 1.442695
    %v3296 = vpow.pop %v3295
    %v3297 = vadd.f32 %v3296, 1.0
    %v3298 = vrcp.pop %v3297
    %v3299 = vmul.f32 1.0, %v3298
    %v3300 = vmul.f32 %v3292, %v3283
    %v3301 = vadd.f32 %v3072, %v3300
    %v3302 = vtanh.pop %v3301
    %v3303 = vsub.f32 1.0, %v3299
    %v3304 = vmul.f32 %v3303, %v3302
    %v3305 = vmul.f32 %v3299, %v3068
    %v3306 = vadd.f32 %v3304, %v3305
    %3307 = vst.msk [vmem:[#allocation5 + $0x30] sm:$0xff] %vm453, %v3306
    %v3308 = vld [vmem:[#allocation2 + $0x38] sm:$0xff]
    %v3309 = vld [vmem:[#allocation3 + $0x38] sm:$0xff]
    %v3310 = vld [vmem:[#allocation4 + $0x38] sm:$0xff]
    %v3312 = vsel %vm453, %v3306, 0
    %3314 = vmatprep.subr.mxu0 0.0
    %3315 = vmatpush1.msra.mxu0 %v1605
    %3316 = vmatprep.subr.mxu0 0.0
    %3317 = vmatpush1.msra.mxu0 %v1606
    %3318 = vmatprep.subr.mxu0 0.0
    %3319 = vmatpush1.msra.mxu0 %v1607
    %3320 = vmatprep.subr.mxu0 0.0
    %3321 = vmatpush1.msra.mxu0 %v1608
    %3322 = vmatprep.subr.mxu0 0.0
    %3323 = vmatpush1.msra.mxu0 0.0
    %3324 = vmatprep.subr.mxu0 0.0
    %3325 = vmatpush1.msra.mxu0 0.0
    %3326 = vmatprep.subr.mxu0 0.0
    %3327 = vmatpush1.msra.mxu0 0.0
    %3328 = vmatprep.subr.mxu0 0.0
    %3329 = vmatpush1.msra.mxu0 0.0
    %3330 = vmatprep.subr.mxu0 0.0
    %3331 = vmatpush1.msra.mxu0 0.0
    %3332 = vmatprep.subr.mxu0 0.0
    %3333 = vmatpush1.msra.mxu0 0.0
    %3334 = vmatprep.subr.mxu0 0.0
    %3335 = vmatpush1.msra.mxu0 0.0
    %3336 = vmatprep.subr.mxu0 0.0
    %3337 = vmatpush1.msra.mxu0 0.0
    %3338 = vmatprep.subr.mxu0 0.0
    %3339 = vmatpush1.msra.mxu0 0.0
    %3340 = vmatprep.subr.mxu0 0.0
    %3341 = vmatpush1.msra.mxu0 0.0
    %3342 = vmatprep.subr.mxu0 0.0
    %3343 = vmatpush1.msra.mxu0 0.0
    %3344 = vmatprep.subr.mxu0 0.0
    %3345 = vmatpush1.msra.mxu0 0.0
    %3346 = vmatprep.subr.mxu0 0.0
    %3347 = vmatpush1.msra.mxu0 0.0
    %3348 = vmatprep.subr.mxu0 0.0
    %3349 = vmatpush1.msra.mxu0 0.0
    %3350 = vmatprep.subr.mxu0 0.0
    %3351 = vmatpush1.msra.mxu0 0.0
    %3352 = vmatprep.subr.mxu0 0.0
    %3353 = vmatpush1.msra.mxu0 0.0
    %3354 = vmatprep.subr.mxu0 0.0
    %3355 = vmatpush1.msra.mxu0 0.0
    %3356 = vmatprep.subr.mxu0 0.0
    %3357 = vmatpush1.msra.mxu0 0.0
    %3358 = vmatprep.subr.mxu0 0.0
    %3359 = vmatpush1.msra.mxu0 0.0
    %3360 = vmatprep.subr.mxu0 0.0
    %3361 = vmatpush1.msra.mxu0 0.0
    %3362 = vmatprep.subr.mxu0 0.0
    %3363 = vmatpush1.msra.mxu0 0.0
    %3364 = vmatprep.subr.mxu0 0.0
    %3365 = vmatpush1.msra.mxu0 0.0
    %3366 = vmatprep.subr.mxu0 0.0
    %3367 = vmatpush1.msra.mxu0 0.0
    %3368 = vmatprep.subr.mxu0 0.0
    %3369 = vmatpush1.msra.mxu0 0.0
    %3370 = vmatprep.subr.mxu0 0.0
    %3371 = vmatpush1.msra.mxu0 0.0
    %3372 = vmatprep.subr.mxu0 0.0
    %3373 = vmatpush1.msra.mxu0 0.0
    %3374 = vmatprep.subr.mxu0 0.0
    %3375 = vmatpush1.msra.mxu0 0.0
    %3376 = vmatprep.subr.mxu0 0.0
    %3377 = vmatpush1.msra.mxu0 0.0
    %3378 = vmatprep.mubr.f32.mxu0 0.0
    %3379 = vmatmul.mubr.f32.gmra.mrb[0].mxu0 %v3312
    %v3380 = vpop.f32.mrb[0].mxu0
    %v3381 = vadd.f32 %v1631, %v3380
    %v3382 = vpop.f32.mrb[0].mxu0
    %3383 = vdwg.mxu0
    %3384 = vmatprep.subr.mxu0 0.0
    %3385 = vmatpush1.msra.mxu0 %v1610
    %3386 = vmatprep.subr.mxu0 0.0
    %3387 = vmatpush1.msra.mxu0 %v1611
    %3388 = vmatprep.subr.mxu0 0.0
    %3389 = vmatpush1.msra.mxu0 %v1612
    %3390 = vmatprep.subr.mxu0 0.0
    %3391 = vmatpush1.msra.mxu0 %v1613
    %3392 = vmatprep.subr.mxu0 0.0
    %3393 = vmatpush1.msra.mxu0 0.0
    %3394 = vmatprep.subr.mxu0 0.0
    %3395 = vmatpush1.msra.mxu0 0.0
    %3396 = vmatprep.subr.mxu0 0.0
    %3397 = vmatpush1.msra.mxu0 0.0
    %3398 = vmatprep.subr.mxu0 0.0
    %3399 = vmatpush1.msra.mxu0 0.0
    %3400 = vmatprep.subr.mxu0 0.0
    %3401 = vmatpush1.msra.mxu0 0.0
    %3402 = vmatprep.subr.mxu0 0.0
    %3403 = vmatpush1.msra.mxu0 0.0
    %3404 = vmatprep.subr.mxu0 0.0
    %3405 = vmatpush1.msra.mxu0 0.0
    %3406 = vmatprep.subr.mxu0 0.0
    %3407 = vmatpush1.msra.mxu0 0.0
    %3408 = vmatprep.subr.mxu0 0.0
    %3409 = vmatpush1.msra.mxu0 0.0
    %3410 = vmatprep.subr.mxu0 0.0
    %3411 = vmatpush1.msra.mxu0 0.0
    %3412 = vmatprep.subr.mxu0 0.0
    %3413 = vmatpush1.msra.mxu0 0.0
    %3414 = vmatprep.subr.mxu0 0.0
    %3415 = vmatpush1.msra.mxu0 0.0
    %3416 = vmatprep.subr.mxu0 0.0
    %3417 = vmatpush1.msra.mxu0 0.0
    %3418 = vmatprep.subr.mxu0 0.0
    %3419 = vmatpush1.msra.mxu0 0.0
    %3420 = vmatprep.subr.mxu0 0.0
    %3421 = vmatpush1.msra.mxu0 0.0
    %3422 = vmatprep.subr.mxu0 0.0
    %3423 = vmatpush1.msra.mxu0 0.0
    %3424 = vmatprep.subr.mxu0 0.0
    %3425 = vmatpush1.msra.mxu0 0.0
    %3426 = vmatprep.subr.mxu0 0.0
    %3427 = vmatpush1.msra.mxu0 0.0
    %3428 = vmatprep.subr.mxu0 0.0
    %3429 = vmatpush1.msra.mxu0 0.0
    %3430 = vmatprep.subr.mxu0 0.0
    %3431 = vmatpush1.msra.mxu0 0.0
    %3432 = vmatprep.subr.mxu0 0.0
    %3433 = vmatpush1.msra.mxu0 0.0
    %3434 = vmatprep.subr.mxu0 0.0
    %3435 = vmatpush1.msra.mxu0 0.0
    %3436 = vmatprep.subr.mxu0 0.0
    %3437 = vmatpush1.msra.mxu0 0.0
    %3438 = vmatprep.subr.mxu0 0.0
    %3439 = vmatpush1.msra.mxu0 0.0
    %3440 = vmatprep.subr.mxu0 0.0
    %3441 = vmatpush1.msra.mxu0 0.0
    %3442 = vmatprep.subr.mxu0 0.0
    %3443 = vmatpush1.msra.mxu0 0.0
    %3444 = vmatprep.subr.mxu0 0.0
    %3445 = vmatpush1.msra.mxu0 0.0
    %3446 = vmatprep.subr.mxu0 0.0
    %3447 = vmatpush1.msra.mxu0 0.0
    %3448 = vmatprep.mubr.f32.mxu0 0.0
    %3449 = vmatmul.mubr.f32.gmra.mrb[0].mxu0 %v3312
    %v3450 = vpop.f32.mrb[0].mxu0
    %v3451 = vadd.f32 %v1710, %v3450
    %v3452 = vpop.f32.mrb[0].mxu0
    %3453 = vdwg.mxu0
    %3454 = vmatprep.subr.mxu0 0.0
    %3455 = vmatpush1.msra.mxu0 %v1615
    %3456 = vmatprep.subr.mxu0 0.0
    %3457 = vmatpush1.msra.mxu0 %v1616
    %3458 = vmatprep.subr.mxu0 0.0
    %3459 = vmatpush1.msra.mxu0 %v1617
    %3460 = vmatprep.subr.mxu0 0.0
    %3461 = vmatpush1.msra.mxu0 %v1618
    %3462 = vmatprep.subr.mxu0 0.0
    %3463 = vmatpush1.msra.mxu0 0.0
    %3464 = vmatprep.subr.mxu0 0.0
    %3465 = vmatpush1.msra.mxu0 0.0
    %3466 = vmatprep.subr.mxu0 0.0
    %3467 = vmatpush1.msra.mxu0 0.0
    %3468 = vmatprep.subr.mxu0 0.0
    %3469 = vmatpush1.msra.mxu0 0.0
    %3470 = vmatprep.subr.mxu0 0.0
    %3471 = vmatpush1.msra.mxu0 0.0
    %3472 = vmatprep.subr.mxu0 0.0
    %3473 = vmatpush1.msra.mxu0 0.0
    %3474 = vmatprep.subr.mxu0 0.0
    %3475 = vmatpush1.msra.mxu0 0.0
    %3476 = vmatprep.subr.mxu0 0.0
    %3477 = vmatpush1.msra.mxu0 0.0
    %3478 = vmatprep.subr.mxu0 0.0
    %3479 = vmatpush1.msra.mxu0 0.0
    %3480 = vmatprep.subr.mxu0 0.0
    %3481 = vmatpush1.msra.mxu0 0.0
    %3482 = vmatprep.subr.mxu0 0.0
    %3483 = vmatpush1.msra.mxu0 0.0
    %3484 = vmatprep.subr.mxu0 0.0
    %3485 = vmatpush1.msra.mxu0 0.0
    %3486 = vmatprep.subr.mxu0 0.0
    %3487 = vmatpush1.msra.mxu0 0.0
    %3488 = vmatprep.subr.mxu0 0.0
    %3489 = vmatpush1.msra.mxu0 0.0
    %3490 = vmatprep.subr.mxu0 0.0
    %3491 = vmatpush1.msra.mxu0 0.0
    %3492 = vmatprep.subr.mxu0 0.0
    %3493 = vmatpush1.msra.mxu0 0.0
    %3494 = vmatprep.subr.mxu0 0.0
    %3495 = vmatpush1.msra.mxu0 0.0
    %3496 = vmatprep.subr.mxu0 0.0
    %3497 = vmatpush1.msra.mxu0 0.0
    %3498 = vmatprep.subr.mxu0 0.0
    %3499 = vmatpush1.msra.mxu0 0.0
    %3500 = vmatprep.subr.mxu0 0.0
    %3501 = vmatpush1.msra.mxu0 0.0
    %3502 = vmatprep.subr.mxu0 0.0
    %3503 = vmatpush1.msra.mxu0 0.0
    %3504 = vmatprep.subr.mxu0 0.0
    %3505 = vmatpush1.msra.mxu0 0.0
    %3506 = vmatprep.subr.mxu0 0.0
    %3507 = vmatpush1.msra.mxu0 0.0
    %3508 = vmatprep.subr.mxu0 0.0
    %3509 = vmatpush1.msra.mxu0 0.0
    %3510 = vmatprep.subr.mxu0 0.0
    %3511 = vmatpush1.msra.mxu0 0.0
    %3512 = vmatprep.subr.mxu0 0.0
    %3513 = vmatpush1.msra.mxu0 0.0
    %3514 = vmatprep.subr.mxu0 0.0
    %3515 = vmatpush1.msra.mxu0 0.0
    %3516 = vmatprep.subr.mxu0 0.0
    %3517 = vmatpush1.msra.mxu0 0.0
    %3518 = vmatprep.mubr.f32.mxu0 0.0
    %3519 = vmatmul.mubr.f32.gmra.mrb[0].mxu0 %v3312
    %v3520 = vpop.f32.mrb[0].mxu0
    %v3521 = vadd.f32 %v1786, %v3520
    %v3522 = vpop.f32.mrb[0].mxu0
    %3523 = vdwg.mxu0
    %v3524 = vadd.f32 %v3308, %v3381
    %v3525 = vxor.u32 %v3524, 2147483648
    %v3526 = vmul.f32 %v3525, 1.442695
    %v3527 = vpow.pop %v3526
    %v3528 = vadd.f32 %v3527, 1.0
    %v3529 = vrcp.pop %v3528
    %v3530 = vmul.f32 1.0, %v3529
    %v3531 = vadd.f32 %v3309, %v3451
    %v3532 = vxor.u32 %v3531, 2147483648
    %v3533 = vmul.f32 %v3532, 1.442695
    %v3534 = vpow.pop %v3533
    %v3535 = vadd.f32 %v3534, 1.0
    %v3536 = vrcp.pop %v3535
    %v3537 = vmul.f32 1.0, %v3536
    %v3538 = vmul.f32 %v3530, %v3521
    %v3539 = vadd.f32 %v3310, %v3538
    %v3540 = vtanh.pop %v3539
    %v3541 = vsub.f32 1.0, %v3537
    %v3542 = vmul.f32 %v3541, %v3540
    %v3543 = vmul.f32 %v3537, %v3306
    %v3544 = vadd.f32 %v3542, %v3543
    %3545 = vst.msk [vmem:[#allocation5 + $0x38] sm:$0xff] %vm453, %v3544
    %v3546 = vld [vmem:[#allocation2 + $0x40] sm:$0xff]
    %v3547 = vld [vmem:[#allocation3 + $0x40] sm:$0xff]
    %v3548 = vld [vmem:[#allocation4 + $0x40] sm:$0xff]
    %v3550 = vsel %vm453, %v3544, 0
    %3552 = vmatprep.subr.mxu0 0.0
    %3553 = vmatpush1.msra.mxu0 %v1605
    %3554 = vmatprep.subr.mxu0 0.0
    %3555 = vmatpush1.msra.mxu0 %v1606
    %3556 = vmatprep.subr.mxu0 0.0
    %3557 = vmatpush1.msra.mxu0 %v1607
    %3558 = vmatprep.subr.mxu0 0.0
    %3559 = vmatpush1.msra.mxu0 %v1608
    %3560 = vmatprep.subr.mxu0 0.0
    %3561 = vmatpush1.msra.mxu0 0.0
    %3562 = vmatprep.subr.mxu0 0.0
    %3563 = vmatpush1.msra.mxu0 0.0
    %3564 = vmatprep.subr.mxu0 0.0
    %3565 = vmatpush1.msra.mxu0 0.0
    %3566 = vmatprep.subr.mxu0 0.0
    %3567 = vmatpush1.msra.mxu0 0.0
    %3568 = vmatprep.subr.mxu0 0.0
    %3569 = vmatpush1.msra.mxu0 0.0
    %3570 = vmatprep.subr.mxu0 0.0
    %3571 = vmatpush1.msra.mxu0 0.0
    %3572 = vmatprep.subr.mxu0 0.0
    %3573 = vmatpush1.msra.mxu0 0.0
    %3574 = vmatprep.subr.mxu0 0.0
    %3575 = vmatpush1.msra.mxu0 0.0
    %3576 = vmatprep.subr.mxu0 0.0
    %3577 = vmatpush1.msra.mxu0 0.0
    %3578 = vmatprep.subr.mxu0 0.0
    %3579 = vmatpush1.msra.mxu0 0.0
    %3580 = vmatprep.subr.mxu0 0.0
    %3581 = vmatpush1.msra.mxu0 0.0
    %3582 = vmatprep.subr.mxu0 0.0
    %3583 = vmatpush1.msra.mxu0 0.0
    %3584 = vmatprep.subr.mxu0 0.0
    %3585 = vmatpush1.msra.mxu0 0.0
    %3586 = vmatprep.subr.mxu0 0.0
    %3587 = vmatpush1.msra.mxu0 0.0
    %3588 = vmatprep.subr.mxu0 0.0
    %3589 = vmatpush1.msra.mxu0 0.0
    %3590 = vmatprep.subr.mxu0 0.0
    %3591 = vmatpush1.msra.mxu0 0.0
    %3592 = vmatprep.subr.mxu0 0.0
    %3593 = vmatpush1.msra.mxu0 0.0
    %3594 = vmatprep.subr.mxu0 0.0
    %3595 = vmatpush1.msra.mxu0 0.0
    %3596 = vmatprep.subr.mxu0 0.0
    %3597 = vmatpush1.msra.mxu0 0.0
    %3598 = vmatprep.subr.mxu0 0.0
    %3599 = vmatpush1.msra.mxu0 0.0
    %3600 = vmatprep.subr.mxu0 0.0
    %3601 = vmatpush1.msra.mxu0 0.0
    %3602 = vmatprep.subr.mxu0 0.0
    %3603 = vmatpush1.msra.mxu0 0.0
    %3604 = vmatprep.subr.mxu0 0.0
    %3605 = vmatpush1.msra.mxu0 0.0
    %3606 = vmatprep.subr.mxu0 0.0
    %3607 = vmatpush1.msra.mxu0 0.0
    %3608 = vmatprep.subr.mxu0 0.0
    %3609 = vmatpush1.msra.mxu0 0.0
    %3610 = vmatprep.subr.mxu0 0.0
    %3611 = vmatpush1.msra.mxu0 0.0
    %3612 = vmatprep.subr.mxu0 0.0
    %3613 = vmatpush1.msra.mxu0 0.0
    %3614 = vmatprep.subr.mxu0 0.0
    %3615 = vmatpush1.msra.mxu0 0.0
    %3616 = vmatprep.mubr.f32.mxu0 0.0
    %3617 = vmatmul.mubr.f32.gmra.mrb[0].mxu0 %v3550
    %v3618 = vpop.f32.mrb[0].mxu0
    %v3619 = vadd.f32 %v1631, %v3618
    %v3620 = vpop.f32.mrb[0].mxu0
    %3621 = vdwg.mxu0
    %3622 = vmatprep.subr.mxu0 0.0
    %3623 = vmatpush1.msra.mxu0 %v1610
    %3624 = vmatprep.subr.mxu0 0.0
    %3625 = vmatpush1.msra.mxu0 %v1611
    %3626 = vmatprep.subr.mxu0 0.0
    %3627 = vmatpush1.msra.mxu0 %v1612
    %3628 = vmatprep.subr.mxu0 0.0
    %3629 = vmatpush1.msra.mxu0 %v1613
    %3630 = vmatprep.subr.mxu0 0.0
    %3631 = vmatpush1.msra.mxu0 0.0
    %3632 = vmatprep.subr.mxu0 0.0
    %3633 = vmatpush1.msra.mxu0 0.0
    %3634 = vmatprep.subr.mxu0 0.0
    %3635 = vmatpush1.msra.mxu0 0.0
    %3636 = vmatprep.subr.mxu0 0.0
    %3637 = vmatpush1.msra.mxu0 0.0
    %3638 = vmatprep.subr.mxu0 0.0
    %3639 = vmatpush1.msra.mxu0 0.0
    %3640 = vmatprep.subr.mxu0 0.0
    %3641 = vmatpush1.msra.mxu0 0.0
    %3642 = vmatprep.subr.mxu0 0.0
    %3643 = vmatpush1.msra.mxu0 0.0
    %3644 = vmatprep.subr.mxu0 0.0
    %3645 = vmatpush1.msra.mxu0 0.0
    %3646 = vmatprep.subr.mxu0 0.0
    %3647 = vmatpush1.msra.mxu0 0.0
    %3648 = vmatprep.subr.mxu0 0.0
    %3649 = vmatpush1.msra.mxu0 0.0
    %3650 = vmatprep.subr.mxu0 0.0
    %3651 = vmatpush1.msra.mxu0 0.0
    %3652 = vmatprep.subr.mxu0 0.0
    %3653 = vmatpush1.msra.mxu0 0.0
    %3654 = vmatprep.subr.mxu0 0.0
    %3655 = vmatpush1.msra.mxu0 0.0
    %3656 = vmatprep.subr.mxu0 0.0
    %3657 = vmatpush1.msra.mxu0 0.0
    %3658 = vmatprep.subr.mxu0 0.0
    %3659 = vmatpush1.msra.mxu0 0.0
    %3660 = vmatprep.subr.mxu0 0.0
    %3661 = vmatpush1.msra.mxu0 0.0
    %3662 = vmatprep.subr.mxu0 0.0
    %3663 = vmatpush1.msra.mxu0 0.0
    %3664 = vmatprep.subr.mxu0 0.0
    %3665 = vmatpush1.msra.mxu0 0.0
    %3666 = vmatprep.subr.mxu0 0.0
    %3667 = vmatpush1.msra.mxu0 0.0
    %3668 = vmatprep.subr.mxu0 0.0
    %3669 = vmatpush1.msra.mxu0 0.0
    %3670 = vmatprep.subr.mxu0 0.0
    %3671 = vmatpush1.msra.mxu0 0.0
    %3672 = vmatprep.subr.mxu0 0.0
    %3673 = vmatpush1.msra.mxu0 0.0
    %3674 = vmatprep.subr.mxu0 0.0
    %3675 = vmatpush1.msra.mxu0 0.0
    %3676 = vmatprep.subr.mxu0 0.0
    %3677 = vmatpush1.msra.mxu0 0.0
    %3678 = vmatprep.subr.mxu0 0.0
    %3679 = vmatpush1.msra.mxu0 0.0
    %3680 = vmatprep.subr.mxu0 0.0
    %3681 = vmatpush1.msra.mxu0 0.0
    %3682 = vmatprep.subr.mxu0 0.0
    %3683 = vmatpush1.msra.mxu0 0.0
    %3684 = vmatprep.subr.mxu0 0.0
    %3685 = vmatpush1.msra.mxu0 0.0
    %3686 = vmatprep.mubr.f32.mxu0 0.0
    %3687 = vmatmul.mubr.f32.gmra.mrb[0].mxu0 %v3550
    %v3688 = vpop.f32.mrb[0].mxu0
    %v3689 = vadd.f32 %v1710, %v3688
    %v3690 = vpop.f32.mrb[0].mxu0
    %3691 = vdwg.mxu0
    %3692 = vmatprep.subr.mxu0 0.0
    %3693 = vmatpush1.msra.mxu0 %v1615
    %3694 = vmatprep.subr.mxu0 0.0
    %3695 = vmatpush1.msra.mxu0 %v1616
    %3696 = vmatprep.subr.mxu0 0.0
    %3697 = vmatpush1.msra.mxu0 %v1617
    %3698 = vmatprep.subr.mxu0 0.0
    %3699 = vmatpush1.msra.mxu0 %v1618
    %3700 = vmatprep.subr.mxu0 0.0
    %3701 = vmatpush1.msra.mxu0 0.0
    %3702 = vmatprep.subr.mxu0 0.0
    %3703 = vmatpush1.msra.mxu0 0.0
    %3704 = vmatprep.subr.mxu0 0.0
    %3705 = vmatpush1.msra.mxu0 0.0
    %3706 = vmatprep.subr.mxu0 0.0
    %3707 = vmatpush1.msra.mxu0 0.0
    %3708 = vmatprep.subr.mxu0 0.0
    %3709 = vmatpush1.msra.mxu0 0.0
    %3710 = vmatprep.subr.mxu0 0.0
    %3711 = vmatpush1.msra.mxu0 0.0
    %3712 = vmatprep.subr.mxu0 0.0
    %3713 = vmatpush1.msra.mxu0 0.0
    %3714 = vmatprep.subr.mxu0 0.0
    %3715 = vmatpush1.msra.mxu0 0.0
    %3716 = vmatprep.subr.mxu0 0.0
    %3717 = vmatpush1.msra.mxu0 0.0
    %3718 = vmatprep.subr.mxu0 0.0
    %3719 = vmatpush1.msra.mxu0 0.0
    %3720 = vmatprep.subr.mxu0 0.0
    %3721 = vmatpush1.msra.mxu0 0.0
    %3722 = vmatprep.subr.mxu0 0.0
    %3723 = vmatpush1.msra.mxu0 0.0
    %3724 = vmatprep.subr.mxu0 0.0
    %3725 = vmatpush1.msra.mxu0 0.0
    %3726 = vmatprep.subr.mxu0 0.0
    %3727 = vmatpush1.msra.mxu0 0.0
    %3728 = vmatprep.subr.mxu0 0.0
    %3729 = vmatpush1.msra.mxu0 0.0
    %3730 = vmatprep.subr.mxu0 0.0
    %3731 = vmatpush1.msra.mxu0 0.0
    %3732 = vmatprep.subr.mxu0 0.0
    %3733 = vmatpush1.msra.mxu0 0.0
    %3734 = vmatprep.subr.mxu0 0.0
    %3735 = vmatpush1.msra.mxu0 0.0
    %3736 = vmatprep.subr.mxu0 0.0
    %3737 = vmatpush1.msra.mxu0 0.0
    %3738 = vmatprep.subr.mxu0 0.0
    %3739 = vmatpush1.msra.mxu0 0.0
    %3740 = vmatprep.subr.mxu0 0.0
    %3741 = vmatpush1.msra.mxu0 0.0
    %3742 = vmatprep.subr.mxu0 0.0
    %3743 = vmatpush1.msra.mxu0 0.0
    %3744 = vmatprep.subr.mxu0 0.0
    %3745 = vmatpush1.msra.mxu0 0.0
    %3746 = vmatprep.subr.mxu0 0.0
    %3747 = vmatpush1.msra.mxu0 0.0
    %3748 = vmatprep.subr.mxu0 0.0
    %3749 = vmatpush1.msra.mxu0 0.0
    %3750 = vmatprep.subr.mxu0 0.0
    %3751 = vmatpush1.msra.mxu0 0.0
    %3752 = vmatprep.subr.mxu0 0.0
    %3753 = vmatpush1.msra.mxu0 0.0
    %3754 = vmatprep.subr.mxu0 0.0
    %3755 = vmatpush1.msra.mxu0 0.0
    %3756 = vmatprep.mubr.f32.mxu0 0.0
    %3757 = vmatmul.mubr.f32.gmra.mrb[0].mxu0 %v3550
    %v3758 = vpop.f32.mrb[0].mxu0
    %v3759 = vadd.f32 %v1786, %v3758
    %v3760 = vpop.f32.mrb[0].mxu0
    %3761 = vdwg.mxu0
    %v3762 = vadd.f32 %v3546, %v3619
    %v3763 = vxor.u32 %v3762, 2147483648
    %v3764 = vmul.f32 %v3763, 1.442695
    %v3765 = vpow.pop %v3764
    %v3766 = vadd.f32 %v3765, 1.0
    %v3767 = vrcp.pop %v3766
    %v3768 = vmul.f32 1.0, %v3767
    %v3769 = vadd.f32 %v3547, %v3689
    %v3770 = vxor.u32 %v3769, 2147483648
    %v3771 = vmul.f32 %v3770, 1.442695
    %v3772 = vpow.pop %v3771
    %v3773 = vadd.f32 %v3772, 1.0
    %v3774 = vrcp.pop %v3773
    %v3775 = vmul.f32 1.0, %v3774
    %v3776 = vmul.f32 %v3768, %v3759
    %v3777 = vadd.f32 %v3548, %v3776
    %v3778 = vtanh.pop %v3777
    %v3779 = vsub.f32 1.0, %v3775
    %v3780 = vmul.f32 %v3779, %v3778
    %v3781 = vmul.f32 %v3775, %v3544
    %v3782 = vadd.f32 %v3780, %v3781
    %3783 = vst.msk [vmem:[#allocation5 + $0x40] sm:$0xff] %vm453, %v3782
    %v3784 = vld [vmem:[#allocation2 + $0x48] sm:$0xff]
    %v3785 = vld [vmem:[#allocation3 + $0x48] sm:$0xff]
    %v3786 = vld [vmem:[#allocation4 + $0x48] sm:$0xff]
    %v3788 = vsel %vm453, %v3782, 0
    %3790 = vmatprep.subr.mxu0 0.0
    %3791 = vmatpush1.msra.mxu0 %v1605
    %3792 = vmatprep.subr.mxu0 0.0
    %3793 = vmatpush1.msra.mxu0 %v1606
    %3794 = vmatprep.subr.mxu0 0.0
    %3795 = vmatpush1.msra.mxu0 %v1607
    %3796 = vmatprep.subr.mxu0 0.0
    %3797 = vmatpush1.msra.mxu0 %v1608
    %3798 = vmatprep.subr.mxu0 0.0
    %3799 = vmatpush1.msra.mxu0 0.0
    %3800 = vmatprep.subr.mxu0 0.0
    %3801 = vmatpush1.msra.mxu0 0.0
    %3802 = vmatprep.subr.mxu0 0.0
    %3803 = vmatpush1.msra.mxu0 0.0
    %3804 = vmatprep.subr.mxu0 0.0
    %3805 = vmatpush1.msra.mxu0 0.0
    %3806 = vmatprep.subr.mxu0 0.0
    %3807 = vmatpush1.msra.mxu0 0.0
    %3808 = vmatprep.subr.mxu0 0.0
    %3809 = vmatpush1.msra.mxu0 0.0
    %3810 = vmatprep.subr.mxu0 0.0
    %3811 = vmatpush1.msra.mxu0 0.0
    %3812 = vmatprep.subr.mxu0 0.0
    %3813 = vmatpush1.msra.mxu0 0.0
    %3814 = vmatprep.subr.mxu0 0.0
    %3815 = vmatpush1.msra.mxu0 0.0
    %3816 = vmatprep.subr.mxu0 0.0
    %3817 = vmatpush1.msra.mxu0 0.0
    %3818 = vmatprep.subr.mxu0 0.0
    %3819 = vmatpush1.msra.mxu0 0.0
    %3820 = vmatprep.subr.mxu0 0.0
    %3821 = vmatpush1.msra.mxu0 0.0
    %3822 = vmatprep.subr.mxu0 0.0
    %3823 = vmatpush1.msra.mxu0 0.0
    %3824 = vmatprep.subr.mxu0 0.0
    %3825 = vmatpush1.msra.mxu0 0.0
    %3826 = vmatprep.subr.mxu0 0.0
    %3827 = vmatpush1.msra.mxu0 0.0
    %3828 = vmatprep.subr.mxu0 0.0
    %3829 = vmatpush1.msra.mxu0 0.0
    %3830 = vmatprep.subr.mxu0 0.0
    %3831 = vmatpush1.msra.mxu0 0.0
    %3832 = vmatprep.subr.mxu0 0.0
    %3833 = vmatpush1.msra.mxu0 0.0
    %3834 = vmatprep.subr.mxu0 0.0
    %3835 = vmatpush1.msra.mxu0 0.0
    %3836 = vmatprep.subr.mxu0 0.0
    %3837 = vmatpush1.msra.mxu0 0.0
    %3838 = vmatprep.subr.mxu0 0.0
    %3839 = vmatpush1.msra.mxu0 0.0
    %3840 = vmatprep.subr.mxu0 0.0
    %3841 = vmatpush1.msra.mxu0 0.0
    %3842 = vmatprep.subr.mxu0 0.0
    %3843 = vmatpush1.msra.mxu0 0.0
    %3844 = vmatprep.subr.mxu0 0.0
    %3845 = vmatpush1.msra.mxu0 0.0
    %3846 = vmatprep.subr.mxu0 0.0
    %3847 = vmatpush1.msra.mxu0 0.0
    %3848 = vmatprep.subr.mxu0 0.0
    %3849 = vmatpush1.msra.mxu0 0.0
    %3850 = vmatprep.subr.mxu0 0.0
    %3851 = vmatpush1.msra.mxu0 0.0
    %3852 = vmatprep.subr.mxu0 0.0
    %3853 = vmatpush1.msra.mxu0 0.0
    %3854 = vmatprep.mubr.f32.mxu0 0.0
    %3855 = vmatmul.mubr.f32.gmra.mrb[0].mxu0 %v3788
    %v3856 = vpop.f32.mrb[0].mxu0
    %v3857 = vadd.f32 %v1631, %v3856
    %v3858 = vpop.f32.mrb[0].mxu0
    %3859 = vdwg.mxu0
    %3860 = vmatprep.subr.mxu0 0.0
    %3861 = vmatpush1.msra.mxu0 %v1610
    %3862 = vmatprep.subr.mxu0 0.0
    %3863 = vmatpush1.msra.mxu0 %v1611
    %3864 = vmatprep.subr.mxu0 0.0
    %3865 = vmatpush1.msra.mxu0 %v1612
    %3866 = vmatprep.subr.mxu0 0.0
    %3867 = vmatpush1.msra.mxu0 %v1613
    %3868 = vmatprep.subr.mxu0 0.0
    %3869 = vmatpush1.msra.mxu0 0.0
    %3870 = vmatprep.subr.mxu0 0.0
    %3871 = vmatpush1.msra.mxu0 0.0
    %3872 = vmatprep.subr.mxu0 0.0
    %3873 = vmatpush1.msra.mxu0 0.0
    %3874 = vmatprep.subr.mxu0 0.0
    %3875 = vmatpush1.msra.mxu0 0.0
    %3876 = vmatprep.subr.mxu0 0.0
    %3877 = vmatpush1.msra.mxu0 0.0
    %3878 = vmatprep.subr.mxu0 0.0
    %3879 = vmatpush1.msra.mxu0 0.0
    %3880 = vmatprep.subr.mxu0 0.0
    %3881 = vmatpush1.msra.mxu0 0.0
    %3882 = vmatprep.subr.mxu0 0.0
    %3883 = vmatpush1.msra.mxu0 0.0
    %3884 = vmatprep.subr.mxu0 0.0
    %3885 = vmatpush1.msra.mxu0 0.0
    %3886 = vmatprep.subr.mxu0 0.0
    %3887 = vmatpush1.msra.mxu0 0.0
    %3888 = vmatprep.subr.mxu0 0.0
    %3889 = vmatpush1.msra.mxu0 0.0
    %3890 = vmatprep.subr.mxu0 0.0
    %3891 = vmatpush1.msra.mxu0 0.0
    %3892 = vmatprep.subr.mxu0 0.0
    %3893 = vmatpush1.msra.mxu0 0.0
    %3894 = vmatprep.subr.mxu0 0.0
    %3895 = vmatpush1.msra.mxu0 0.0
    %3896 = vmatprep.subr.mxu0 0.0
    %3897 = vmatpush1.msra.mxu0 0.0
    %3898 = vmatprep.subr.mxu0 0.0
    %3899 = vmatpush1.msra.mxu0 0.0
    %3900 = vmatprep.subr.mxu0 0.0
    %3901 = vmatpush1.msra.mxu0 0.0
    %3902 = vmatprep.subr.mxu0 0.0
    %3903 = vmatpush1.msra.mxu0 0.0
    %3904 = vmatprep.subr.mxu0 0.0
    %3905 = vmatpush1.msra.mxu0 0.0
    %3906 = vmatprep.subr.mxu0 0.0
    %3907 = vmatpush1.msra.mxu0 0.0
    %3908 = vmatprep.subr.mxu0 0.0
    %3909 = vmatpush1.msra.mxu0 0.0
    %3910 = vmatprep.subr.mxu0 0.0
    %3911 = vmatpush1.msra.mxu0 0.0
    %3912 = vmatprep.subr.mxu0 0.0
    %3913 = vmatpush1.msra.mxu0 0.0
    %3914 = vmatprep.subr.mxu0 0.0
    %3915 = vmatpush1.msra.mxu0 0.0
    %3916 = vmatprep.subr.mxu0 0.0
    %3917 = vmatpush1.msra.mxu0 0.0
    %3918 = vmatprep.subr.mxu0 0.0
    %3919 = vmatpush1.msra.mxu0 0.0
    %3920 = vmatprep.subr.mxu0 0.0
    %3921 = vmatpush1.msra.mxu0 0.0
    %3922 = vmatprep.subr.mxu0 0.0
    %3923 = vmatpush1.msra.mxu0 0.0
    %3924 = vmatprep.mubr.f32.mxu0 0.0
    %3925 = vmatmul.mubr.f32.gmra.mrb[0].mxu0 %v3788
    %v3926 = vpop.f32.mrb[0].mxu0
    %v3927 = vadd.f32 %v1710, %v3926
    %v3928 = vpop.f32.mrb[0].mxu0
    %3929 = vdwg.mxu0
    %3930 = vmatprep.subr.mxu0 0.0
    %3931 = vmatpush1.msra.mxu0 %v1615
    %3932 = vmatprep.subr.mxu0 0.0
    %3933 = vmatpush1.msra.mxu0 %v1616
    %3934 = vmatprep.subr.mxu0 0.0
    %3935 = vmatpush1.msra.mxu0 %v1617
    %3936 = vmatprep.subr.mxu0 0.0
    %3937 = vmatpush1.msra.mxu0 %v1618
    %3938 = vmatprep.subr.mxu0 0.0
    %3939 = vmatpush1.msra.mxu0 0.0
    %3940 = vmatprep.subr.mxu0 0.0
    %3941 = vmatpush1.msra.mxu0 0.0
    %3942 = vmatprep.subr.mxu0 0.0
    %3943 = vmatpush1.msra.mxu0 0.0
    %3944 = vmatprep.subr.mxu0 0.0
    %3945 = vmatpush1.msra.mxu0 0.0
    %3946 = vmatprep.subr.mxu0 0.0
    %3947 = vmatpush1.msra.mxu0 0.0
    %3948 = vmatprep.subr.mxu0 0.0
    %3949 = vmatpush1.msra.mxu0 0.0
    %3950 = vmatprep.subr.mxu0 0.0
    %3951 = vmatpush1.msra.mxu0 0.0
    %3952 = vmatprep.subr.mxu0 0.0
    %3953 = vmatpush1.msra.mxu0 0.0
    %3954 = vmatprep.subr.mxu0 0.0
    %3955 = vmatpush1.msra.mxu0 0.0
    %3956 = vmatprep.subr.mxu0 0.0
    %3957 = vmatpush1.msra.mxu0 0.0
    %3958 = vmatprep.subr.mxu0 0.0
    %3959 = vmatpush1.msra.mxu0 0.0
    %3960 = vmatprep.subr.mxu0 0.0
    %3961 = vmatpush1.msra.mxu0 0.0
    %3962 = vmatprep.subr.mxu0 0.0
    %3963 = vmatpush1.msra.mxu0 0.0
    %3964 = vmatprep.subr.mxu0 0.0
    %3965 = vmatpush1.msra.mxu0 0.0
    %3966 = vmatprep.subr.mxu0 0.0
    %3967 = vmatpush1.msra.mxu0 0.0
    %3968 = vmatprep.subr.mxu0 0.0
    %3969 = vmatpush1.msra.mxu0 0.0
    %3970 = vmatprep.subr.mxu0 0.0
    %3971 = vmatpush1.msra.mxu0 0.0
    %3972 = vmatprep.subr.mxu0 0.0
    %3973 = vmatpush1.msra.mxu0 0.0
    %3974 = vmatprep.subr.mxu0 0.0
    %3975 = vmatpush1.msra.mxu0 0.0
    %3976 = vmatprep.subr.mxu0 0.0
    %3977 = vmatpush1.msra.mxu0 0.0
    %3978 = vmatprep.subr.mxu0 0.0
    %3979 = vmatpush1.msra.mxu0 0.0
    %3980 = vmatprep.subr.mxu0 0.0
    %3981 = vmatpush1.msra.mxu0 0.0
    %3982 = vmatprep.subr.mxu0 0.0
    %3983 = vmatpush1.msra.mxu0 0.0
    %3984 = vmatprep.subr.mxu0 0.0
    %3985 = vmatpush1.msra.mxu0 0.0
    %3986 = vmatprep.subr.mxu0 0.0
    %3987 = vmatpush1.msra.mxu0 0.0
    %3988 = vmatprep.subr.mxu0 0.0
    %3989 = vmatpush1.msra.mxu0 0.0
    %3990 = vmatprep.subr.mxu0 0.0
    %3991 = vmatpush1.msra.mxu0 0.0
    %3992 = vmatprep.subr.mxu0 0.0
    %3993 = vmatpush1.msra.mxu0 0.0
    %3994 = vmatprep.mubr.f32.mxu0 0.0
    %3995 = vmatmul.mubr.f32.gmra.mrb[0].mxu0 %v3788
    %v3996 = vpop.f32.mrb[0].mxu0
    %v3997 = vadd.f32 %v1786, %v3996
    %v3998 = vpop.f32.mrb[0].mxu0
    %3999 = vdwg.mxu0
    %v4000 = vadd.f32 %v3784, %v3857
    %v4001 = vxor.u32 %v4000, 2147483648
    %v4002 = vmul.f32 %v4001, 1.442695
    %v4003 = vpow.pop %v4002
    %v4004 = vadd.f32 %v4003, 1.0
    %v4005 = vrcp.pop %v4004
    %v4006 = vmul.f32 1.0, %v4005
    %v4007 = vadd.f32 %v3785, %v3927
    %v4008 = vxor.u32 %v4007, 2147483648
    %v4009 = vmul.f32 %v4008, 1.442695
    %v4010 = vpow.pop %v4009
    %v4011 = vadd.f32 %v4010, 1.0
    %v4012 = vrcp.pop %v4011
    %v4013 = vmul.f32 1.0, %v4012
    %v4014 = vmul.f32 %v4006, %v3997
    %v4015 = vadd.f32 %v3786, %v4014
    %v4016 = vtanh.pop %v4015
    %v4017 = vsub.f32 1.0, %v4013
    %v4018 = vmul.f32 %v4017, %v4016
    %v4019 = vmul.f32 %v4013, %v3782
    %v4020 = vadd.f32 %v4018, %v4019
    %4021 = vst.msk [vmem:[#allocation5 + $0x48] sm:$0xff] %vm453, %v4020
    %v4022 = vld [vmem:[#allocation2 + $0x50] sm:$0xff]
    %v4023 = vld [vmem:[#allocation3 + $0x50] sm:$0xff]
    %v4024 = vld [vmem:[#allocation4 + $0x50] sm:$0xff]
    %v4026 = vsel %vm453, %v4020, 0
    %4028 = vmatprep.subr.mxu0 0.0
    %4029 = vmatpush1.msra.mxu0 %v1605
    %4030 = vmatprep.subr.mxu0 0.0
    %4031 = vmatpush1.msra.mxu0 %v1606
    %4032 = vmatprep.subr.mxu0 0.0
    %4033 = vmatpush1.msra.mxu0 %v1607
    %4034 = vmatprep.subr.mxu0 0.0
    %4035 = vmatpush1.msra.mxu0 %v1608
    %4036 = vmatprep.subr.mxu0 0.0
    %4037 = vmatpush1.msra.mxu0 0.0
    %4038 = vmatprep.subr.mxu0 0.0
    %4039 = vmatpush1.msra.mxu0 0.0
    %4040 = vmatprep.subr.mxu0 0.0
    %4041 = vmatpush1.msra.mxu0 0.0
    %4042 = vmatprep.subr.mxu0 0.0
    %4043 = vmatpush1.msra.mxu0 0.0
    %4044 = vmatprep.subr.mxu0 0.0
    %4045 = vmatpush1.msra.mxu0 0.0
    %4046 = vmatprep.subr.mxu0 0.0
    %4047 = vmatpush1.msra.mxu0 0.0
    %4048 = vmatprep.subr.mxu0 0.0
    %4049 = vmatpush1.msra.mxu0 0.0
    %4050 = vmatprep.subr.mxu0 0.0
    %4051 = vmatpush1.msra.mxu0 0.0
    %4052 = vmatprep.subr.mxu0 0.0
    %4053 = vmatpush1.msra.mxu0 0.0
    %4054 = vmatprep.subr.mxu0 0.0
    %4055 = vmatpush1.msra.mxu0 0.0
    %4056 = vmatprep.subr.mxu0 0.0
    %4057 = vmatpush1.msra.mxu0 0.0
    %4058 = vmatprep.subr.mxu0 0.0
    %4059 = vmatpush1.msra.mxu0 0.0
    %4060 = vmatprep.subr.mxu0 0.0
    %4061 = vmatpush1.msra.mxu0 0.0
    %4062 = vmatprep.subr.mxu0 0.0
    %4063 = vmatpush1.msra.mxu0 0.0
    %4064 = vmatprep.subr.mxu0 0.0
    %4065 = vmatpush1.msra.mxu0 0.0
    %4066 = vmatprep.subr.mxu0 0.0
    %4067 = vmatpush1.msra.mxu0 0.0
    %4068 = vmatprep.subr.mxu0 0.0
    %4069 = vmatpush1.msra.mxu0 0.0
    %4070 = vmatprep.subr.mxu0 0.0
    %4071 = vmatpush1.msra.mxu0 0.0
    %4072 = vmatprep.subr.mxu0 0.0
    %4073 = vmatpush1.msra.mxu0 0.0
    %4074 = vmatprep.subr.mxu0 0.0
    %4075 = vmatpush1.msra.mxu0 0.0
    %4076 = vmatprep.subr.mxu0 0.0
    %4077 = vmatpush1.msra.mxu0 0.0
    %4078 = vmatprep.subr.mxu0 0.0
    %4079 = vmatpush1.msra.mxu0 0.0
    %4080 = vmatprep.subr.mxu0 0.0
    %4081 = vmatpush1.msra.mxu0 0.0
    %4082 = vmatprep.subr.mxu0 0.0
    %4083 = vmatpush1.msra.mxu0 0.0
    %4084 = vmatprep.subr.mxu0 0.0
    %4085 = vmatpush1.msra.mxu0 0.0
    %4086 = vmatprep.subr.mxu0 0.0
    %4087 = vmatpush1.msra.mxu0 0.0
    %4088 = vmatprep.subr.mxu0 0.0
    %4089 = vmatpush1.msra.mxu0 0.0
    %4090 = vmatprep.subr.mxu0 0.0
    %4091 = vmatpush1.msra.mxu0 0.0
    %4092 = vmatprep.mubr.f32.mxu0 0.0
    %4093 = vmatmul.mubr.f32.gmra.mrb[0].mxu0 %v4026
    %v4094 = vpop.f32.mrb[0].mxu0
    %v4095 = vadd.f32 %v1631, %v4094
    %v4096 = vpop.f32.mrb[0].mxu0
    %4097 = vdwg.mxu0
    %4098 = vmatprep.subr.mxu0 0.0
    %4099 = vmatpush1.msra.mxu0 %v1610
    %4100 = vmatprep.subr.mxu0 0.0
    %4101 = vmatpush1.msra.mxu0 %v1611
    %4102 = vmatprep.subr.mxu0 0.0
    %4103 = vmatpush1.msra.mxu0 %v1612
    %4104 = vmatprep.subr.mxu0 0.0
    %4105 = vmatpush1.msra.mxu0 %v1613
    %4106 = vmatprep.subr.mxu0 0.0
    %4107 = vmatpush1.msra.mxu0 0.0
    %4108 = vmatprep.subr.mxu0 0.0
    %4109 = vmatpush1.msra.mxu0 0.0
    %4110 = vmatprep.subr.mxu0 0.0
    %4111 = vmatpush1.msra.mxu0 0.0
    %4112 = vmatprep.subr.mxu0 0.0
    %4113 = vmatpush1.msra.mxu0 0.0
    %4114 = vmatprep.subr.mxu0 0.0
    %4115 = vmatpush1.msra.mxu0 0.0
    %4116 = vmatprep.subr.mxu0 0.0
    %4117 = vmatpush1.msra.mxu0 0.0
    %4118 = vmatprep.subr.mxu0 0.0
    %4119 = vmatpush1.msra.mxu0 0.0
    %4120 = vmatprep.subr.mxu0 0.0
    %4121 = vmatpush1.msra.mxu0 0.0
    %4122 = vmatprep.subr.mxu0 0.0
    %4123 = vmatpush1.msra.mxu0 0.0
    %4124 = vmatprep.subr.mxu0 0.0
    %4125 = vmatpush1.msra.mxu0 0.0
    %4126 = vmatprep.subr.mxu0 0.0
    %4127 = vmatpush1.msra.mxu0 0.0
    %4128 = vmatprep.subr.mxu0 0.0
    %4129 = vmatpush1.msra.mxu0 0.0
    %4130 = vmatprep.subr.mxu0 0.0
    %4131 = vmatpush1.msra.mxu0 0.0
    %4132 = vmatprep.subr.mxu0 0.0
    %4133 = vmatpush1.msra.mxu0 0.0
    %4134 = vmatprep.subr.mxu0 0.0
    %4135 = vmatpush1.msra.mxu0 0.0
    %4136 = vmatprep.subr.mxu0 0.0
    %4137 = vmatpush1.msra.mxu0 0.0
    %4138 = vmatprep.subr.mxu0 0.0
    %4139 = vmatpush1.msra.mxu0 0.0
    %4140 = vmatprep.subr.mxu0 0.0
    %4141 = vmatpush1.msra.mxu0 0.0
    %4142 = vmatprep.subr.mxu0 0.0
    %4143 = vmatpush1.msra.mxu0 0.0
    %4144 = vmatprep.subr.mxu0 0.0
    %4145 = vmatpush1.msra.mxu0 0.0
    %4146 = vmatprep.subr.mxu0 0.0
    %4147 = vmatpush1.msra.mxu0 0.0
    %4148 = vmatprep.subr.mxu0 0.0
    %4149 = vmatpush1.msra.mxu0 0.0
    %4150 = vmatprep.subr.mxu0 0.0
    %4151 = vmatpush1.msra.mxu0 0.0
    %4152 = vmatprep.subr.mxu0 0.0
    %4153 = vmatpush1.msra.mxu0 0.0
    %4154 = vmatprep.subr.mxu0 0.0
    %4155 = vmatpush1.msra.mxu0 0.0
    %4156 = vmatprep.subr.mxu0 0.0
    %4157 = vmatpush1.msra.mxu0 0.0
    %4158 = vmatprep.subr.mxu0 0.0
    %4159 = vmatpush1.msra.mxu0 0.0
    %4160 = vmatprep.subr.mxu0 0.0
    %4161 = vmatpush1.msra.mxu0 0.0
    %4162 = vmatprep.mubr.f32.mxu0 0.0
    %4163 = vmatmul.mubr.f32.gmra.mrb[0].mxu0 %v4026
    %v4164 = vpop.f32.mrb[0].mxu0
    %v4165 = vadd.f32 %v1710, %v4164
    %v4166 = vpop.f32.mrb[0].mxu0
    %4167 = vdwg.mxu0
    %4168 = vmatprep.subr.mxu0 0.0
    %4169 = vmatpush1.msra.mxu0 %v1615
    %4170 = vmatprep.subr.mxu0 0.0
    %4171 = vmatpush1.msra.mxu0 %v1616
    %4172 = vmatprep.subr.mxu0 0.0
    %4173 = vmatpush1.msra.mxu0 %v1617
    %4174 = vmatprep.subr.mxu0 0.0
    %4175 = vmatpush1.msra.mxu0 %v1618
    %4176 = vmatprep.subr.mxu0 0.0
    %4177 = vmatpush1.msra.mxu0 0.0
    %4178 = vmatprep.subr.mxu0 0.0
    %4179 = vmatpush1.msra.mxu0 0.0
    %4180 = vmatprep.subr.mxu0 0.0
    %4181 = vmatpush1.msra.mxu0 0.0
    %4182 = vmatprep.subr.mxu0 0.0
    %4183 = vmatpush1.msra.mxu0 0.0
    %4184 = vmatprep.subr.mxu0 0.0
    %4185 = vmatpush1.msra.mxu0 0.0
    %4186 = vmatprep.subr.mxu0 0.0
    %4187 = vmatpush1.msra.mxu0 0.0
    %4188 = vmatprep.subr.mxu0 0.0
    %4189 = vmatpush1.msra.mxu0 0.0
    %4190 = vmatprep.subr.mxu0 0.0
    %4191 = vmatpush1.msra.mxu0 0.0
    %4192 = vmatprep.subr.mxu0 0.0
    %4193 = vmatpush1.msra.mxu0 0.0
    %4194 = vmatprep.subr.mxu0 0.0
    %4195 = vmatpush1.msra.mxu0 0.0
    %4196 = vmatprep.subr.mxu0 0.0
    %4197 = vmatpush1.msra.mxu0 0.0
    %4198 = vmatprep.subr.mxu0 0.0
    %4199 = vmatpush1.msra.mxu0 0.0
    %4200 = vmatprep.subr.mxu0 0.0
    %4201 = vmatpush1.msra.mxu0 0.0
    %4202 = vmatprep.subr.mxu0 0.0
    %4203 = vmatpush1.msra.mxu0 0.0
    %4204 = vmatprep.subr.mxu0 0.0
    %4205 = vmatpush1.msra.mxu0 0.0
    %4206 = vmatprep.subr.mxu0 0.0
    %4207 = vmatpush1.msra.mxu0 0.0
    %4208 = vmatprep.subr.mxu0 0.0
    %4209 = vmatpush1.msra.mxu0 0.0
    %4210 = vmatprep.subr.mxu0 0.0
    %4211 = vmatpush1.msra.mxu0 0.0
    %4212 = vmatprep.subr.mxu0 0.0
    %4213 = vmatpush1.msra.mxu0 0.0
    %4214 = vmatprep.subr.mxu0 0.0
    %4215 = vmatpush1.msra.mxu0 0.0
    %4216 = vmatprep.subr.mxu0 0.0
    %4217 = vmatpush1.msra.mxu0 0.0
    %4218 = vmatprep.subr.mxu0 0.0
    %4219 = vmatpush1.msra.mxu0 0.0
    %4220 = vmatprep.subr.mxu0 0.0
    %4221 = vmatpush1.msra.mxu0 0.0
    %4222 = vmatprep.subr.mxu0 0.0
    %4223 = vmatpush1.msra.mxu0 0.0
    %4224 = vmatprep.subr.mxu0 0.0
    %4225 = vmatpush1.msra.mxu0 0.0
    %4226 = vmatprep.subr.mxu0 0.0
    %4227 = vmatpush1.msra.mxu0 0.0
    %4228 = vmatprep.subr.mxu0 0.0
    %4229 = vmatpush1.msra.mxu0 0.0
    %4230 = vmatprep.subr.mxu0 0.0
    %4231 = vmatpush1.msra.mxu0 0.0
    %4232 = vmatprep.mubr.f32.mxu0 0.0
    %4233 = vmatmul.mubr.f32.gmra.mrb[0].mxu0 %v4026
    %v4234 = vpop.f32.mrb[0].mxu0
    %v4235 = vadd.f32 %v1786, %v4234
    %v4236 = vpop.f32.mrb[0].mxu0
    %4237 = vdwg.mxu0
    %v4238 = vadd.f32 %v4022, %v4095
    %v4239 = vxor.u32 %v4238, 2147483648
    %v4240 = vmul.f32 %v4239, 1.442695
    %v4241 = vpow.pop %v4240
    %v4242 = vadd.f32 %v4241, 1.0
    %v4243 = vrcp.pop %v4242
    %v4244 = vmul.f32 1.0, %v4243
    %v4245 = vadd.f32 %v4023, %v4165
    %v4246 = vxor.u32 %v4245, 2147483648
    %v4247 = vmul.f32 %v4246, 1.442695
    %v4248 = vpow.pop %v4247
    %v4249 = vadd.f32 %v4248, 1.0
    %v4250 = vrcp.pop %v4249
    %v4251 = vmul.f32 1.0, %v4250
    %v4252 = vmul.f32 %v4244, %v4235
    %v4253 = vadd.f32 %v4024, %v4252
    %v4254 = vtanh.pop %v4253
    %v4255 = vsub.f32 1.0, %v4251
    %v4256 = vmul.f32 %v4255, %v4254
    %v4257 = vmul.f32 %v4251, %v4020
    %v4258 = vadd.f32 %v4256, %v4257
    %4259 = vst.msk [vmem:[#allocation5 + $0x50] sm:$0xff] %vm453, %v4258
    %v4260 = vld [vmem:[#allocation2 + $0x58] sm:$0xff]
    %v4261 = vld [vmem:[#allocation3 + $0x58] sm:$0xff]
    %v4262 = vld [vmem:[#allocation4 + $0x58] sm:$0xff]
    %v4264 = vsel %vm453, %v4258, 0
    %4266 = vmatprep.subr.mxu0 0.0
    %4267 = vmatpush1.msra.mxu0 %v1605
    %4268 = vmatprep.subr.mxu0 0.0
    %4269 = vmatpush1.msra.mxu0 %v1606
    %4270 = vmatprep.subr.mxu0 0.0
    %4271 = vmatpush1.msra.mxu0 %v1607
    %4272 = vmatprep.subr.mxu0 0.0
    %4273 = vmatpush1.msra.mxu0 %v1608
    %4274 = vmatprep.subr.mxu0 0.0
    %4275 = vmatpush1.msra.mxu0 0.0
    %4276 = vmatprep.subr.mxu0 0.0
    %4277 = vmatpush1.msra.mxu0 0.0
    %4278 = vmatprep.subr.mxu0 0.0
    %4279 = vmatpush1.msra.mxu0 0.0
    %4280 = vmatprep.subr.mxu0 0.0
    %4281 = vmatpush1.msra.mxu0 0.0
    %4282 = vmatprep.subr.mxu0 0.0
    %4283 = vmatpush1.msra.mxu0 0.0
    %4284 = vmatprep.subr.mxu0 0.0
    %4285 = vmatpush1.msra.mxu0 0.0
    %4286 = vmatprep.subr.mxu0 0.0
    %4287 = vmatpush1.msra.mxu0 0.0
    %4288 = vmatprep.subr.mxu0 0.0
    %4289 = vmatpush1.msra.mxu0 0.0
    %4290 = vmatprep.subr.mxu0 0.0
    %4291 = vmatpush1.msra.mxu0 0.0
    %4292 = vmatprep.subr.mxu0 0.0
    %4293 = vmatpush1.msra.mxu0 0.0
    %4294 = vmatprep.subr.mxu0 0.0
    %4295 = vmatpush1.msra.mxu0 0.0
    %4296 = vmatprep.subr.mxu0 0.0
    %4297 = vmatpush1.msra.mxu0 0.0
    %4298 = vmatprep.subr.mxu0 0.0
    %4299 = vmatpush1.msra.mxu0 0.0
    %4300 = vmatprep.subr.mxu0 0.0
    %4301 = vmatpush1.msra.mxu0 0.0
    %4302 = vmatprep.subr.mxu0 0.0
    %4303 = vmatpush1.msra.mxu0 0.0
    %4304 = vmatprep.subr.mxu0 0.0
    %4305 = vmatpush1.msra.mxu0 0.0
    %4306 = vmatprep.subr.mxu0 0.0
    %4307 = vmatpush1.msra.mxu0 0.0
    %4308 = vmatprep.subr.mxu0 0.0
    %4309 = vmatpush1.msra.mxu0 0.0
    %4310 = vmatprep.subr.mxu0 0.0
    %4311 = vmatpush1.msra.mxu0 0.0
    %4312 = vmatprep.subr.mxu0 0.0
    %4313 = vmatpush1.msra.mxu0 0.0
    %4314 = vmatprep.subr.mxu0 0.0
    %4315 = vmatpush1.msra.mxu0 0.0
    %4316 = vmatprep.subr.mxu0 0.0
    %4317 = vmatpush1.msra.mxu0 0.0
    %4318 = vmatprep.subr.mxu0 0.0
    %4319 = vmatpush1.msra.mxu0 0.0
    %4320 = vmatprep.subr.mxu0 0.0
    %4321 = vmatpush1.msra.mxu0 0.0
    %4322 = vmatprep.subr.mxu0 0.0
    %4323 = vmatpush1.msra.mxu0 0.0
    %4324 = vmatprep.subr.mxu0 0.0
    %4325 = vmatpush1.msra.mxu0 0.0
    %4326 = vmatprep.subr.mxu0 0.0
    %4327 = vmatpush1.msra.mxu0 0.0
    %4328 = vmatprep.subr.mxu0 0.0
    %4329 = vmatpush1.msra.mxu0 0.0
    %4330 = vmatprep.mubr.f32.mxu0 0.0
    %4331 = vmatmul.mubr.f32.gmra.mrb[0].mxu0 %v4264
    %v4332 = vpop.f32.mrb[0].mxu0
    %v4333 = vadd.f32 %v1631, %v4332
    %v4334 = vpop.f32.mrb[0].mxu0
    %4335 = vdwg.mxu0
    %4336 = vmatprep.subr.mxu0 0.0
    %4337 = vmatpush1.msra.mxu0 %v1610
    %4338 = vmatprep.subr.mxu0 0.0
    %4339 = vmatpush1.msra.mxu0 %v1611
    %4340 = vmatprep.subr.mxu0 0.0
    %4341 = vmatpush1.msra.mxu0 %v1612
    %4342 = vmatprep.subr.mxu0 0.0
    %4343 = vmatpush1.msra.mxu0 %v1613
    %4344 = vmatprep.subr.mxu0 0.0
    %4345 = vmatpush1.msra.mxu0 0.0
    %4346 = vmatprep.subr.mxu0 0.0
    %4347 = vmatpush1.msra.mxu0 0.0
    %4348 = vmatprep.subr.mxu0 0.0
    %4349 = vmatpush1.msra.mxu0 0.0
    %4350 = vmatprep.subr.mxu0 0.0
    %4351 = vmatpush1.msra.mxu0 0.0
    %4352 = vmatprep.subr.mxu0 0.0
    %4353 = vmatpush1.msra.mxu0 0.0
    %4354 = vmatprep.subr.mxu0 0.0
    %4355 = vmatpush1.msra.mxu0 0.0
    %4356 = vmatprep.subr.mxu0 0.0
    %4357 = vmatpush1.msra.mxu0 0.0
    %4358 = vmatprep.subr.mxu0 0.0
    %4359 = vmatpush1.msra.mxu0 0.0
    %4360 = vmatprep.subr.mxu0 0.0
    %4361 = vmatpush1.msra.mxu0 0.0
    %4362 = vmatprep.subr.mxu0 0.0
    %4363 = vmatpush1.msra.mxu0 0.0
    %4364 = vmatprep.subr.mxu0 0.0
    %4365 = vmatpush1.msra.mxu0 0.0
    %4366 = vmatprep.subr.mxu0 0.0
    %4367 = vmatpush1.msra.mxu0 0.0
    %4368 = vmatprep.subr.mxu0 0.0
    %4369 = vmatpush1.msra.mxu0 0.0
    %4370 = vmatprep.subr.mxu0 0.0
    %4371 = vmatpush1.msra.mxu0 0.0
    %4372 = vmatprep.subr.mxu0 0.0
    %4373 = vmatpush1.msra.mxu0 0.0
    %4374 = vmatprep.subr.mxu0 0.0
    %4375 = vmatpush1.msra.mxu0 0.0
    %4376 = vmatprep.subr.mxu0 0.0
    %4377 = vmatpush1.msra.mxu0 0.0
    %4378 = vmatprep.subr.mxu0 0.0
    %4379 = vmatpush1.msra.mxu0 0.0
    %4380 = vmatprep.subr.mxu0 0.0
    %4381 = vmatpush1.msra.mxu0 0.0
    %4382 = vmatprep.subr.mxu0 0.0
    %4383 = vmatpush1.msra.mxu0 0.0
    %4384 = vmatprep.subr.mxu0 0.0
    %4385 = vmatpush1.msra.mxu0 0.0
    %4386 = vmatprep.subr.mxu0 0.0
    %4387 = vmatpush1.msra.mxu0 0.0
    %4388 = vmatprep.subr.mxu0 0.0
    %4389 = vmatpush1.msra.mxu0 0.0
    %4390 = vmatprep.subr.mxu0 0.0
    %4391 = vmatpush1.msra.mxu0 0.0
    %4392 = vmatprep.subr.mxu0 0.0
    %4393 = vmatpush1.msra.mxu0 0.0
    %4394 = vmatprep.subr.mxu0 0.0
    %4395 = vmatpush1.msra.mxu0 0.0
    %4396 = vmatprep.subr.mxu0 0.0
    %4397 = vmatpush1.msra.mxu0 0.0
    %4398 = vmatprep.subr.mxu0 0.0
    %4399 = vmatpush1.msra.mxu0 0.0
    %4400 = vmatprep.mubr.f32.mxu0 0.0
    %4401 = vmatmul.mubr.f32.gmra.mrb[0].mxu0 %v4264
    %v4402 = vpop.f32.mrb[0].mxu0
    %v4403 = vadd.f32 %v1710, %v4402
    %v4404 = vpop.f32.mrb[0].mxu0
    %4405 = vdwg.mxu0
    %4406 = vmatprep.subr.mxu0 0.0
    %4407 = vmatpush1.msra.mxu0 %v1615
    %4408 = vmatprep.subr.mxu0 0.0
    %4409 = vmatpush1.msra.mxu0 %v1616
    %4410 = vmatprep.subr.mxu0 0.0
    %4411 = vmatpush1.msra.mxu0 %v1617
    %4412 = vmatprep.subr.mxu0 0.0
    %4413 = vmatpush1.msra.mxu0 %v1618
    %4414 = vmatprep.subr.mxu0 0.0
    %4415 = vmatpush1.msra.mxu0 0.0
    %4416 = vmatprep.subr.mxu0 0.0
    %4417 = vmatpush1.msra.mxu0 0.0
    %4418 = vmatprep.subr.mxu0 0.0
    %4419 = vmatpush1.msra.mxu0 0.0
    %4420 = vmatprep.subr.mxu0 0.0
    %4421 = vmatpush1.msra.mxu0 0.0
    %4422 = vmatprep.subr.mxu0 0.0
    %4423 = vmatpush1.msra.mxu0 0.0
    %4424 = vmatprep.subr.mxu0 0.0
    %4425 = vmatpush1.msra.mxu0 0.0
    %4426 = vmatprep.subr.mxu0 0.0
    %4427 = vmatpush1.msra.mxu0 0.0
    %4428 = vmatprep.subr.mxu0 0.0
    %4429 = vmatpush1.msra.mxu0 0.0
    %4430 = vmatprep.subr.mxu0 0.0
    %4431 = vmatpush1.msra.mxu0 0.0
    %4432 = vmatprep.subr.mxu0 0.0
    %4433 = vmatpush1.msra.mxu0 0.0
    %4434 = vmatprep.subr.mxu0 0.0
    %4435 = vmatpush1.msra.mxu0 0.0
    %4436 = vmatprep.subr.mxu0 0.0
    %4437 = vmatpush1.msra.mxu0 0.0
    %4438 = vmatprep.subr.mxu0 0.0
    %4439 = vmatpush1.msra.mxu0 0.0
    %4440 = vmatprep.subr.mxu0 0.0
    %4441 = vmatpush1.msra.mxu0 0.0
    %4442 = vmatprep.subr.mxu0 0.0
    %4443 = vmatpush1.msra.mxu0 0.0
    %4444 = vmatprep.subr.mxu0 0.0
    %4445 = vmatpush1.msra.mxu0 0.0
    %4446 = vmatprep.subr.mxu0 0.0
    %4447 = vmatpush1.msra.mxu0 0.0
    %4448 = vmatprep.subr.mxu0 0.0
    %4449 = vmatpush1.msra.mxu0 0.0
    %4450 = vmatprep.subr.mxu0 0.0
    %4451 = vmatpush1.msra.mxu0 0.0
    %4452 = vmatprep.subr.mxu0 0.0
    %4453 = vmatpush1.msra.mxu0 0.0
    %4454 = vmatprep.subr.mxu0 0.0
    %4455 = vmatpush1.msra.mxu0 0.0
    %4456 = vmatprep.subr.mxu0 0.0
    %4457 = vmatpush1.msra.mxu0 0.0
    %4458 = vmatprep.subr.mxu0 0.0
    %4459 = vmatpush1.msra.mxu0 0.0
    %4460 = vmatprep.subr.mxu0 0.0
    %4461 = vmatpush1.msra.mxu0 0.0
    %4462 = vmatprep.subr.mxu0 0.0
    %4463 = vmatpush1.msra.mxu0 0.0
    %4464 = vmatprep.subr.mxu0 0.0
    %4465 = vmatpush1.msra.mxu0 0.0
    %4466 = vmatprep.subr.mxu0 0.0
    %4467 = vmatpush1.msra.mxu0 0.0
    %4468 = vmatprep.subr.mxu0 0.0
    %4469 = vmatpush1.msra.mxu0 0.0
    %4470 = vmatprep.mubr.f32.mxu0 0.0
    %4471 = vmatmul.mubr.f32.gmra.mrb[0].mxu0 %v4264
    %v4472 = vpop.f32.mrb[0].mxu0
    %v4473 = vadd.f32 %v1786, %v4472
    %v4474 = vpop.f32.mrb[0].mxu0
    %4475 = vdwg.mxu0
    %v4476 = vadd.f32 %v4260, %v4333
    %v4477 = vxor.u32 %v4476, 2147483648
    %v4478 = vmul.f32 %v4477, 1.442695
    %v4479 = vpow.pop %v4478
    %v4480 = vadd.f32 %v4479, 1.0
    %v4481 = vrcp.pop %v4480
    %v4482 = vmul.f32 1.0, %v4481
    %v4483 = vadd.f32 %v4261, %v4403
    %v4484 = vxor.u32 %v4483, 2147483648
    %v4485 = vmul.f32 %v4484, 1.442695
    %v4486 = vpow.pop %v4485
    %v4487 = vadd.f32 %v4486, 1.0
    %v4488 = vrcp.pop %v4487
    %v4489 = vmul.f32 1.0, %v4488
    %v4490 = vmul.f32 %v4482, %v4473
    %v4491 = vadd.f32 %v4262, %v4490
    %v4492 = vtanh.pop %v4491
    %v4493 = vsub.f32 1.0, %v4489
    %v4494 = vmul.f32 %v4493, %v4492
    %v4495 = vmul.f32 %v4489, %v4258
    %v4496 = vadd.f32 %v4494, %v4495
    %4497 = vst.msk [vmem:[#allocation5 + $0x58] sm:$0xff] %vm453, %v4496
    %v4498 = vld [vmem:[#allocation2 + $0x60] sm:$0xff]
    %v4499 = vld [vmem:[#allocation3 + $0x60] sm:$0xff]
    %v4500 = vld [vmem:[#allocation4 + $0x60] sm:$0xff]
    %v4502 = vsel %vm453, %v4496, 0
    %4504 = vmatprep.subr.mxu0 0.0
    %4505 = vmatpush1.msra.mxu0 %v1605
    %4506 = vmatprep.subr.mxu0 0.0
    %4507 = vmatpush1.msra.mxu0 %v1606
    %4508 = vmatprep.subr.mxu0 0.0
    %4509 = vmatpush1.msra.mxu0 %v1607
    %4510 = vmatprep.subr.mxu0 0.0
    %4511 = vmatpush1.msra.mxu0 %v1608
    %4512 = vmatprep.subr.mxu0 0.0
    %4513 = vmatpush1.msra.mxu0 0.0
    %4514 = vmatprep.subr.mxu0 0.0
    %4515 = vmatpush1.msra.mxu0 0.0
    %4516 = vmatprep.subr.mxu0 0.0
    %4517 = vmatpush1.msra.mxu0 0.0
    %4518 = vmatprep.subr.mxu0 0.0
    %4519 = vmatpush1.msra.mxu0 0.0
    %4520 = vmatprep.subr.mxu0 0.0
    %4521 = vmatpush1.msra.mxu0 0.0
    %4522 = vmatprep.subr.mxu0 0.0
    %4523 = vmatpush1.msra.mxu0 0.0
    %4524 = vmatprep.subr.mxu0 0.0
    %4525 = vmatpush1.msra.mxu0 0.0
    %4526 = vmatprep.subr.mxu0 0.0
    %4527 = vmatpush1.msra.mxu0 0.0
    %4528 = vmatprep.subr.mxu0 0.0
    %4529 = vmatpush1.msra.mxu0 0.0
    %4530 = vmatprep.subr.mxu0 0.0
    %4531 = vmatpush1.msra.mxu0 0.0
    %4532 = vmatprep.subr.mxu0 0.0
    %4533 = vmatpush1.msra.mxu0 0.0
    %4534 = vmatprep.subr.mxu0 0.0
    %4535 = vmatpush1.msra.mxu0 0.0
    %4536 = vmatprep.subr.mxu0 0.0
    %4537 = vmatpush1.msra.mxu0 0.0
    %4538 = vmatprep.subr.mxu0 0.0
    %4539 = vmatpush1.msra.mxu0 0.0
    %4540 = vmatprep.subr.mxu0 0.0
    %4541 = vmatpush1.msra.mxu0 0.0
    %4542 = vmatprep.subr.mxu0 0.0
    %4543 = vmatpush1.msra.mxu0 0.0
    %4544 = vmatprep.subr.mxu0 0.0
    %4545 = vmatpush1.msra.mxu0 0.0
    %4546 = vmatprep.subr.mxu0 0.0
    %4547 = vmatpush1.msra.mxu0 0.0
    %4548 = vmatprep.subr.mxu0 0.0
    %4549 = vmatpush1.msra.mxu0 0.0
    %4550 = vmatprep.subr.mxu0 0.0
    %4551 = vmatpush1.msra.mxu0 0.0
    %4552 = vmatprep.subr.mxu0 0.0
    %4553 = vmatpush1.msra.mxu0 0.0
    %4554 = vmatprep.subr.mxu0 0.0
    %4555 = vmatpush1.msra.mxu0 0.0
    %4556 = vmatprep.subr.mxu0 0.0
    %4557 = vmatpush1.msra.mxu0 0.0
    %4558 = vmatprep.subr.mxu0 0.0
    %4559 = vmatpush1.msra.mxu0 0.0
    %4560 = vmatprep.subr.mxu0 0.0
    %4561 = vmatpush1.msra.mxu0 0.0
    %4562 = vmatprep.subr.mxu0 0.0
    %4563 = vmatpush1.msra.mxu0 0.0
    %4564 = vmatprep.subr.mxu0 0.0
    %4565 = vmatpush1.msra.mxu0 0.0
    %4566 = vmatprep.subr.mxu0 0.0
    %4567 = vmatpush1.msra.mxu0 0.0
    %4568 = vmatprep.mubr.f32.mxu0 0.0
    %4569 = vmatmul.mubr.f32.gmra.mrb[0].mxu0 %v4502
    %v4570 = vpop.f32.mrb[0].mxu0
    %v4571 = vadd.f32 %v1631, %v4570
    %v4572 = vpop.f32.mrb[0].mxu0
    %4573 = vdwg.mxu0
    %4574 = vmatprep.subr.mxu0 0.0
    %4575 = vmatpush1.msra.mxu0 %v1610
    %4576 = vmatprep.subr.mxu0 0.0
    %4577 = vmatpush1.msra.mxu0 %v1611
    %4578 = vmatprep.subr.mxu0 0.0
    %4579 = vmatpush1.msra.mxu0 %v1612
    %4580 = vmatprep.subr.mxu0 0.0
    %4581 = vmatpush1.msra.mxu0 %v1613
    %4582 = vmatprep.subr.mxu0 0.0
    %4583 = vmatpush1.msra.mxu0 0.0
    %4584 = vmatprep.subr.mxu0 0.0
    %4585 = vmatpush1.msra.mxu0 0.0
    %4586 = vmatprep.subr.mxu0 0.0
    %4587 = vmatpush1.msra.mxu0 0.0
    %4588 = vmatprep.subr.mxu0 0.0
    %4589 = vmatpush1.msra.mxu0 0.0
    %4590 = vmatprep.subr.mxu0 0.0
    %4591 = vmatpush1.msra.mxu0 0.0
    %4592 = vmatprep.subr.mxu0 0.0
    %4593 = vmatpush1.msra.mxu0 0.0
    %4594 = vmatprep.subr.mxu0 0.0
    %4595 = vmatpush1.msra.mxu0 0.0
    %4596 = vmatprep.subr.mxu0 0.0
    %4597 = vmatpush1.msra.mxu0 0.0
    %4598 = vmatprep.subr.mxu0 0.0
    %4599 = vmatpush1.msra.mxu0 0.0
    %4600 = vmatprep.subr.mxu0 0.0
    %4601 = vmatpush1.msra.mxu0 0.0
    %4602 = vmatprep.subr.mxu0 0.0
    %4603 = vmatpush1.msra.mxu0 0.0
    %4604 = vmatprep.subr.mxu0 0.0
    %4605 = vmatpush1.msra.mxu0 0.0
    %4606 = vmatprep.subr.mxu0 0.0
    %4607 = vmatpush1.msra.mxu0 0.0
    %4608 = vmatprep.subr.mxu0 0.0
    %4609 = vmatpush1.msra.mxu0 0.0
    %4610 = vmatprep.subr.mxu0 0.0
    %4611 = vmatpush1.msra.mxu0 0.0
    %4612 = vmatprep.subr.mxu0 0.0
    %4613 = vmatpush1.msra.mxu0 0.0
    %4614 = vmatprep.subr.mxu0 0.0
    %4615 = vmatpush1.msra.mxu0 0.0
    %4616 = vmatprep.subr.mxu0 0.0
    %4617 = vmatpush1.msra.mxu0 0.0
    %4618 = vmatprep.subr.mxu0 0.0
    %4619 = vmatpush1.msra.mxu0 0.0
    %4620 = vmatprep.subr.mxu0 0.0
    %4621 = vmatpush1.msra.mxu0 0.0
    %4622 = vmatprep.subr.mxu0 0.0
    %4623 = vmatpush1.msra.mxu0 0.0
    %4624 = vmatprep.subr.mxu0 0.0
    %4625 = vmatpush1.msra.mxu0 0.0
    %4626 = vmatprep.subr.mxu0 0.0
    %4627 = vmatpush1.msra.mxu0 0.0
    %4628 = vmatprep.subr.mxu0 0.0
    %4629 = vmatpush1.msra.mxu0 0.0
    %4630 = vmatprep.subr.mxu0 0.0
    %4631 = vmatpush1.msra.mxu0 0.0
    %4632 = vmatprep.subr.mxu0 0.0
    %4633 = vmatpush1.msra.mxu0 0.0
    %4634 = vmatprep.subr.mxu0 0.0
    %4635 = vmatpush1.msra.mxu0 0.0
    %4636 = vmatprep.subr.mxu0 0.0
    %4637 = vmatpush1.msra.mxu0 0.0
    %4638 = vmatprep.mubr.f32.mxu0 0.0
    %4639 = vmatmul.mubr.f32.gmra.mrb[0].mxu0 %v4502
    %v4640 = vpop.f32.mrb[0].mxu0
    %v4641 = vadd.f32 %v1710, %v4640
    %v4642 = vpop.f32.mrb[0].mxu0
    %4643 = vdwg.mxu0
    %4644 = vmatprep.subr.mxu0 0.0
    %4645 = vmatpush1.msra.mxu0 %v1615
    %4646 = vmatprep.subr.mxu0 0.0
    %4647 = vmatpush1.msra.mxu0 %v1616
    %4648 = vmatprep.subr.mxu0 0.0
    %4649 = vmatpush1.msra.mxu0 %v1617
    %4650 = vmatprep.subr.mxu0 0.0
    %4651 = vmatpush1.msra.mxu0 %v1618
    %4652 = vmatprep.subr.mxu0 0.0
    %4653 = vmatpush1.msra.mxu0 0.0
    %4654 = vmatprep.subr.mxu0 0.0
    %4655 = vmatpush1.msra.mxu0 0.0
    %4656 = vmatprep.subr.mxu0 0.0
    %4657 = vmatpush1.msra.mxu0 0.0
    %4658 = vmatprep.subr.mxu0 0.0
    %4659 = vmatpush1.msra.mxu0 0.0
    %4660 = vmatprep.subr.mxu0 0.0
    %4661 = vmatpush1.msra.mxu0 0.0
    %4662 = vmatprep.subr.mxu0 0.0
    %4663 = vmatpush1.msra.mxu0 0.0
    %4664 = vmatprep.subr.mxu0 0.0
    %4665 = vmatpush1.msra.mxu0 0.0
    %4666 = vmatprep.subr.mxu0 0.0
    %4667 = vmatpush1.msra.mxu0 0.0
    %4668 = vmatprep.subr.mxu0 0.0
    %4669 = vmatpush1.msra.mxu0 0.0
    %4670 = vmatprep.subr.mxu0 0.0
    %4671 = vmatpush1.msra.mxu0 0.0
    %4672 = vmatprep.subr.mxu0 0.0
    %4673 = vmatpush1.msra.mxu0 0.0
    %4674 = vmatprep.subr.mxu0 0.0
    %4675 = vmatpush1.msra.mxu0 0.0
    %4676 = vmatprep.subr.mxu0 0.0
    %4677 = vmatpush1.msra.mxu0 0.0
    %4678 = vmatprep.subr.mxu0 0.0
    %4679 = vmatpush1.msra.mxu0 0.0
    %4680 = vmatprep.subr.mxu0 0.0
    %4681 = vmatpush1.msra.mxu0 0.0
    %4682 = vmatprep.subr.mxu0 0.0
    %4683 = vmatpush1.msra.mxu0 0.0
    %4684 = vmatprep.subr.mxu0 0.0
    %4685 = vmatpush1.msra.mxu0 0.0
    %4686 = vmatprep.subr.mxu0 0.0
    %4687 = vmatpush1.msra.mxu0 0.0
    %4688 = vmatprep.subr.mxu0 0.0
    %4689 = vmatpush1.msra.mxu0 0.0
    %4690 = vmatprep.subr.mxu0 0.0
    %4691 = vmatpush1.msra.mxu0 0.0
    %4692 = vmatprep.subr.mxu0 0.0
    %4693 = vmatpush1.msra.mxu0 0.0
    %4694 = vmatprep.subr.mxu0 0.0
    %4695 = vmatpush1.msra.mxu0 0.0
    %4696 = vmatprep.subr.mxu0 0.0
    %4697 = vmatpush1.msra.mxu0 0.0
    %4698 = vmatprep.subr.mxu0 0.0
    %4699 = vmatpush1.msra.mxu0 0.0
    %4700 = vmatprep.subr.mxu0 0.0
    %4701 = vmatpush1.msra.mxu0 0.0
    %4702 = vmatprep.subr.mxu0 0.0
    %4703 = vmatpush1.msra.mxu0 0.0
    %4704 = vmatprep.subr.mxu0 0.0
    %4705 = vmatpush1.msra.mxu0 0.0
    %4706 = vmatprep.subr.mxu0 0.0
    %4707 = vmatpush1.msra.mxu0 0.0
    %4708 = vmatprep.mubr.f32.mxu0 0.0
    %4709 = vmatmul.mubr.f32.gmra.mrb[0].mxu0 %v4502
    %v4710 = vpop.f32.mrb[0].mxu0
    %v4711 = vadd.f32 %v1786, %v4710
    %v4712 = vpop.f32.mrb[0].mxu0
    %4713 = vdwg.mxu0
    %v4714 = vadd.f32 %v4498, %v4571
    %v4715 = vxor.u32 %v4714, 2147483648
    %v4716 = vmul.f32 %v4715, 1.442695
    %v4717 = vpow.pop %v4716
    %v4718 = vadd.f32 %v4717, 1.0
    %v4719 = vrcp.pop %v4718
    %v4720 = vmul.f32 1.0, %v4719
    %v4721 = vadd.f32 %v4499, %v4641
    %v4722 = vxor.u32 %v4721, 2147483648
    %v4723 = vmul.f32 %v4722, 1.442695
    %v4724 = vpow.pop %v4723
    %v4725 = vadd.f32 %v4724, 1.0
    %v4726 = vrcp.pop %v4725
    %v4727 = vmul.f32 1.0, %v4726
    %v4728 = vmul.f32 %v4720, %v4711
    %v4729 = vadd.f32 %v4500, %v4728
    %v4730 = vtanh.pop %v4729
    %v4731 = vsub.f32 1.0, %v4727
    %v4732 = vmul.f32 %v4731, %v4730
    %v4733 = vmul.f32 %v4727, %v4496
    %v4734 = vadd.f32 %v4732, %v4733
    %4735 = vst.msk [vmem:[#allocation5 + $0x60] sm:$0xff] %vm453, %v4734
    %v4736 = vld [vmem:[#allocation2 + $0x68] sm:$0xff]
    %v4737 = vld [vmem:[#allocation3 + $0x68] sm:$0xff]
    %v4738 = vld [vmem:[#allocation4 + $0x68] sm:$0xff]
    %v4740 = vsel %vm453, %v4734, 0
    %4742 = vmatprep.subr.mxu0 0.0
    %4743 = vmatpush1.msra.mxu0 %v1605
    %4744 = vmatprep.subr.mxu0 0.0
    %4745 = vmatpush1.msra.mxu0 %v1606
    %4746 = vmatprep.subr.mxu0 0.0
    %4747 = vmatpush1.msra.mxu0 %v1607
    %4748 = vmatprep.subr.mxu0 0.0
    %4749 = vmatpush1.msra.mxu0 %v1608
    %4750 = vmatprep.subr.mxu0 0.0
    %4751 = vmatpush1.msra.mxu0 0.0
    %4752 = vmatprep.subr.mxu0 0.0
    %4753 = vmatpush1.msra.mxu0 0.0
    %4754 = vmatprep.subr.mxu0 0.0
    %4755 = vmatpush1.msra.mxu0 0.0
    %4756 = vmatprep.subr.mxu0 0.0
    %4757 = vmatpush1.msra.mxu0 0.0
    %4758 = vmatprep.subr.mxu0 0.0
    %4759 = vmatpush1.msra.mxu0 0.0
    %4760 = vmatprep.subr.mxu0 0.0
    %4761 = vmatpush1.msra.mxu0 0.0
    %4762 = vmatprep.subr.mxu0 0.0
    %4763 = vmatpush1.msra.mxu0 0.0
    %4764 = vmatprep.subr.mxu0 0.0
    %4765 = vmatpush1.msra.mxu0 0.0
    %4766 = vmatprep.subr.mxu0 0.0
    %4767 = vmatpush1.msra.mxu0 0.0
    %4768 = vmatprep.subr.mxu0 0.0
    %4769 = vmatpush1.msra.mxu0 0.0
    %4770 = vmatprep.subr.mxu0 0.0
    %4771 = vmatpush1.msra.mxu0 0.0
    %4772 = vmatprep.subr.mxu0 0.0
    %4773 = vmatpush1.msra.mxu0 0.0
    %4774 = vmatprep.subr.mxu0 0.0
    %4775 = vmatpush1.msra.mxu0 0.0
    %4776 = vmatprep.subr.mxu0 0.0
    %4777 = vmatpush1.msra.mxu0 0.0
    %4778 = vmatprep.subr.mxu0 0.0
    %4779 = vmatpush1.msra.mxu0 0.0
    %4780 = vmatprep.subr.mxu0 0.0
    %4781 = vmatpush1.msra.mxu0 0.0
    %4782 = vmatprep.subr.mxu0 0.0
    %4783 = vmatpush1.msra.mxu0 0.0
    %4784 = vmatprep.subr.mxu0 0.0
    %4785 = vmatpush1.msra.mxu0 0.0
    %4786 = vmatprep.subr.mxu0 0.0
    %4787 = vmatpush1.msra.mxu0 0.0
    %4788 = vmatprep.subr.mxu0 0.0
    %4789 = vmatpush1.msra.mxu0 0.0
    %4790 = vmatprep.subr.mxu0 0.0
    %4791 = vmatpush1.msra.mxu0 0.0
    %4792 = vmatprep.subr.mxu0 0.0
    %4793 = vmatpush1.msra.mxu0 0.0
    %4794 = vmatprep.subr.mxu0 0.0
    %4795 = vmatpush1.msra.mxu0 0.0
    %4796 = vmatprep.subr.mxu0 0.0
    %4797 = vmatpush1.msra.mxu0 0.0
    %4798 = vmatprep.subr.mxu0 0.0
    %4799 = vmatpush1.msra.mxu0 0.0
    %4800 = vmatprep.subr.mxu0 0.0
    %4801 = vmatpush1.msra.mxu0 0.0
    %4802 = vmatprep.subr.mxu0 0.0
    %4803 = vmatpush1.msra.mxu0 0.0
    %4804 = vmatprep.subr.mxu0 0.0
    %4805 = vmatpush1.msra.mxu0 0.0
    %4806 = vmatprep.mubr.f32.mxu0 0.0
    %4807 = vmatmul.mubr.f32.gmra.mrb[0].mxu0 %v4740
    %v4808 = vpop.f32.mrb[0].mxu0
    %v4809 = vadd.f32 %v1631, %v4808
    %v4810 = vpop.f32.mrb[0].mxu0
    %4811 = vdwg.mxu0
    %4812 = vmatprep.subr.mxu0 0.0
    %4813 = vmatpush1.msra.mxu0 %v1610
    %4814 = vmatprep.subr.mxu0 0.0
    %4815 = vmatpush1.msra.mxu0 %v1611
    %4816 = vmatprep.subr.mxu0 0.0
    %4817 = vmatpush1.msra.mxu0 %v1612
    %4818 = vmatprep.subr.mxu0 0.0
    %4819 = vmatpush1.msra.mxu0 %v1613
    %4820 = vmatprep.subr.mxu0 0.0
    %4821 = vmatpush1.msra.mxu0 0.0
    %4822 = vmatprep.subr.mxu0 0.0
    %4823 = vmatpush1.msra.mxu0 0.0
    %4824 = vmatprep.subr.mxu0 0.0
    %4825 = vmatpush1.msra.mxu0 0.0
    %4826 = vmatprep.subr.mxu0 0.0
    %4827 = vmatpush1.msra.mxu0 0.0
    %4828 = vmatprep.subr.mxu0 0.0
    %4829 = vmatpush1.msra.mxu0 0.0
    %4830 = vmatprep.subr.mxu0 0.0
    %4831 = vmatpush1.msra.mxu0 0.0
    %4832 = vmatprep.subr.mxu0 0.0
    %4833 = vmatpush1.msra.mxu0 0.0
    %4834 = vmatprep.subr.mxu0 0.0
    %4835 = vmatpush1.msra.mxu0 0.0
    %4836 = vmatprep.subr.mxu0 0.0
    %4837 = vmatpush1.msra.mxu0 0.0
    %4838 = vmatprep.subr.mxu0 0.0
    %4839 = vmatpush1.msra.mxu0 0.0
    %4840 = vmatprep.subr.mxu0 0.0
    %4841 = vmatpush1.msra.mxu0 0.0
    %4842 = vmatprep.subr.mxu0 0.0
    %4843 = vmatpush1.msra.mxu0 0.0
    %4844 = vmatprep.subr.mxu0 0.0
    %4845 = vmatpush1.msra.mxu0 0.0
    %4846 = vmatprep.subr.mxu0 0.0
    %4847 = vmatpush1.msra.mxu0 0.0
    %4848 = vmatprep.subr.mxu0 0.0
    %4849 = vmatpush1.msra.mxu0 0.0
    %4850 = vmatprep.subr.mxu0 0.0
    %4851 = vmatpush1.msra.mxu0 0.0
    %4852 = vmatprep.subr.mxu0 0.0
    %4853 = vmatpush1.msra.mxu0 0.0
    %4854 = vmatprep.subr.mxu0 0.0
    %4855 = vmatpush1.msra.mxu0 0.0
    %4856 = vmatprep.subr.mxu0 0.0
    %4857 = vmatpush1.msra.mxu0 0.0
    %4858 = vmatprep.subr.mxu0 0.0
    %4859 = vmatpush1.msra.mxu0 0.0
    %4860 = vmatprep.subr.mxu0 0.0
    %4861 = vmatpush1.msra.mxu0 0.0
    %4862 = vmatprep.subr.mxu0 0.0
    %4863 = vmatpush1.msra.mxu0 0.0
    %4864 = vmatprep.subr.mxu0 0.0
    %4865 = vmatpush1.msra.mxu0 0.0
    %4866 = vmatprep.subr.mxu0 0.0
    %4867 = vmatpush1.msra.mxu0 0.0
    %4868 = vmatprep.subr.mxu0 0.0
    %4869 = vmatpush1.msra.mxu0 0.0
    %4870 = vmatprep.subr.mxu0 0.0
    %4871 = vmatpush1.msra.mxu0 0.0
    %4872 = vmatprep.subr.mxu0 0.0
    %4873 = vmatpush1.msra.mxu0 0.0
    %4874 = vmatprep.subr.mxu0 0.0
    %4875 = vmatpush1.msra.mxu0 0.0
    %4876 = vmatprep.mubr.f32.mxu0 0.0
    %4877 = vmatmul.mubr.f32.gmra.mrb[0].mxu0 %v4740
    %v4878 = vpop.f32.mrb[0].mxu0
    %v4879 = vadd.f32 %v1710, %v4878
    %v4880 = vpop.f32.mrb[0].mxu0
    %4881 = vdwg.mxu0
    %4882 = vmatprep.subr.mxu0 0.0
    %4883 = vmatpush1.msra.mxu0 %v1615
    %4884 = vmatprep.subr.mxu0 0.0
    %4885 = vmatpush1.msra.mxu0 %v1616
    %4886 = vmatprep.subr.mxu0 0.0
    %4887 = vmatpush1.msra.mxu0 %v1617
    %4888 = vmatprep.subr.mxu0 0.0
    %4889 = vmatpush1.msra.mxu0 %v1618
    %4890 = vmatprep.subr.mxu0 0.0
    %4891 = vmatpush1.msra.mxu0 0.0
    %4892 = vmatprep.subr.mxu0 0.0
    %4893 = vmatpush1.msra.mxu0 0.0
    %4894 = vmatprep.subr.mxu0 0.0
    %4895 = vmatpush1.msra.mxu0 0.0
    %4896 = vmatprep.subr.mxu0 0.0
    %4897 = vmatpush1.msra.mxu0 0.0
    %4898 = vmatprep.subr.mxu0 0.0
    %4899 = vmatpush1.msra.mxu0 0.0
    %4900 = vmatprep.subr.mxu0 0.0
    %4901 = vmatpush1.msra.mxu0 0.0
    %4902 = vmatprep.subr.mxu0 0.0
    %4903 = vmatpush1.msra.mxu0 0.0
    %4904 = vmatprep.subr.mxu0 0.0
    %4905 = vmatpush1.msra.mxu0 0.0
    %4906 = vmatprep.subr.mxu0 0.0
    %4907 = vmatpush1.msra.mxu0 0.0
    %4908 = vmatprep.subr.mxu0 0.0
    %4909 = vmatpush1.msra.mxu0 0.0
    %4910 = vmatprep.subr.mxu0 0.0
    %4911 = vmatpush1.msra.mxu0 0.0
    %4912 = vmatprep.subr.mxu0 0.0
    %4913 = vmatpush1.msra.mxu0 0.0
    %4914 = vmatprep.subr.mxu0 0.0
    %4915 = vmatpush1.msra.mxu0 0.0
    %4916 = vmatprep.subr.mxu0 0.0
    %4917 = vmatpush1.msra.mxu0 0.0
    %4918 = vmatprep.subr.mxu0 0.0
    %4919 = vmatpush1.msra.mxu0 0.0
    %4920 = vmatprep.subr.mxu0 0.0
    %4921 = vmatpush1.msra.mxu0 0.0
    %4922 = vmatprep.subr.mxu0 0.0
    %4923 = vmatpush1.msra.mxu0 0.0
    %4924 = vmatprep.subr.mxu0 0.0
    %4925 = vmatpush1.msra.mxu0 0.0
    %4926 = vmatprep.subr.mxu0 0.0
    %4927 = vmatpush1.msra.mxu0 0.0
    %4928 = vmatprep.subr.mxu0 0.0
    %4929 = vmatpush1.msra.mxu0 0.0
    %4930 = vmatprep.subr.mxu0 0.0
    %4931 = vmatpush1.msra.mxu0 0.0
    %4932 = vmatprep.subr.mxu0 0.0
    %4933 = vmatpush1.msra.mxu0 0.0
    %4934 = vmatprep.subr.mxu0 0.0
    %4935 = vmatpush1.msra.mxu0 0.0
    %4936 = vmatprep.subr.mxu0 0.0
    %4937 = vmatpush1.msra.mxu0 0.0
    %4938 = vmatprep.subr.mxu0 0.0
    %4939 = vmatpush1.msra.mxu0 0.0
    %4940 = vmatprep.subr.mxu0 0.0
    %4941 = vmatpush1.msra.mxu0 0.0
    %4942 = vmatprep.subr.mxu0 0.0
    %4943 = vmatpush1.msra.mxu0 0.0
    %4944 = vmatprep.subr.mxu0 0.0
    %4945 = vmatpush1.msra.mxu0 0.0
    %4946 = vmatprep.mubr.f32.mxu0 0.0
    %4947 = vmatmul.mubr.f32.gmra.mrb[0].mxu0 %v4740
    %v4948 = vpop.f32.mrb[0].mxu0
    %v4949 = vadd.f32 %v1786, %v4948
    %v4950 = vpop.f32.mrb[0].mxu0
    %4951 = vdwg.mxu0
    %v4952 = vadd.f32 %v4736, %v4809
    %v4953 = vxor.u32 %v4952, 2147483648
    %v4954 = vmul.f32 %v4953, 1.442695
    %v4955 = vpow.pop %v4954
    %v4956 = vadd.f32 %v4955, 1.0
    %v4957 = vrcp.pop %v4956
    %v4958 = vmul.f32 1.0, %v4957
    %v4959 = vadd.f32 %v4737, %v4879
    %v4960 = vxor.u32 %v4959, 2147483648
    %v4961 = vmul.f32 %v4960, 1.442695
    %v4962 = vpow.pop %v4961
    %v4963 = vadd.f32 %v4962, 1.0
    %v4964 = vrcp.pop %v4963
    %v4965 = vmul.f32 1.0, %v4964
    %v4966 = vmul.f32 %v4958, %v4949
    %v4967 = vadd.f32 %v4738, %v4966
    %v4968 = vtanh.pop %v4967
    %v4969 = vsub.f32 1.0, %v4965
    %v4970 = vmul.f32 %v4969, %v4968
    %v4971 = vmul.f32 %v4965, %v4734
    %v4972 = vadd.f32 %v4970, %v4971
    %4973 = vst.msk [vmem:[#allocation5 + $0x68] sm:$0xff] %vm453, %v4972
    %v4974 = vld [vmem:[#allocation2 + $0x70] sm:$0xff]
    %v4975 = vld [vmem:[#allocation3 + $0x70] sm:$0xff]
    %v4976 = vld [vmem:[#allocation4 + $0x70] sm:$0xff]
    %v4978 = vsel %vm453, %v4972, 0
    %4980 = vmatprep.subr.mxu0 0.0
    %4981 = vmatpush1.msra.mxu0 %v1605
    %4982 = vmatprep.subr.mxu0 0.0
    %4983 = vmatpush1.msra.mxu0 %v1606
    %4984 = vmatprep.subr.mxu0 0.0
    %4985 = vmatpush1.msra.mxu0 %v1607
    %4986 = vmatprep.subr.mxu0 0.0
    %4987 = vmatpush1.msra.mxu0 %v1608
    %4988 = vmatprep.subr.mxu0 0.0
    %4989 = vmatpush1.msra.mxu0 0.0
    %4990 = vmatprep.subr.mxu0 0.0
    %4991 = vmatpush1.msra.mxu0 0.0
    %4992 = vmatprep.subr.mxu0 0.0
    %4993 = vmatpush1.msra.mxu0 0.0
    %4994 = vmatprep.subr.mxu0 0.0
    %4995 = vmatpush1.msra.mxu0 0.0
    %4996 = vmatprep.subr.mxu0 0.0
    %4997 = vmatpush1.msra.mxu0 0.0
    %4998 = vmatprep.subr.mxu0 0.0
    %4999 = vmatpush1.msra.mxu0 0.0
    %5000 = vmatprep.subr.mxu0 0.0
    %5001 = vmatpush1.msra.mxu0 0.0
    %5002 = vmatprep.subr.mxu0 0.0
    %5003 = vmatpush1.msra.mxu0 0.0
    %5004 = vmatprep.subr.mxu0 0.0
    %5005 = vmatpush1.msra.mxu0 0.0
    %5006 = vmatprep.subr.mxu0 0.0
    %5007 = vmatpush1.msra.mxu0 0.0
    %5008 = vmatprep.subr.mxu0 0.0
    %5009 = vmatpush1.msra.mxu0 0.0
    %5010 = vmatprep.subr.mxu0 0.0
    %5011 = vmatpush1.msra.mxu0 0.0
    %5012 = vmatprep.subr.mxu0 0.0
    %5013 = vmatpush1.msra.mxu0 0.0
    %5014 = vmatprep.subr.mxu0 0.0
    %5015 = vmatpush1.msra.mxu0 0.0
    %5016 = vmatprep.subr.mxu0 0.0
    %5017 = vmatpush1.msra.mxu0 0.0
    %5018 = vmatprep.subr.mxu0 0.0
    %5019 = vmatpush1.msra.mxu0 0.0
    %5020 = vmatprep.subr.mxu0 0.0
    %5021 = vmatpush1.msra.mxu0 0.0
    %5022 = vmatprep.subr.mxu0 0.0
    %5023 = vmatpush1.msra.mxu0 0.0
    %5024 = vmatprep.subr.mxu0 0.0
    %5025 = vmatpush1.msra.mxu0 0.0
    %5026 = vmatprep.subr.mxu0 0.0
    %5027 = vmatpush1.msra.mxu0 0.0
    %5028 = vmatprep.subr.mxu0 0.0
    %5029 = vmatpush1.msra.mxu0 0.0
    %5030 = vmatprep.subr.mxu0 0.0
    %5031 = vmatpush1.msra.mxu0 0.0
    %5032 = vmatprep.subr.mxu0 0.0
    %5033 = vmatpush1.msra.mxu0 0.0
    %5034 = vmatprep.subr.mxu0 0.0
    %5035 = vmatpush1.msra.mxu0 0.0
    %5036 = vmatprep.subr.mxu0 0.0
    %5037 = vmatpush1.msra.mxu0 0.0
    %5038 = vmatprep.subr.mxu0 0.0
    %5039 = vmatpush1.msra.mxu0 0.0
    %5040 = vmatprep.subr.mxu0 0.0
    %5041 = vmatpush1.msra.mxu0 0.0
    %5042 = vmatprep.subr.mxu0 0.0
    %5043 = vmatpush1.msra.mxu0 0.0
    %5044 = vmatprep.mubr.f32.mxu0 0.0
    %5045 = vmatmul.mubr.f32.gmra.mrb[0].mxu0 %v4978
    %v5046 = vpop.f32.mrb[0].mxu0
    %v5047 = vadd.f32 %v1631, %v5046
    %v5048 = vpop.f32.mrb[0].mxu0
    %5049 = vdwg.mxu0
    %5050 = vmatprep.subr.mxu0 0.0
    %5051 = vmatpush1.msra.mxu0 %v1610
    %5052 = vmatprep.subr.mxu0 0.0
    %5053 = vmatpush1.msra.mxu0 %v1611
    %5054 = vmatprep.subr.mxu0 0.0
    %5055 = vmatpush1.msra.mxu0 %v1612
    %5056 = vmatprep.subr.mxu0 0.0
    %5057 = vmatpush1.msra.mxu0 %v1613
    %5058 = vmatprep.subr.mxu0 0.0
    %5059 = vmatpush1.msra.mxu0 0.0
    %5060 = vmatprep.subr.mxu0 0.0
    %5061 = vmatpush1.msra.mxu0 0.0
    %5062 = vmatprep.subr.mxu0 0.0
    %5063 = vmatpush1.msra.mxu0 0.0
    %5064 = vmatprep.subr.mxu0 0.0
    %5065 = vmatpush1.msra.mxu0 0.0
    %5066 = vmatprep.subr.mxu0 0.0
    %5067 = vmatpush1.msra.mxu0 0.0
    %5068 = vmatprep.subr.mxu0 0.0
    %5069 = vmatpush1.msra.mxu0 0.0
    %5070 = vmatprep.subr.mxu0 0.0
    %5071 = vmatpush1.msra.mxu0 0.0
    %5072 = vmatprep.subr.mxu0 0.0
    %5073 = vmatpush1.msra.mxu0 0.0
    %5074 = vmatprep.subr.mxu0 0.0
    %5075 = vmatpush1.msra.mxu0 0.0
    %5076 = vmatprep.subr.mxu0 0.0
    %5077 = vmatpush1.msra.mxu0 0.0
    %5078 = vmatprep.subr.mxu0 0.0
    %5079 = vmatpush1.msra.mxu0 0.0
    %5080 = vmatprep.subr.mxu0 0.0
    %5081 = vmatpush1.msra.mxu0 0.0
    %5082 = vmatprep.subr.mxu0 0.0
    %5083 = vmatpush1.msra.mxu0 0.0
    %5084 = vmatprep.subr.mxu0 0.0
    %5085 = vmatpush1.msra.mxu0 0.0
    %5086 = vmatprep.subr.mxu0 0.0
    %5087 = vmatpush1.msra.mxu0 0.0
    %5088 = vmatprep.subr.mxu0 0.0
    %5089 = vmatpush1.msra.mxu0 0.0
    %5090 = vmatprep.subr.mxu0 0.0
    %5091 = vmatpush1.msra.mxu0 0.0
    %5092 = vmatprep.subr.mxu0 0.0
    %5093 = vmatpush1.msra.mxu0 0.0
    %5094 = vmatprep.subr.mxu0 0.0
    %5095 = vmatpush1.msra.mxu0 0.0
    %5096 = vmatprep.subr.mxu0 0.0
    %5097 = vmatpush1.msra.mxu0 0.0
    %5098 = vmatprep.subr.mxu0 0.0
    %5099 = vmatpush1.msra.mxu0 0.0
    %5100 = vmatprep.subr.mxu0 0.0
    %5101 = vmatpush1.msra.mxu0 0.0
    %5102 = vmatprep.subr.mxu0 0.0
    %5103 = vmatpush1.msra.mxu0 0.0
    %5104 = vmatprep.subr.mxu0 0.0
    %5105 = vmatpush1.msra.mxu0 0.0
    %5106 = vmatprep.subr.mxu0 0.0
    %5107 = vmatpush1.msra.mxu0 0.0
    %5108 = vmatprep.subr.mxu0 0.0
    %5109 = vmatpush1.msra.mxu0 0.0
    %5110 = vmatprep.subr.mxu0 0.0
    %5111 = vmatpush1.msra.mxu0 0.0
    %5112 = vmatprep.subr.mxu0 0.0
    %5113 = vmatpush1.msra.mxu0 0.0
    %5114 = vmatprep.mubr.f32.mxu0 0.0
    %5115 = vmatmul.mubr.f32.gmra.mrb[0].mxu0 %v4978
    %v5116 = vpop.f32.mrb[0].mxu0
    %v5117 = vadd.f32 %v1710, %v5116
    %v5118 = vpop.f32.mrb[0].mxu0
    %5119 = vdwg.mxu0
    %5120 = vmatprep.subr.mxu0 0.0
    %5121 = vmatpush1.msra.mxu0 %v1615
    %5122 = vmatprep.subr.mxu0 0.0
    %5123 = vmatpush1.msra.mxu0 %v1616
    %5124 = vmatprep.subr.mxu0 0.0
    %5125 = vmatpush1.msra.mxu0 %v1617
    %5126 = vmatprep.subr.mxu0 0.0
    %5127 = vmatpush1.msra.mxu0 %v1618
    %5128 = vmatprep.subr.mxu0 0.0
    %5129 = vmatpush1.msra.mxu0 0.0
    %5130 = vmatprep.subr.mxu0 0.0
    %5131 = vmatpush1.msra.mxu0 0.0
    %5132 = vmatprep.subr.mxu0 0.0
    %5133 = vmatpush1.msra.mxu0 0.0
    %5134 = vmatprep.subr.mxu0 0.0
    %5135 = vmatpush1.msra.mxu0 0.0
    %5136 = vmatprep.subr.mxu0 0.0
    %5137 = vmatpush1.msra.mxu0 0.0
    %5138 = vmatprep.subr.mxu0 0.0
    %5139 = vmatpush1.msra.mxu0 0.0
    %5140 = vmatprep.subr.mxu0 0.0
    %5141 = vmatpush1.msra.mxu0 0.0
    %5142 = vmatprep.subr.mxu0 0.0
    %5143 = vmatpush1.msra.mxu0 0.0
    %5144 = vmatprep.subr.mxu0 0.0
    %5145 = vmatpush1.msra.mxu0 0.0
    %5146 = vmatprep.subr.mxu0 0.0
    %5147 = vmatpush1.msra.mxu0 0.0
    %5148 = vmatprep.subr.mxu0 0.0
    %5149 = vmatpush1.msra.mxu0 0.0
    %5150 = vmatprep.subr.mxu0 0.0
    %5151 = vmatpush1.msra.mxu0 0.0
    %5152 = vmatprep.subr.mxu0 0.0
    %5153 = vmatpush1.msra.mxu0 0.0
    %5154 = vmatprep.subr.mxu0 0.0
    %5155 = vmatpush1.msra.mxu0 0.0
    %5156 = vmatprep.subr.mxu0 0.0
    %5157 = vmatpush1.msra.mxu0 0.0
    %5158 = vmatprep.subr.mxu0 0.0
    %5159 = vmatpush1.msra.mxu0 0.0
    %5160 = vmatprep.subr.mxu0 0.0
    %5161 = vmatpush1.msra.mxu0 0.0
    %5162 = vmatprep.subr.mxu0 0.0
    %5163 = vmatpush1.msra.mxu0 0.0
    %5164 = vmatprep.subr.mxu0 0.0
    %5165 = vmatpush1.msra.mxu0 0.0
    %5166 = vmatprep.subr.mxu0 0.0
    %5167 = vmatpush1.msra.mxu0 0.0
    %5168 = vmatprep.subr.mxu0 0.0
    %5169 = vmatpush1.msra.mxu0 0.0
    %5170 = vmatprep.subr.mxu0 0.0
    %5171 = vmatpush1.msra.mxu0 0.0
    %5172 = vmatprep.subr.mxu0 0.0
    %5173 = vmatpush1.msra.mxu0 0.0
    %5174 = vmatprep.subr.mxu0 0.0
    %5175 = vmatpush1.msra.mxu0 0.0
    %5176 = vmatprep.subr.mxu0 0.0
    %5177 = vmatpush1.msra.mxu0 0.0
    %5178 = vmatprep.subr.mxu0 0.0
    %5179 = vmatpush1.msra.mxu0 0.0
    %5180 = vmatprep.subr.mxu0 0.0
    %5181 = vmatpush1.msra.mxu0 0.0
    %5182 = vmatprep.subr.mxu0 0.0
    %5183 = vmatpush1.msra.mxu0 0.0
    %5184 = vmatprep.mubr.f32.mxu0 0.0
    %5185 = vmatmul.mubr.f32.gmra.mrb[0].mxu0 %v4978
    %v5186 = vpop.f32.mrb[0].mxu0
    %v5187 = vadd.f32 %v1786, %v5186
    %v5188 = vpop.f32.mrb[0].mxu0
    %5189 = vdwg.mxu0
    %v5190 = vadd.f32 %v4974, %v5047
    %v5191 = vxor.u32 %v5190, 2147483648
    %v5192 = vmul.f32 %v5191, 1.442695
    %v5193 = vpow.pop %v5192
    %v5194 = vadd.f32 %v5193, 1.0
    %v5195 = vrcp.pop %v5194
    %v5196 = vmul.f32 1.0, %v5195
    %v5197 = vadd.f32 %v4975, %v5117
    %v5198 = vxor.u32 %v5197, 2147483648
    %v5199 = vmul.f32 %v5198, 1.442695
    %v5200 = vpow.pop %v5199
    %v5201 = vadd.f32 %v5200, 1.0
    %v5202 = vrcp.pop %v5201
    %v5203 = vmul.f32 1.0, %v5202
    %v5204 = vmul.f32 %v5196, %v5187
    %v5205 = vadd.f32 %v4976, %v5204
    %v5206 = vtanh.pop %v5205
    %v5207 = vsub.f32 1.0, %v5203
    %v5208 = vmul.f32 %v5207, %v5206
    %v5209 = vmul.f32 %v5203, %v4972
    %v5210 = vadd.f32 %v5208, %v5209
    %5211 = vst.msk [vmem:[#allocation5 + $0x70] sm:$0xff] %vm453, %v5210
    %v5212 = vld [vmem:[#allocation2 + $0x78] sm:$0xff]
    %v5213 = vld [vmem:[#allocation3 + $0x78] sm:$0xff]
    %v5214 = vld [vmem:[#allocation4 + $0x78] sm:$0xff]
    %v5216 = vsel %vm453, %v5210, 0
    %5218 = vmatprep.subr.mxu0 0.0
    %5219 = vmatpush1.msra.mxu0 %v1605
    %5220 = vmatprep.subr.mxu0 0.0
    %5221 = vmatpush1.msra.mxu0 %v1606
    %5222 = vmatprep.subr.mxu0 0.0
    %5223 = vmatpush1.msra.mxu0 %v1607
    %5224 = vmatprep.subr.mxu0 0.0
    %5225 = vmatpush1.msra.mxu0 %v1608
    %5226 = vmatprep.subr.mxu0 0.0
    %5227 = vmatpush1.msra.mxu0 0.0
    %5228 = vmatprep.subr.mxu0 0.0
    %5229 = vmatpush1.msra.mxu0 0.0
    %5230 = vmatprep.subr.mxu0 0.0
    %5231 = vmatpush1.msra.mxu0 0.0
    %5232 = vmatprep.subr.mxu0 0.0
    %5233 = vmatpush1.msra.mxu0 0.0
    %5234 = vmatprep.subr.mxu0 0.0
    %5235 = vmatpush1.msra.mxu0 0.0
    %5236 = vmatprep.subr.mxu0 0.0
    %5237 = vmatpush1.msra.mxu0 0.0
    %5238 = vmatprep.subr.mxu0 0.0
    %5239 = vmatpush1.msra.mxu0 0.0
    %5240 = vmatprep.subr.mxu0 0.0
    %5241 = vmatpush1.msra.mxu0 0.0
    %5242 = vmatprep.subr.mxu0 0.0
    %5243 = vmatpush1.msra.mxu0 0.0
    %5244 = vmatprep.subr.mxu0 0.0
    %5245 = vmatpush1.msra.mxu0 0.0
    %5246 = vmatprep.subr.mxu0 0.0
    %5247 = vmatpush1.msra.mxu0 0.0
    %5248 = vmatprep.subr.mxu0 0.0
    %5249 = vmatpush1.msra.mxu0 0.0
    %5250 = vmatprep.subr.mxu0 0.0
    %5251 = vmatpush1.msra.mxu0 0.0
    %5252 = vmatprep.subr.mxu0 0.0
    %5253 = vmatpush1.msra.mxu0 0.0
    %5254 = vmatprep.subr.mxu0 0.0
    %5255 = vmatpush1.msra.mxu0 0.0
    %5256 = vmatprep.subr.mxu0 0.0
    %5257 = vmatpush1.msra.mxu0 0.0
    %5258 = vmatprep.subr.mxu0 0.0
    %5259 = vmatpush1.msra.mxu0 0.0
    %5260 = vmatprep.subr.mxu0 0.0
    %5261 = vmatpush1.msra.mxu0 0.0
    %5262 = vmatprep.subr.mxu0 0.0
    %5263 = vmatpush1.msra.mxu0 0.0
    %5264 = vmatprep.subr.mxu0 0.0
    %5265 = vmatpush1.msra.mxu0 0.0
    %5266 = vmatprep.subr.mxu0 0.0
    %5267 = vmatpush1.msra.mxu0 0.0
    %5268 = vmatprep.subr.mxu0 0.0
    %5269 = vmatpush1.msra.mxu0 0.0
    %5270 = vmatprep.subr.mxu0 0.0
    %5271 = vmatpush1.msra.mxu0 0.0
    %5272 = vmatprep.subr.mxu0 0.0
    %5273 = vmatpush1.msra.mxu0 0.0
    %5274 = vmatprep.subr.mxu0 0.0
    %5275 = vmatpush1.msra.mxu0 0.0
    %5276 = vmatprep.subr.mxu0 0.0
    %5277 = vmatpush1.msra.mxu0 0.0
    %5278 = vmatprep.subr.mxu0 0.0
    %5279 = vmatpush1.msra.mxu0 0.0
    %5280 = vmatprep.subr.mxu0 0.0
    %5281 = vmatpush1.msra.mxu0 0.0
    %5282 = vmatprep.mubr.f32.mxu0 0.0
    %5283 = vmatmul.mubr.f32.gmra.mrb[0].mxu0 %v5216
    %v5284 = vpop.f32.mrb[0].mxu0
    %v5285 = vadd.f32 %v1631, %v5284
    %v5286 = vpop.f32.mrb[0].mxu0
    %5287 = vdwg.mxu0
    %5288 = vmatprep.subr.mxu0 0.0
    %5289 = vmatpush1.msra.mxu0 %v1610
    %5290 = vmatprep.subr.mxu0 0.0
    %5291 = vmatpush1.msra.mxu0 %v1611
    %5292 = vmatprep.subr.mxu0 0.0
    %5293 = vmatpush1.msra.mxu0 %v1612
    %5294 = vmatprep.subr.mxu0 0.0
    %5295 = vmatpush1.msra.mxu0 %v1613
    %5296 = vmatprep.subr.mxu0 0.0
    %5297 = vmatpush1.msra.mxu0 0.0
    %5298 = vmatprep.subr.mxu0 0.0
    %5299 = vmatpush1.msra.mxu0 0.0
    %5300 = vmatprep.subr.mxu0 0.0
    %5301 = vmatpush1.msra.mxu0 0.0
    %5302 = vmatprep.subr.mxu0 0.0
    %5303 = vmatpush1.msra.mxu0 0.0
    %5304 = vmatprep.subr.mxu0 0.0
    %5305 = vmatpush1.msra.mxu0 0.0
    %5306 = vmatprep.subr.mxu0 0.0
    %5307 = vmatpush1.msra.mxu0 0.0
    %5308 = vmatprep.subr.mxu0 0.0
    %5309 = vmatpush1.msra.mxu0 0.0
    %5310 = vmatprep.subr.mxu0 0.0
    %5311 = vmatpush1.msra.mxu0 0.0
    %5312 = vmatprep.subr.mxu0 0.0
    %5313 = vmatpush1.msra.mxu0 0.0
    %5314 = vmatprep.subr.mxu0 0.0
    %5315 = vmatpush1.msra.mxu0 0.0
    %5316 = vmatprep.subr.mxu0 0.0
    %5317 = vmatpush1.msra.mxu0 0.0
    %5318 = vmatprep.subr.mxu0 0.0
    %5319 = vmatpush1.msra.mxu0 0.0
    %5320 = vmatprep.subr.mxu0 0.0
    %5321 = vmatpush1.msra.mxu0 0.0
    %5322 = vmatprep.subr.mxu0 0.0
    %5323 = vmatpush1.msra.mxu0 0.0
    %5324 = vmatprep.subr.mxu0 0.0
    %5325 = vmatpush1.msra.mxu0 0.0
    %5326 = vmatprep.subr.mxu0 0.0
    %5327 = vmatpush1.msra.mxu0 0.0
    %5328 = vmatprep.subr.mxu0 0.0
    %5329 = vmatpush1.msra.mxu0 0.0
    %5330 = vmatprep.subr.mxu0 0.0
    %5331 = vmatpush1.msra.mxu0 0.0
    %5332 = vmatprep.subr.mxu0 0.0
    %5333 = vmatpush1.msra.mxu0 0.0
    %5334 = vmatprep.subr.mxu0 0.0
    %5335 = vmatpush1.msra.mxu0 0.0
    %5336 = vmatprep.subr.mxu0 0.0
    %5337 = vmatpush1.msra.mxu0 0.0
    %5338 = vmatprep.subr.mxu0 0.0
    %5339 = vmatpush1.msra.mxu0 0.0
    %5340 = vmatprep.subr.mxu0 0.0
    %5341 = vmatpush1.msra.mxu0 0.0
    %5342 = vmatprep.subr.mxu0 0.0
    %5343 = vmatpush1.msra.mxu0 0.0
    %5344 = vmatprep.subr.mxu0 0.0
    %5345 = vmatpush1.msra.mxu0 0.0
    %5346 = vmatprep.subr.mxu0 0.0
    %5347 = vmatpush1.msra.mxu0 0.0
    %5348 = vmatprep.subr.mxu0 0.0
    %5349 = vmatpush1.msra.mxu0 0.0
    %5350 = vmatprep.subr.mxu0 0.0
    %5351 = vmatpush1.msra.mxu0 0.0
    %5352 = vmatprep.mubr.f32.mxu0 0.0
    %5353 = vmatmul.mubr.f32.gmra.mrb[0].mxu0 %v5216
    %v5354 = vpop.f32.mrb[0].mxu0
    %v5355 = vadd.f32 %v1710, %v5354
    %v5356 = vpop.f32.mrb[0].mxu0
    %5357 = vdwg.mxu0
    %5358 = vmatprep.subr.mxu0 0.0
    %5359 = vmatpush1.msra.mxu0 %v1615
    %5360 = vmatprep.subr.mxu0 0.0
    %5361 = vmatpush1.msra.mxu0 %v1616
    %5362 = vmatprep.subr.mxu0 0.0
    %5363 = vmatpush1.msra.mxu0 %v1617
    %5364 = vmatprep.subr.mxu0 0.0
    %5365 = vmatpush1.msra.mxu0 %v1618
    %5366 = vmatprep.subr.mxu0 0.0
    %5367 = vmatpush1.msra.mxu0 0.0
    %5368 = vmatprep.subr.mxu0 0.0
    %5369 = vmatpush1.msra.mxu0 0.0
    %5370 = vmatprep.subr.mxu0 0.0
    %5371 = vmatpush1.msra.mxu0 0.0
    %5372 = vmatprep.subr.mxu0 0.0
    %5373 = vmatpush1.msra.mxu0 0.0
    %5374 = vmatprep.subr.mxu0 0.0
    %5375 = vmatpush1.msra.mxu0 0.0
    %5376 = vmatprep.subr.mxu0 0.0
    %5377 = vmatpush1.msra.mxu0 0.0
    %5378 = vmatprep.subr.mxu0 0.0
    %5379 = vmatpush1.msra.mxu0 0.0
    %5380 = vmatprep.subr.mxu0 0.0
    %5381 = vmatpush1.msra.mxu0 0.0
    %5382 = vmatprep.subr.mxu0 0.0
    %5383 = vmatpush1.msra.mxu0 0.0
    %5384 = vmatprep.subr.mxu0 0.0
    %5385 = vmatpush1.msra.mxu0 0.0
    %5386 = vmatprep.subr.mxu0 0.0
    %5387 = vmatpush1.msra.mxu0 0.0
    %5388 = vmatprep.subr.mxu0 0.0
    %5389 = vmatpush1.msra.mxu0 0.0
    %5390 = vmatprep.subr.mxu0 0.0
    %5391 = vmatpush1.msra.mxu0 0.0
    %5392 = vmatprep.subr.mxu0 0.0
    %5393 = vmatpush1.msra.mxu0 0.0
    %5394 = vmatprep.subr.mxu0 0.0
    %5395 = vmatpush1.msra.mxu0 0.0
    %5396 = vmatprep.subr.mxu0 0.0
    %5397 = vmatpush1.msra.mxu0 0.0
    %5398 = vmatprep.subr.mxu0 0.0
    %5399 = vmatpush1.msra.mxu0 0.0
    %5400 = vmatprep.subr.mxu0 0.0
    %5401 = vmatpush1.msra.mxu0 0.0
    %5402 = vmatprep.subr.mxu0 0.0
    %5403 = vmatpush1.msra.mxu0 0.0
    %5404 = vmatprep.subr.mxu0 0.0
    %5405 = vmatpush1.msra.mxu0 0.0
    %5406 = vmatprep.subr.mxu0 0.0
    %5407 = vmatpush1.msra.mxu0 0.0
    %5408 = vmatprep.subr.mxu0 0.0
    %5409 = vmatpush1.msra.mxu0 0.0
    %5410 = vmatprep.subr.mxu0 0.0
    %5411 = vmatpush1.msra.mxu0 0.0
    %5412 = vmatprep.subr.mxu0 0.0
    %5413 = vmatpush1.msra.mxu0 0.0
    %5414 = vmatprep.subr.mxu0 0.0
    %5415 = vmatpush1.msra.mxu0 0.0
    %5416 = vmatprep.subr.mxu0 0.0
    %5417 = vmatpush1.msra.mxu0 0.0
    %5418 = vmatprep.subr.mxu0 0.0
    %5419 = vmatpush1.msra.mxu0 0.0
    %5420 = vmatprep.subr.mxu0 0.0
    %5421 = vmatpush1.msra.mxu0 0.0
    %5422 = vmatprep.mubr.f32.mxu0 0.0
    %5423 = vmatmul.mubr.f32.gmra.mrb[0].mxu0 %v5216
    %v5424 = vpop.f32.mrb[0].mxu0
    %v5425 = vadd.f32 %v1786, %v5424
    %v5426 = vpop.f32.mrb[0].mxu0
    %5427 = vdwg.mxu0
    %v5428 = vadd.f32 %v5212, %v5285
    %v5429 = vxor.u32 %v5428, 2147483648
    %v5430 = vmul.f32 %v5429, 1.442695
    %v5431 = vpow.pop %v5430
    %v5432 = vadd.f32 %v5431, 1.0
    %v5433 = vrcp.pop %v5432
    %v5434 = vmul.f32 1.0, %v5433
    %v5435 = vadd.f32 %v5213, %v5355
    %v5436 = vxor.u32 %v5435, 2147483648
    %v5437 = vmul.f32 %v5436, 1.442695
    %v5438 = vpow.pop %v5437
    %v5439 = vadd.f32 %v5438, 1.0
    %v5440 = vrcp.pop %v5439
    %v5441 = vmul.f32 1.0, %v5440
    %v5442 = vmul.f32 %v5434, %v5425
    %v5443 = vadd.f32 %v5214, %v5442
    %v5444 = vtanh.pop %v5443
    %v5445 = vsub.f32 1.0, %v5441
    %v5446 = vmul.f32 %v5445, %v5444
    %v5447 = vmul.f32 %v5441, %v5210
    %v5448 = vadd.f32 %v5446, %v5447
    %5449 = vst.msk [vmem:[#allocation5 + $0x78] sm:$0xff] %vm453, %v5448
    %v5450 = vld [vmem:[#allocation5 + $0x40] sm:$0xff]
    %v5451 = vld [vmem:[#allocation5 + $0x48] sm:$0xff]
    %v5452 = vld [vmem:[#allocation5 + $0x50] sm:$0xff]
    %v5453 = vld [vmem:[#allocation5 + $0x58] sm:$0xff]
    %v5454 = vld [vmem:[#allocation5 + $0x60] sm:$0xff]
    %v5455 = vld [vmem:[#allocation5 + $0x68] sm:$0xff]
    %v5456 = vld [vmem:[#allocation5 + $0x70] sm:$0xff]
    %v5457 = vld [vmem:[#allocation5 + $0x78] sm:$0xff]
    %v5458 = vld [vmem:[%s1] sm:$0xff]
    %v5459 = vld [vmem:[%s1 + $0x8] sm:$0xff]
    %v5460 = vld [vmem:[%s1 + $0x10] sm:$0xff]
    %v5461 = vld [vmem:[%s1 + $0x18] sm:$0xff]
    %v5462 = vld [vmem:[%s1 + $0x20] sm:$0xff]
    %v5463 = vld [vmem:[%s1 + $0x28] sm:$0xff]
    %v5464 = vld [vmem:[%s1 + $0x30] sm:$0xff]
    %v5465 = vld [vmem:[%s1 + $0x38] sm:$0xff]
    %v5466 = vpack.c.bf16 %v5459, %v5458
    %v5467 = vpack.c.bf16 %v5461, %v5460
    %v5468 = vpack.c.bf16 %v5463, %v5462
    %v5469 = vpack.c.bf16 %v5465, %v5464
    %v5470 = vld [vmem:[%s16] sm:$0xf]
    %v5471 = vld [vmem:[%s16 + $0x4] sm:$0xf]
    %v5472 = vld [vmem:[%s16 + $0x8] sm:$0xf]
    %v5473 = vld [vmem:[%s16 + $0xc] sm:$0xf]
    %v5474 = vpack.c.bf16 %v5451, %v5450
    %v5475 = vpack.c.bf16 %v5453, %v5452
    %v5476 = vpack.c.bf16 %v5455, %v5454
    %v5477 = vpack.c.bf16 %v5457, %v5456
    %s5478 = scalar_lea.vmem %s16, 16
    %v5479 = vld [vmem:[%s5478] sm:$0xf]
    %v5480 = vld [vmem:[%s5478 + $0x4] sm:$0xf]
    %v5481 = vld [vmem:[%s5478 + $0x8] sm:$0xf]
    %v5482 = vld [vmem:[%s5478 + $0xc] sm:$0xf]
    %v5487 = vunpack.c.l.b16 %v5479
    %v5488 = vunpack.c.l.b16 %v5480
    %v5489 = vunpack.c.l.b16 %v5481
    %v5490 = vunpack.c.l.b16 %v5482
    %v5491 = vpack.c.b16 %v5488, %v5487
    %v5492 = vpack.c.b16 %v5490, %v5489
    %v5496 = vsel %vm453, %v5474, 0
    %v5499 = vsel %vm453, %v5475, 0
    %v5502 = vsel %vm453, %v5476, 0
    %v5505 = vsel %vm453, %v5477, 0
    %5507 = vmatprep.subr.bf16.mxu0 0
    %5508 = vmatpush1.bf16.msra.mxu0 %v5491
    %5509 = vmatprep.subr.bf16.mxu0 0
    %5510 = vmatpush1.bf16.msra.mxu0 %v5492
    %5511 = vmatprep.subr.bf16.mxu0 0
    %5512 = vmatpush1.bf16.msra.mxu0 0
    %5513 = vmatprep.subr.bf16.mxu0 0
    %5514 = vmatpush1.bf16.msra.mxu0 0
    %5515 = vmatprep.subr.bf16.mxu0 0
    %5516 = vmatpush1.bf16.msra.mxu0 0
    %5517 = vmatprep.subr.bf16.mxu0 0
    %5518 = vmatpush1.bf16.msra.mxu0 0
    %5519 = vmatprep.subr.bf16.mxu0 0
    %5520 = vmatpush1.bf16.msra.mxu0 0
    %5521 = vmatprep.subr.bf16.mxu0 0
    %5522 = vmatpush1.bf16.msra.mxu0 0
    %5523 = vmatprep.subr.bf16.mxu0 0
    %5524 = vmatpush1.bf16.msra.mxu0 0
    %5525 = vmatprep.subr.bf16.mxu0 0
    %5526 = vmatpush1.bf16.msra.mxu0 0
    %5527 = vmatprep.subr.bf16.mxu0 0
    %5528 = vmatpush1.bf16.msra.mxu0 0
    %5529 = vmatprep.subr.bf16.mxu0 0
    %5530 = vmatpush1.bf16.msra.mxu0 0
    %5531 = vmatprep.subr.bf16.mxu0 0
    %5532 = vmatpush1.bf16.msra.mxu0 0
    %5533 = vmatprep.subr.bf16.mxu0 0
    %5534 = vmatpush1.bf16.msra.mxu0 0
    %5535 = vmatprep.subr.bf16.mxu0 0
    %5536 = vmatpush1.bf16.msra.mxu0 0
    %5537 = vmatprep.subr.bf16.mxu0 0
    %5538 = vmatpush1.bf16.msra.mxu0 0
    %5539 = vmatprep.mubr.bf16.mxu0 0
    %5540 = vmatmul.mubr.bf16.gmra.mrb[0].mxu0 %v5496
    %v5541 = vpop.f32.mrb[0].mxu0
    %v5542 = vadd.f32 0.0, %v5541
    %v5543 = vpop.f32.mrb[0].mxu0
    %v5544 = vpop.f32.mrb[0].mxu0
    %v5545 = vadd.f32 0.0, %v5544
    %v5546 = vpop.f32.mrb[0].mxu0
    %5547 = vmatprep.mubr.bf16.mxu0 0
    %5548 = vmatmul.mubr.bf16.gmra.mrb[0].mxu0 %v5499
    %v5549 = vpop.f32.mrb[0].mxu0
    %v5550 = vadd.f32 0.0, %v5549
    %v5551 = vpop.f32.mrb[0].mxu0
    %v5552 = vpop.f32.mrb[0].mxu0
    %v5553 = vadd.f32 0.0, %v5552
    %v5554 = vpop.f32.mrb[0].mxu0
    %5555 = vmatprep.mubr.bf16.mxu0 0
    %5556 = vmatmul.mubr.bf16.gmra.mrb[0].mxu0 %v5502
    %v5557 = vpop.f32.mrb[0].mxu0
    %v5558 = vadd.f32 0.0, %v5557
    %v5559 = vpop.f32.mrb[0].mxu0
    %v5560 = vpop.f32.mrb[0].mxu0
    %v5561 = vadd.f32 0.0, %v5560
    %v5562 = vpop.f32.mrb[0].mxu0
    %5563 = vmatprep.mubr.bf16.mxu0 0
    %5564 = vmatmul.mubr.bf16.gmra.mrb[0].mxu0 %v5505
    %v5565 = vpop.f32.mrb[0].mxu0
    %v5566 = vadd.f32 0.0, %v5565
    %v5567 = vpop.f32.mrb[0].mxu0
    %v5568 = vpop.f32.mrb[0].mxu0
    %v5569 = vadd.f32 0.0, %v5568
    %v5570 = vpop.f32.mrb[0].mxu0
    %5571 = vdwg.mxu0
    %v5576 = vunpack.c.l.b16 %v5470
    %v5577 = vunpack.c.l.b16 %v5471
    %v5578 = vunpack.c.l.b16 %v5472
    %v5579 = vunpack.c.l.b16 %v5473
    %v5580 = vpack.c.b16 %v5577, %v5576
    %v5581 = vpack.c.b16 %v5579, %v5578
    %v5585 = vsel %vm453, %v5466, 0
    %v5588 = vsel %vm453, %v5467, 0
    %v5591 = vsel %vm453, %v5468, 0
    %v5594 = vsel %vm453, %v5469, 0
    %5596 = vmatprep.subr.bf16.mxu0 0
    %5597 = vmatpush1.bf16.msra.mxu0 %v5580
    %5598 = vmatprep.subr.bf16.mxu0 0
    %5599 = vmatpush1.bf16.msra.mxu0 %v5581
    %5600 = vmatprep.subr.bf16.mxu0 0
    %5601 = vmatpush1.bf16.msra.mxu0 0
    %5602 = vmatprep.subr.bf16.mxu0 0
    %5603 = vmatpush1.bf16.msra.mxu0 0
    %5604 = vmatprep.subr.bf16.mxu0 0
    %5605 = vmatpush1.bf16.msra.mxu0 0
    %5606 = vmatprep.subr.bf16.mxu0 0
    %5607 = vmatpush1.bf16.msra.mxu0 0
    %5608 = vmatprep.subr.bf16.mxu0 0
    %5609 = vmatpush1.bf16.msra.mxu0 0
    %5610 = vmatprep.subr.bf16.mxu0 0
    %5611 = vmatpush1.bf16.msra.mxu0 0
    %5612 = vmatprep.subr.bf16.mxu0 0
    %5613 = vmatpush1.bf16.msra.mxu0 0
    %5614 = vmatprep.subr.bf16.mxu0 0
    %5615 = vmatpush1.bf16.msra.mxu0 0
    %5616 = vmatprep.subr.bf16.mxu0 0
    %5617 = vmatpush1.bf16.msra.mxu0 0
    %5618 = vmatprep.subr.bf16.mxu0 0
    %5619 = vmatpush1.bf16.msra.mxu0 0
    %5620 = vmatprep.subr.bf16.mxu0 0
    %5621 = vmatpush1.bf16.msra.mxu0 0
    %5622 = vmatprep.subr.bf16.mxu0 0
    %5623 = vmatpush1.bf16.msra.mxu0 0
    %5624 = vmatprep.subr.bf16.mxu0 0
    %5625 = vmatpush1.bf16.msra.mxu0 0
    %5626 = vmatprep.subr.bf16.mxu0 0
    %5627 = vmatpush1.bf16.msra.mxu0 0
    %5628 = vmatprep.mubr.bf16.mxu0 0
    %5629 = vmatmul.mubr.bf16.gmra.mrb[0].mxu0 %v5585
    %v5630 = vpop.f32.mrb[0].mxu0
    %v5631 = vadd.f32 %v5542, %v5630
    %v5632 = vpop.f32.mrb[0].mxu0
    %v5633 = vpop.f32.mrb[0].mxu0
    %v5634 = vadd.f32 %v5545, %v5633
    %v5635 = vpop.f32.mrb[0].mxu0
    %5636 = vmatprep.mubr.bf16.mxu0 0
    %5637 = vmatmul.mubr.bf16.gmra.mrb[0].mxu0 %v5588
    %v5638 = vpop.f32.mrb[0].mxu0
    %v5639 = vadd.f32 %v5550, %v5638
    %v5640 = vpop.f32.mrb[0].mxu0
    %v5641 = vpop.f32.mrb[0].mxu0
    %v5642 = vadd.f32 %v5553, %v5641
    %v5643 = vpop.f32.mrb[0].mxu0
    %5644 = vmatprep.mubr.bf16.mxu0 0
    %5645 = vmatmul.mubr.bf16.gmra.mrb[0].mxu0 %v5591
    %v5646 = vpop.f32.mrb[0].mxu0
    %v5647 = vadd.f32 %v5558, %v5646
    %v5648 = vpop.f32.mrb[0].mxu0
    %v5649 = vpop.f32.mrb[0].mxu0
    %v5650 = vadd.f32 %v5561, %v5649
    %v5651 = vpop.f32.mrb[0].mxu0
    %5652 = vmatprep.mubr.bf16.mxu0 0
    %5653 = vmatmul.mubr.bf16.gmra.mrb[0].mxu0 %v5594
    %v5654 = vpop.f32.mrb[0].mxu0
    %v5655 = vadd.f32 %v5566, %v5654
    %v5656 = vpop.f32.mrb[0].mxu0
    %v5657 = vpop.f32.mrb[0].mxu0
    %v5658 = vadd.f32 %v5569, %v5657
    %v5659 = vpop.f32.mrb[0].mxu0
    %5660 = vdwg.mxu0
    %v5661 = vld [vmem:[%s2] sm:$0xff]
    %v5662 = vld [vmem:[%s2 + $0x8] sm:$0xff]
    %v5663 = vld [vmem:[%s2 + $0x10] sm:$0xff]
    %v5664 = vld [vmem:[%s2 + $0x18] sm:$0xff]
    %v5665 = vld [vmem:[%s2 + $0x20] sm:$0xff]
    %v5666 = vld [vmem:[%s2 + $0x28] sm:$0xff]
    %v5667 = vld [vmem:[%s2 + $0x30] sm:$0xff]
    %v5668 = vld [vmem:[%s2 + $0x38] sm:$0xff]
    %v5669 = vpack.c.bf16 %v5662, %v5661
    %v5670 = vpack.c.bf16 %v5664, %v5663
    %v5671 = vpack.c.bf16 %v5666, %v5665
    %v5672 = vpack.c.bf16 %v5668, %v5667
    %s5673 = scalar_lea.vmem %s16, 32
    %v5674 = vld [vmem:[%s5673] sm:$0xf]
    %v5675 = vld [vmem:[%s5673 + $0x4] sm:$0xf]
    %v5676 = vld [vmem:[%s5673 + $0x8] sm:$0xf]
    %v5677 = vld [vmem:[%s5673 + $0xc] sm:$0xf]
    %v5682 = vunpack.c.l.b16 %v5674
    %v5683 = vunpack.c.l.b16 %v5675
    %v5684 = vunpack.c.l.b16 %v5676
    %v5685 = vunpack.c.l.b16 %v5677
    %v5686 = vpack.c.b16 %v5683, %v5682
    %v5687 = vpack.c.b16 %v5685, %v5684
    %v5691 = vsel %vm453, %v5669, 0
    %v5694 = vsel %vm453, %v5670, 0
    %v5697 = vsel %vm453, %v5671, 0
    %v5700 = vsel %vm453, %v5672, 0
    %5702 = vmatprep.subr.bf16.mxu0 0
    %5703 = vmatpush1.bf16.msra.mxu0 %v5686
    %5704 = vmatprep.subr.bf16.mxu0 0
    %5705 = vmatpush1.bf16.msra.mxu0 %v5687
    %5706 = vmatprep.subr.bf16.mxu0 0
    %5707 = vmatpush1.bf16.msra.mxu0 0
    %5708 = vmatprep.subr.bf16.mxu0 0
    %5709 = vmatpush1.bf16.msra.mxu0 0
    %5710 = vmatprep.subr.bf16.mxu0 0
    %5711 = vmatpush1.bf16.msra.mxu0 0
    %5712 = vmatprep.subr.bf16.mxu0 0
    %5713 = vmatpush1.bf16.msra.mxu0 0
    %5714 = vmatprep.subr.bf16.mxu0 0
    %5715 = vmatpush1.bf16.msra.mxu0 0
    %5716 = vmatprep.subr.bf16.mxu0 0
    %5717 = vmatpush1.bf16.msra.mxu0 0
    %5718 = vmatprep.subr.bf16.mxu0 0
    %5719 = vmatpush1.bf16.msra.mxu0 0
    %5720 = vmatprep.subr.bf16.mxu0 0
    %5721 = vmatpush1.bf16.msra.mxu0 0
    %5722 = vmatprep.subr.bf16.mxu0 0
    %5723 = vmatpush1.bf16.msra.mxu0 0
    %5724 = vmatprep.subr.bf16.mxu0 0
    %5725 = vmatpush1.bf16.msra.mxu0 0
    %5726 = vmatprep.subr.bf16.mxu0 0
    %5727 = vmatpush1.bf16.msra.mxu0 0
    %5728 = vmatprep.subr.bf16.mxu0 0
    %5729 = vmatpush1.bf16.msra.mxu0 0
    %5730 = vmatprep.subr.bf16.mxu0 0
    %5731 = vmatpush1.bf16.msra.mxu0 0
    %5732 = vmatprep.subr.bf16.mxu0 0
    %5733 = vmatpush1.bf16.msra.mxu0 0
    %5734 = vmatprep.mubr.bf16.mxu0 0
    %5735 = vmatmul.mubr.bf16.gmra.mrb[0].mxu0 %v5691
    %v5736 = vpop.f32.mrb[0].mxu0
    %v5737 = vadd.f32 0.0, %v5736
    %v5738 = vpop.f32.mrb[0].mxu0
    %v5739 = vpop.f32.mrb[0].mxu0
    %v5740 = vadd.f32 0.0, %v5739
    %v5741 = vpop.f32.mrb[0].mxu0
    %5742 = vmatprep.mubr.bf16.mxu0 0
    %5743 = vmatmul.mubr.bf16.gmra.mrb[0].mxu0 %v5694
    %v5744 = vpop.f32.mrb[0].mxu0
    %v5745 = vadd.f32 0.0, %v5744
    %v5746 = vpop.f32.mrb[0].mxu0
    %v5747 = vpop.f32.mrb[0].mxu0
    %v5748 = vadd.f32 0.0, %v5747
    %v5749 = vpop.f32.mrb[0].mxu0
    %5750 = vmatprep.mubr.bf16.mxu0 0
    %5751 = vmatmul.mubr.bf16.gmra.mrb[0].mxu0 %v5697
    %v5752 = vpop.f32.mrb[0].mxu0
    %v5753 = vadd.f32 0.0, %v5752
    %v5754 = vpop.f32.mrb[0].mxu0
    %v5755 = vpop.f32.mrb[0].mxu0
    %v5756 = vadd.f32 0.0, %v5755
    %v5757 = vpop.f32.mrb[0].mxu0
    %5758 = vmatprep.mubr.bf16.mxu0 0
    %5759 = vmatmul.mubr.bf16.gmra.mrb[0].mxu0 %v5700
    %v5760 = vpop.f32.mrb[0].mxu0
    %v5761 = vadd.f32 0.0, %v5760
    %v5762 = vpop.f32.mrb[0].mxu0
    %v5763 = vpop.f32.mrb[0].mxu0
    %v5764 = vadd.f32 0.0, %v5763
    %v5765 = vpop.f32.mrb[0].mxu0
    %5766 = vdwg.mxu0
    %v5767 = vadd.f32 %v5631, %v5737
    %v5768 = vadd.f32 %v5634, %v5740
    %v5769 = vadd.f32 %v5639, %v5745
    %v5770 = vadd.f32 %v5642, %v5748
    %v5771 = vadd.f32 %v5647, %v5753
    %v5772 = vadd.f32 %v5650, %v5756
    %v5773 = vadd.f32 %v5655, %v5761
    %v5774 = vadd.f32 %v5658, %v5764
    %v5775 = vld [vmem:[#allocation13] sm:$0x1]
    %v5777 = vlaneseq
    %v5778 = vshrl.u32 %v5777, 7
    %v5779 = vsub.s32 0, %v5778
    %v5780 = vrot.slane %v5775, %v5779
    %v5782 = vadd.f32 %v5767, %v5780
    %v5783 = vadd.f32 %v5768, %v5780
    %v5784 = vadd.f32 %v5769, %v5780
    %v5785 = vadd.f32 %v5770, %v5780
    %v5786 = vadd.f32 %v5771, %v5780
    %v5787 = vadd.f32 %v5772, %v5780
    %v5788 = vadd.f32 %v5773, %v5780
    %v5789 = vadd.f32 %v5774, %v5780
    %v5790 = vld [vmem:[%s3] sm:$0xff]
    %v5791 = vpack.c.bf16 %v5790, %v5790
    %s5792 = scalar_lea.vmem %s16, 48
    %v5793 = vld [vmem:[%s5792] sm:$0xf]
    %v5794 = vld [vmem:[%s5792 + $0x4] sm:$0xf]
    %v5795 = vld [vmem:[%s5792 + $0x8] sm:$0xf]
    %v5796 = vld [vmem:[%s5792 + $0xc] sm:$0xf]
    %v5801 = vunpack.c.l.b16 %v5793
    %v5802 = vunpack.c.l.b16 %v5794
    %v5803 = vunpack.c.l.b16 %v5795
    %v5804 = vunpack.c.l.b16 %v5796
    %v5805 = vpack.c.b16 %v5802, %v5801
    %v5806 = vpack.c.b16 %v5804, %v5803
    %v5810 = vsel %vm453, %v5791, 0
    %5812 = vmatprep.subr.bf16.mxu0 0
    %5813 = vmatpush1.bf16.msra.mxu0 %v5805
    %5814 = vmatprep.subr.bf16.mxu0 0
    %5815 = vmatpush1.bf16.msra.mxu0 %v5806
    %5816 = vmatprep.subr.bf16.mxu0 0
    %5817 = vmatpush1.bf16.msra.mxu0 0
    %5818 = vmatprep.subr.bf16.mxu0 0
    %5819 = vmatpush1.bf16.msra.mxu0 0
    %5820 = vmatprep.subr.bf16.mxu0 0
    %5821 = vmatpush1.bf16.msra.mxu0 0
    %5822 = vmatprep.subr.bf16.mxu0 0
    %5823 = vmatpush1.bf16.msra.mxu0 0
    %5824 = vmatprep.subr.bf16.mxu0 0
    %5825 = vmatpush1.bf16.msra.mxu0 0
    %5826 = vmatprep.subr.bf16.mxu0 0
    %5827 = vmatpush1.bf16.msra.mxu0 0
    %5828 = vmatprep.subr.bf16.mxu0 0
    %5829 = vmatpush1.bf16.msra.mxu0 0
    %5830 = vmatprep.subr.bf16.mxu0 0
    %5831 = vmatpush1.bf16.msra.mxu0 0
    %5832 = vmatprep.subr.bf16.mxu0 0
    %5833 = vmatpush1.bf16.msra.mxu0 0
    %5834 = vmatprep.subr.bf16.mxu0 0
    %5835 = vmatpush1.bf16.msra.mxu0 0
    %5836 = vmatprep.subr.bf16.mxu0 0
    %5837 = vmatpush1.bf16.msra.mxu0 0
    %5838 = vmatprep.subr.bf16.mxu0 0
    %5839 = vmatpush1.bf16.msra.mxu0 0
    %5840 = vmatprep.subr.bf16.mxu0 0
    %5841 = vmatpush1.bf16.msra.mxu0 0
    %5842 = vmatprep.subr.bf16.mxu0 0
    %5843 = vmatpush1.bf16.msra.mxu0 0
    %5844 = vmatprep.mubr.bf16.mxu0 0
    %5845 = vmatmul.mubr.bf16.gmra.mrb[0].mxu0 %v5810
    %v5846 = vpop.f32.mrb[0].mxu0
    %v5847 = vadd.f32 0.0, %v5846
    %v5848 = vpop.f32.mrb[0].mxu0
    %v5849 = vpop.f32.mrb[0].mxu0
    %v5850 = vpop.f32.mrb[0].mxu0
    %5851 = vdwg.mxu0
    %v5852 = vadd.f32 %v5782, %v5847
    %v5853 = vadd.f32 %v5783, %v5847
    %v5854 = vadd.f32 %v5784, %v5847
    %v5855 = vadd.f32 %v5785, %v5847
    %v5856 = vadd.f32 %v5786, %v5847
    %v5857 = vadd.f32 %v5787, %v5847
    %v5858 = vadd.f32 %v5788, %v5847
    %v5859 = vadd.f32 %v5789, %v5847
    %v5860 = vld [vmem:[#allocation14] sm:$0x1]
    %v5861 = vld [vmem:[#allocation16] sm:$0x1]
    %v5862 = vsel %vm453, %v5852, 0.0
    %5863 = vadd.xlane.f32.xlu0 %v5862
    %v5864 = vpop.xlane.xlu0 %5863
    %v5865 = vsel %vm453, %v5853, 0.0
    %5866 = vadd.xlane.f32.xlu0 %v5865
    %v5867 = vpop.xlane.xlu0 %5866
    %v5868 = vsel %vm453, %v5854, 0.0
    %5869 = vadd.xlane.f32.xlu0 %v5868
    %v5870 = vpop.xlane.xlu0 %5869
    %v5871 = vsel %vm453, %v5855, 0.0
    %5872 = vadd.xlane.f32.xlu0 %v5871
    %v5873 = vpop.xlane.xlu0 %5872
    %v5874 = vsel %vm453, %v5856, 0.0
    %5875 = vadd.xlane.f32.xlu0 %v5874
    %v5876 = vpop.xlane.xlu0 %5875
    %v5877 = vsel %vm453, %v5857, 0.0
    %5878 = vadd.xlane.f32.xlu0 %v5877
    %v5879 = vpop.xlane.xlu0 %5878
    %v5880 = vsel %vm453, %v5858, 0.0
    %5881 = vadd.xlane.f32.xlu0 %v5880
    %v5882 = vpop.xlane.xlu0 %5881
    %v5883 = vsel %vm453, %v5859, 0.0
    %5884 = vadd.xlane.f32.xlu0 %v5883
    %v5885 = vpop.xlane.xlu0 %5884
    %v5886 = vmul.f32 %v5864, %v502
    %v5887 = vmul.f32 %v5867, %v502
    %v5888 = vmul.f32 %v5870, %v502
    %v5889 = vmul.f32 %v5873, %v502
    %v5890 = vmul.f32 %v5876, %v502
    %v5891 = vmul.f32 %v5879, %v502
    %v5892 = vmul.f32 %v5882, %v502
    %v5893 = vmul.f32 %v5885, %v502
    %v5894 = vsub.f32 %v5852, %v5886
    %v5895 = vsub.f32 %v5853, %v5887
    %v5896 = vsub.f32 %v5854, %v5888
    %v5897 = vsub.f32 %v5855, %v5889
    %v5898 = vsub.f32 %v5856, %v5890
    %v5899 = vsub.f32 %v5857, %v5891
    %v5900 = vsub.f32 %v5858, %v5892
    %v5901 = vsub.f32 %v5859, %v5893
    %v5902 = vmul.f32 %v5894, %v5894
    %v5903 = vmul.f32 %v5895, %v5895
    %v5904 = vmul.f32 %v5896, %v5896
    %v5905 = vmul.f32 %v5897, %v5897
    %v5906 = vmul.f32 %v5898, %v5898
    %v5907 = vmul.f32 %v5899, %v5899
    %v5908 = vmul.f32 %v5900, %v5900
    %v5909 = vmul.f32 %v5901, %v5901
    %v5910 = vsel %vm453, %v5902, 0.0
    %5911 = vadd.xlane.f32.xlu0 %v5910
    %v5912 = vpop.xlane.xlu0 %5911
    %v5913 = vsel %vm453, %v5903, 0.0
    %5914 = vadd.xlane.f32.xlu0 %v5913
    %v5915 = vpop.xlane.xlu0 %5914
    %v5916 = vsel %vm453, %v5904, 0.0
    %5917 = vadd.xlane.f32.xlu0 %v5916
    %v5918 = vpop.xlane.xlu0 %5917
    %v5919 = vsel %vm453, %v5905, 0.0
    %5920 = vadd.xlane.f32.xlu0 %v5919
    %v5921 = vpop.xlane.xlu0 %5920
    %v5922 = vsel %vm453, %v5906, 0.0
    %5923 = vadd.xlane.f32.xlu0 %v5922
    %v5924 = vpop.xlane.xlu0 %5923
    %v5925 = vsel %vm453, %v5907, 0.0
    %5926 = vadd.xlane.f32.xlu0 %v5925
    %v5927 = vpop.xlane.xlu0 %5926
    %v5928 = vsel %vm453, %v5908, 0.0
    %5929 = vadd.xlane.f32.xlu0 %v5928
    %v5930 = vpop.xlane.xlu0 %5929
    %v5931 = vsel %vm453, %v5909, 0.0
    %5932 = vadd.xlane.f32.xlu0 %v5931
    %v5933 = vpop.xlane.xlu0 %5932
    %v5934 = vmul.f32 %v5912, %v502
    %v5935 = vmul.f32 %v5915, %v502
    %v5936 = vmul.f32 %v5918, %v502
    %v5937 = vmul.f32 %v5921, %v502
    %v5938 = vmul.f32 %v5924, %v502
    %v5939 = vmul.f32 %v5927, %v502
    %v5940 = vmul.f32 %v5930, %v502
    %v5941 = vmul.f32 %v5933, %v502
    %v5942 = vadd.f32 %v5934, 1e-05
    %v5943 = vadd.f32 %v5935, 1e-05
    %v5944 = vadd.f32 %v5936, 1e-05
    %v5945 = vadd.f32 %v5937, 1e-05
    %v5946 = vadd.f32 %v5938, 1e-05
    %v5947 = vadd.f32 %v5939, 1e-05
    %v5948 = vadd.f32 %v5940, 1e-05
    %v5949 = vadd.f32 %v5941, 1e-05
    %v5950 = vrsqrt.pop %v5942
    %v5951 = vrsqrt.pop %v5943
    %v5952 = vrsqrt.pop %v5944
    %v5953 = vrsqrt.pop %v5945
    %v5954 = vrsqrt.pop %v5946
    %v5955 = vrsqrt.pop %v5947
    %v5956 = vrsqrt.pop %v5948
    %v5957 = vrsqrt.pop %v5949
    %v5958 = vmul.f32 %v5894, %v5950
    %v5959 = vmul.f32 %v5895, %v5951
    %v5960 = vmul.f32 %v5896, %v5952
    %v5961 = vmul.f32 %v5897, %v5953
    %v5962 = vmul.f32 %v5898, %v5954
    %v5963 = vmul.f32 %v5899, %v5955
    %v5964 = vmul.f32 %v5900, %v5956
    %v5965 = vmul.f32 %v5901, %v5957
    %v5967 = vlaneseq
    %v5968 = vshrl.u32 %v5967, 7
    %v5969 = vsub.s32 0, %v5968
    %v5970 = vrot.slane %v5860, %v5969
    %v5972 = vmul.f32 %v5958, %v5970
    %v5973 = vmul.f32 %v5959, %v5970
    %v5974 = vmul.f32 %v5960, %v5970
    %v5975 = vmul.f32 %v5961, %v5970
    %v5976 = vmul.f32 %v5962, %v5970
    %v5977 = vmul.f32 %v5963, %v5970
    %v5978 = vmul.f32 %v5964, %v5970
    %v5979 = vmul.f32 %v5965, %v5970
    %v5981 = vlaneseq
    %v5982 = vshrl.u32 %v5981, 7
    %v5983 = vsub.s32 0, %v5982
    %v5984 = vrot.slane %v5861, %v5983
    %v5986 = vadd.f32 %v5972, %v5984
    %v5987 = vadd.f32 %v5973, %v5984
    %v5988 = vadd.f32 %v5974, %v5984
    %v5989 = vadd.f32 %v5975, %v5984
    %v5990 = vadd.f32 %v5976, %v5984
    %v5991 = vadd.f32 %v5977, %v5984
    %v5992 = vadd.f32 %v5978, %v5984
    %v5993 = vadd.f32 %v5979, %v5984
    %v5994 = vmax.f32 %v5986, 0.0
    %v5995 = vmax.f32 %v5987, 0.0
    %v5996 = vmax.f32 %v5988, 0.0
    %v5997 = vmax.f32 %v5989, 0.0
    %v5998 = vmax.f32 %v5990, 0.0
    %v5999 = vmax.f32 %v5991, 0.0
    %v6000 = vmax.f32 %v5992, 0.0
    %v6001 = vmax.f32 %v5993, 0.0
    %v6002 = vpack.c.bf16 %v5995, %v5994
    %v6003 = vpack.c.bf16 %v5997, %v5996
    %v6004 = vpack.c.bf16 %v5999, %v5998
    %v6005 = vpack.c.bf16 %v6001, %v6000
    %v6006 = vld [vmem:[%s20] sm:$0xf]
    %v6007 = vld [vmem:[%s20 + $0x4] sm:$0xf]
    %v6008 = vld [vmem:[%s20 + $0x8] sm:$0xf]
    %v6009 = vld [vmem:[%s20 + $0xc] sm:$0xf]
    %v6010 = vld [vmem:[#allocation17] sm:$0x1]
    %v6012 = vlaneseq
    %v6013 = vshrl.u32 %v6012, 7
    %v6014 = vsub.s32 0, %v6013
    %v6015 = vrot.slane %v6010, %v6014
    %v6021 = vunpack.c.l.b16 %v6006
    %v6022 = vunpack.c.l.b16 %v6007
    %v6023 = vunpack.c.l.b16 %v6008
    %v6024 = vunpack.c.l.b16 %v6009
    %v6025 = vpack.c.b16 %v6022, %v6021
    %v6026 = vpack.c.b16 %v6024, %v6023
    %v6030 = vsel %vm453, %v6002, 0
    %v6033 = vsel %vm453, %v6003, 0
    %v6036 = vsel %vm453, %v6004, 0
    %v6039 = vsel %vm453, %v6005, 0
    %6041 = vmatprep.subr.bf16.mxu0 0
    %6042 = vmatpush1.bf16.msra.mxu0 %v6025
    %6043 = vmatprep.subr.bf16.mxu0 0
    %6044 = vmatpush1.bf16.msra.mxu0 %v6026
    %6045 = vmatprep.subr.bf16.mxu0 0
    %6046 = vmatpush1.bf16.msra.mxu0 0
    %6047 = vmatprep.subr.bf16.mxu0 0
    %6048 = vmatpush1.bf16.msra.mxu0 0
    %6049 = vmatprep.subr.bf16.mxu0 0
    %6050 = vmatpush1.bf16.msra.mxu0 0
    %6051 = vmatprep.subr.bf16.mxu0 0
    %6052 = vmatpush1.bf16.msra.mxu0 0
    %6053 = vmatprep.subr.bf16.mxu0 0
    %6054 = vmatpush1.bf16.msra.mxu0 0
    %6055 = vmatprep.subr.bf16.mxu0 0
    %6056 = vmatpush1.bf16.msra.mxu0 0
    %6057 = vmatprep.subr.bf16.mxu0 0
    %6058 = vmatpush1.bf16.msra.mxu0 0
    %6059 = vmatprep.subr.bf16.mxu0 0
    %6060 = vmatpush1.bf16.msra.mxu0 0
    %6061 = vmatprep.subr.bf16.mxu0 0
    %6062 = vmatpush1.bf16.msra.mxu0 0
    %6063 = vmatprep.subr.bf16.mxu0 0
    %6064 = vmatpush1.bf16.msra.mxu0 0
    %6065 = vmatprep.subr.bf16.mxu0 0
    %6066 = vmatpush1.bf16.msra.mxu0 0
    %6067 = vmatprep.subr.bf16.mxu0 0
    %6068 = vmatpush1.bf16.msra.mxu0 0
    %6069 = vmatprep.subr.bf16.mxu0 0
    %6070 = vmatpush1.bf16.msra.mxu0 0
    %6071 = vmatprep.subr.bf16.mxu0 0
    %6072 = vmatpush1.bf16.msra.mxu0 0
    %6073 = vmatprep.mubr.bf16.mxu0 0
    %6074 = vmatmul.mubr.bf16.gmra.mrb[0].mxu0 %v6030
    %v6075 = vpop.f32.mrb[0].mxu0
    %v6076 = vadd.f32 %v6015, %v6075
    %v6077 = vpop.f32.mrb[0].mxu0
    %v6078 = vpop.f32.mrb[0].mxu0
    %v6079 = vadd.f32 %v6015, %v6078
    %v6080 = vpop.f32.mrb[0].mxu0
    %6081 = vmatprep.mubr.bf16.mxu0 0
    %6082 = vmatmul.mubr.bf16.gmra.mrb[0].mxu0 %v6033
    %v6083 = vpop.f32.mrb[0].mxu0
    %v6084 = vadd.f32 %v6015, %v6083
    %v6085 = vpop.f32.mrb[0].mxu0
    %v6086 = vpop.f32.mrb[0].mxu0
    %v6087 = vadd.f32 %v6015, %v6086
    %v6088 = vpop.f32.mrb[0].mxu0
    %6089 = vmatprep.mubr.bf16.mxu0 0
    %6090 = vmatmul.mubr.bf16.gmra.mrb[0].mxu0 %v6036
    %v6091 = vpop.f32.mrb[0].mxu0
    %v6092 = vadd.f32 %v6015, %v6091
    %v6093 = vpop.f32.mrb[0].mxu0
    %v6094 = vpop.f32.mrb[0].mxu0
    %v6095 = vadd.f32 %v6015, %v6094
    %v6096 = vpop.f32.mrb[0].mxu0
    %6097 = vmatprep.mubr.bf16.mxu0 0
    %6098 = vmatmul.mubr.bf16.gmra.mrb[0].mxu0 %v6039
    %v6099 = vpop.f32.mrb[0].mxu0
    %v6100 = vadd.f32 %v6015, %v6099
    %v6101 = vpop.f32.mrb[0].mxu0
    %v6102 = vpop.f32.mrb[0].mxu0
    %v6103 = vadd.f32 %v6015, %v6102
    %v6104 = vpop.f32.mrb[0].mxu0
    %6105 = vdwg.mxu0
    %v6106 = vld [vmem:[#allocation19] sm:$0x1]
    %v6107 = vld [vmem:[#allocation20] sm:$0x1]
    %v6108 = vsel %vm453, %v6076, 0.0
    %6109 = vadd.xlane.f32.xlu0 %v6108
    %v6110 = vpop.xlane.xlu0 %6109
    %v6111 = vsel %vm453, %v6079, 0.0
    %6112 = vadd.xlane.f32.xlu0 %v6111
    %v6113 = vpop.xlane.xlu0 %6112
    %v6114 = vsel %vm453, %v6084, 0.0
    %6115 = vadd.xlane.f32.xlu0 %v6114
    %v6116 = vpop.xlane.xlu0 %6115
    %v6117 = vsel %vm453, %v6087, 0.0
    %6118 = vadd.xlane.f32.xlu0 %v6117
    %v6119 = vpop.xlane.xlu0 %6118
    %v6120 = vsel %vm453, %v6092, 0.0
    %6121 = vadd.xlane.f32.xlu0 %v6120
    %v6122 = vpop.xlane.xlu0 %6121
    %v6123 = vsel %vm453, %v6095, 0.0
    %6124 = vadd.xlane.f32.xlu0 %v6123
    %v6125 = vpop.xlane.xlu0 %6124
    %v6126 = vsel %vm453, %v6100, 0.0
    %6127 = vadd.xlane.f32.xlu0 %v6126
    %v6128 = vpop.xlane.xlu0 %6127
    %v6129 = vsel %vm453, %v6103, 0.0
    %6130 = vadd.xlane.f32.xlu0 %v6129
    %v6131 = vpop.xlane.xlu0 %6130
    %v6132 = vmul.f32 %v6110, %v502
    %v6133 = vmul.f32 %v6113, %v502
    %v6134 = vmul.f32 %v6116, %v502
    %v6135 = vmul.f32 %v6119, %v502
    %v6136 = vmul.f32 %v6122, %v502
    %v6137 = vmul.f32 %v6125, %v502
    %v6138 = vmul.f32 %v6128, %v502
    %v6139 = vmul.f32 %v6131, %v502
    %v6140 = vsub.f32 %v6076, %v6132
    %v6141 = vsub.f32 %v6079, %v6133
    %v6142 = vsub.f32 %v6084, %v6134
    %v6143 = vsub.f32 %v6087, %v6135
    %v6144 = vsub.f32 %v6092, %v6136
    %v6145 = vsub.f32 %v6095, %v6137
    %v6146 = vsub.f32 %v6100, %v6138
    %v6147 = vsub.f32 %v6103, %v6139
    %v6148 = vmul.f32 %v6140, %v6140
    %v6149 = vmul.f32 %v6141, %v6141
    %v6150 = vmul.f32 %v6142, %v6142
    %v6151 = vmul.f32 %v6143, %v6143
    %v6152 = vmul.f32 %v6144, %v6144
    %v6153 = vmul.f32 %v6145, %v6145
    %v6154 = vmul.f32 %v6146, %v6146
    %v6155 = vmul.f32 %v6147, %v6147
    %v6156 = vsel %vm453, %v6148, 0.0
    %6157 = vadd.xlane.f32.xlu0 %v6156
    %v6158 = vpop.xlane.xlu0 %6157
    %v6159 = vsel %vm453, %v6149, 0.0
    %6160 = vadd.xlane.f32.xlu0 %v6159
    %v6161 = vpop.xlane.xlu0 %6160
    %v6162 = vsel %vm453, %v6150, 0.0
    %6163 = vadd.xlane.f32.xlu0 %v6162
    %v6164 = vpop.xlane.xlu0 %6163
    %v6165 = vsel %vm453, %v6151, 0.0
    %6166 = vadd.xlane.f32.xlu0 %v6165
    %v6167 = vpop.xlane.xlu0 %6166
    %v6168 = vsel %vm453, %v6152, 0.0
    %6169 = vadd.xlane.f32.xlu0 %v6168
    %v6170 = vpop.xlane.xlu0 %6169
    %v6171 = vsel %vm453, %v6153, 0.0
    %6172 = vadd.xlane.f32.xlu0 %v6171
    %v6173 = vpop.xlane.xlu0 %6172
    %v6174 = vsel %vm453, %v6154, 0.0
    %6175 = vadd.xlane.f32.xlu0 %v6174
    %v6176 = vpop.xlane.xlu0 %6175
    %v6177 = vsel %vm453, %v6155, 0.0
    %6178 = vadd.xlane.f32.xlu0 %v6177
    %v6179 = vpop.xlane.xlu0 %6178
    %v6180 = vmul.f32 %v6158, %v502
    %v6181 = vmul.f32 %v6161, %v502
    %v6182 = vmul.f32 %v6164, %v502
    %v6183 = vmul.f32 %v6167, %v502
    %v6184 = vmul.f32 %v6170, %v502
    %v6185 = vmul.f32 %v6173, %v502
    %v6186 = vmul.f32 %v6176, %v502
    %v6187 = vmul.f32 %v6179, %v502
    %v6188 = vadd.f32 %v6180, 1e-05
    %v6189 = vadd.f32 %v6181, 1e-05
    %v6190 = vadd.f32 %v6182, 1e-05
    %v6191 = vadd.f32 %v6183, 1e-05
    %v6192 = vadd.f32 %v6184, 1e-05
    %v6193 = vadd.f32 %v6185, 1e-05
    %v6194 = vadd.f32 %v6186, 1e-05
    %v6195 = vadd.f32 %v6187, 1e-05
    %v6196 = vrsqrt.pop %v6188
    %v6197 = vrsqrt.pop %v6189
    %v6198 = vrsqrt.pop %v6190
    %v6199 = vrsqrt.pop %v6191
    %v6200 = vrsqrt.pop %v6192
    %v6201 = vrsqrt.pop %v6193
    %v6202 = vrsqrt.pop %v6194
    %v6203 = vrsqrt.pop %v6195
    %v6204 = vmul.f32 %v6140, %v6196
    %v6205 = vmul.f32 %v6141, %v6197
    %v6206 = vmul.f32 %v6142, %v6198
    %v6207 = vmul.f32 %v6143, %v6199
    %v6208 = vmul.f32 %v6144, %v6200
    %v6209 = vmul.f32 %v6145, %v6201
    %v6210 = vmul.f32 %v6146, %v6202
    %v6211 = vmul.f32 %v6147, %v6203
    %v6213 = vlaneseq
    %v6214 = vshrl.u32 %v6213, 7
    %v6215 = vsub.s32 0, %v6214
    %v6216 = vrot.slane %v6106, %v6215
    %v6218 = vmul.f32 %v6204, %v6216
    %v6219 = vmul.f32 %v6205, %v6216
    %v6220 = vmul.f32 %v6206, %v6216
    %v6221 = vmul.f32 %v6207, %v6216
    %v6222 = vmul.f32 %v6208, %v6216
    %v6223 = vmul.f32 %v6209, %v6216
    %v6224 = vmul.f32 %v6210, %v6216
    %v6225 = vmul.f32 %v6211, %v6216
    %v6227 = vlaneseq
    %v6228 = vshrl.u32 %v6227, 7
    %v6229 = vsub.s32 0, %v6228
    %v6230 = vrot.slane %v6107, %v6229
    %v6232 = vadd.f32 %v6218, %v6230
    %v6233 = vadd.f32 %v6219, %v6230
    %v6234 = vadd.f32 %v6220, %v6230
    %v6235 = vadd.f32 %v6221, %v6230
    %v6236 = vadd.f32 %v6222, %v6230
    %v6237 = vadd.f32 %v6223, %v6230
    %v6238 = vadd.f32 %v6224, %v6230
    %v6239 = vadd.f32 %v6225, %v6230
    %v6240 = vmax.f32 %v6232, 0.0
    %v6241 = vmax.f32 %v6233, 0.0
    %v6242 = vmax.f32 %v6234, 0.0
    %v6243 = vmax.f32 %v6235, 0.0
    %v6244 = vmax.f32 %v6236, 0.0
    %v6245 = vmax.f32 %v6237, 0.0
    %v6246 = vmax.f32 %v6238, 0.0
    %v6247 = vmax.f32 %v6239, 0.0
    %v6248 = vld [vmem:[%s24] sm:$0xff]
    %v6249 = vld [vmem:[%s24 + $0x8] sm:$0xff]
    %v6250 = vld [vmem:[%s24 + $0x10] sm:$0xff]
    %v6251 = vld [vmem:[%s24 + $0x18] sm:$0xff]
    %v6252 = vld [vmem:[#allocation22] sm:$0x1]
    %v6254 = vlaneseq
    %v6255 = vshrl.u32 %v6254, 7
    %v6256 = vsub.s32 0, %v6255
    %v6257 = vrot.slane %v6252, %v6256
    %v6260 = vsel %vm453, %v6240, 0
    %v6263 = vsel %vm453, %v6241, 0
    %v6266 = vsel %vm453, %v6242, 0
    %v6269 = vsel %vm453, %v6243, 0
    %v6272 = vsel %vm453, %v6244, 0
    %v6275 = vsel %vm453, %v6245, 0
    %v6278 = vsel %vm453, %v6246, 0
    %v6281 = vsel %vm453, %v6247, 0
    %6283 = vmatprep.subr.mxu0 0.0
    %6284 = vmatpush1.msra.mxu0 %v6248
    %6285 = vmatprep.subr.mxu0 0.0
    %6286 = vmatpush1.msra.mxu0 %v6249
    %6287 = vmatprep.subr.mxu0 0.0
    %6288 = vmatpush1.msra.mxu0 %v6250
    %6289 = vmatprep.subr.mxu0 0.0
    %6290 = vmatpush1.msra.mxu0 %v6251
    %6291 = vmatprep.subr.mxu0 0.0
    %6292 = vmatpush1.msra.mxu0 0.0
    %6293 = vmatprep.subr.mxu0 0.0
    %6294 = vmatpush1.msra.mxu0 0.0
    %6295 = vmatprep.subr.mxu0 0.0
    %6296 = vmatpush1.msra.mxu0 0.0
    %6297 = vmatprep.subr.mxu0 0.0
    %6298 = vmatpush1.msra.mxu0 0.0
    %6299 = vmatprep.subr.mxu0 0.0
    %6300 = vmatpush1.msra.mxu0 0.0
    %6301 = vmatprep.subr.mxu0 0.0
    %6302 = vmatpush1.msra.mxu0 0.0
    %6303 = vmatprep.subr.mxu0 0.0
    %6304 = vmatpush1.msra.mxu0 0.0
    %6305 = vmatprep.subr.mxu0 0.0
    %6306 = vmatpush1.msra.mxu0 0.0
    %6307 = vmatprep.subr.mxu0 0.0
    %6308 = vmatpush1.msra.mxu0 0.0
    %6309 = vmatprep.subr.mxu0 0.0
    %6310 = vmatpush1.msra.mxu0 0.0
    %6311 = vmatprep.subr.mxu0 0.0
    %6312 = vmatpush1.msra.mxu0 0.0
    %6313 = vmatprep.subr.mxu0 0.0
    %6314 = vmatpush1.msra.mxu0 0.0
    %6315 = vmatprep.subr.mxu0 0.0
    %6316 = vmatpush1.msra.mxu0 0.0
    %6317 = vmatprep.subr.mxu0 0.0
    %6318 = vmatpush1.msra.mxu0 0.0
    %6319 = vmatprep.subr.mxu0 0.0
    %6320 = vmatpush1.msra.mxu0 0.0
    %6321 = vmatprep.subr.mxu0 0.0
    %6322 = vmatpush1.msra.mxu0 0.0
    %6323 = vmatprep.subr.mxu0 0.0
    %6324 = vmatpush1.msra.mxu0 0.0
    %6325 = vmatprep.subr.mxu0 0.0
    %6326 = vmatpush1.msra.mxu0 0.0
    %6327 = vmatprep.subr.mxu0 0.0
    %6328 = vmatpush1.msra.mxu0 0.0
    %6329 = vmatprep.subr.mxu0 0.0
    %6330 = vmatpush1.msra.mxu0 0.0
    %6331 = vmatprep.subr.mxu0 0.0
    %6332 = vmatpush1.msra.mxu0 0.0
    %6333 = vmatprep.subr.mxu0 0.0
    %6334 = vmatpush1.msra.mxu0 0.0
    %6335 = vmatprep.subr.mxu0 0.0
    %6336 = vmatpush1.msra.mxu0 0.0
    %6337 = vmatprep.subr.mxu0 0.0
    %6338 = vmatpush1.msra.mxu0 0.0
    %6339 = vmatprep.subr.mxu0 0.0
    %6340 = vmatpush1.msra.mxu0 0.0
    %6341 = vmatprep.subr.mxu0 0.0
    %6342 = vmatpush1.msra.mxu0 0.0
    %6343 = vmatprep.subr.mxu0 0.0
    %6344 = vmatpush1.msra.mxu0 0.0
    %6345 = vmatprep.subr.mxu0 0.0
    %6346 = vmatpush1.msra.mxu0 0.0
    %6347 = vmatprep.mubr.f32.mxu0 0.0
    %6348 = vmatmul.mubr.f32.gmra.mrb[0].mxu0 %v6260
    %v6349 = vpop.f32.mrb[0].mxu0
    %v6350 = vadd.f32 %v6257, %v6349
    %v6351 = vpop.f32.mrb[0].mxu0
    %6352 = vmatprep.mubr.f32.mxu0 0.0
    %6353 = vmatmul.mubr.f32.gmra.mrb[0].mxu0 %v6263
    %v6354 = vpop.f32.mrb[0].mxu0
    %v6355 = vadd.f32 %v6257, %v6354
    %v6356 = vpop.f32.mrb[0].mxu0
    %6357 = vmatprep.mubr.f32.mxu0 0.0
    %6358 = vmatmul.mubr.f32.gmra.mrb[0].mxu0 %v6266
    %v6359 = vpop.f32.mrb[0].mxu0
    %v6360 = vadd.f32 %v6257, %v6359
    %v6361 = vpop.f32.mrb[0].mxu0
    %6362 = vmatprep.mubr.f32.mxu0 0.0
    %6363 = vmatmul.mubr.f32.gmra.mrb[0].mxu0 %v6269
    %v6364 = vpop.f32.mrb[0].mxu0
    %v6365 = vadd.f32 %v6257, %v6364
    %v6366 = vpop.f32.mrb[0].mxu0
    %6367 = vmatprep.mubr.f32.mxu0 0.0
    %6368 = vmatmul.mubr.f32.gmra.mrb[0].mxu0 %v6272
    %v6369 = vpop.f32.mrb[0].mxu0
    %v6370 = vadd.f32 %v6257, %v6369
    %v6371 = vpop.f32.mrb[0].mxu0
    %6372 = vmatprep.mubr.f32.mxu0 0.0
    %6373 = vmatmul.mubr.f32.gmra.mrb[0].mxu0 %v6275
    %v6374 = vpop.f32.mrb[0].mxu0
    %v6375 = vadd.f32 %v6257, %v6374
    %v6376 = vpop.f32.mrb[0].mxu0
    %6377 = vmatprep.mubr.f32.mxu0 0.0
    %6378 = vmatmul.mubr.f32.gmra.mrb[0].mxu0 %v6278
    %v6379 = vpop.f32.mrb[0].mxu0
    %v6380 = vadd.f32 %v6257, %v6379
    %v6381 = vpop.f32.mrb[0].mxu0
    %6382 = vmatprep.mubr.f32.mxu0 0.0
    %6383 = vmatmul.mubr.f32.gmra.mrb[0].mxu0 %v6281
    %v6384 = vpop.f32.mrb[0].mxu0
    %v6385 = vadd.f32 %v6257, %v6384
    %v6386 = vpop.f32.mrb[0].mxu0
    %6387 = vdwg.mxu0
    %vm6388 = vcmask 15360
    %6389 = vst.msk [vmem:[%s26] sm:$0xff] %vm6388, %v6350
    %6390 = vst.msk [vmem:[%s26 + $0x8] sm:$0xff] %vm6388, %v6355
    %6391 = vst.msk [vmem:[%s26 + $0x10] sm:$0xff] %vm6388, %v6360
    %6392 = vst.msk [vmem:[%s26 + $0x18] sm:$0xff] %vm6388, %v6365
    %6393 = vst.msk [vmem:[%s26 + $0x20] sm:$0xff] %vm6388, %v6370
    %6394 = vst.msk [vmem:[%s26 + $0x28] sm:$0xff] %vm6388, %v6375
    %6395 = vst.msk [vmem:[%s26 + $0x30] sm:$0xff] %vm6388, %v6380
    %6396 = vst.msk [vmem:[%s26 + $0x38] sm:$0xff] %vm6388, %v6385
    // Predicated region
    $region150: #{trajectory_refinement_forward.1} parent=1 // pred_check
      _
    $region151: #{trajectory_refinement_forward.1} parent=1 // pred_check_branch
      %6398 = sbr.rel (0) target = $region153
    $region152: #{trajectory_refinement_forward.1} parent=1 // pred_region
      _
    $region153: #{trajectory_refinement_forward.1} parent=1 // pred_fallthru
      _
    // Predicated region
    $region154: #{trajectory_refinement_forward.1} parent=1 // pred_check
      _
    $region155: #{trajectory_refinement_forward.1} parent=1 // pred_check_branch
      %6400 = sbr.rel (0) target = $region157
    $region156: #{trajectory_refinement_forward.1} parent=1 // pred_region
      _
    $region157: #{trajectory_refinement_forward.1} parent=1 // pred_fallthru
      _
    %6401 = vsyncpa [#allocation7], 1
    %6402 = vsyncpa [#allocation9], 1
    %6403 = vsyncpa [#allocation12], 1
    %6404 = vsyncpa [#allocation15], 1
    %6405 = vsyncpa [#allocation18], 1
    %6406 = vsyncpa [#allocation21], 1

</llo_original>
